<compile_context>
chip_gen: v7x
topology: tpu7x:2x2x1
jax: 0.10.0
libtpu: 0.0.40
codegen_flags: <defaults>
</compile_context>

<pallas_src>
import functools
import math

import jax
import jax.numpy as jnp
from jax.experimental import pallas as pl
from jax.experimental.pallas import tpu as pltpu

# ---- "cfg" constants (small, deterministic, synthetic) ----
NUM_CLASSES = 8          # cfg.MODEL.RETINANET.NUM_CLASSES
NUM_CONVS = 2            # cfg.MODEL.RETINANET.NUM_CONVS  (must be >= 2 here)
NUM_ANCHORS = 3          # anchor_generator.num_cell_anchors[0]
BOX_DIM = 5              # rotated boxes -> box_dim = 5
IN_CHANNELS = 32         # FPN channels
PRIOR_PROB = 0.01        # cfg.MODEL.RETINANET.PRIOR_PROB
FOCAL_GAMMA = 2.0        # cfg.MODEL.RETINANET.FOCAL_LOSS_GAMMA (hard-coded as square below)

N_CLS_CH = NUM_ANCHORS * NUM_CLASSES        # 24
N_BOX_CH = NUM_ANCHORS * BOX_DIM            # 15
OUT_PAD = max(128, pl.cdiv(N_CLS_CH + N_BOX_CH, 128) * 128)   # lane-dense packed width

LANE = 128
CHUNK_ROWS = 256         # max loss-kernel row tile (multiple of 8)
NSPLIT = 2               # loss reduction "parallel" split (v7x megacore)

VMEM_LIMIT = 32 * 1024 * 1024


# ----------------------------------------------------------------------------
# Pallas kernel 1: fused per-level RetinaNet head.
#   grid=(N,)  ("parallel" -> v7x's two TensorCores split the batch)
#   feat (1,H,W,32) bf16 -> stage-0 conv with [W_cls|W_bbox] stacked on the output axis
#   -> (NUM_CONVS-1) lockstep block-diagonal conv+ReLU stages -> fused final
#   cls_score|bbox_pred conv -> packed lane-dense (1, H*W, 128) f32 output.
#   Each 3x3 conv = 9 shifted MXU matmuls accumulated in f32 (no im2col concat);
#   halo padding lives in f32 VMEM scratch whose borders only are zeroed per step.
# ----------------------------------------------------------------------------
def _head_kernel(feat_ref, w0_ref, b0_ref, wstack_ref, bstack_ref,
                 wfin_ref, bfin_ref, out_ref, pad0_ref, pad_ref,
                 *, H, W, C, C2, num_convs):
    # feat_ref  : (1, H, W, C)              bf16
    # w0_ref    : (9, C, C2)                bf16   stage-0 taps, [cls|bbox] on output axis
    # b0_ref    : (1, C2)                   f32
    # wstack_ref: (num_convs-1, 9, C2, C2)  bf16   block-diagonal lockstep taps
    # bstack_ref: (num_convs-1, 1, C2)      f32
    # wfin_ref  : (9, C2, OUT_PAD)          bf16   fused cls_score | bbox_pred (zero-padded)
    # bfin_ref  : (1, OUT_PAD)              f32
    # out_ref   : (1, H*W, OUT_PAD)         f32
    # pad0_ref  : VMEM (H+2, W+2, C)  f32   halo-padded input
    # pad_ref   : VMEM (H+2, W+2, C2) f32   halo-padded lockstep activation

    # Zero ONLY the 1-px halo borders, every grid step (megacore-safe: the batch axis is
    # "parallel", so each core's private scratch must be initialized by its own steps).
    zr0 = jnp.zeros((1, W + 2, C), jnp.float32)
    zc0 = jnp.zeros((H + 2, 1, C), jnp.float32)
    pad0_ref[0:1, :, :] = zr0
    pad0_ref[H + 1:H + 2, :, :] = zr0
    pad0_ref[:, 0:1, :] = zc0
    pad0_ref[:, W + 1:W + 2, :] = zc0

    zr = jnp.zeros((1, W + 2, C2), jnp.float32)
    zc = jnp.zeros((H + 2, 1, C2), jnp.float32)
    pad_ref[0:1, :, :] = zr
    pad_ref[H + 1:H + 2, :, :] = zr
    pad_ref[:, 0:1, :] = zc
    pad_ref[:, W + 1:W + 2, :] = zc

    def conv3x3(padded_ref, w_taps, cout):
        # 3x3 "same" conv as nine shifted (H*W, Cin) x (Cin, cout) matmuls accumulated in f32.
        xp = padded_ref[...].astype(jnp.bfloat16)          # (H+2, W+2, Cin)
        cin = xp.shape[-1]
        acc = jnp.zeros((H * W, cout), jnp.float32)
        for kh in range(3):
            for kw in range(3):
                xs = xp[kh:kh + H, kw:kw + W, :].reshape(H * W, cin)
                acc = acc + jnp.dot(xs, w_taps[kh * 3 + kw],
                                    preferred_element_type=jnp.float32)
        return acc

    # Stage 0: Cin = C (no [f, f] duplication); output channels [0:C]=cls path, [C:2C]=bbox path.
    pad0_ref[1:H + 1, 1:W + 1, :] = feat_ref[0].astype(jnp.float32)
    act = conv3x3(pad0_ref, w0_ref[...], C2)
    act = jnp.maximum(act + b0_ref[...], 0.0)              # bias + ReLU in f32

    # Stages 1..num_convs-1: lockstep block-diagonal towers.
    for s in range(num_convs - 1):
        pad_ref[1:H + 1, 1:W + 1, :] = act.reshape(H, W, C2)
        act = conv3x3(pad_ref, wstack_ref[s], C2)
        act = jnp.maximum(act + bstack_ref[s], 0.0)

    # Final fused cls_score | bbox_pred conv -> lane-dense packed slab.
    pad_ref[1:H + 1, 1:W + 1, :] = act.reshape(H, W, C2)
    out = conv3x3(pad_ref, wfin_ref[...], OUT_PAD)
    out_ref[0] = out + bfin_ref[...]


def fused_head_level(feat_bf16, w0, b0, wstack, bstack, wfin, bfin):
    N, H, W, C = feat_bf16.shape
    C2 = 2 * C
    NS = NUM_CONVS - 1
    kernel = functools.partial(_head_kernel, H=H, W=W, C=C, C2=C2,
                               num_convs=NUM_CONVS)
    return pl.pallas_call(
        kernel,
        out_shape=jax.ShapeDtypeStruct((N, H * W, OUT_PAD), jnp.float32),
        grid=(N,),
        in_specs=[
            pl.BlockSpec((1, H, W, C), lambda n: (n, 0, 0, 0)),
            pl.BlockSpec((9, C, C2), lambda n: (0, 0, 0)),
            pl.BlockSpec((1, C2), lambda n: (0, 0)),
            pl.BlockSpec((NS, 9, C2, C2), lambda n: (0, 0, 0, 0)),
            pl.BlockSpec((NS, 1, C2), lambda n: (0, 0, 0)),
            pl.BlockSpec((9, C2, OUT_PAD), lambda n: (0, 0, 0)),
            pl.BlockSpec((1, OUT_PAD), lambda n: (0, 0)),
        ],
        out_specs=pl.BlockSpec((1, H * W, OUT_PAD), lambda n: (n, 0, 0)),
        scratch_shapes=[pltpu.VMEM((H + 2, W + 2, C), jnp.float32),
                        pltpu.VMEM((H + 2, W + 2, C2), jnp.float32)],
        compiler_params=pltpu.CompilerParams(
            dimension_semantics=("parallel",),
            vmem_limit_bytes=VMEM_LIMIT),
    )(feat_bf16, w0, b0, wstack, bstack, wfin, bfin)


# ----------------------------------------------------------------------------
# Pallas kernel 2: fused training losses, lane-dense tiled reduction.
#   grid = (NSPLIT, nchunks): outer "parallel" split (v7x megacore), inner "arbitrary" reduction.
#   Per chunk: elementwise focal / balanced-L1 terms accumulated into (chunk,128) f32 VMEM
#   accumulators (no per-chunk XLU reduction, no SMEM scalar RMW); reduced to an (8,128)
#   partial at the last inner step; wrapper sums the tiny partials.
# ----------------------------------------------------------------------------
def _loss_kernel(x_ref, t_ref, w_ref, pd_ref, gd_ref, fm_ref,
                 cls_out_ref, box_out_ref, acc_cls, acc_box,
                 *, bl1_beta, bl1_alpha, bl1_gamma):
    i = pl.program_id(1)

    @pl.when(i == 0)
    def _():
        acc_cls[...] = jnp.zeros_like(acc_cls)
        acc_box[...] = jnp.zeros_like(acc_box)

    # ---- sigmoid focal loss (gamma == 2.0); alpha_t * valid is prefolded into w ----
    x = x_ref[...]                          # (chunk, 128) flattened logits, f32
    t = t_ref[...].astype(jnp.float32)      # one-hot targets (exact 0/1 in bf16)
    w = w_ref[...]                          # alpha_t * valid-mask (0 on padding), f32
    # EUP-lean: e = exp(-|x|); sigmoid via one approx reciprocal; reuse e in log(1+e).
    e = jnp.exp(-jnp.abs(x))
    r = pl.reciprocal(1.0 + e, approx=True)
    p = jnp.where(x >= 0.0, r, e * r)
    ce = jnp.maximum(x, 0.0) - x * t + jnp.log(1.0 + e)
    p_t = p * t + (1.0 - p) * (1.0 - t)
    one_m = 1.0 - p_t
    acc_cls[...] += ce * one_m * one_m * w

    # ---- balanced L1 loss ----
    pd = pd_ref[...]
    gd = gd_ref[...]
    fm = fm_ref[...].astype(jnp.float32)    # foreground mask (0 on padding)
    diff = jnp.abs(pd - gd)
    b = math.e ** (bl1_gamma / bl1_alpha) - 1.0
    l = jnp.where(
        diff < bl1_beta,
        bl1_alpha / b * (b * diff + 1.0) * jnp.log(b * diff / bl1_beta + 1.0)
        - bl1_alpha * diff,
        bl1_gamma * diff + bl1_gamma / b - bl1_alpha * bl1_beta)
    acc_box[...] += l * fm

    @pl.when(i == pl.num_programs(1) - 1)
    def _():
        cls_out_ref[0] = acc_cls[...].reshape(-1, 8, LANE).sum(axis=0)
        box_out_ref[0] = acc_box[...].reshape(-1, 8, LANE).sum(axis=0)


def _to_lane_rows(flat, rows, dtype):
    pad = rows * LANE - flat.shape[0]
    return jnp.pad(flat, (0, pad)).reshape(rows, LANE).astype(dtype)


def retinanet_losses(pred_logits, pred_deltas, gt_classes, gt_deltas):
    R, K = pred_logits.shape
    D = pred_deltas.shape[1]

    valid = gt_classes >= 0
    fg = valid & (gt_classes != NUM_CLASSES)
    num_fg = jnp.sum(fg).astype(jnp.float32)
    num_valid = jnp.sum(valid).astype(jnp.float32)
    # RelationRetinaNet: focal_loss_alpha = 1 - num_foreground / num_valid (dynamic).
    focal_alpha = 1.0 - num_fg / jnp.maximum(num_valid, 1.0)

    tgt = jax.nn.one_hot(jnp.clip(gt_classes, 0, K - 1), K, dtype=jnp.float32)
    tgt = tgt * fg.astype(jnp.float32)[:, None]
    alpha_t = focal_alpha * tgt + (1.0 - focal_alpha) * (1.0 - tgt)
    wcls = alpha_t * valid.astype(jnp.float32)[:, None]                     # (R, K)
    wbox = jnp.broadcast_to(fg.astype(jnp.float32)[:, None], (R, D))        # (R, D)

    rows_cls = pl.cdiv(R * K, LANE)
    rows_box = pl.cdiv(R * D, LANE)
    rows_needed = max(rows_cls, rows_box)
    chunk = min(CHUNK_ROWS, pl.cdiv(pl.cdiv(rows_needed, NSPLIT), 8) * 8)
    nchunks = pl.cdiv(rows_needed, NSPLIT * chunk)
    rows = NSPLIT * nchunks * chunk

    x_r = _to_lane_rows(pred_logits.reshape(-1), rows, jnp.float32)
    t_r = _to_lane_rows(tgt.reshape(-1), rows, jnp.bfloat16)      # exact 0/1
    w_r = _to_lane_rows(wcls.reshape(-1), rows, jnp.float32)
    pd_r = _to_lane_rows(pred_deltas.reshape(-1), rows, jnp.float32)
    gd_r = _to_lane_rows(gt_deltas.reshape(-1), rows, jnp.float32)
    fm_r = _to_lane_rows(wbox.reshape(-1), rows, jnp.bfloat16)    # exact 0/1

    kernel = functools.partial(_loss_kernel, bl1_beta=1.0, bl1_alpha=0.3,
                               bl1_gamma=1.5)

    def in_spec(_):
        return pl.BlockSpec((chunk, LANE), lambda c, i: (c * nchunks + i, 0))

    cls_part, box_part = pl.pallas_call(
        kernel,
        out_shape=(jax.ShapeDtypeStruct((NSPLIT, 8, LANE), jnp.float32),
                   jax.ShapeDtypeStruct((NSPLIT, 8, LANE), jnp.float32)),
        grid=(NSPLIT, nchunks),
        in_specs=[in_spec(j) for j in range(6)],
        out_specs=(pl.BlockSpec((1, 8, LANE), lambda c, i: (c, 0, 0)),
                   pl.BlockSpec((1, 8, LANE), lambda c, i: (c, 0, 0))),
        scratch_shapes=[pltpu.VMEM((chunk, LANE), jnp.float32),
                        pltpu.VMEM((chunk, LANE), jnp.float32)],
        compiler_params=pltpu.CompilerParams(
            dimension_semantics=("parallel", "arbitrary"),
            vmem_limit_bytes=VMEM_LIMIT),
    )(x_r, t_r, w_r, pd_r, gd_r, fm_r)

    denom = jnp.maximum(1.0, num_fg)
    return {"loss_cls": jnp.sum(cls_part) / denom,
            "loss_box_reg": jnp.sum(box_part) / denom}


# ----------------------------------------------------------------------------
# RetinaNetHead parameters (same init as the PyTorch module) + weight packing
# ----------------------------------------------------------------------------
def init_head_params(key):
    def conv_init(k, cin, cout, bias_val=0.0):
        w = jax.random.normal(k, (3, 3, cin, cout), jnp.float32) * 0.01
        b = jnp.full((cout,), bias_val, jnp.float32)
        return (w, b)

    keys = jax.random.split(key, 2 * NUM_CONVS + 2)
    cls_subnet, bbox_subnet = [], []
    for i in range(NUM_CONVS):
        cls_subnet.append(conv_init(keys[2 * i], IN_CHANNELS, IN_CHANNELS))
        bbox_subnet.append(conv_init(keys[2 * i + 1], IN_CHANNELS, IN_CHANNELS))
    bias_value = -math.log((1.0 - PRIOR_PROB) / PRIOR_PROB)
    cls_score = conv_init(keys[-2], IN_CHANNELS, N_CLS_CH, bias_value)
    bbox_pred = conv_init(keys[-1], IN_CHANNELS, N_BOX_CH)
    return {"cls_subnet": cls_subnet, "bbox_subnet": bbox_subnet,
            "cls_score": cls_score, "bbox_pred": bbox_pred}


def _prep_fused_weights(params):
    """Pack the two towers into lockstep weights (channels [0:C]=cls, [C:2C]=bbox).

    Stage 0: [W_cls | W_bbox] stacked on the output axis (Cin = C, no input duplication).
    Stages >= 1: block-diagonal. Final: fused cls_score | bbox_pred, zero-padded to OUT_PAD lanes.
    Per-tap layout (9, Cin, Cout) with tap index kh*3+kw.
    """
    assert NUM_CONVS >= 2
    C = IN_CHANNELS
    C2 = 2 * C

    wc0, bc0 = params["cls_subnet"][0]
    wb0, bb0 = params["bbox_subnet"][0]
    w0 = jnp.concatenate([wc0, wb0], axis=-1)                    # (3,3,C,C2)
    w0 = w0.reshape(9, C, C2).astype(jnp.bfloat16)
    b0 = jnp.concatenate([bc0, bb0]).reshape(1, C2)

    wstack, bstack = [], []
    for s in range(1, NUM_CONVS):
        wc, bc = params["cls_subnet"][s]
        wb, bb = params["bbox_subnet"][s]
        w = jnp.zeros((3, 3, C2, C2), jnp.float32)
        w = w.at[:, :, :C, :C].set(wc)
        w = w.at[:, :, C:, C:].set(wb)
        wstack.append(w.reshape(9, C2, C2))
        bstack.append(jnp.concatenate([bc, bb]).reshape(1, C2))
    wstack = jnp.stack(wstack).astype(jnp.bfloat16)              # (NUM_CONVS-1, 9, C2, C2)
    bstack = jnp.stack(bstack)                                   # (NUM_CONVS-1, 1, C2) f32

    wcs, bcs = params["cls_score"]                               # (3,3,C,24), (24,)
    wbp, bbp = params["bbox_pred"]                               # (3,3,C,15), (15,)
    wfin = jnp.zeros((3, 3, C2, OUT_PAD), jnp.float32)
    wfin = wfin.at[:, :, :C, :N_CLS_CH].set(wcs)
    wfin = wfin.at[:, :, C:, N_CLS_CH:N_CLS_CH + N_BOX_CH].set(wbp)
    wfin = wfin.reshape(9, C2, OUT_PAD).astype(jnp.bfloat16)
    bfin = jnp.zeros((1, OUT_PAD), jnp.float32)
    bfin = bfin.at[0, :N_CLS_CH].set(bcs)
    bfin = bfin.at[0, N_CLS_CH:N_CLS_CH + N_BOX_CH].set(bbp)
    return w0, b0, wstack, bstack, wfin, bfin


def retinanet_head_forward(params, features_nhwc):
    w0, b0, wstack, bstack, wfin, bfin = _prep_fused_weights(params)
    logits, bbox_reg = [], []
    for feat in features_nhwc:
        N, H, W, _ = feat.shape
        slab = fused_head_level(feat.astype(jnp.bfloat16),
                                w0, b0, wstack, bstack, wfin, bfin)  # (N, H*W, 128)
        logits.append(slab[:, :, :N_CLS_CH].reshape(N, H, W, N_CLS_CH))
        bbox_reg.append(
            slab[:, :, N_CLS_CH:N_CLS_CH + N_BOX_CH].reshape(N, H, W, N_BOX_CH))
    return logits, bbox_reg


# permute_to_N_HWA_K / permute_all_cls_and_box_to_N_HWA_K_and_concat (glue)
def permute_to_N_HWA_K_from_nhwc(t_nhwc, K):
    N, H, W, AK = t_nhwc.shape
    return t_nhwc.reshape(N, H * W * (AK // K), K)


def permute_all_and_concat(box_cls, box_delta, box_dim, num_classes):
    cls_flat = [permute_to_N_HWA_K_from_nhwc(x, num_classes) for x in box_cls]
    dlt_flat = [permute_to_N_HWA_K_from_nhwc(x, box_dim) for x in box_delta]
    box_cls = jnp.concatenate(cls_flat, axis=1).reshape(-1, num_classes)
    box_delta = jnp.concatenate(dlt_flat, axis=1).reshape(-1, box_dim)
    return box_cls, box_delta


if __name__ == "__main__":
    key = jax.random.PRNGKey(0)
    k_feat, k_params, k_gt_cls, k_gt_delta = jax.random.split(key, 4)

    # Synthetic FPN features (backbone itself is untranslatable); PyTorch NCHW.
    feat_shapes = [(2, IN_CHANNELS, 16, 16), (2, IN_CHANNELS, 8, 8)]
    kf = jax.random.split(k_feat, len(feat_shapes))
    features_nchw = [jax.random.normal(kk, s, jnp.float32)
                     for kk, s in zip(kf, feat_shapes)]
    features_nhwc = [jnp.transpose(f, (0, 2, 3, 1)) for f in features_nchw]

    params = init_head_params(k_params)
    logits_nhwc, bbox_nhwc = retinanet_head_forward(params, features_nhwc)

    # Head outputs in the PyTorch layout: (N, A*K, Hi, Wi) / (N, A*box_dim, Hi, Wi)
    logits_nchw = [jnp.transpose(x, (0, 3, 1, 2)) for x in logits_nhwc]
    bbox_nchw = [jnp.transpose(x, (0, 3, 1, 2)) for x in bbox_nhwc]

    # Training branch: losses(). Ground truth is synthesized because the rotated
    # IoU matcher / anchor generation have no Pallas equivalent.
    pred_logits, pred_deltas = permute_all_and_concat(
        logits_nhwc, bbox_nhwc, BOX_DIM, NUM_CLASSES)
    R = pred_logits.shape[0]
    gt_classes = jax.random.randint(k_gt_cls, (R,), -1, NUM_CLASSES + 1)
    gt_deltas = jax.random.normal(k_gt_delta, (R, BOX_DIM), jnp.float32)
    losses = retinanet_losses(pred_logits, pred_deltas, gt_classes, gt_deltas)

    jax.block_until_ready((logits_nchw, bbox_nchw, losses))
    print("KERNEL_OK")
</pallas_src>

<mosaic_0001>
module attributes {stable_mosaic.version = 11 : i64} {
  func.func @_head_kernel(%arg0: i32, %arg1: memref<1x16x16x32xbf16, #tpu.memory_space<vmem>>, %arg2: memref<9x32x64xbf16, #tpu.memory_space<vmem>>, %arg3: memref<1x64xf32, #tpu.memory_space<vmem>>, %arg4: memref<1x9x64x64xbf16, #tpu.memory_space<vmem>>, %arg5: memref<1x1x64xf32, #tpu.memory_space<vmem>>, %arg6: memref<9x64x128xbf16, #tpu.memory_space<vmem>>, %arg7: memref<1x128xf32, #tpu.memory_space<vmem>>, %arg8: memref<1x256x128xf32, #tpu.memory_space<vmem>>, %arg9: memref<18x18x32xf32, #tpu.memory_space<vmem>>, %arg10: memref<18x18x64xf32, #tpu.memory_space<vmem>>) attributes {dimension_semantics = [#tpu.dimension_semantics<parallel>], iteration_bounds = array<i64: 2>, scalar_prefetch = 0 : i64, scratch_operands = 2 : i64, tpu.core_type = #tpu.core_type<tc>, window_params = [{transform_indices = @transform_0, window_bounds = array<i64: 1, 16, 16, 32>}, {pipeline_mode = #tpu.pipeline_mode<synchronous>, transform_indices = @transform_1, window_bounds = array<i64: 9, 32, 64>}, {pipeline_mode = #tpu.pipeline_mode<synchronous>, transform_indices = @transform_2, window_bounds = array<i64: 1, 64>}, {pipeline_mode = #tpu.pipeline_mode<synchronous>, transform_indices = @transform_3, window_bounds = array<i64: 1, 9, 64, 64>}, {pipeline_mode = #tpu.pipeline_mode<synchronous>, transform_indices = @transform_4, window_bounds = array<i64: 1, 1, 64>}, {pipeline_mode = #tpu.pipeline_mode<synchronous>, transform_indices = @transform_5, window_bounds = array<i64: 9, 64, 128>}, {pipeline_mode = #tpu.pipeline_mode<synchronous>, transform_indices = @transform_6, window_bounds = array<i64: 1, 128>}, {transform_indices = @transform_7, window_bounds = array<i64: 1, 256, 128>}]} {
    %cst = arith.constant 0.000000e+00 : f32
    %0 = vector.broadcast %cst : f32 to vector<1x18x32xf32>
    %cst_0 = arith.constant 0.000000e+00 : f32
    %1 = vector.broadcast %cst_0 : f32 to vector<18x1x32xf32>
    %c0 = arith.constant 0 : index
    %c0_1 = arith.constant 0 : index
    %c0_2 = arith.constant 0 : index
    %2 = vector.load %arg9[%c0, %c0_1, %c0_2] : memref<18x18x32xf32, #tpu.memory_space<vmem>>, vector<1x18x32xf32>
    tpu.vector_store %arg9[%c0, %c0_1, %c0_2], %0 {strides = array<i32>} : memref<18x18x32xf32, #tpu.memory_space<vmem>>, vector<1x18x32xf32>,
    %c17 = arith.constant 17 : index
    %c0_3 = arith.constant 0 : index
    %c0_4 = arith.constant 0 : index
    %3 = vector.load %arg9[%c17, %c0_3, %c0_4] : memref<18x18x32xf32, #tpu.memory_space<vmem>>, vector<1x18x32xf32>
    tpu.vector_store %arg9[%c17, %c0_3, %c0_4], %0 {strides = array<i32>} : memref<18x18x32xf32, #tpu.memory_space<vmem>>, vector<1x18x32xf32>,
    %c0_5 = arith.constant 0 : index
    %c0_6 = arith.constant 0 : index
    %c0_7 = arith.constant 0 : index
    %4 = vector.load %arg9[%c0_5, %c0_6, %c0_7] : memref<18x18x32xf32, #tpu.memory_space<vmem>>, vector<18x1x32xf32>
    tpu.vector_store %arg9[%c0_5, %c0_6, %c0_7], %1 {strides = array<i32>} : memref<18x18x32xf32, #tpu.memory_space<vmem>>, vector<18x1x32xf32>,
    %c0_8 = arith.constant 0 : index
    %c17_9 = arith.constant 17 : index
    %c0_10 = arith.constant 0 : index
    %5 = vector.load %arg9[%c0_8, %c17_9, %c0_10] : memref<18x18x32xf32, #tpu.memory_space<vmem>>, vector<18x1x32xf32>
    tpu.vector_store %arg9[%c0_8, %c17_9, %c0_10], %1 {strides = array<i32>} : memref<18x18x32xf32, #tpu.memory_space<vmem>>, vector<18x1x32xf32>,
    %cst_11 = arith.constant 0.000000e+00 : f32
    %6 = vector.broadcast %cst_11 : f32 to vector<1x18x64xf32>
    %cst_12 = arith.constant 0.000000e+00 : f32
    %7 = vector.broadcast %cst_12 : f32 to vector<18x1x64xf32>
    %c0_13 = arith.constant 0 : index
    %c0_14 = arith.constant 0 : index
    %c0_15 = arith.constant 0 : index
    %8 = vector.load %arg10[%c0_13, %c0_14, %c0_15] : memref<18x18x64xf32, #tpu.memory_space<vmem>>, vector<1x18x64xf32>
    tpu.vector_store %arg10[%c0_13, %c0_14, %c0_15], %6 {strides = array<i32>} : memref<18x18x64xf32, #tpu.memory_space<vmem>>, vector<1x18x64xf32>,
    %c17_16 = arith.constant 17 : index
    %c0_17 = arith.constant 0 : index
    %c0_18 = arith.constant 0 : index
    %9 = vector.load %arg10[%c17_16, %c0_17, %c0_18] : memref<18x18x64xf32, #tpu.memory_space<vmem>>, vector<1x18x64xf32>
    tpu.vector_store %arg10[%c17_16, %c0_17, %c0_18], %6 {strides = array<i32>} : memref<18x18x64xf32, #tpu.memory_space<vmem>>, vector<1x18x64xf32>,
    %c0_19 = arith.constant 0 : index
    %c0_20 = arith.constant 0 : index
    %c0_21 = arith.constant 0 : index
    %10 = vector.load %arg10[%c0_19, %c0_20, %c0_21] : memref<18x18x64xf32, #tpu.memory_space<vmem>>, vector<18x1x64xf32>
    tpu.vector_store %arg10[%c0_19, %c0_20, %c0_21], %7 {strides = array<i32>} : memref<18x18x64xf32, #tpu.memory_space<vmem>>, vector<18x1x64xf32>,
    %c0_22 = arith.constant 0 : index
    %c17_23 = arith.constant 17 : index
    %c0_24 = arith.constant 0 : index
    %11 = vector.load %arg10[%c0_22, %c17_23, %c0_24] : memref<18x18x64xf32, #tpu.memory_space<vmem>>, vector<18x1x64xf32>
    tpu.vector_store %arg10[%c0_22, %c17_23, %c0_24], %7 {strides = array<i32>} : memref<18x18x64xf32, #tpu.memory_space<vmem>>, vector<18x1x64xf32>,
    %c0_25 = arith.constant 0 : index
    %c0_26 = arith.constant 0 : index
    %c0_27 = arith.constant 0 : index
    %c0_28 = arith.constant 0 : index
    %12 = vector.load %arg1[%c0_25, %c0_26, %c0_27, %c0_28] : memref<1x16x16x32xbf16, #tpu.memory_space<vmem>>, vector<1x16x16x32xbf16>
    %13 = vector.shape_cast %12 : vector<1x16x16x32xbf16> to vector<16x16x32xbf16>
    %14 = arith.extf %13 : vector<16x16x32xbf16> to vector<16x16x32xf32>
    %c1 = arith.constant 1 : index
    %c1_29 = arith.constant 1 : index
    %c0_30 = arith.constant 0 : index
    %15 = vector.load %arg9[%c1, %c1_29, %c0_30] : memref<18x18x32xf32, #tpu.memory_space<vmem>>, vector<16x16x32xf32>
    tpu.vector_store %arg9[%c1, %c1_29, %c0_30], %14 {strides = array<i32>} : memref<18x18x32xf32, #tpu.memory_space<vmem>>, vector<16x16x32xf32>,
    %c0_31 = arith.constant 0 : index
    %c0_32 = arith.constant 0 : index
    %c0_33 = arith.constant 0 : index
    %16 = vector.load %arg2[%c0_31, %c0_32, %c0_33] : memref<9x32x64xbf16, #tpu.memory_space<vmem>>, vector<9x32x64xbf16>
    %c0_34 = arith.constant 0 : index
    %c0_35 = arith.constant 0 : index
    %c0_36 = arith.constant 0 : index
    %17 = vector.load %arg9[%c0_34, %c0_35, %c0_36] : memref<18x18x32xf32, #tpu.memory_space<vmem>>, vector<18x18x32xf32>
    %18 = arith.truncf %17 : vector<18x18x32xf32> to vector<18x18x32xbf16>
    %cst_37 = arith.constant 0.000000e+00 : f32
    %19 = vector.broadcast %cst_37 : f32 to vector<256x64xf32>
    %20 = vector.extract_strided_slice %18 {offsets = [0, 0, 0], sizes = [16, 16, 32], strides = [1, 1, 1]} : vector<18x18x32xbf16> to vector<16x16x32xbf16>
    %21 = vector.shape_cast %20 : vector<16x16x32xbf16> to vector<256x32xbf16>
    %22 = vector.extract_strided_slice %16 {offsets = [0, 0, 0], sizes = [1, 32, 64], strides = [1, 1, 1]} : vector<9x32x64xbf16> to vector<1x32x64xbf16>
    %23 = vector.shape_cast %22 : vector<1x32x64xbf16> to vector<32x64xbf16>
    %cst_38 = arith.constant dense<0.000000e+00> : vector<256x64xf32>
    %24 = tpu.matmul %21, %23, %cst_38 {dimension_numbers = #tpu.dot_dimension_numbers<[1], [0], [0], [1], [0, 0, 1, 1], [], []>} : vector<256x32xbf16>, vector<32x64xbf16>, vector<256x64xf32> -> vector<256x64xf32>
    %25 = arith.addf %19, %24 : vector<256x64xf32>
    %26 = vector.extract_strided_slice %18 {offsets = [0, 1, 0], sizes = [16, 16, 32], strides = [1, 1, 1]} : vector<18x18x32xbf16> to vector<16x16x32xbf16>
    %27 = vector.shape_cast %26 : vector<16x16x32xbf16> to vector<256x32xbf16>
    %28 = vector.extract_strided_slice %16 {offsets = [1, 0, 0], sizes = [1, 32, 64], strides = [1, 1, 1]} : vector<9x32x64xbf16> to vector<1x32x64xbf16>
    %29 = vector.shape_cast %28 : vector<1x32x64xbf16> to vector<32x64xbf16>
    %cst_39 = arith.constant dense<0.000000e+00> : vector<256x64xf32>
    %30 = tpu.matmul %27, %29, %cst_39 {dimension_numbers = #tpu.dot_dimension_numbers<[1], [0], [0], [1], [0, 0, 1, 1], [], []>} : vector<256x32xbf16>, vector<32x64xbf16>, vector<256x64xf32> -> vector<256x64xf32>
    %31 = arith.addf %25, %30 : vector<256x64xf32>
    %32 = vector.extract_strided_slice %18 {offsets = [0, 2, 0], sizes = [16, 16, 32], strides = [1, 1, 1]} : vector<18x18x32xbf16> to vector<16x16x32xbf16>
    %33 = vector.shape_cast %32 : vector<16x16x32xbf16> to vector<256x32xbf16>
    %34 = vector.extract_strided_slice %16 {offsets = [2, 0, 0], sizes = [1, 32, 64], strides = [1, 1, 1]} : vector<9x32x64xbf16> to vector<1x32x64xbf16>
    %35 = vector.shape_cast %34 : vector<1x32x64xbf16> to vector<32x64xbf16>
    %cst_40 = arith.constant dense<0.000000e+00> : vector<256x64xf32>
    %36 = tpu.matmul %33, %35, %cst_40 {dimension_numbers = #tpu.dot_dimension_numbers<[1], [0], [0], [1], [0, 0, 1, 1], [], []>} : vector<256x32xbf16>, vector<32x64xbf16>, vector<256x64xf32> -> vector<256x64xf32>
    %37 = arith.addf %31, %36 : vector<256x64xf32>
    %38 = vector.extract_strided_slice %18 {offsets = [1, 0, 0], sizes = [16, 16, 32], strides = [1, 1, 1]} : vector<18x18x32xbf16> to vector<16x16x32xbf16>
    %39 = vector.shape_cast %38 : vector<16x16x32xbf16> to vector<256x32xbf16>
    %40 = vector.extract_strided_slice %16 {offsets = [3, 0, 0], sizes = [1, 32, 64], strides = [1, 1, 1]} : vector<9x32x64xbf16> to vector<1x32x64xbf16>
    %41 = vector.shape_cast %40 : vector<1x32x64xbf16> to vector<32x64xbf16>
    %cst_41 = arith.constant dense<0.000000e+00> : vector<256x64xf32>
    %42 = tpu.matmul %39, %41, %cst_41 {dimension_numbers = #tpu.dot_dimension_numbers<[1], [0], [0], [1], [0, 0, 1, 1], [], []>} : vector<256x32xbf16>, vector<32x64xbf16>, vector<256x64xf32> -> vector<256x64xf32>
    %43 = arith.addf %37, %42 : vector<256x64xf32>
    %44 = vector.extract_strided_slice %18 {offsets = [1, 1, 0], sizes = [16, 16, 32], strides = [1, 1, 1]} : vector<18x18x32xbf16> to vector<16x16x32xbf16>
    %45 = vector.shape_cast %44 : vector<16x16x32xbf16> to vector<256x32xbf16>
    %46 = vector.extract_strided_slice %16 {offsets = [4, 0, 0], sizes = [1, 32, 64], strides = [1, 1, 1]} : vector<9x32x64xbf16> to vector<1x32x64xbf16>
    %47 = vector.shape_cast %46 : vector<1x32x64xbf16> to vector<32x64xbf16>
    %cst_42 = arith.constant dense<0.000000e+00> : vector<256x64xf32>
    %48 = tpu.matmul %45, %47, %cst_42 {dimension_numbers = #tpu.dot_dimension_numbers<[1], [0], [0], [1], [0, 0, 1, 1], [], []>} : vector<256x32xbf16>, vector<32x64xbf16>, vector<256x64xf32> -> vector<256x64xf32>
    %49 = arith.addf %43, %48 : vector<256x64xf32>
    %50 = vector.extract_strided_slice %18 {offsets = [1, 2, 0], sizes = [16, 16, 32], strides = [1, 1, 1]} : vector<18x18x32xbf16> to vector<16x16x32xbf16>
    %51 = vector.shape_cast %50 : vector<16x16x32xbf16> to vector<256x32xbf16>
    %52 = vector.extract_strided_slice %16 {offsets = [5, 0, 0], sizes = [1, 32, 64], strides = [1, 1, 1]} : vector<9x32x64xbf16> to vector<1x32x64xbf16>
    %53 = vector.shape_cast %52 : vector<1x32x64xbf16> to vector<32x64xbf16>
    %cst_43 = arith.constant dense<0.000000e+00> : vector<256x64xf32>
    %54 = tpu.matmul %51, %53, %cst_43 {dimension_numbers = #tpu.dot_dimension_numbers<[1], [0], [0], [1], [0, 0, 1, 1], [], []>} : vector<256x32xbf16>, vector<32x64xbf16>, vector<256x64xf32> -> vector<256x64xf32>
    %55 = arith.addf %49, %54 : vector<256x64xf32>
    %56 = vector.extract_strided_slice %18 {offsets = [2, 0, 0], sizes = [16, 16, 32], strides = [1, 1, 1]} : vector<18x18x32xbf16> to vector<16x16x32xbf16>
    %57 = vector.shape_cast %56 : vector<16x16x32xbf16> to vector<256x32xbf16>
    %58 = vector.extract_strided_slice %16 {offsets = [6, 0, 0], sizes = [1, 32, 64], strides = [1, 1, 1]} : vector<9x32x64xbf16> to vector<1x32x64xbf16>
    %59 = vector.shape_cast %58 : vector<1x32x64xbf16> to vector<32x64xbf16>
    %cst_44 = arith.constant dense<0.000000e+00> : vector<256x64xf32>
    %60 = tpu.matmul %57, %59, %cst_44 {dimension_numbers = #tpu.dot_dimension_numbers<[1], [0], [0], [1], [0, 0, 1, 1], [], []>} : vector<256x32xbf16>, vector<32x64xbf16>, vector<256x64xf32> -> vector<256x64xf32>
    %61 = arith.addf %55, %60 : vector<256x64xf32>
    %62 = vector.extract_strided_slice %18 {offsets = [2, 1, 0], sizes = [16, 16, 32], strides = [1, 1, 1]} : vector<18x18x32xbf16> to vector<16x16x32xbf16>
    %63 = vector.shape_cast %62 : vector<16x16x32xbf16> to vector<256x32xbf16>
    %64 = vector.extract_strided_slice %16 {offsets = [7, 0, 0], sizes = [1, 32, 64], strides = [1, 1, 1]} : vector<9x32x64xbf16> to vector<1x32x64xbf16>
    %65 = vector.shape_cast %64 : vector<1x32x64xbf16> to vector<32x64xbf16>
    %cst_45 = arith.constant dense<0.000000e+00> : vector<256x64xf32>
    %66 = tpu.matmul %63, %65, %cst_45 {dimension_numbers = #tpu.dot_dimension_numbers<[1], [0], [0], [1], [0, 0, 1, 1], [], []>} : vector<256x32xbf16>, vector<32x64xbf16>, vector<256x64xf32> -> vector<256x64xf32>
    %67 = arith.addf %61, %66 : vector<256x64xf32>
    %68 = vector.extract_strided_slice %18 {offsets = [2, 2, 0], sizes = [16, 16, 32], strides = [1, 1, 1]} : vector<18x18x32xbf16> to vector<16x16x32xbf16>
    %69 = vector.shape_cast %68 : vector<16x16x32xbf16> to vector<256x32xbf16>
    %70 = vector.extract_strided_slice %16 {offsets = [8, 0, 0], sizes = [1, 32, 64], strides = [1, 1, 1]} : vector<9x32x64xbf16> to vector<1x32x64xbf16>
    %71 = vector.shape_cast %70 : vector<1x32x64xbf16> to vector<32x64xbf16>
    %cst_46 = arith.constant dense<0.000000e+00> : vector<256x64xf32>
    %72 = tpu.matmul %69, %71, %cst_46 {dimension_numbers = #tpu.dot_dimension_numbers<[1], [0], [0], [1], [0, 0, 1, 1], [], []>} : vector<256x32xbf16>, vector<32x64xbf16>, vector<256x64xf32> -> vector<256x64xf32>
    %73 = arith.addf %67, %72 : vector<256x64xf32>
    %c0_47 = arith.constant 0 : index
    %c0_48 = arith.constant 0 : index
    %74 = vector.load %arg3[%c0_47, %c0_48] : memref<1x64xf32, #tpu.memory_space<vmem>>, vector<1x64xf32>
    %75 = vector.broadcast %74 : vector<1x64xf32> to vector<256x64xf32>
    %76 = arith.addf %73, %75 : vector<256x64xf32>
    %cst_49 = arith.constant 0.000000e+00 : f32
    %77 = vector.broadcast %cst_49 : f32 to vector<256x64xf32>
    %78 = arith.maximumf %76, %77 : vector<256x64xf32>
    %79 = vector.shape_cast %78 : vector<256x64xf32> to vector<16x16x64xf32>
    %c1_50 = arith.constant 1 : index
    %c1_51 = arith.constant 1 : index
    %c0_52 = arith.constant 0 : index
    %80 = vector.load %arg10[%c1_50, %c1_51, %c0_52] : memref<18x18x64xf32, #tpu.memory_space<vmem>>, vector<16x16x64xf32>
    tpu.vector_store %arg10[%c1_50, %c1_51, %c0_52], %79 {strides = array<i32>} : memref<18x18x64xf32, #tpu.memory_space<vmem>>, vector<16x16x64xf32>,
    %c0_53 = arith.constant 0 : index
    %c0_54 = arith.constant 0 : index
    %c0_55 = arith.constant 0 : index
    %c0_56 = arith.constant 0 : index
    %81 = vector.load %arg4[%c0_53, %c0_54, %c0_55, %c0_56] : memref<1x9x64x64xbf16, #tpu.memory_space<vmem>>, vector<1x9x64x64xbf16>
    %82 = vector.shape_cast %81 : vector<1x9x64x64xbf16> to vector<9x64x64xbf16>
    %c0_57 = arith.constant 0 : index
    %c0_58 = arith.constant 0 : index
    %c0_59 = arith.constant 0 : index
    %83 = vector.load %arg10[%c0_57, %c0_58, %c0_59] : memref<18x18x64xf32, #tpu.memory_space<vmem>>, vector<18x18x64xf32>
    %84 = arith.truncf %83 : vector<18x18x64xf32> to vector<18x18x64xbf16>
    %cst_60 = arith.constant 0.000000e+00 : f32
    %85 = vector.broadcast %cst_60 : f32 to vector<256x64xf32>
    %86 = vector.extract_strided_slice %84 {offsets = [0, 0, 0], sizes = [16, 16, 64], strides = [1, 1, 1]} : vector<18x18x64xbf16> to vector<16x16x64xbf16>
    %87 = vector.shape_cast %86 : vector<16x16x64xbf16> to vector<256x64xbf16>
    %88 = vector.extract_strided_slice %82 {offsets = [0, 0, 0], sizes = [1, 64, 64], strides = [1, 1, 1]} : vector<9x64x64xbf16> to vector<1x64x64xbf16>
    %89 = vector.shape_cast %88 : vector<1x64x64xbf16> to vector<64x64xbf16>
    %cst_61 = arith.constant dense<0.000000e+00> : vector<256x64xf32>
    %90 = tpu.matmul %87, %89, %cst_61 {dimension_numbers = #tpu.dot_dimension_numbers<[1], [0], [0], [1], [0, 0, 1, 1], [], []>} : vector<256x64xbf16>, vector<64x64xbf16>, vector<256x64xf32> -> vector<256x64xf32>
    %91 = arith.addf %85, %90 : vector<256x64xf32>
    %92 = vector.extract_strided_slice %84 {offsets = [0, 1, 0], sizes = [16, 16, 64], strides = [1, 1, 1]} : vector<18x18x64xbf16> to vector<16x16x64xbf16>
    %93 = vector.shape_cast %92 : vector<16x16x64xbf16> to vector<256x64xbf16>
    %94 = vector.extract_strided_slice %82 {offsets = [1, 0, 0], sizes = [1, 64, 64], strides = [1, 1, 1]} : vector<9x64x64xbf16> to vector<1x64x64xbf16>
    %95 = vector.shape_cast %94 : vector<1x64x64xbf16> to vector<64x64xbf16>
    %cst_62 = arith.constant dense<0.000000e+00> : vector<256x64xf32>
    %96 = tpu.matmul %93, %95, %cst_62 {dimension_numbers = #tpu.dot_dimension_numbers<[1], [0], [0], [1], [0, 0, 1, 1], [], []>} : vector<256x64xbf16>, vector<64x64xbf16>, vector<256x64xf32> -> vector<256x64xf32>
    %97 = arith.addf %91, %96 : vector<256x64xf32>
    %98 = vector.extract_strided_slice %84 {offsets = [0, 2, 0], sizes = [16, 16, 64], strides = [1, 1, 1]} : vector<18x18x64xbf16> to vector<16x16x64xbf16>
    %99 = vector.shape_cast %98 : vector<16x16x64xbf16> to vector<256x64xbf16>
    %100 = vector.extract_strided_slice %82 {offsets = [2, 0, 0], sizes = [1, 64, 64], strides = [1, 1, 1]} : vector<9x64x64xbf16> to vector<1x64x64xbf16>
    %101 = vector.shape_cast %100 : vector<1x64x64xbf16> to vector<64x64xbf16>
    %cst_63 = arith.constant dense<0.000000e+00> : vector<256x64xf32>
    %102 = tpu.matmul %99, %101, %cst_63 {dimension_numbers = #tpu.dot_dimension_numbers<[1], [0], [0], [1], [0, 0, 1, 1], [], []>} : vector<256x64xbf16>, vector<64x64xbf16>, vector<256x64xf32> -> vector<256x64xf32>
    %103 = arith.addf %97, %102 : vector<256x64xf32>
    %104 = vector.extract_strided_slice %84 {offsets = [1, 0, 0], sizes = [16, 16, 64], strides = [1, 1, 1]} : vector<18x18x64xbf16> to vector<16x16x64xbf16>
    %105 = vector.shape_cast %104 : vector<16x16x64xbf16> to vector<256x64xbf16>
    %106 = vector.extract_strided_slice %82 {offsets = [3, 0, 0], sizes = [1, 64, 64], strides = [1, 1, 1]} : vector<9x64x64xbf16> to vector<1x64x64xbf16>
    %107 = vector.shape_cast %106 : vector<1x64x64xbf16> to vector<64x64xbf16>
    %cst_64 = arith.constant dense<0.000000e+00> : vector<256x64xf32>
    %108 = tpu.matmul %105, %107, %cst_64 {dimension_numbers = #tpu.dot_dimension_numbers<[1], [0], [0], [1], [0, 0, 1, 1], [], []>} : vector<256x64xbf16>, vector<64x64xbf16>, vector<256x64xf32> -> vector<256x64xf32>
    %109 = arith.addf %103, %108 : vector<256x64xf32>
    %110 = vector.extract_strided_slice %84 {offsets = [1, 1, 0], sizes = [16, 16, 64], strides = [1, 1, 1]} : vector<18x18x64xbf16> to vector<16x16x64xbf16>
    %111 = vector.shape_cast %110 : vector<16x16x64xbf16> to vector<256x64xbf16>
    %112 = vector.extract_strided_slice %82 {offsets = [4, 0, 0], sizes = [1, 64, 64], strides = [1, 1, 1]} : vector<9x64x64xbf16> to vector<1x64x64xbf16>
    %113 = vector.shape_cast %112 : vector<1x64x64xbf16> to vector<64x64xbf16>
    %cst_65 = arith.constant dense<0.000000e+00> : vector<256x64xf32>
    %114 = tpu.matmul %111, %113, %cst_65 {dimension_numbers = #tpu.dot_dimension_numbers<[1], [0], [0], [1], [0, 0, 1, 1], [], []>} : vector<256x64xbf16>, vector<64x64xbf16>, vector<256x64xf32> -> vector<256x64xf32>
    %115 = arith.addf %109, %114 : vector<256x64xf32>
    %116 = vector.extract_strided_slice %84 {offsets = [1, 2, 0], sizes = [16, 16, 64], strides = [1, 1, 1]} : vector<18x18x64xbf16> to vector<16x16x64xbf16>
    %117 = vector.shape_cast %116 : vector<16x16x64xbf16> to vector<256x64xbf16>
    %118 = vector.extract_strided_slice %82 {offsets = [5, 0, 0], sizes = [1, 64, 64], strides = [1, 1, 1]} : vector<9x64x64xbf16> to vector<1x64x64xbf16>
    %119 = vector.shape_cast %118 : vector<1x64x64xbf16> to vector<64x64xbf16>
    %cst_66 = arith.constant dense<0.000000e+00> : vector<256x64xf32>
    %120 = tpu.matmul %117, %119, %cst_66 {dimension_numbers = #tpu.dot_dimension_numbers<[1], [0], [0], [1], [0, 0, 1, 1], [], []>} : vector<256x64xbf16>, vector<64x64xbf16>, vector<256x64xf32> -> vector<256x64xf32>
    %121 = arith.addf %115, %120 : vector<256x64xf32>
    %122 = vector.extract_strided_slice %84 {offsets = [2, 0, 0], sizes = [16, 16, 64], strides = [1, 1, 1]} : vector<18x18x64xbf16> to vector<16x16x64xbf16>
    %123 = vector.shape_cast %122 : vector<16x16x64xbf16> to vector<256x64xbf16>
    %124 = vector.extract_strided_slice %82 {offsets = [6, 0, 0], sizes = [1, 64, 64], strides = [1, 1, 1]} : vector<9x64x64xbf16> to vector<1x64x64xbf16>
    %125 = vector.shape_cast %124 : vector<1x64x64xbf16> to vector<64x64xbf16>
    %cst_67 = arith.constant dense<0.000000e+00> : vector<256x64xf32>
    %126 = tpu.matmul %123, %125, %cst_67 {dimension_numbers = #tpu.dot_dimension_numbers<[1], [0], [0], [1], [0, 0, 1, 1], [], []>} : vector<256x64xbf16>, vector<64x64xbf16>, vector<256x64xf32> -> vector<256x64xf32>
    %127 = arith.addf %121, %126 : vector<256x64xf32>
    %128 = vector.extract_strided_slice %84 {offsets = [2, 1, 0], sizes = [16, 16, 64], strides = [1, 1, 1]} : vector<18x18x64xbf16> to vector<16x16x64xbf16>
    %129 = vector.shape_cast %128 : vector<16x16x64xbf16> to vector<256x64xbf16>
    %130 = vector.extract_strided_slice %82 {offsets = [7, 0, 0], sizes = [1, 64, 64], strides = [1, 1, 1]} : vector<9x64x64xbf16> to vector<1x64x64xbf16>
    %131 = vector.shape_cast %130 : vector<1x64x64xbf16> to vector<64x64xbf16>
    %cst_68 = arith.constant dense<0.000000e+00> : vector<256x64xf32>
    %132 = tpu.matmul %129, %131, %cst_68 {dimension_numbers = #tpu.dot_dimension_numbers<[1], [0], [0], [1], [0, 0, 1, 1], [], []>} : vector<256x64xbf16>, vector<64x64xbf16>, vector<256x64xf32> -> vector<256x64xf32>
    %133 = arith.addf %127, %132 : vector<256x64xf32>
    %134 = vector.extract_strided_slice %84 {offsets = [2, 2, 0], sizes = [16, 16, 64], strides = [1, 1, 1]} : vector<18x18x64xbf16> to vector<16x16x64xbf16>
    %135 = vector.shape_cast %134 : vector<16x16x64xbf16> to vector<256x64xbf16>
    %136 = vector.extract_strided_slice %82 {offsets = [8, 0, 0], sizes = [1, 64, 64], strides = [1, 1, 1]} : vector<9x64x64xbf16> to vector<1x64x64xbf16>
    %137 = vector.shape_cast %136 : vector<1x64x64xbf16> to vector<64x64xbf16>
    %cst_69 = arith.constant dense<0.000000e+00> : vector<256x64xf32>
    %138 = tpu.matmul %135, %137, %cst_69 {dimension_numbers = #tpu.dot_dimension_numbers<[1], [0], [0], [1], [0, 0, 1, 1], [], []>} : vector<256x64xbf16>, vector<64x64xbf16>, vector<256x64xf32> -> vector<256x64xf32>
    %139 = arith.addf %133, %138 : vector<256x64xf32>
    %c0_70 = arith.constant 0 : index
    %c0_71 = arith.constant 0 : index
    %c0_72 = arith.constant 0 : index
    %140 = vector.load %arg5[%c0_70, %c0_71, %c0_72] : memref<1x1x64xf32, #tpu.memory_space<vmem>>, vector<1x1x64xf32>
    %141 = vector.shape_cast %140 : vector<1x1x64xf32> to vector<1x64xf32>
    %142 = vector.broadcast %141 : vector<1x64xf32> to vector<256x64xf32>
    %143 = arith.addf %139, %142 : vector<256x64xf32>
    %cst_73 = arith.constant 0.000000e+00 : f32
    %144 = vector.broadcast %cst_73 : f32 to vector<256x64xf32>
    %145 = arith.maximumf %143, %144 : vector<256x64xf32>
    %146 = vector.shape_cast %145 : vector<256x64xf32> to vector<16x16x64xf32>
    %c1_74 = arith.constant 1 : index
    %c1_75 = arith.constant 1 : index
    %c0_76 = arith.constant 0 : index
    %147 = vector.load %arg10[%c1_74, %c1_75, %c0_76] : memref<18x18x64xf32, #tpu.memory_space<vmem>>, vector<16x16x64xf32>
    tpu.vector_store %arg10[%c1_74, %c1_75, %c0_76], %146 {strides = array<i32>} : memref<18x18x64xf32, #tpu.memory_space<vmem>>, vector<16x16x64xf32>,
    %c0_77 = arith.constant 0 : index
    %c0_78 = arith.constant 0 : index
    %c0_79 = arith.constant 0 : index
    %148 = vector.load %arg6[%c0_77, %c0_78, %c0_79] : memref<9x64x128xbf16, #tpu.memory_space<vmem>>, vector<9x64x128xbf16>
    %c0_80 = arith.constant 0 : index
    %c0_81 = arith.constant 0 : index
    %c0_82 = arith.constant 0 : index
    %149 = vector.load %arg10[%c0_80, %c0_81, %c0_82] : memref<18x18x64xf32, #tpu.memory_space<vmem>>, vector<18x18x64xf32>
    %150 = arith.truncf %149 : vector<18x18x64xf32> to vector<18x18x64xbf16>
    %cst_83 = arith.constant 0.000000e+00 : f32
    %151 = vector.broadcast %cst_83 : f32 to vector<256x128xf32>
    %152 = vector.extract_strided_slice %150 {offsets = [0, 0, 0], sizes = [16, 16, 64], strides = [1, 1, 1]} : vector<18x18x64xbf16> to vector<16x16x64xbf16>
    %153 = vector.shape_cast %152 : vector<16x16x64xbf16> to vector<256x64xbf16>
    %154 = vector.extract_strided_slice %148 {offsets = [0, 0, 0], sizes = [1, 64, 128], strides = [1, 1, 1]} : vector<9x64x128xbf16> to vector<1x64x128xbf16>
    %155 = vector.shape_cast %154 : vector<1x64x128xbf16> to vector<64x128xbf16>
    %cst_84 = arith.constant dense<0.000000e+00> : vector<256x128xf32>
    %156 = tpu.matmul %153, %155, %cst_84 {dimension_numbers = #tpu.dot_dimension_numbers<[1], [0], [0], [1], [0, 0, 1, 1], [], []>} : vector<256x64xbf16>, vector<64x128xbf16>, vector<256x128xf32> -> vector<256x128xf32>
    %157 = arith.addf %151, %156 : vector<256x128xf32>
    %158 = vector.extract_strided_slice %150 {offsets = [0, 1, 0], sizes = [16, 16, 64], strides = [1, 1, 1]} : vector<18x18x64xbf16> to vector<16x16x64xbf16>
    %159 = vector.shape_cast %158 : vector<16x16x64xbf16> to vector<256x64xbf16>
    %160 = vector.extract_strided_slice %148 {offsets = [1, 0, 0], sizes = [1, 64, 128], strides = [1, 1, 1]} : vector<9x64x128xbf16> to vector<1x64x128xbf16>
    %161 = vector.shape_cast %160 : vector<1x64x128xbf16> to vector<64x128xbf16>
    %cst_85 = arith.constant dense<0.000000e+00> : vector<256x128xf32>
    %162 = tpu.matmul %159, %161, %cst_85 {dimension_numbers = #tpu.dot_dimension_numbers<[1], [0], [0], [1], [0, 0, 1, 1], [], []>} : vector<256x64xbf16>, vector<64x128xbf16>, vector<256x128xf32> -> vector<256x128xf32>
    %163 = arith.addf %157, %162 : vector<256x128xf32>
    %164 = vector.extract_strided_slice %150 {offsets = [0, 2, 0], sizes = [16, 16, 64], strides = [1, 1, 1]} : vector<18x18x64xbf16> to vector<16x16x64xbf16>
    %165 = vector.shape_cast %164 : vector<16x16x64xbf16> to vector<256x64xbf16>
    %166 = vector.extract_strided_slice %148 {offsets = [2, 0, 0], sizes = [1, 64, 128], strides = [1, 1, 1]} : vector<9x64x128xbf16> to vector<1x64x128xbf16>
    %167 = vector.shape_cast %166 : vector<1x64x128xbf16> to vector<64x128xbf16>
    %cst_86 = arith.constant dense<0.000000e+00> : vector<256x128xf32>
    %168 = tpu.matmul %165, %167, %cst_86 {dimension_numbers = #tpu.dot_dimension_numbers<[1], [0], [0], [1], [0, 0, 1, 1], [], []>} : vector<256x64xbf16>, vector<64x128xbf16>, vector<256x128xf32> -> vector<256x128xf32>
    %169 = arith.addf %163, %168 : vector<256x128xf32>
    %170 = vector.extract_strided_slice %150 {offsets = [1, 0, 0], sizes = [16, 16, 64], strides = [1, 1, 1]} : vector<18x18x64xbf16> to vector<16x16x64xbf16>
    %171 = vector.shape_cast %170 : vector<16x16x64xbf16> to vector<256x64xbf16>
    %172 = vector.extract_strided_slice %148 {offsets = [3, 0, 0], sizes = [1, 64, 128], strides = [1, 1, 1]} : vector<9x64x128xbf16> to vector<1x64x128xbf16>
    %173 = vector.shape_cast %172 : vector<1x64x128xbf16> to vector<64x128xbf16>
    %cst_87 = arith.constant dense<0.000000e+00> : vector<256x128xf32>
    %174 = tpu.matmul %171, %173, %cst_87 {dimension_numbers = #tpu.dot_dimension_numbers<[1], [0], [0], [1], [0, 0, 1, 1], [], []>} : vector<256x64xbf16>, vector<64x128xbf16>, vector<256x128xf32> -> vector<256x128xf32>
    %175 = arith.addf %169, %174 : vector<256x128xf32>
    %176 = vector.extract_strided_slice %150 {offsets = [1, 1, 0], sizes = [16, 16, 64], strides = [1, 1, 1]} : vector<18x18x64xbf16> to vector<16x16x64xbf16>
    %177 = vector.shape_cast %176 : vector<16x16x64xbf16> to vector<256x64xbf16>
    %178 = vector.extract_strided_slice %148 {offsets = [4, 0, 0], sizes = [1, 64, 128], strides = [1, 1, 1]} : vector<9x64x128xbf16> to vector<1x64x128xbf16>
    %179 = vector.shape_cast %178 : vector<1x64x128xbf16> to vector<64x128xbf16>
    %cst_88 = arith.constant dense<0.000000e+00> : vector<256x128xf32>
    %180 = tpu.matmul %177, %179, %cst_88 {dimension_numbers = #tpu.dot_dimension_numbers<[1], [0], [0], [1], [0, 0, 1, 1], [], []>} : vector<256x64xbf16>, vector<64x128xbf16>, vector<256x128xf32> -> vector<256x128xf32>
    %181 = arith.addf %175, %180 : vector<256x128xf32>
    %182 = vector.extract_strided_slice %150 {offsets = [1, 2, 0], sizes = [16, 16, 64], strides = [1, 1, 1]} : vector<18x18x64xbf16> to vector<16x16x64xbf16>
    %183 = vector.shape_cast %182 : vector<16x16x64xbf16> to vector<256x64xbf16>
    %184 = vector.extract_strided_slice %148 {offsets = [5, 0, 0], sizes = [1, 64, 128], strides = [1, 1, 1]} : vector<9x64x128xbf16> to vector<1x64x128xbf16>
    %185 = vector.shape_cast %184 : vector<1x64x128xbf16> to vector<64x128xbf16>
    %cst_89 = arith.constant dense<0.000000e+00> : vector<256x128xf32>
    %186 = tpu.matmul %183, %185, %cst_89 {dimension_numbers = #tpu.dot_dimension_numbers<[1], [0], [0], [1], [0, 0, 1, 1], [], []>} : vector<256x64xbf16>, vector<64x128xbf16>, vector<256x128xf32> -> vector<256x128xf32>
    %187 = arith.addf %181, %186 : vector<256x128xf32>
    %188 = vector.extract_strided_slice %150 {offsets = [2, 0, 0], sizes = [16, 16, 64], strides = [1, 1, 1]} : vector<18x18x64xbf16> to vector<16x16x64xbf16>
    %189 = vector.shape_cast %188 : vector<16x16x64xbf16> to vector<256x64xbf16>
    %190 = vector.extract_strided_slice %148 {offsets = [6, 0, 0], sizes = [1, 64, 128], strides = [1, 1, 1]} : vector<9x64x128xbf16> to vector<1x64x128xbf16>
    %191 = vector.shape_cast %190 : vector<1x64x128xbf16> to vector<64x128xbf16>
    %cst_90 = arith.constant dense<0.000000e+00> : vector<256x128xf32>
    %192 = tpu.matmul %189, %191, %cst_90 {dimension_numbers = #tpu.dot_dimension_numbers<[1], [0], [0], [1], [0, 0, 1, 1], [], []>} : vector<256x64xbf16>, vector<64x128xbf16>, vector<256x128xf32> -> vector<256x128xf32>
    %193 = arith.addf %187, %192 : vector<256x128xf32>
    %194 = vector.extract_strided_slice %150 {offsets = [2, 1, 0], sizes = [16, 16, 64], strides = [1, 1, 1]} : vector<18x18x64xbf16> to vector<16x16x64xbf16>
    %195 = vector.shape_cast %194 : vector<16x16x64xbf16> to vector<256x64xbf16>
    %196 = vector.extract_strided_slice %148 {offsets = [7, 0, 0], sizes = [1, 64, 128], strides = [1, 1, 1]} : vector<9x64x128xbf16> to vector<1x64x128xbf16>
    %197 = vector.shape_cast %196 : vector<1x64x128xbf16> to vector<64x128xbf16>
    %cst_91 = arith.constant dense<0.000000e+00> : vector<256x128xf32>
    %198 = tpu.matmul %195, %197, %cst_91 {dimension_numbers = #tpu.dot_dimension_numbers<[1], [0], [0], [1], [0, 0, 1, 1], [], []>} : vector<256x64xbf16>, vector<64x128xbf16>, vector<256x128xf32> -> vector<256x128xf32>
    %199 = arith.addf %193, %198 : vector<256x128xf32>
    %200 = vector.extract_strided_slice %150 {offsets = [2, 2, 0], sizes = [16, 16, 64], strides = [1, 1, 1]} : vector<18x18x64xbf16> to vector<16x16x64xbf16>
    %201 = vector.shape_cast %200 : vector<16x16x64xbf16> to vector<256x64xbf16>
    %202 = vector.extract_strided_slice %148 {offsets = [8, 0, 0], sizes = [1, 64, 128], strides = [1, 1, 1]} : vector<9x64x128xbf16> to vector<1x64x128xbf16>
    %203 = vector.shape_cast %202 : vector<1x64x128xbf16> to vector<64x128xbf16>
    %cst_92 = arith.constant dense<0.000000e+00> : vector<256x128xf32>
    %204 = tpu.matmul %201, %203, %cst_92 {dimension_numbers = #tpu.dot_dimension_numbers<[1], [0], [0], [1], [0, 0, 1, 1], [], []>} : vector<256x64xbf16>, vector<64x128xbf16>, vector<256x128xf32> -> vector<256x128xf32>
    %205 = arith.addf %199, %204 : vector<256x128xf32>
    %c0_93 = arith.constant 0 : index
    %c0_94 = arith.constant 0 : index
    %206 = vector.load %arg7[%c0_93, %c0_94] : memref<1x128xf32, #tpu.memory_space<vmem>>, vector<1x128xf32>
    %207 = vector.broadcast %206 : vector<1x128xf32> to vector<256x128xf32>
    %208 = arith.addf %205, %207 : vector<256x128xf32>
    %c0_95 = arith.constant 0 : index
    %c0_96 = arith.constant 0 : index
    %c0_97 = arith.constant 0 : index
    %209 = vector.load %arg8[%c0_95, %c0_96, %c0_97] : memref<1x256x128xf32, #tpu.memory_space<vmem>>, vector<1x256x128xf32>
    %210 = vector.shape_cast %209 : vector<1x256x128xf32> to vector<256x128xf32>
    %211 = vector.shape_cast %208 : vector<256x128xf32> to vector<1x256x128xf32>
    tpu.vector_store %arg8[%c0_95, %c0_96, %c0_97], %211 {strides = array<i32>} : memref<1x256x128xf32, #tpu.memory_space<vmem>>, vector<1x256x128xf32>,
    return
  }
  func.func @transform_0(%arg0: i32) -> (i32, i32, i32, i32) {
    %c0_i32 = arith.constant 0 : i32
    %c0_i32_0 = arith.constant 0 : i32
    %c0_i32_1 = arith.constant 0 : i32
    %c0_i32_2 = arith.constant 0 : i32
    return %arg0, %c0_i32, %c0_i32_0, %c0_i32_1 : i32, i32, i32, i32
  }
  func.func @transform_1(%arg0: i32) -> (i32, i32, i32) {
    %c0_i32 = arith.constant 0 : i32
    %c0_i32_0 = arith.constant 0 : i32
    %c0_i32_1 = arith.constant 0 : i32
    %c0_i32_2 = arith.constant 0 : i32
    return %c0_i32, %c0_i32_0, %c0_i32_1 : i32, i32, i32
  }
  func.func @transform_2(%arg0: i32) -> (i32, i32) {
    %c0_i32 = arith.constant 0 : i32
    %c0_i32_0 = arith.constant 0 : i32
    %c0_i32_1 = arith.constant 0 : i32
    return %c0_i32, %c0_i32_0 : i32, i32
  }
  func.func @transform_3(%arg0: i32) -> (i32, i32, i32, i32) {
    %c0_i32 = arith.constant 0 : i32
    %c0_i32_0 = arith.constant 0 : i32
    %c0_i32_1 = arith.constant 0 : i32
    %c0_i32_2 = arith.constant 0 : i32
    %c0_i32_3 = arith.constant 0 : i32
    return %c0_i32, %c0_i32_0, %c0_i32_1, %c0_i32_2 : i32, i32, i32, i32
  }
  func.func @transform_4(%arg0: i32) -> (i32, i32, i32) {
    %c0_i32 = arith.constant 0 : i32
    %c0_i32_0 = arith.constant 0 : i32
    %c0_i32_1 = arith.constant 0 : i32
    %c0_i32_2 = arith.constant 0 : i32
    return %c0_i32, %c0_i32_0, %c0_i32_1 : i32, i32, i32
  }
  func.func @transform_5(%arg0: i32) -> (i32, i32, i32) {
    %c0_i32 = arith.constant 0 : i32
    %c0_i32_0 = arith.constant 0 : i32
    %c0_i32_1 = arith.constant 0 : i32
    %c0_i32_2 = arith.constant 0 : i32
    return %c0_i32, %c0_i32_0, %c0_i32_1 : i32, i32, i32
  }
  func.func @transform_6(%arg0: i32) -> (i32, i32) {
    %c0_i32 = arith.constant 0 : i32
    %c0_i32_0 = arith.constant 0 : i32
    %c0_i32_1 = arith.constant 0 : i32
    return %c0_i32, %c0_i32_0 : i32, i32
  }
  func.func @transform_7(%arg0: i32) -> (i32, i32, i32) {
    %c0_i32 = arith.constant 0 : i32
    %c0_i32_0 = arith.constant 0 : i32
    %c0_i32_1 = arith.constant 0 : i32
    return %arg0, %c0_i32, %c0_i32_0 : i32, i32, i32
  }
}

</mosaic_0001>

<llo_original>
// kernel: tpu_custom_call.1
$region0: #{tpu_custom_call.1}
  #allocation0 [shape = 'u32[]', space=smem, size = 0x4, offset = 0x4, fixed_abs, tag = 'smem constant byte address 0x4 - core index']
  #allocation1 [shape = 'u32[144,128]{1,0:T(1,128)}', space=vmem, size = 0x12000, scoped, tag = 'internal scratch']
  #allocation2 [shape = 'f32[18,18,32]{2,1,0:T(8,128)}', space=vmem, size = 0x36000, scoped, tag = 'scratch operand']
  #allocation3 [shape = 'f32[18,18,64]{2,1,0:T(8,128)}', space=vmem, size = 0x36000, scoped, tag = 'scratch operand']
  %s0 = inlined_call_operand.hbm [shape: bf16[2,16,16,32], index: 0, kind: input, shape index: {}]
  %s1 = inlined_call_operand.hbm [shape: bf16[9,32,64], index: 1, kind: input, shape index: {}]
  %s2 = inlined_call_operand.vmem [shape: f32[1,64], index: 2, kind: input, shape index: {}]
  %s3 = inlined_call_operand.hbm [shape: bf16[1,9,64,64], index: 3, kind: input, shape index: {}]
  %s4 = inlined_call_operand.vmem [shape: f32[1,1,64], index: 4, kind: input, shape index: {}]
  %s5 = inlined_call_operand.hbm [shape: bf16[9,64,128], index: 5, kind: input, shape index: {}]
  %s6 = inlined_call_operand.vmem [shape: f32[1,128], index: 6, kind: input, shape index: {}]
  %s7 = inlined_call_operand.hbm [shape: f32[2,256,128], index: 7, kind: output, shape index: {}]
  %s8 = sld [smem:[#allocation0]]
  $region77: #{tpu_custom_call.1} parent=0
    _
  %s10 = ssub.s32 1, %s8
  %s11 = scalar_select 0, %s10, %s8
  $region1: #{tpu_custom_call.1} parent=0
    #allocation4 [shape = 'u8[131072]{0}', space=vmem, size = 0x20000, scoped, tag = 'input window, operand 0']
    #allocation5 [shape = 's32[2]{0}', space=sflag, size = 0x8, scoped, tag = 'scoped memory for tpu_custom_call.1']
    #allocation6 [shape = 's32[2]{0}', space=sflag, size = 0x8, scoped, tag = 'scoped memory for tpu_custom_call.1']
    #allocation7 [shape = 'u8[73728]{0}', space=vmem, size = 0x12000, scoped, tag = 'input window, operand 1, single buffered']
    #allocation8 [shape = 's32[1]{0}', space=sflag, size = 0x4, scoped, tag = 'scoped memory for tpu_custom_call.1']
    #allocation9 [shape = 'u8[147456]{0}', space=vmem, size = 0x24000, scoped, tag = 'input window, operand 3, single buffered']
    #allocation10 [shape = 'u8[147456]{0}', space=vmem, size = 0x24000, scoped, tag = 'input window, operand 5, single buffered']
    #allocation11 [shape = 's32[1]{0}', space=sflag, size = 0x4, scoped, tag = 'scoped memory for tpu_custom_call.1']
    #allocation12 [shape = 'u8[262144]{0}', space=vmem, size = 0x40000, scoped, tag = 'output window, operand 0']
    %12 = vsyncpa [#allocation5], 0
    %s13 = scalar_lea.sflag [#allocation5], 1
    %14 = vsyncpa %s13, 0
    %15 = vsyncpa [#allocation8], 0
    %16 = vsyncpa [#allocation11], 0
    %17 = vsyncpa [#allocation6], 0
    %s18 = scalar_lea.sflag [#allocation6], 1
    %19 = vsyncpa %s18, 0
    loop: start=0, step=1, limit=4
    $region2: #{tpu_custom_call.1} parent=1 // loop_pre_header
      _
    $region3: #{tpu_custom_call.1} parent=1 // loop_header
      %s21 = sphi 0, %s25
      %p22 = scmp.ge.s32.totalorder %s21, 4
      %s31 = sphi 0, %s33
      %s34 = sphi 0, %s31
      %s35 = sphi 0, %s34
      %s51 = sphi 0, %s35
      %s55 = sphi 0, %s55
      %s57 = sphi 0, %s55
      %s58 = sphi 0, %s57
      %s72 = sphi 0, %s58
      %s76 = sphi 0, %s76
      %s78 = sphi 0, %s76
      %s79 = sphi 0, %s78
      %s93 = sphi 0, %s79
      %s97 = sphi 0, %s97
      %s99 = sphi 0, %s97
      %s100 = sphi 0, %s99
      %s114 = sphi 0, %s100
      %s118 = sphi 0, %s118
      %s120 = sphi 0, %s118
      %s121 = sphi 0, %s120
      %s135 = sphi 0, %s121
      %s139 = sphi 0, %s139
      %s141 = sphi 0, %s139
      %s142 = sphi 0, %s141
      %s156 = sphi 0, %s142
      %s160 = sphi 0, %s160
      %s162 = sphi 0, %s160
      %s163 = sphi 0, %s162
      %s177 = sphi 0, %s163
      %s183 = sphi 0, %s185
      %s186 = sphi 0, %s183
      %s187 = sphi 0, %s186
      %s203 = sphi 0, %s187
    $region4: #{tpu_custom_call.1} parent=1 // loop_header_branch
      %24 = sbr.rel (%p22) target = $region8
    $region5: #{tpu_custom_call.1} parent=1 // loop_body
      %s26 = ssub.s32 %s21, 1
      %s27 = ssub.s32 %s21, 2
      %s28 = sadd.s32 %s21, 1
      %s29 = ssub.s32 %s21, %s28
      %p30 = scmp.eq.s32.totalorder %s29, 0
      %s32 = sadd.s32 %s31, 1
      %s33 = scalar_select %p30, %s31, %s32
      %p36 = pneg %p30
      %p37 = scmp.eq.s32.totalorder %s21, 1
      %p38 = por %p36, %p37
      %p39 = scmp.ne.s32.totalorder %s31, %s34
      %p40 = scmp.eq.s32.totalorder %s21, 0
      %p41 = por %p39, %p40
      %p42 = scmp.ne.s32.totalorder %s31, %s34
      %p43 = scmp.eq.s32.totalorder %s26, 1
      %p44 = por %p42, %p43
      %p45 = scmp.ne.s32.totalorder %s34, %s35
      %p46 = scmp.eq.s32.totalorder %s26, 0
      %p47 = por %p45, %p46
      %p48 = scmp.ne.s32.totalorder %s34, %s35
      %p49 = scmp.eq.s32.totalorder %s27, 1
      %p50 = por %p48, %p49
      %p52 = scmp.ne.s32.totalorder %s35, %s51
      %p53 = scmp.eq.s32.totalorder %s27, 0
      %p54 = por %p52, %p53
      %s56 = sadd.s32 %s55, 1
      %p59 = scmp.eq.s32.totalorder %s21, 1
      %p60 = scmp.ne.s32.totalorder %s55, %s57
      %p61 = scmp.eq.s32.totalorder %s21, 0
      %p62 = por %p60, %p61
      %p63 = scmp.ne.s32.totalorder %s55, %s57
      %p64 = scmp.eq.s32.totalorder %s26, 1
      %p65 = por %p63, %p64
      %p66 = scmp.ne.s32.totalorder %s57, %s58
      %p67 = scmp.eq.s32.totalorder %s26, 0
      %p68 = por %p66, %p67
      %p69 = scmp.ne.s32.totalorder %s57, %s58
      %p70 = scmp.eq.s32.totalorder %s27, 1
      %p71 = por %p69, %p70
      %p73 = scmp.ne.s32.totalorder %s58, %s72
      %p74 = scmp.eq.s32.totalorder %s27, 0
      %p75 = por %p73, %p74
      %s77 = sadd.s32 %s76, 1
      %p80 = scmp.eq.s32.totalorder %s21, 1
      %p81 = scmp.ne.s32.totalorder %s76, %s78
      %p82 = scmp.eq.s32.totalorder %s21, 0
      %p83 = por %p81, %p82
      %p84 = scmp.ne.s32.totalorder %s76, %s78
      %p85 = scmp.eq.s32.totalorder %s26, 1
      %p86 = por %p84, %p85
      %p87 = scmp.ne.s32.totalorder %s78, %s79
      %p88 = scmp.eq.s32.totalorder %s26, 0
      %p89 = por %p87, %p88
      %p90 = scmp.ne.s32.totalorder %s78, %s79
      %p91 = scmp.eq.s32.totalorder %s27, 1
      %p92 = por %p90, %p91
      %p94 = scmp.ne.s32.totalorder %s79, %s93
      %p95 = scmp.eq.s32.totalorder %s27, 0
      %p96 = por %p94, %p95
      %s98 = sadd.s32 %s97, 1
      %p101 = scmp.eq.s32.totalorder %s21, 1
      %p102 = scmp.ne.s32.totalorder %s97, %s99
      %p103 = scmp.eq.s32.totalorder %s21, 0
      %p104 = por %p102, %p103
      %p105 = scmp.ne.s32.totalorder %s97, %s99
      %p106 = scmp.eq.s32.totalorder %s26, 1
      %p107 = por %p105, %p106
      %p108 = scmp.ne.s32.totalorder %s99, %s100
      %p109 = scmp.eq.s32.totalorder %s26, 0
      %p110 = por %p108, %p109
      %p111 = scmp.ne.s32.totalorder %s99, %s100
      %p112 = scmp.eq.s32.totalorder %s27, 1
      %p113 = por %p111, %p112
      %p115 = scmp.ne.s32.totalorder %s100, %s114
      %p116 = scmp.eq.s32.totalorder %s27, 0
      %p117 = por %p115, %p116
      %s119 = sadd.s32 %s118, 1
      %p122 = scmp.eq.s32.totalorder %s21, 1
      %p123 = scmp.ne.s32.totalorder %s118, %s120
      %p124 = scmp.eq.s32.totalorder %s21, 0
      %p125 = por %p123, %p124
      %p126 = scmp.ne.s32.totalorder %s118, %s120
      %p127 = scmp.eq.s32.totalorder %s26, 1
      %p128 = por %p126, %p127
      %p129 = scmp.ne.s32.totalorder %s120, %s121
      %p130 = scmp.eq.s32.totalorder %s26, 0
      %p131 = por %p129, %p130
      %p132 = scmp.ne.s32.totalorder %s120, %s121
      %p133 = scmp.eq.s32.totalorder %s27, 1
      %p134 = por %p132, %p133
      %p136 = scmp.ne.s32.totalorder %s121, %s135
      %p137 = scmp.eq.s32.totalorder %s27, 0
      %p138 = por %p136, %p137
      %s140 = sadd.s32 %s139, 1
      %p143 = scmp.eq.s32.totalorder %s21, 1
      %p144 = scmp.ne.s32.totalorder %s139, %s141
      %p145 = scmp.eq.s32.totalorder %s21, 0
      %p146 = por %p144, %p145
      %p147 = scmp.ne.s32.totalorder %s139, %s141
      %p148 = scmp.eq.s32.totalorder %s26, 1
      %p149 = por %p147, %p148
      %p150 = scmp.ne.s32.totalorder %s141, %s142
      %p151 = scmp.eq.s32.totalorder %s26, 0
      %p152 = por %p150, %p151
      %p153 = scmp.ne.s32.totalorder %s141, %s142
      %p154 = scmp.eq.s32.totalorder %s27, 1
      %p155 = por %p153, %p154
      %p157 = scmp.ne.s32.totalorder %s142, %s156
      %p158 = scmp.eq.s32.totalorder %s27, 0
      %p159 = por %p157, %p158
      %s161 = sadd.s32 %s160, 1
      %p164 = scmp.eq.s32.totalorder %s21, 1
      %p165 = scmp.ne.s32.totalorder %s160, %s162
      %p166 = scmp.eq.s32.totalorder %s21, 0
      %p167 = por %p165, %p166
      %p168 = scmp.ne.s32.totalorder %s160, %s162
      %p169 = scmp.eq.s32.totalorder %s26, 1
      %p170 = por %p168, %p169
      %p171 = scmp.ne.s32.totalorder %s162, %s163
      %p172 = scmp.eq.s32.totalorder %s26, 0
      %p173 = por %p171, %p172
      %p174 = scmp.ne.s32.totalorder %s162, %s163
      %p175 = scmp.eq.s32.totalorder %s27, 1
      %p176 = por %p174, %p175
      %p178 = scmp.ne.s32.totalorder %s163, %s177
      %p179 = scmp.eq.s32.totalorder %s27, 0
      %p180 = por %p178, %p179
      %s181 = ssub.s32 %s21, %s28
      %p182 = scmp.eq.s32.totalorder %s181, 0
      %s184 = sadd.s32 %s183, 1
      %s185 = scalar_select %p182, %s183, %s184
      %p188 = pneg %p182
      %p189 = scmp.eq.s32.totalorder %s21, 1
      %p190 = por %p188, %p189
      %p191 = scmp.ne.s32.totalorder %s183, %s186
      %p192 = scmp.eq.s32.totalorder %s21, 0
      %p193 = por %p191, %p192
      %p194 = scmp.ne.s32.totalorder %s183, %s186
      %p195 = scmp.eq.s32.totalorder %s26, 1
      %p196 = por %p194, %p195
      %p197 = scmp.ne.s32.totalorder %s186, %s187
      %p198 = scmp.eq.s32.totalorder %s26, 0
      %p199 = por %p197, %p198
      %p200 = scmp.ne.s32.totalorder %s186, %s187
      %p201 = scmp.eq.s32.totalorder %s27, 1
      %p202 = por %p200, %p201
      %p204 = scmp.ne.s32.totalorder %s187, %s203
      %p205 = scmp.eq.s32.totalorder %s27, 0
      %p206 = por %p204, %p205
      %p207 = scmp.le.s32.totalorder 1, %s21
      %p208 = scmp.lt.s32.totalorder %s21, 3
      %p209 = pnand %p207, %p208
      %p210 = pneg %p209
      // Predicated region
      $region9: #{tpu_custom_call.1} parent=5 // pred_check
        _
      $region10: #{tpu_custom_call.1} parent=5 // pred_check_branch
        %212 = sbr.rel (%p209) target = $region12
      $region11: #{tpu_custom_call.1} parent=5 // pred_region
        %s213 = ssub.s32 %s21, 1
        // Predicated region
        $region13: #{tpu_custom_call.1} parent=11 // pred_check
          %p214 = pneg %p68
        $region14: #{tpu_custom_call.1} parent=11 // pred_check_branch
          %216 = sbr.rel (%p214) target = $region16
        $region15: #{tpu_custom_call.1} parent=11 // pred_region
          %s218 = ssub.s32 2304, 2304
          %219 = vsyncadd [#allocation8], %s218
          %s220 = sshll.u32 [#allocation7], 4
          %s221 = int_to_ptr.vmem [resolvable:$true] %s220
          %226 = dma.hbm_to_vmem [thread:$0]  %s1, 2304, %s221, [#allocation8], 64, 64, 4
        $region16: #{tpu_custom_call.1} parent=11 // pred_fallthru
          _
        // Predicated region
        $region17: #{tpu_custom_call.1} parent=11 // pred_check
          %p227 = pneg %p89
        $region18: #{tpu_custom_call.1} parent=11 // pred_check_branch
          %229 = sbr.rel (%p227) target = $region20
        $region19: #{tpu_custom_call.1} parent=11 // pred_region
          _
        $region20: #{tpu_custom_call.1} parent=11 // pred_fallthru
          _
        // Predicated region
        $region21: #{tpu_custom_call.1} parent=11 // pred_check
          %p230 = pneg %p110
        $region22: #{tpu_custom_call.1} parent=11 // pred_check_branch
          %232 = sbr.rel (%p230) target = $region24
        $region23: #{tpu_custom_call.1} parent=11 // pred_region
          %s234 = ssub.s32 4608, 4608
          %235 = vsyncadd [#allocation8], %s234
          %s236 = sshll.u32 [#allocation9], 4
          %s237 = int_to_ptr.vmem [resolvable:$true] %s236
          %242 = dma.hbm_to_vmem [thread:$0]  %s3, 4608, %s237, [#allocation8], 64, 64, 4
        $region24: #{tpu_custom_call.1} parent=11 // pred_fallthru
          _
        // Predicated region
        $region25: #{tpu_custom_call.1} parent=11 // pred_check
          %p243 = pneg %p131
        $region26: #{tpu_custom_call.1} parent=11 // pred_check_branch
          %245 = sbr.rel (%p243) target = $region28
        $region27: #{tpu_custom_call.1} parent=11 // pred_region
          _
        $region28: #{tpu_custom_call.1} parent=11 // pred_fallthru
          _
        // Predicated region
        $region29: #{tpu_custom_call.1} parent=11 // pred_check
          %p246 = pneg %p152
        $region30: #{tpu_custom_call.1} parent=11 // pred_check_branch
          %248 = sbr.rel (%p246) target = $region32
        $region31: #{tpu_custom_call.1} parent=11 // pred_region
          %s250 = ssub.s32 4608, 4608
          %251 = vsyncadd [#allocation11], %s250
          %s252 = sshll.u32 [#allocation10], 4
          %s253 = int_to_ptr.vmem [resolvable:$true] %s252
          %258 = dma.hbm_to_vmem [thread:$0]  %s5, 4608, %s253, [#allocation11], 64, 64, 4
        $region32: #{tpu_custom_call.1} parent=11 // pred_fallthru
          _
        // Predicated region
        $region33: #{tpu_custom_call.1} parent=11 // pred_check
          %p259 = pneg %p173
        $region34: #{tpu_custom_call.1} parent=11 // pred_check_branch
          %261 = sbr.rel (%p259) target = $region36
        $region35: #{tpu_custom_call.1} parent=11 // pred_region
          _
        $region36: #{tpu_custom_call.1} parent=11 // pred_fallthru
          _
      $region12: #{tpu_custom_call.1} parent=5 // pred_fallthru
        _
      %p262 = scmp.lt.s32.totalorder %s21, 2
      // Predicated region
      $region37: #{tpu_custom_call.1} parent=5 // pred_check
        %p263 = pneg %p262
      $region38: #{tpu_custom_call.1} parent=5 // pred_check_branch
        %265 = sbr.rel (%p263) target = $region40
      $region39: #{tpu_custom_call.1} parent=5 // pred_region
        // Predicated region
        $region41: #{tpu_custom_call.1} parent=39 // pred_check
          %p266 = pneg %p41
        $region42: #{tpu_custom_call.1} parent=39 // pred_check_branch
          %268 = sbr.rel (%p266) target = $region44
        $region43: #{tpu_custom_call.1} parent=39 // pred_region
          %s269 = sand.u32 %s31, 1
          %s270 = scalar_lea.sflag [#allocation5], %s269
          %s271 = sand.u32 %s31, 1
          %s272 = smul.addr %s271, 128
          %s273 = scalar_lea.vmem [#allocation4], %s272
          %s275 = ssub.s32 2048, 2048
          %276 = vsyncadd %s270, %s275
          %s277 = smul.addr %s21, 32
          %s278 = smul.addr %s277, 64
          %s279 = scalar_lea.hbm %s0, %s278
          %s280 = sshll.u32 %s273, 4
          %s281 = int_to_ptr.vmem [resolvable:$true] %s280
          %286 = dma.hbm_to_vmem [thread:$0]  %s279, 2048, %s281, %s270, 64, 64, 4
        $region44: #{tpu_custom_call.1} parent=39 // pred_fallthru
          _
      $region40: #{tpu_custom_call.1} parent=5 // pred_fallthru
        _
      %p287 = scmp.le.s32.totalorder 1, %s21
      %p288 = scmp.lt.s32.totalorder %s21, 3
      %p289 = pnand %p287, %p288
      %p290 = pneg %p289
      // Predicated region
      $region45: #{tpu_custom_call.1} parent=5 // pred_check
        _
      $region46: #{tpu_custom_call.1} parent=5 // pred_check_branch
        %292 = sbr.rel (%p289) target = $region48
      $region47: #{tpu_custom_call.1} parent=5 // pred_region
        %s293 = ssub.s32 %s21, 1
        %s294 = sand.u32 %s34, 1
        %s295 = scalar_lea.sflag [#allocation5], %s294
        %s296 = sand.u32 %s34, 1
        %s297 = smul.addr %s296, 128
        %s298 = scalar_lea.vmem [#allocation4], %s297
        // Predicated region
        $region49: #{tpu_custom_call.1} parent=47 // pred_check
          %p299 = pneg %p47
        $region50: #{tpu_custom_call.1} parent=47 // pred_check_branch
          %301 = sbr.rel (%p299) target = $region52
        $region51: #{tpu_custom_call.1} parent=47 // pred_region
          %302 = dma.done %s295, 2048
        $region52: #{tpu_custom_call.1} parent=47 // pred_fallthru
          _
        // Predicated region
        $region53: #{tpu_custom_call.1} parent=47 // pred_check
          %p303 = pneg %p68
        $region54: #{tpu_custom_call.1} parent=47 // pred_check_branch
          %305 = sbr.rel (%p303) target = $region56
        $region55: #{tpu_custom_call.1} parent=47 // pred_region
          %306 = dma.done [#allocation8], 2304
        $region56: #{tpu_custom_call.1} parent=47 // pred_fallthru
          _
        // Predicated region
        $region57: #{tpu_custom_call.1} parent=47 // pred_check
          %p307 = pneg %p110
        $region58: #{tpu_custom_call.1} parent=47 // pred_check_branch
          %309 = sbr.rel (%p307) target = $region60
        $region59: #{tpu_custom_call.1} parent=47 // pred_region
          %310 = dma.done [#allocation8], 4608
        $region60: #{tpu_custom_call.1} parent=47 // pred_fallthru
          _
        // Predicated region
        $region61: #{tpu_custom_call.1} parent=47 // pred_check
          %p311 = pneg %p152
        $region62: #{tpu_custom_call.1} parent=47 // pred_check_branch
          %313 = sbr.rel (%p311) target = $region64
        $region63: #{tpu_custom_call.1} parent=47 // pred_region
          %314 = dma.done [#allocation11], 4608
        $region64: #{tpu_custom_call.1} parent=47 // pred_fallthru
          _
        %s315 = sand.u32 %s34, 1
        %s316 = scalar_lea.sflag [#allocation5], %s315
        %s317 = sand.u32 %s34, 1
        %s318 = smul.addr %s317, 128
        %s319 = scalar_lea.vmem [#allocation4], %s318
        %p320 = pneg %p47
        %p321 = pneg %p44
        %p322 = pneg %p68
        %p323 = pneg %p65
        %p324 = pneg %p89
        %p325 = pneg %p86
        %p326 = pneg %p110
        %p327 = pneg %p107
        %p328 = pneg %p131
        %p329 = pneg %p128
        %p330 = pneg %p152
        %p331 = pneg %p149
        %p332 = pneg %p173
        %p333 = pneg %p170
        %p334 = pneg %p199
        %p335 = pneg %p196
        %s336 = sand.u32 %s186, 1
        %s337 = scalar_lea.sflag [#allocation6], %s336
        %s338 = sand.u32 %s186, 1
        %s339 = smul.addr %s338, 256
        %s340 = scalar_lea.vmem [#allocation12], %s339
        %vm342 = vcmask 261120
        %343 = vst.msk [vmem:[#allocation2] sm:$0xff] %vm342, 0.0
        %344 = vst.msk [vmem:[#allocation2 + $0x8] sm:$0xff] %vm342, 0.0
        %vm345 = vcmask 254976
        %346 = vst.msk [vmem:[#allocation2 + $0x10] sm:$0x3] %vm345, 0.0
        %s347 = scalar_lea.vmem [#allocation2], 408
        %348 = vst.msk [vmem:[%s347] sm:$0xff] %vm342, 0.0
        %349 = vst.msk [vmem:[%s347 + $0x8] sm:$0xff] %vm342, 0.0
        %350 = vst.msk [vmem:[%s347 + $0x10] sm:$0x3] %vm345, 0.0
        %vm351 = vcmask 253952
        %352 = vst.msk [vmem:[#allocation2] sm:$0x1] %vm351, 0.0
        %353 = vst.msk [vmem:[#allocation2 + $0x18] sm:$0x1] %vm351, 0.0
        %354 = vst.msk [vmem:[#allocation2 + $0x30] sm:$0x1] %vm351, 0.0
        %355 = vst.msk [vmem:[#allocation2 + $0x48] sm:$0x1] %vm351, 0.0
        %356 = vst.msk [vmem:[#allocation2 + $0x60] sm:$0x1] %vm351, 0.0
        %357 = vst.msk [vmem:[#allocation2 + $0x78] sm:$0x1] %vm351, 0.0
        %358 = vst.msk [vmem:[#allocation2 + $0x90] sm:$0x1] %vm351, 0.0
        %359 = vst.msk [vmem:[#allocation2 + $0xa8] sm:$0x1] %vm351, 0.0
        %360 = vst.msk [vmem:[#allocation2 + $0xc0] sm:$0x1] %vm351, 0.0
        %361 = vst.msk [vmem:[#allocation2 + $0xd8] sm:$0x1] %vm351, 0.0
        %362 = vst.msk [vmem:[#allocation2 + $0xf0] sm:$0x1] %vm351, 0.0
        %363 = vst.msk [vmem:[#allocation2 + $0x108] sm:$0x1] %vm351, 0.0
        %364 = vst.msk [vmem:[#allocation2 + $0x120] sm:$0x1] %vm351, 0.0
        %365 = vst.msk [vmem:[#allocation2 + $0x138] sm:$0x1] %vm351, 0.0
        %366 = vst.msk [vmem:[#allocation2 + $0x150] sm:$0x1] %vm351, 0.0
        %367 = vst.msk [vmem:[#allocation2 + $0x168] sm:$0x1] %vm351, 0.0
        %368 = vst.msk [vmem:[#allocation2 + $0x180] sm:$0x1] %vm351, 0.0
        %369 = vst.msk [vmem:[#allocation2 + $0x198] sm:$0x1] %vm351, 0.0
        %370 = vst.msk [vmem:[#allocation2 + $0x11] sm:$0x1] %vm351, 0.0
        %371 = vst.msk [vmem:[#allocation2 + $0x29] sm:$0x1] %vm351, 0.0
        %372 = vst.msk [vmem:[#allocation2 + $0x41] sm:$0x1] %vm351, 0.0
        %373 = vst.msk [vmem:[#allocation2 + $0x59] sm:$0x1] %vm351, 0.0
        %374 = vst.msk [vmem:[#allocation2 + $0x71] sm:$0x1] %vm351, 0.0
        %375 = vst.msk [vmem:[#allocation2 + $0x89] sm:$0x1] %vm351, 0.0
        %376 = vst.msk [vmem:[#allocation2 + $0xa1] sm:$0x1] %vm351, 0.0
        %377 = vst.msk [vmem:[#allocation2 + $0xb9] sm:$0x1] %vm351, 0.0
        %378 = vst.msk [vmem:[#allocation2 + $0xd1] sm:$0x1] %vm351, 0.0
        %379 = vst.msk [vmem:[#allocation2 + $0xe9] sm:$0x1] %vm351, 0.0
        %380 = vst.msk [vmem:[#allocation2 + $0x101] sm:$0x1] %vm351, 0.0
        %381 = vst.msk [vmem:[#allocation2 + $0x119] sm:$0x1] %vm351, 0.0
        %382 = vst.msk [vmem:[#allocation2 + $0x131] sm:$0x1] %vm351, 0.0
        %383 = vst.msk [vmem:[#allocation2 + $0x149] sm:$0x1] %vm351, 0.0
        %384 = vst.msk [vmem:[#allocation2 + $0x161] sm:$0x1] %vm351, 0.0
        %385 = vst.msk [vmem:[#allocation2 + $0x179] sm:$0x1] %vm351, 0.0
        %386 = vst.msk [vmem:[#allocation2 + $0x191] sm:$0x1] %vm351, 0.0
        %387 = vst.msk [vmem:[#allocation2 + $0x1a9] sm:$0x1] %vm351, 0.0
        %vm388 = vcmask 523264
        %389 = vst.msk [vmem:[#allocation3] sm:$0xff] %vm388, 0.0
        %390 = vst.msk [vmem:[#allocation3 + $0x8] sm:$0xff] %vm388, 0.0
        %vm391 = vcmask 517120
        %392 = vst.msk [vmem:[#allocation3 + $0x10] sm:$0x3] %vm391, 0.0
        %s393 = scalar_lea.vmem [#allocation3], 408
        %394 = vst.msk [vmem:[%s393] sm:$0xff] %vm388, 0.0
        %395 = vst.msk [vmem:[%s393 + $0x8] sm:$0xff] %vm388, 0.0
        %396 = vst.msk [vmem:[%s393 + $0x10] sm:$0x3] %vm391, 0.0
        %vm397 = vcmask 516096
        %398 = vst.msk [vmem:[#allocation3] sm:$0x1] %vm397, 0.0
        %399 = vst.msk [vmem:[#allocation3 + $0x18] sm:$0x1] %vm397, 0.0
        %400 = vst.msk [vmem:[#allocation3 + $0x30] sm:$0x1] %vm397, 0.0
        %401 = vst.msk [vmem:[#allocation3 + $0x48] sm:$0x1] %vm397, 0.0
        %402 = vst.msk [vmem:[#allocation3 + $0x60] sm:$0x1] %vm397, 0.0
        %403 = vst.msk [vmem:[#allocation3 + $0x78] sm:$0x1] %vm397, 0.0
        %404 = vst.msk [vmem:[#allocation3 + $0x90] sm:$0x1] %vm397, 0.0
        %405 = vst.msk [vmem:[#allocation3 + $0xa8] sm:$0x1] %vm397, 0.0
        %406 = vst.msk [vmem:[#allocation3 + $0xc0] sm:$0x1] %vm397, 0.0
        %407 = vst.msk [vmem:[#allocation3 + $0xd8] sm:$0x1] %vm397, 0.0
        %408 = vst.msk [vmem:[#allocation3 + $0xf0] sm:$0x1] %vm397, 0.0
        %409 = vst.msk [vmem:[#allocation3 + $0x108] sm:$0x1] %vm397, 0.0
        %410 = vst.msk [vmem:[#allocation3 + $0x120] sm:$0x1] %vm397, 0.0
        %411 = vst.msk [vmem:[#allocation3 + $0x138] sm:$0x1] %vm397, 0.0
        %412 = vst.msk [vmem:[#allocation3 + $0x150] sm:$0x1] %vm397, 0.0
        %413 = vst.msk [vmem:[#allocation3 + $0x168] sm:$0x1] %vm397, 0.0
        %414 = vst.msk [vmem:[#allocation3 + $0x180] sm:$0x1] %vm397, 0.0
        %415 = vst.msk [vmem:[#allocation3 + $0x198] sm:$0x1] %vm397, 0.0
        %416 = vst.msk [vmem:[#allocation3 + $0x11] sm:$0x1] %vm397, 0.0
        %417 = vst.msk [vmem:[#allocation3 + $0x29] sm:$0x1] %vm397, 0.0
        %418 = vst.msk [vmem:[#allocation3 + $0x41] sm:$0x1] %vm397, 0.0
        %419 = vst.msk [vmem:[#allocation3 + $0x59] sm:$0x1] %vm397, 0.0
        %420 = vst.msk [vmem:[#allocation3 + $0x71] sm:$0x1] %vm397, 0.0
        %421 = vst.msk [vmem:[#allocation3 + $0x89] sm:$0x1] %vm397, 0.0
        %422 = vst.msk [vmem:[#allocation3 + $0xa1] sm:$0x1] %vm397, 0.0
        %423 = vst.msk [vmem:[#allocation3 + $0xb9] sm:$0x1] %vm397, 0.0
        %424 = vst.msk [vmem:[#allocation3 + $0xd1] sm:$0x1] %vm397, 0.0
        %425 = vst.msk [vmem:[#allocation3 + $0xe9] sm:$0x1] %vm397, 0.0
        %426 = vst.msk [vmem:[#allocation3 + $0x101] sm:$0x1] %vm397, 0.0
        %427 = vst.msk [vmem:[#allocation3 + $0x119] sm:$0x1] %vm397, 0.0
        %428 = vst.msk [vmem:[#allocation3 + $0x131] sm:$0x1] %vm397, 0.0
        %429 = vst.msk [vmem:[#allocation3 + $0x149] sm:$0x1] %vm397, 0.0
        %430 = vst.msk [vmem:[#allocation3 + $0x161] sm:$0x1] %vm397, 0.0
        %431 = vst.msk [vmem:[#allocation3 + $0x179] sm:$0x1] %vm397, 0.0
        %432 = vst.msk [vmem:[#allocation3 + $0x191] sm:$0x1] %vm397, 0.0
        %433 = vst.msk [vmem:[#allocation3 + $0x1a9] sm:$0x1] %vm397, 0.0
        %v434 = vld [vmem:[%s298] sm:$0xf]
        %v435 = vld [vmem:[%s298 + $0x4] sm:$0xf]
        %v436 = vld [vmem:[%s298 + $0x8] sm:$0xf]
        %v437 = vld [vmem:[%s298 + $0xc] sm:$0xf]
        %v438 = vld [vmem:[%s298 + $0x10] sm:$0xf]
        %v439 = vld [vmem:[%s298 + $0x14] sm:$0xf]
        %v440 = vld [vmem:[%s298 + $0x18] sm:$0xf]
        %v441 = vld [vmem:[%s298 + $0x1c] sm:$0xf]
        %v442 = vld [vmem:[%s298 + $0x20] sm:$0xf]
        %v443 = vld [vmem:[%s298 + $0x24] sm:$0xf]
        %v444 = vld [vmem:[%s298 + $0x28] sm:$0xf]
        %v445 = vld [vmem:[%s298 + $0x2c] sm:$0xf]
        %v446 = vld [vmem:[%s298 + $0x30] sm:$0xf]
        %v447 = vld [vmem:[%s298 + $0x34] sm:$0xf]
        %v448 = vld [vmem:[%s298 + $0x38] sm:$0xf]
        %v449 = vld [vmem:[%s298 + $0x3c] sm:$0xf]
        %v450 = vld [vmem:[%s298 + $0x40] sm:$0xf]
        %v451 = vld [vmem:[%s298 + $0x44] sm:$0xf]
        %v452 = vld [vmem:[%s298 + $0x48] sm:$0xf]
        %v453 = vld [vmem:[%s298 + $0x4c] sm:$0xf]
        %v454 = vld [vmem:[%s298 + $0x50] sm:$0xf]
        %v455 = vld [vmem:[%s298 + $0x54] sm:$0xf]
        %v456 = vld [vmem:[%s298 + $0x58] sm:$0xf]
        %v457 = vld [vmem:[%s298 + $0x5c] sm:$0xf]
        %v458 = vld [vmem:[%s298 + $0x60] sm:$0xf]
        %v459 = vld [vmem:[%s298 + $0x64] sm:$0xf]
        %v460 = vld [vmem:[%s298 + $0x68] sm:$0xf]
        %v461 = vld [vmem:[%s298 + $0x6c] sm:$0xf]
        %v462 = vld [vmem:[%s298 + $0x70] sm:$0xf]
        %v463 = vld [vmem:[%s298 + $0x74] sm:$0xf]
        %v464 = vld [vmem:[%s298 + $0x78] sm:$0xf]
        %v465 = vld [vmem:[%s298 + $0x7c] sm:$0xf]
        %v466 = vunpack.c.l.bf16 %v434
        %v467 = vunpack.c.l.bf16 %v435
        %v468 = vunpack.c.l.bf16 %v436
        %v469 = vunpack.c.l.bf16 %v437
        %v470 = vunpack.c.l.bf16 %v438
        %v471 = vunpack.c.l.bf16 %v439
        %v472 = vunpack.c.l.bf16 %v440
        %v473 = vunpack.c.l.bf16 %v441
        %v474 = vunpack.c.l.bf16 %v442
        %v475 = vunpack.c.l.bf16 %v443
        %v476 = vunpack.c.l.bf16 %v444
        %v477 = vunpack.c.l.bf16 %v445
        %v478 = vunpack.c.l.bf16 %v446
        %v479 = vunpack.c.l.bf16 %v447
        %v480 = vunpack.c.l.bf16 %v448
        %v481 = vunpack.c.l.bf16 %v449
        %v482 = vunpack.c.l.bf16 %v450
        %v483 = vunpack.c.l.bf16 %v451
        %v484 = vunpack.c.l.bf16 %v452
        %v485 = vunpack.c.l.bf16 %v453
        %v486 = vunpack.c.l.bf16 %v454
        %v487 = vunpack.c.l.bf16 %v455
        %v488 = vunpack.c.l.bf16 %v456
        %v489 = vunpack.c.l.bf16 %v457
        %v490 = vunpack.c.l.bf16 %v458
        %v491 = vunpack.c.l.bf16 %v459
        %v492 = vunpack.c.l.bf16 %v460
        %v493 = vunpack.c.l.bf16 %v461
        %v494 = vunpack.c.l.bf16 %v462
        %v495 = vunpack.c.l.bf16 %v463
        %v496 = vunpack.c.l.bf16 %v464
        %v497 = vunpack.c.l.bf16 %v465
        %s498 = scalar_lea.vmem [#allocation2], 24
        %499 = vst.msk [vmem:[%s498 + $0x1] sm:$0xff] %vm342, %v466
        %500 = vst.msk [vmem:[%s498 + $0x9] sm:$0xff] %vm342, %v467
        %501 = vst.msk [vmem:[%s498 + $0x19] sm:$0xff] %vm342, %v468
        %502 = vst.msk [vmem:[%s498 + $0x21] sm:$0xff] %vm342, %v469
        %503 = vst.msk [vmem:[%s498 + $0x31] sm:$0xff] %vm342, %v470
        %504 = vst.msk [vmem:[%s498 + $0x39] sm:$0xff] %vm342, %v471
        %505 = vst.msk [vmem:[%s498 + $0x49] sm:$0xff] %vm342, %v472
        %506 = vst.msk [vmem:[%s498 + $0x51] sm:$0xff] %vm342, %v473
        %507 = vst.msk [vmem:[%s498 + $0x61] sm:$0xff] %vm342, %v474
        %508 = vst.msk [vmem:[%s498 + $0x69] sm:$0xff] %vm342, %v475
        %509 = vst.msk [vmem:[%s498 + $0x79] sm:$0xff] %vm342, %v476
        %510 = vst.msk [vmem:[%s498 + $0x81] sm:$0xff] %vm342, %v477
        %511 = vst.msk [vmem:[%s498 + $0x91] sm:$0xff] %vm342, %v478
        %512 = vst.msk [vmem:[%s498 + $0x99] sm:$0xff] %vm342, %v479
        %513 = vst.msk [vmem:[%s498 + $0xa9] sm:$0xff] %vm342, %v480
        %514 = vst.msk [vmem:[%s498 + $0xb1] sm:$0xff] %vm342, %v481
        %515 = vst.msk [vmem:[%s498 + $0xc1] sm:$0xff] %vm342, %v482
        %516 = vst.msk [vmem:[%s498 + $0xc9] sm:$0xff] %vm342, %v483
        %517 = vst.msk [vmem:[%s498 + $0xd9] sm:$0xff] %vm342, %v484
        %518 = vst.msk [vmem:[%s498 + $0xe1] sm:$0xff] %vm342, %v485
        %519 = vst.msk [vmem:[%s498 + $0xf1] sm:$0xff] %vm342, %v486
        %520 = vst.msk [vmem:[%s498 + $0xf9] sm:$0xff] %vm342, %v487
        %521 = vst.msk [vmem:[%s498 + $0x109] sm:$0xff] %vm342, %v488
        %522 = vst.msk [vmem:[%s498 + $0x111] sm:$0xff] %vm342, %v489
        %523 = vst.msk [vmem:[%s498 + $0x121] sm:$0xff] %vm342, %v490
        %524 = vst.msk [vmem:[%s498 + $0x129] sm:$0xff] %vm342, %v491
        %525 = vst.msk [vmem:[%s498 + $0x139] sm:$0xff] %vm342, %v492
        %526 = vst.msk [vmem:[%s498 + $0x141] sm:$0xff] %vm342, %v493
        %527 = vst.msk [vmem:[%s498 + $0x151] sm:$0xff] %vm342, %v494
        %528 = vst.msk [vmem:[%s498 + $0x159] sm:$0xff] %vm342, %v495
        %529 = vst.msk [vmem:[%s498 + $0x169] sm:$0xff] %vm342, %v496
        %530 = vst.msk [vmem:[%s498 + $0x171] sm:$0xff] %vm342, %v497
        %v531 = vld [vmem:[#allocation7] sm:$0xf]
        %v532 = vld [vmem:[#allocation7 + $0x4] sm:$0xf]
        %v533 = vld [vmem:[#allocation7 + $0x8] sm:$0xf]
        %v534 = vld [vmem:[#allocation7 + $0xc] sm:$0xf]
        %v535 = vld [vmem:[#allocation7 + $0x10] sm:$0xf]
        %v536 = vld [vmem:[#allocation7 + $0x14] sm:$0xf]
        %v537 = vld [vmem:[#allocation7 + $0x18] sm:$0xf]
        %v538 = vld [vmem:[#allocation7 + $0x1c] sm:$0xf]
        %v539 = vld [vmem:[#allocation7 + $0x20] sm:$0xf]
        %v540 = vld [vmem:[#allocation7 + $0x24] sm:$0xf]
        %v541 = vld [vmem:[#allocation7 + $0x28] sm:$0xf]
        %v542 = vld [vmem:[#allocation7 + $0x2c] sm:$0xf]
        %v543 = vld [vmem:[#allocation7 + $0x30] sm:$0xf]
        %v544 = vld [vmem:[#allocation7 + $0x34] sm:$0xf]
        %v545 = vld [vmem:[#allocation7 + $0x38] sm:$0xf]
        %v546 = vld [vmem:[#allocation7 + $0x3c] sm:$0xf]
        %v547 = vld [vmem:[#allocation7 + $0x40] sm:$0xf]
        %v548 = vld [vmem:[#allocation7 + $0x44] sm:$0xf]
        %v549 = vld [vmem:[#allocation7 + $0x48] sm:$0xf]
        %v550 = vld [vmem:[#allocation7 + $0x4c] sm:$0xf]
        %v551 = vld [vmem:[#allocation7 + $0x50] sm:$0xf]
        %v552 = vld [vmem:[#allocation7 + $0x54] sm:$0xf]
        %v553 = vld [vmem:[#allocation7 + $0x58] sm:$0xf]
        %v554 = vld [vmem:[#allocation7 + $0x5c] sm:$0xf]
        %v555 = vld [vmem:[#allocation7 + $0x60] sm:$0xf]
        %v556 = vld [vmem:[#allocation7 + $0x64] sm:$0xf]
        %v557 = vld [vmem:[#allocation7 + $0x68] sm:$0xf]
        %v558 = vld [vmem:[#allocation7 + $0x6c] sm:$0xf]
        %v559 = vld [vmem:[#allocation7 + $0x70] sm:$0xf]
        %v560 = vld [vmem:[#allocation7 + $0x74] sm:$0xf]
        %v561 = vld [vmem:[#allocation7 + $0x78] sm:$0xf]
        %v562 = vld [vmem:[#allocation7 + $0x7c] sm:$0xf]
        %v563 = vld [vmem:[#allocation7 + $0x80] sm:$0xf]
        %v564 = vld [vmem:[#allocation7 + $0x84] sm:$0xf]
        %v565 = vld [vmem:[#allocation7 + $0x88] sm:$0xf]
        %v566 = vld [vmem:[#allocation7 + $0x8c] sm:$0xf]
        %v567 = vld [vmem:[#allocation2] sm:$0xff]
        %v568 = vld [vmem:[#allocation2 + $0x8] sm:$0xff]
        %v569 = vld [vmem:[#allocation2 + $0x10] sm:$0x3]
        %v570 = vld [vmem:[#allocation2 + $0x18] sm:$0xff]
        %v571 = vld [vmem:[#allocation2 + $0x20] sm:$0xff]
        %v572 = vld [vmem:[#allocation2 + $0x28] sm:$0x3]
        %v573 = vld [vmem:[#allocation2 + $0x30] sm:$0xff]
        %v574 = vld [vmem:[#allocation2 + $0x38] sm:$0xff]
        %v575 = vld [vmem:[#allocation2 + $0x40] sm:$0x3]
        %v576 = vld [vmem:[#allocation2 + $0x48] sm:$0xff]
        %v577 = vld [vmem:[#allocation2 + $0x50] sm:$0xff]
        %v578 = vld [vmem:[#allocation2 + $0x58] sm:$0x3]
        %v579 = vld [vmem:[#allocation2 + $0x60] sm:$0xff]
        %v580 = vld [vmem:[#allocation2 + $0x68] sm:$0xff]
        %v581 = vld [vmem:[#allocation2 + $0x70] sm:$0x3]
        %v582 = vld [vmem:[#allocation2 + $0x78] sm:$0xff]
        %v583 = vld [vmem:[#allocation2 + $0x80] sm:$0xff]
        %v584 = vld [vmem:[#allocation2 + $0x88] sm:$0x3]
        %v585 = vld [vmem:[#allocation2 + $0x90] sm:$0xff]
        %v586 = vld [vmem:[#allocation2 + $0x98] sm:$0xff]
        %v587 = vld [vmem:[#allocation2 + $0xa0] sm:$0x3]
        %v588 = vld [vmem:[#allocation2 + $0xa8] sm:$0xff]
        %v589 = vld [vmem:[#allocation2 + $0xb0] sm:$0xff]
        %v590 = vld [vmem:[#allocation2 + $0xb8] sm:$0x3]
        %v591 = vld [vmem:[#allocation2 + $0xc0] sm:$0xff]
        %v592 = vld [vmem:[#allocation2 + $0xc8] sm:$0xff]
        %v593 = vld [vmem:[#allocation2 + $0xd0] sm:$0x3]
        %v594 = vld [vmem:[#allocation2 + $0xd8] sm:$0xff]
        %v595 = vld [vmem:[#allocation2 + $0xe0] sm:$0xff]
        %v596 = vld [vmem:[#allocation2 + $0xe8] sm:$0x3]
        %v597 = vld [vmem:[#allocation2 + $0xf0] sm:$0xff]
        %v598 = vld [vmem:[#allocation2 + $0xf8] sm:$0xff]
        %v599 = vld [vmem:[#allocation2 + $0x100] sm:$0x3]
        %v600 = vld [vmem:[#allocation2 + $0x108] sm:$0xff]
        %v601 = vld [vmem:[#allocation2 + $0x110] sm:$0xff]
        %v602 = vld [vmem:[#allocation2 + $0x118] sm:$0x3]
        %v603 = vld [vmem:[#allocation2 + $0x120] sm:$0xff]
        %v604 = vld [vmem:[#allocation2 + $0x128] sm:$0xff]
        %v605 = vld [vmem:[#allocation2 + $0x130] sm:$0x3]
        %v606 = vld [vmem:[#allocation2 + $0x138] sm:$0xff]
        %v607 = vld [vmem:[#allocation2 + $0x140] sm:$0xff]
        %v608 = vld [vmem:[#allocation2 + $0x148] sm:$0x3]
        %v609 = vld [vmem:[#allocation2 + $0x150] sm:$0xff]
        %v610 = vld [vmem:[#allocation2 + $0x158] sm:$0xff]
        %v611 = vld [vmem:[#allocation2 + $0x160] sm:$0x3]
        %v612 = vld [vmem:[#allocation2 + $0x168] sm:$0xff]
        %v613 = vld [vmem:[#allocation2 + $0x170] sm:$0xff]
        %v614 = vld [vmem:[#allocation2 + $0x178] sm:$0x3]
        %v615 = vld [vmem:[#allocation2 + $0x180] sm:$0xff]
        %v616 = vld [vmem:[#allocation2 + $0x188] sm:$0xff]
        %v617 = vld [vmem:[#allocation2 + $0x190] sm:$0x3]
        %v618 = vld [vmem:[#allocation2 + $0x198] sm:$0xff]
        %v619 = vld [vmem:[#allocation2 + $0x1a0] sm:$0xff]
        %v620 = vld [vmem:[#allocation2 + $0x1a8] sm:$0x3]
        %v621 = vpack.c.bf16 %v568, %v567
        %v622 = vpack.c.bf16 %v569, %v569
        %v623 = vpack.c.bf16 %v571, %v570
        %v624 = vpack.c.bf16 %v572, %v572
        %v625 = vpack.c.bf16 %v574, %v573
        %v626 = vpack.c.bf16 %v575, %v575
        %v627 = vpack.c.bf16 %v577, %v576
        %v628 = vpack.c.bf16 %v578, %v578
        %v629 = vpack.c.bf16 %v580, %v579
        %v630 = vpack.c.bf16 %v581, %v581
        %v631 = vpack.c.bf16 %v583, %v582
        %v632 = vpack.c.bf16 %v584, %v584
        %v633 = vpack.c.bf16 %v586, %v585
        %v634 = vpack.c.bf16 %v587, %v587
        %v635 = vpack.c.bf16 %v589, %v588
        %v636 = vpack.c.bf16 %v590, %v590
        %v637 = vpack.c.bf16 %v592, %v591
        %v638 = vpack.c.bf16 %v593, %v593
        %v639 = vpack.c.bf16 %v595, %v594
        %v640 = vpack.c.bf16 %v596, %v596
        %v641 = vpack.c.bf16 %v598, %v597
        %v642 = vpack.c.bf16 %v599, %v599
        %v643 = vpack.c.bf16 %v601, %v600
        %v644 = vpack.c.bf16 %v602, %v602
        %v645 = vpack.c.bf16 %v604, %v603
        %v646 = vpack.c.bf16 %v605, %v605
        %v647 = vpack.c.bf16 %v607, %v606
        %v648 = vpack.c.bf16 %v608, %v608
        %v649 = vpack.c.bf16 %v610, %v609
        %v650 = vpack.c.bf16 %v611, %v611
        %v651 = vpack.c.bf16 %v613, %v612
        %v652 = vpack.c.bf16 %v614, %v614
        %v653 = vpack.c.bf16 %v616, %v615
        %v654 = vpack.c.bf16 %v617, %v617
        %v655 = vpack.c.bf16 %v619, %v618
        %v656 = vpack.c.bf16 %v620, %v620
        %vm657 = vsmask.f32 7424
        %v659 = vshrl.u32 %v621, 16
        %v661 = vshll.u32 %v621, 16
        %v663 = vrot.slane %v661, 1
        %v664 = vor.u32 %v659, %v663
        %v666 = vshll.u32 %v622, 16
        %v668 = vrot.slane %v666, 1
        %v669 = vsel %vm657, %v664, %v668
        %v671 = vshrl.u32 %v623, 16
        %v673 = vshll.u32 %v623, 16
        %v675 = vrot.slane %v673, 1
        %v676 = vor.u32 %v671, %v675
        %v678 = vshll.u32 %v624, 16
        %v680 = vrot.slane %v678, 1
        %v681 = vsel %vm657, %v676, %v680
        %v683 = vshrl.u32 %v625, 16
        %v685 = vshll.u32 %v625, 16
        %v687 = vrot.slane %v685, 1
        %v688 = vor.u32 %v683, %v687
        %v690 = vshll.u32 %v626, 16
        %v692 = vrot.slane %v690, 1
        %v693 = vsel %vm657, %v688, %v692
        %v695 = vshrl.u32 %v627, 16
        %v697 = vshll.u32 %v627, 16
        %v699 = vrot.slane %v697, 1
        %v700 = vor.u32 %v695, %v699
        %v702 = vshll.u32 %v628, 16
        %v704 = vrot.slane %v702, 1
        %v705 = vsel %vm657, %v700, %v704
        %v707 = vshrl.u32 %v629, 16
        %v709 = vshll.u32 %v629, 16
        %v711 = vrot.slane %v709, 1
        %v712 = vor.u32 %v707, %v711
        %v714 = vshll.u32 %v630, 16
        %v716 = vrot.slane %v714, 1
        %v717 = vsel %vm657, %v712, %v716
        %v719 = vshrl.u32 %v631, 16
        %v721 = vshll.u32 %v631, 16
        %v723 = vrot.slane %v721, 1
        %v724 = vor.u32 %v719, %v723
        %v726 = vshll.u32 %v632, 16
        %v728 = vrot.slane %v726, 1
        %v729 = vsel %vm657, %v724, %v728
        %v731 = vshrl.u32 %v633, 16
        %v733 = vshll.u32 %v633, 16
        %v735 = vrot.slane %v733, 1
        %v736 = vor.u32 %v731, %v735
        %v738 = vshll.u32 %v634, 16
        %v740 = vrot.slane %v738, 1
        %v741 = vsel %vm657, %v736, %v740
        %v743 = vshrl.u32 %v635, 16
        %v745 = vshll.u32 %v635, 16
        %v747 = vrot.slane %v745, 1
        %v748 = vor.u32 %v743, %v747
        %v750 = vshll.u32 %v636, 16
        %v752 = vrot.slane %v750, 1
        %v753 = vsel %vm657, %v748, %v752
        %v755 = vshrl.u32 %v637, 16
        %v757 = vshll.u32 %v637, 16
        %v759 = vrot.slane %v757, 1
        %v760 = vor.u32 %v755, %v759
        %v762 = vshll.u32 %v638, 16
        %v764 = vrot.slane %v762, 1
        %v765 = vsel %vm657, %v760, %v764
        %v767 = vshrl.u32 %v639, 16
        %v769 = vshll.u32 %v639, 16
        %v771 = vrot.slane %v769, 1
        %v772 = vor.u32 %v767, %v771
        %v774 = vshll.u32 %v640, 16
        %v776 = vrot.slane %v774, 1
        %v777 = vsel %vm657, %v772, %v776
        %v779 = vshrl.u32 %v641, 16
        %v781 = vshll.u32 %v641, 16
        %v783 = vrot.slane %v781, 1
        %v784 = vor.u32 %v779, %v783
        %v786 = vshll.u32 %v642, 16
        %v788 = vrot.slane %v786, 1
        %v789 = vsel %vm657, %v784, %v788
        %v791 = vshrl.u32 %v643, 16
        %v793 = vshll.u32 %v643, 16
        %v795 = vrot.slane %v793, 1
        %v796 = vor.u32 %v791, %v795
        %v798 = vshll.u32 %v644, 16
        %v800 = vrot.slane %v798, 1
        %v801 = vsel %vm657, %v796, %v800
        %v803 = vshrl.u32 %v645, 16
        %v805 = vshll.u32 %v645, 16
        %v807 = vrot.slane %v805, 1
        %v808 = vor.u32 %v803, %v807
        %v810 = vshll.u32 %v646, 16
        %v812 = vrot.slane %v810, 1
        %v813 = vsel %vm657, %v808, %v812
        %v815 = vshrl.u32 %v647, 16
        %v817 = vshll.u32 %v647, 16
        %v819 = vrot.slane %v817, 1
        %v820 = vor.u32 %v815, %v819
        %v822 = vshll.u32 %v648, 16
        %v824 = vrot.slane %v822, 1
        %v825 = vsel %vm657, %v820, %v824
        %v827 = vshrl.u32 %v649, 16
        %v829 = vshll.u32 %v649, 16
        %v831 = vrot.slane %v829, 1
        %v832 = vor.u32 %v827, %v831
        %v834 = vshll.u32 %v650, 16
        %v836 = vrot.slane %v834, 1
        %v837 = vsel %vm657, %v832, %v836
        %v839 = vshrl.u32 %v651, 16
        %v841 = vshll.u32 %v651, 16
        %v843 = vrot.slane %v841, 1
        %v844 = vor.u32 %v839, %v843
        %v846 = vshll.u32 %v652, 16
        %v848 = vrot.slane %v846, 1
        %v849 = vsel %vm657, %v844, %v848
        %v854 = vunpack.c.l.b16 %v535
        %v855 = vunpack.c.l.b16 %v536
        %v856 = vunpack.c.l.b16 %v537
        %v857 = vunpack.c.l.b16 %v538
        %v858 = vpack.c.b16 %v855, %v854
        %v859 = vpack.c.b16 %v857, %v856
        %v863 = vsel %vm342, %v669, 0
        %v866 = vsel %vm342, %v681, 0
        %v869 = vsel %vm342, %v693, 0
        %v872 = vsel %vm342, %v705, 0
        %v875 = vsel %vm342, %v717, 0
        %v878 = vsel %vm342, %v729, 0
        %v881 = vsel %vm342, %v741, 0
        %v884 = vsel %vm342, %v753, 0
        %v887 = vsel %vm342, %v765, 0
        %v890 = vsel %vm342, %v777, 0
        %v893 = vsel %vm342, %v789, 0
        %v896 = vsel %vm342, %v801, 0
        %v899 = vsel %vm342, %v813, 0
        %v902 = vsel %vm342, %v825, 0
        %v905 = vsel %vm342, %v837, 0
        %v908 = vsel %vm342, %v849, 0
        %910 = vmatprep.subr.bf16.mxu0 0
        %911 = vmatpush1.bf16.msra.mxu0 %v858
        %912 = vmatprep.subr.bf16.mxu0 0
        %913 = vmatpush1.bf16.msra.mxu0 %v859
        %914 = vmatprep.subr.bf16.mxu0 0
        %915 = vmatpush1.bf16.msra.mxu0 0
        %916 = vmatprep.subr.bf16.mxu0 0
        %917 = vmatpush1.bf16.msra.mxu0 0
        %918 = vmatprep.subr.bf16.mxu0 0
        %919 = vmatpush1.bf16.msra.mxu0 0
        %920 = vmatprep.subr.bf16.mxu0 0
        %921 = vmatpush1.bf16.msra.mxu0 0
        %922 = vmatprep.subr.bf16.mxu0 0
        %923 = vmatpush1.bf16.msra.mxu0 0
        %924 = vmatprep.subr.bf16.mxu0 0
        %925 = vmatpush1.bf16.msra.mxu0 0
        %926 = vmatprep.subr.bf16.mxu0 0
        %927 = vmatpush1.bf16.msra.mxu0 0
        %928 = vmatprep.subr.bf16.mxu0 0
        %929 = vmatpush1.bf16.msra.mxu0 0
        %930 = vmatprep.subr.bf16.mxu0 0
        %931 = vmatpush1.bf16.msra.mxu0 0
        %932 = vmatprep.subr.bf16.mxu0 0
        %933 = vmatpush1.bf16.msra.mxu0 0
        %934 = vmatprep.subr.bf16.mxu0 0
        %935 = vmatpush1.bf16.msra.mxu0 0
        %936 = vmatprep.subr.bf16.mxu0 0
        %937 = vmatpush1.bf16.msra.mxu0 0
        %938 = vmatprep.subr.bf16.mxu0 0
        %939 = vmatpush1.bf16.msra.mxu0 0
        %940 = vmatprep.subr.bf16.mxu0 0
        %941 = vmatpush1.bf16.msra.mxu0 0
        %942 = vmatprep.mubr.bf16.mxu0 0
        %943 = vmatmul.mubr.bf16.gmra.mrb[0].mxu0 %v863
        %v944 = vpop.f32.mrb[0].mxu0
        %v945 = vadd.f32 0.0, %v944
        %v946 = vpop.f32.mrb[0].mxu0
        %v947 = vpop.f32.mrb[0].mxu0
        %v948 = vadd.f32 0.0, %v947
        %v949 = vpop.f32.mrb[0].mxu0
        %950 = vmatprep.mubr.bf16.mxu0 0
        %951 = vmatmul.mubr.bf16.gmra.mrb[0].mxu0 %v866
        %v952 = vpop.f32.mrb[0].mxu0
        %v953 = vadd.f32 0.0, %v952
        %v954 = vpop.f32.mrb[0].mxu0
        %v955 = vpop.f32.mrb[0].mxu0
        %v956 = vadd.f32 0.0, %v955
        %v957 = vpop.f32.mrb[0].mxu0
        %958 = vmatprep.mubr.bf16.mxu0 0
        %959 = vmatmul.mubr.bf16.gmra.mrb[0].mxu0 %v869
        %v960 = vpop.f32.mrb[0].mxu0
        %v961 = vadd.f32 0.0, %v960
        %v962 = vpop.f32.mrb[0].mxu0
        %v963 = vpop.f32.mrb[0].mxu0
        %v964 = vadd.f32 0.0, %v963
        %v965 = vpop.f32.mrb[0].mxu0
        %966 = vmatprep.mubr.bf16.mxu0 0
        %967 = vmatmul.mubr.bf16.gmra.mrb[0].mxu0 %v872
        %v968 = vpop.f32.mrb[0].mxu0
        %v969 = vadd.f32 0.0, %v968
        %v970 = vpop.f32.mrb[0].mxu0
        %v971 = vpop.f32.mrb[0].mxu0
        %v972 = vadd.f32 0.0, %v971
        %v973 = vpop.f32.mrb[0].mxu0
        %974 = vmatprep.mubr.bf16.mxu0 0
        %975 = vmatmul.mubr.bf16.gmra.mrb[0].mxu0 %v875
        %v976 = vpop.f32.mrb[0].mxu0
        %v977 = vadd.f32 0.0, %v976
        %v978 = vpop.f32.mrb[0].mxu0
        %v979 = vpop.f32.mrb[0].mxu0
        %v980 = vadd.f32 0.0, %v979
        %v981 = vpop.f32.mrb[0].mxu0
        %982 = vmatprep.mubr.bf16.mxu0 0
        %983 = vmatmul.mubr.bf16.gmra.mrb[0].mxu0 %v878
        %v984 = vpop.f32.mrb[0].mxu0
        %v985 = vadd.f32 0.0, %v984
        %v986 = vpop.f32.mrb[0].mxu0
        %v987 = vpop.f32.mrb[0].mxu0
        %v988 = vadd.f32 0.0, %v987
        %v989 = vpop.f32.mrb[0].mxu0
        %990 = vmatprep.mubr.bf16.mxu0 0
        %991 = vmatmul.mubr.bf16.gmra.mrb[0].mxu0 %v881
        %v992 = vpop.f32.mrb[0].mxu0
        %v993 = vadd.f32 0.0, %v992
        %v994 = vpop.f32.mrb[0].mxu0
        %v995 = vpop.f32.mrb[0].mxu0
        %v996 = vadd.f32 0.0, %v995
        %v997 = vpop.f32.mrb[0].mxu0
        %998 = vmatprep.mubr.bf16.mxu0 0
        %999 = vmatmul.mubr.bf16.gmra.mrb[0].mxu0 %v884
        %v1000 = vpop.f32.mrb[0].mxu0
        %v1001 = vadd.f32 0.0, %v1000
        %v1002 = vpop.f32.mrb[0].mxu0
        %v1003 = vpop.f32.mrb[0].mxu0
        %v1004 = vadd.f32 0.0, %v1003
        %v1005 = vpop.f32.mrb[0].mxu0
        %1006 = vmatprep.mubr.bf16.mxu0 0
        %1007 = vmatmul.mubr.bf16.gmra.mrb[0].mxu0 %v887
        %v1008 = vpop.f32.mrb[0].mxu0
        %v1009 = vadd.f32 0.0, %v1008
        %v1010 = vpop.f32.mrb[0].mxu0
        %v1011 = vpop.f32.mrb[0].mxu0
        %v1012 = vadd.f32 0.0, %v1011
        %v1013 = vpop.f32.mrb[0].mxu0
        %1014 = vmatprep.mubr.bf16.mxu0 0
        %1015 = vmatmul.mubr.bf16.gmra.mrb[0].mxu0 %v890
        %v1016 = vpop.f32.mrb[0].mxu0
        %v1017 = vadd.f32 0.0, %v1016
        %v1018 = vpop.f32.mrb[0].mxu0
        %v1019 = vpop.f32.mrb[0].mxu0
        %v1020 = vadd.f32 0.0, %v1019
        %v1021 = vpop.f32.mrb[0].mxu0
        %1022 = vmatprep.mubr.bf16.mxu0 0
        %1023 = vmatmul.mubr.bf16.gmra.mrb[0].mxu0 %v893
        %v1024 = vpop.f32.mrb[0].mxu0
        %v1025 = vadd.f32 0.0, %v1024
        %v1026 = vpop.f32.mrb[0].mxu0
        %v1027 = vpop.f32.mrb[0].mxu0
        %v1028 = vadd.f32 0.0, %v1027
        %v1029 = vpop.f32.mrb[0].mxu0
        %1030 = vmatprep.mubr.bf16.mxu0 0
        %1031 = vmatmul.mubr.bf16.gmra.mrb[0].mxu0 %v896
        %v1032 = vpop.f32.mrb[0].mxu0
        %v1033 = vadd.f32 0.0, %v1032
        %v1034 = vpop.f32.mrb[0].mxu0
        %v1035 = vpop.f32.mrb[0].mxu0
        %v1036 = vadd.f32 0.0, %v1035
        %v1037 = vpop.f32.mrb[0].mxu0
        %1038 = vmatprep.mubr.bf16.mxu0 0
        %1039 = vmatmul.mubr.bf16.gmra.mrb[0].mxu0 %v899
        %v1040 = vpop.f32.mrb[0].mxu0
        %v1041 = vadd.f32 0.0, %v1040
        %v1042 = vpop.f32.mrb[0].mxu0
        %v1043 = vpop.f32.mrb[0].mxu0
        %v1044 = vadd.f32 0.0, %v1043
        %v1045 = vpop.f32.mrb[0].mxu0
        %1046 = vmatprep.mubr.bf16.mxu0 0
        %1047 = vmatmul.mubr.bf16.gmra.mrb[0].mxu0 %v902
        %v1048 = vpop.f32.mrb[0].mxu0
        %v1049 = vadd.f32 0.0, %v1048
        %v1050 = vpop.f32.mrb[0].mxu0
        %v1051 = vpop.f32.mrb[0].mxu0
        %v1052 = vadd.f32 0.0, %v1051
        %v1053 = vpop.f32.mrb[0].mxu0
        %1054 = vmatprep.mubr.bf16.mxu0 0
        %1055 = vmatmul.mubr.bf16.gmra.mrb[0].mxu0 %v905
        %v1056 = vpop.f32.mrb[0].mxu0
        %v1057 = vadd.f32 0.0, %v1056
        %v1058 = vpop.f32.mrb[0].mxu0
        %v1059 = vpop.f32.mrb[0].mxu0
        %v1060 = vadd.f32 0.0, %v1059
        %v1061 = vpop.f32.mrb[0].mxu0
        %1062 = vmatprep.mubr.bf16.mxu0 0
        %1063 = vmatmul.mubr.bf16.gmra.mrb[0].mxu0 %v908
        %v1064 = vpop.f32.mrb[0].mxu0
        %v1065 = vadd.f32 0.0, %v1064
        %v1066 = vpop.f32.mrb[0].mxu0
        %v1067 = vpop.f32.mrb[0].mxu0
        %v1068 = vadd.f32 0.0, %v1067
        %v1069 = vpop.f32.mrb[0].mxu0
        %1070 = vdwg.mxu0
        %v1075 = vunpack.c.l.b16 %v531
        %v1076 = vunpack.c.l.b16 %v532
        %v1077 = vunpack.c.l.b16 %v533
        %v1078 = vunpack.c.l.b16 %v534
        %v1079 = vpack.c.b16 %v1076, %v1075
        %v1080 = vpack.c.b16 %v1078, %v1077
        %v1083 = vsel %vm342, %v621, 0
        %v1085 = vsel %vm342, %v623, 0
        %v1087 = vsel %vm342, %v625, 0
        %v1089 = vsel %vm342, %v627, 0
        %v1091 = vsel %vm342, %v629, 0
        %v1093 = vsel %vm342, %v631, 0
        %v1095 = vsel %vm342, %v633, 0
        %v1097 = vsel %vm342, %v635, 0
        %v1099 = vsel %vm342, %v637, 0
        %v1101 = vsel %vm342, %v639, 0
        %v1103 = vsel %vm342, %v641, 0
        %v1105 = vsel %vm342, %v643, 0
        %v1107 = vsel %vm342, %v645, 0
        %v1109 = vsel %vm342, %v647, 0
        %v1111 = vsel %vm342, %v649, 0
        %v1113 = vsel %vm342, %v651, 0
        %1115 = vmatprep.subr.bf16.mxu0 0
        %1116 = vmatpush1.bf16.msra.mxu0 %v1079
        %1117 = vmatprep.subr.bf16.mxu0 0
        %1118 = vmatpush1.bf16.msra.mxu0 %v1080
        %1119 = vmatprep.subr.bf16.mxu0 0
        %1120 = vmatpush1.bf16.msra.mxu0 0
        %1121 = vmatprep.subr.bf16.mxu0 0
        %1122 = vmatpush1.bf16.msra.mxu0 0
        %1123 = vmatprep.subr.bf16.mxu0 0
        %1124 = vmatpush1.bf16.msra.mxu0 0
        %1125 = vmatprep.subr.bf16.mxu0 0
        %1126 = vmatpush1.bf16.msra.mxu0 0
        %1127 = vmatprep.subr.bf16.mxu0 0
        %1128 = vmatpush1.bf16.msra.mxu0 0
        %1129 = vmatprep.subr.bf16.mxu0 0
        %1130 = vmatpush1.bf16.msra.mxu0 0
        %1131 = vmatprep.subr.bf16.mxu0 0
        %1132 = vmatpush1.bf16.msra.mxu0 0
        %1133 = vmatprep.subr.bf16.mxu0 0
        %1134 = vmatpush1.bf16.msra.mxu0 0
        %1135 = vmatprep.subr.bf16.mxu0 0
        %1136 = vmatpush1.bf16.msra.mxu0 0
        %1137 = vmatprep.subr.bf16.mxu0 0
        %1138 = vmatpush1.bf16.msra.mxu0 0
        %1139 = vmatprep.subr.bf16.mxu0 0
        %1140 = vmatpush1.bf16.msra.mxu0 0
        %1141 = vmatprep.subr.bf16.mxu0 0
        %1142 = vmatpush1.bf16.msra.mxu0 0
        %1143 = vmatprep.subr.bf16.mxu0 0
        %1144 = vmatpush1.bf16.msra.mxu0 0
        %1145 = vmatprep.subr.bf16.mxu0 0
        %1146 = vmatpush1.bf16.msra.mxu0 0
        %1147 = vmatprep.mubr.bf16.mxu0 0
        %1148 = vmatmul.mubr.bf16.gmra.mrb[0].mxu0 %v1083
        %v1149 = vpop.f32.mrb[0].mxu0
        %v1150 = vadd.f32 %v945, %v1149
        %v1151 = vpop.f32.mrb[0].mxu0
        %v1152 = vpop.f32.mrb[0].mxu0
        %v1153 = vadd.f32 %v948, %v1152
        %v1154 = vpop.f32.mrb[0].mxu0
        %1155 = vmatprep.mubr.bf16.mxu0 0
        %1156 = vmatmul.mubr.bf16.gmra.mrb[0].mxu0 %v1085
        %v1157 = vpop.f32.mrb[0].mxu0
        %v1158 = vadd.f32 %v953, %v1157
        %v1159 = vpop.f32.mrb[0].mxu0
        %v1160 = vpop.f32.mrb[0].mxu0
        %v1161 = vadd.f32 %v956, %v1160
        %v1162 = vpop.f32.mrb[0].mxu0
        %1163 = vmatprep.mubr.bf16.mxu0 0
        %1164 = vmatmul.mubr.bf16.gmra.mrb[0].mxu0 %v1087
        %v1165 = vpop.f32.mrb[0].mxu0
        %v1166 = vadd.f32 %v961, %v1165
        %v1167 = vpop.f32.mrb[0].mxu0
        %v1168 = vpop.f32.mrb[0].mxu0
        %v1169 = vadd.f32 %v964, %v1168
        %v1170 = vpop.f32.mrb[0].mxu0
        %1171 = vmatprep.mubr.bf16.mxu0 0
        %1172 = vmatmul.mubr.bf16.gmra.mrb[0].mxu0 %v1089
        %v1173 = vpop.f32.mrb[0].mxu0
        %v1174 = vadd.f32 %v969, %v1173
        %v1175 = vpop.f32.mrb[0].mxu0
        %v1176 = vpop.f32.mrb[0].mxu0
        %v1177 = vadd.f32 %v972, %v1176
        %v1178 = vpop.f32.mrb[0].mxu0
        %1179 = vmatprep.mubr.bf16.mxu0 0
        %1180 = vmatmul.mubr.bf16.gmra.mrb[0].mxu0 %v1091
        %v1181 = vpop.f32.mrb[0].mxu0
        %v1182 = vadd.f32 %v977, %v1181
        %v1183 = vpop.f32.mrb[0].mxu0
        %v1184 = vpop.f32.mrb[0].mxu0
        %v1185 = vadd.f32 %v980, %v1184
        %v1186 = vpop.f32.mrb[0].mxu0
        %1187 = vmatprep.mubr.bf16.mxu0 0
        %1188 = vmatmul.mubr.bf16.gmra.mrb[0].mxu0 %v1093
        %v1189 = vpop.f32.mrb[0].mxu0
        %v1190 = vadd.f32 %v985, %v1189
        %v1191 = vpop.f32.mrb[0].mxu0
        %v1192 = vpop.f32.mrb[0].mxu0
        %v1193 = vadd.f32 %v988, %v1192
        %v1194 = vpop.f32.mrb[0].mxu0
        %1195 = vmatprep.mubr.bf16.mxu0 0
        %1196 = vmatmul.mubr.bf16.gmra.mrb[0].mxu0 %v1095
        %v1197 = vpop.f32.mrb[0].mxu0
        %v1198 = vadd.f32 %v993, %v1197
        %v1199 = vpop.f32.mrb[0].mxu0
        %v1200 = vpop.f32.mrb[0].mxu0
        %v1201 = vadd.f32 %v996, %v1200
        %v1202 = vpop.f32.mrb[0].mxu0
        %1203 = vmatprep.mubr.bf16.mxu0 0
        %1204 = vmatmul.mubr.bf16.gmra.mrb[0].mxu0 %v1097
        %v1205 = vpop.f32.mrb[0].mxu0
        %v1206 = vadd.f32 %v1001, %v1205
        %v1207 = vpop.f32.mrb[0].mxu0
        %v1208 = vpop.f32.mrb[0].mxu0
        %v1209 = vadd.f32 %v1004, %v1208
        %v1210 = vpop.f32.mrb[0].mxu0
        %1211 = vmatprep.mubr.bf16.mxu0 0
        %1212 = vmatmul.mubr.bf16.gmra.mrb[0].mxu0 %v1099
        %v1213 = vpop.f32.mrb[0].mxu0
        %v1214 = vadd.f32 %v1009, %v1213
        %v1215 = vpop.f32.mrb[0].mxu0
        %v1216 = vpop.f32.mrb[0].mxu0
        %v1217 = vadd.f32 %v1012, %v1216
        %v1218 = vpop.f32.mrb[0].mxu0
        %1219 = vmatprep.mubr.bf16.mxu0 0
        %1220 = vmatmul.mubr.bf16.gmra.mrb[0].mxu0 %v1101
        %v1221 = vpop.f32.mrb[0].mxu0
        %v1222 = vadd.f32 %v1017, %v1221
        %v1223 = vpop.f32.mrb[0].mxu0
        %v1224 = vpop.f32.mrb[0].mxu0
        %v1225 = vadd.f32 %v1020, %v1224
        %v1226 = vpop.f32.mrb[0].mxu0
        %1227 = vmatprep.mubr.bf16.mxu0 0
        %1228 = vmatmul.mubr.bf16.gmra.mrb[0].mxu0 %v1103
        %v1229 = vpop.f32.mrb[0].mxu0
        %v1230 = vadd.f32 %v1025, %v1229
        %v1231 = vpop.f32.mrb[0].mxu0
        %v1232 = vpop.f32.mrb[0].mxu0
        %v1233 = vadd.f32 %v1028, %v1232
        %v1234 = vpop.f32.mrb[0].mxu0
        %1235 = vmatprep.mubr.bf16.mxu0 0
        %1236 = vmatmul.mubr.bf16.gmra.mrb[0].mxu0 %v1105
        %v1237 = vpop.f32.mrb[0].mxu0
        %v1238 = vadd.f32 %v1033, %v1237
        %v1239 = vpop.f32.mrb[0].mxu0
        %v1240 = vpop.f32.mrb[0].mxu0
        %v1241 = vadd.f32 %v1036, %v1240
        %v1242 = vpop.f32.mrb[0].mxu0
        %1243 = vmatprep.mubr.bf16.mxu0 0
        %1244 = vmatmul.mubr.bf16.gmra.mrb[0].mxu0 %v1107
        %v1245 = vpop.f32.mrb[0].mxu0
        %v1246 = vadd.f32 %v1041, %v1245
        %v1247 = vpop.f32.mrb[0].mxu0
        %v1248 = vpop.f32.mrb[0].mxu0
        %v1249 = vadd.f32 %v1044, %v1248
        %v1250 = vpop.f32.mrb[0].mxu0
        %1251 = vmatprep.mubr.bf16.mxu0 0
        %1252 = vmatmul.mubr.bf16.gmra.mrb[0].mxu0 %v1109
        %v1253 = vpop.f32.mrb[0].mxu0
        %v1254 = vadd.f32 %v1049, %v1253
        %v1255 = vpop.f32.mrb[0].mxu0
        %v1256 = vpop.f32.mrb[0].mxu0
        %v1257 = vadd.f32 %v1052, %v1256
        %v1258 = vpop.f32.mrb[0].mxu0
        %1259 = vmatprep.mubr.bf16.mxu0 0
        %1260 = vmatmul.mubr.bf16.gmra.mrb[0].mxu0 %v1111
        %v1261 = vpop.f32.mrb[0].mxu0
        %v1262 = vadd.f32 %v1057, %v1261
        %v1263 = vpop.f32.mrb[0].mxu0
        %v1264 = vpop.f32.mrb[0].mxu0
        %v1265 = vadd.f32 %v1060, %v1264
        %v1266 = vpop.f32.mrb[0].mxu0
        %1267 = vmatprep.mubr.bf16.mxu0 0
        %1268 = vmatmul.mubr.bf16.gmra.mrb[0].mxu0 %v1113
        %v1269 = vpop.f32.mrb[0].mxu0
        %v1270 = vadd.f32 %v1065, %v1269
        %v1271 = vpop.f32.mrb[0].mxu0
        %v1272 = vpop.f32.mrb[0].mxu0
        %v1273 = vadd.f32 %v1068, %v1272
        %v1274 = vpop.f32.mrb[0].mxu0
        %1275 = vdwg.mxu0
        %vm1308 = vcmask 1046528
        %v1309 = vrot.slane %v621, 1
        %v1310 = vrot.slane %v622, 1
        %v1311 = vsel %vm1308, %v1309, %v1310
        %v1312 = vrot.slane %v623, 1
        %v1313 = vrot.slane %v624, 1
        %v1314 = vsel %vm1308, %v1312, %v1313
        %v1315 = vrot.slane %v625, 1
        %v1316 = vrot.slane %v626, 1
        %v1317 = vsel %vm1308, %v1315, %v1316
        %v1318 = vrot.slane %v627, 1
        %v1319 = vrot.slane %v628, 1
        %v1320 = vsel %vm1308, %v1318, %v1319
        %v1321 = vrot.slane %v629, 1
        %v1322 = vrot.slane %v630, 1
        %v1323 = vsel %vm1308, %v1321, %v1322
        %v1324 = vrot.slane %v631, 1
        %v1325 = vrot.slane %v632, 1
        %v1326 = vsel %vm1308, %v1324, %v1325
        %v1327 = vrot.slane %v633, 1
        %v1328 = vrot.slane %v634, 1
        %v1329 = vsel %vm1308, %v1327, %v1328
        %v1330 = vrot.slane %v635, 1
        %v1331 = vrot.slane %v636, 1
        %v1332 = vsel %vm1308, %v1330, %v1331
        %v1333 = vrot.slane %v637, 1
        %v1334 = vrot.slane %v638, 1
        %v1335 = vsel %vm1308, %v1333, %v1334
        %v1336 = vrot.slane %v639, 1
        %v1337 = vrot.slane %v640, 1
        %v1338 = vsel %vm1308, %v1336, %v1337
        %v1339 = vrot.slane %v641, 1
        %v1340 = vrot.slane %v642, 1
        %v1341 = vsel %vm1308, %v1339, %v1340
        %v1342 = vrot.slane %v643, 1
        %v1343 = vrot.slane %v644, 1
        %v1344 = vsel %vm1308, %v1342, %v1343
        %v1345 = vrot.slane %v645, 1
        %v1346 = vrot.slane %v646, 1
        %v1347 = vsel %vm1308, %v1345, %v1346
        %v1348 = vrot.slane %v647, 1
        %v1349 = vrot.slane %v648, 1
        %v1350 = vsel %vm1308, %v1348, %v1349
        %v1351 = vrot.slane %v649, 1
        %v1352 = vrot.slane %v650, 1
        %v1353 = vsel %vm1308, %v1351, %v1352
        %v1354 = vrot.slane %v651, 1
        %v1355 = vrot.slane %v652, 1
        %v1356 = vsel %vm1308, %v1354, %v1355
        %v1361 = vunpack.c.l.b16 %v539
        %v1362 = vunpack.c.l.b16 %v540
        %v1363 = vunpack.c.l.b16 %v541
        %v1364 = vunpack.c.l.b16 %v542
        %v1365 = vpack.c.b16 %v1362, %v1361
        %v1366 = vpack.c.b16 %v1364, %v1363
        %v1370 = vsel %vm342, %v1311, 0
        %v1373 = vsel %vm342, %v1314, 0
        %v1376 = vsel %vm342, %v1317, 0
        %v1379 = vsel %vm342, %v1320, 0
        %v1382 = vsel %vm342, %v1323, 0
        %v1385 = vsel %vm342, %v1326, 0
        %v1388 = vsel %vm342, %v1329, 0
        %v1391 = vsel %vm342, %v1332, 0
        %v1394 = vsel %vm342, %v1335, 0
        %v1397 = vsel %vm342, %v1338, 0
        %v1400 = vsel %vm342, %v1341, 0
        %v1403 = vsel %vm342, %v1344, 0
        %v1406 = vsel %vm342, %v1347, 0
        %v1409 = vsel %vm342, %v1350, 0
        %v1412 = vsel %vm342, %v1353, 0
        %v1415 = vsel %vm342, %v1356, 0
        %1417 = vmatprep.subr.bf16.mxu0 0
        %1418 = vmatpush1.bf16.msra.mxu0 %v1365
        %1419 = vmatprep.subr.bf16.mxu0 0
        %1420 = vmatpush1.bf16.msra.mxu0 %v1366
        %1421 = vmatprep.subr.bf16.mxu0 0
        %1422 = vmatpush1.bf16.msra.mxu0 0
        %1423 = vmatprep.subr.bf16.mxu0 0
        %1424 = vmatpush1.bf16.msra.mxu0 0
        %1425 = vmatprep.subr.bf16.mxu0 0
        %1426 = vmatpush1.bf16.msra.mxu0 0
        %1427 = vmatprep.subr.bf16.mxu0 0
        %1428 = vmatpush1.bf16.msra.mxu0 0
        %1429 = vmatprep.subr.bf16.mxu0 0
        %1430 = vmatpush1.bf16.msra.mxu0 0
        %1431 = vmatprep.subr.bf16.mxu0 0
        %1432 = vmatpush1.bf16.msra.mxu0 0
        %1433 = vmatprep.subr.bf16.mxu0 0
        %1434 = vmatpush1.bf16.msra.mxu0 0
        %1435 = vmatprep.subr.bf16.mxu0 0
        %1436 = vmatpush1.bf16.msra.mxu0 0
        %1437 = vmatprep.subr.bf16.mxu0 0
        %1438 = vmatpush1.bf16.msra.mxu0 0
        %1439 = vmatprep.subr.bf16.mxu0 0
        %1440 = vmatpush1.bf16.msra.mxu0 0
        %1441 = vmatprep.subr.bf16.mxu0 0
        %1442 = vmatpush1.bf16.msra.mxu0 0
        %1443 = vmatprep.subr.bf16.mxu0 0
        %1444 = vmatpush1.bf16.msra.mxu0 0
        %1445 = vmatprep.subr.bf16.mxu0 0
        %1446 = vmatpush1.bf16.msra.mxu0 0
        %1447 = vmatprep.subr.bf16.mxu0 0
        %1448 = vmatpush1.bf16.msra.mxu0 0
        %1449 = vmatprep.mubr.bf16.mxu0 0
        %1450 = vmatmul.mubr.bf16.gmra.mrb[0].mxu0 %v1370
        %v1451 = vpop.f32.mrb[0].mxu0
        %v1452 = vadd.f32 0.0, %v1451
        %v1453 = vpop.f32.mrb[0].mxu0
        %v1454 = vpop.f32.mrb[0].mxu0
        %v1455 = vadd.f32 0.0, %v1454
        %v1456 = vpop.f32.mrb[0].mxu0
        %1457 = vmatprep.mubr.bf16.mxu0 0
        %1458 = vmatmul.mubr.bf16.gmra.mrb[0].mxu0 %v1373
        %v1459 = vpop.f32.mrb[0].mxu0
        %v1460 = vadd.f32 0.0, %v1459
        %v1461 = vpop.f32.mrb[0].mxu0
        %v1462 = vpop.f32.mrb[0].mxu0
        %v1463 = vadd.f32 0.0, %v1462
        %v1464 = vpop.f32.mrb[0].mxu0
        %1465 = vmatprep.mubr.bf16.mxu0 0
        %1466 = vmatmul.mubr.bf16.gmra.mrb[0].mxu0 %v1376
        %v1467 = vpop.f32.mrb[0].mxu0
        %v1468 = vadd.f32 0.0, %v1467
        %v1469 = vpop.f32.mrb[0].mxu0
        %v1470 = vpop.f32.mrb[0].mxu0
        %v1471 = vadd.f32 0.0, %v1470
        %v1472 = vpop.f32.mrb[0].mxu0
        %1473 = vmatprep.mubr.bf16.mxu0 0
        %1474 = vmatmul.mubr.bf16.gmra.mrb[0].mxu0 %v1379
        %v1475 = vpop.f32.mrb[0].mxu0
        %v1476 = vadd.f32 0.0, %v1475
        %v1477 = vpop.f32.mrb[0].mxu0
        %v1478 = vpop.f32.mrb[0].mxu0
        %v1479 = vadd.f32 0.0, %v1478
        %v1480 = vpop.f32.mrb[0].mxu0
        %1481 = vmatprep.mubr.bf16.mxu0 0
        %1482 = vmatmul.mubr.bf16.gmra.mrb[0].mxu0 %v1382
        %v1483 = vpop.f32.mrb[0].mxu0
        %v1484 = vadd.f32 0.0, %v1483
        %v1485 = vpop.f32.mrb[0].mxu0
        %v1486 = vpop.f32.mrb[0].mxu0
        %v1487 = vadd.f32 0.0, %v1486
        %v1488 = vpop.f32.mrb[0].mxu0
        %1489 = vmatprep.mubr.bf16.mxu0 0
        %1490 = vmatmul.mubr.bf16.gmra.mrb[0].mxu0 %v1385
        %v1491 = vpop.f32.mrb[0].mxu0
        %v1492 = vadd.f32 0.0, %v1491
        %v1493 = vpop.f32.mrb[0].mxu0
        %v1494 = vpop.f32.mrb[0].mxu0
        %v1495 = vadd.f32 0.0, %v1494
        %v1496 = vpop.f32.mrb[0].mxu0
        %1497 = vmatprep.mubr.bf16.mxu0 0
        %1498 = vmatmul.mubr.bf16.gmra.mrb[0].mxu0 %v1388
        %v1499 = vpop.f32.mrb[0].mxu0
        %v1500 = vadd.f32 0.0, %v1499
        %v1501 = vpop.f32.mrb[0].mxu0
        %v1502 = vpop.f32.mrb[0].mxu0
        %v1503 = vadd.f32 0.0, %v1502
        %v1504 = vpop.f32.mrb[0].mxu0
        %1505 = vmatprep.mubr.bf16.mxu0 0
        %1506 = vmatmul.mubr.bf16.gmra.mrb[0].mxu0 %v1391
        %v1507 = vpop.f32.mrb[0].mxu0
        %v1508 = vadd.f32 0.0, %v1507
        %v1509 = vpop.f32.mrb[0].mxu0
        %v1510 = vpop.f32.mrb[0].mxu0
        %v1511 = vadd.f32 0.0, %v1510
        %v1512 = vpop.f32.mrb[0].mxu0
        %1513 = vmatprep.mubr.bf16.mxu0 0
        %1514 = vmatmul.mubr.bf16.gmra.mrb[0].mxu0 %v1394
        %v1515 = vpop.f32.mrb[0].mxu0
        %v1516 = vadd.f32 0.0, %v1515
        %v1517 = vpop.f32.mrb[0].mxu0
        %v1518 = vpop.f32.mrb[0].mxu0
        %v1519 = vadd.f32 0.0, %v1518
        %v1520 = vpop.f32.mrb[0].mxu0
        %1521 = vmatprep.mubr.bf16.mxu0 0
        %1522 = vmatmul.mubr.bf16.gmra.mrb[0].mxu0 %v1397
        %v1523 = vpop.f32.mrb[0].mxu0
        %v1524 = vadd.f32 0.0, %v1523
        %v1525 = vpop.f32.mrb[0].mxu0
        %v1526 = vpop.f32.mrb[0].mxu0
        %v1527 = vadd.f32 0.0, %v1526
        %v1528 = vpop.f32.mrb[0].mxu0
        %1529 = vmatprep.mubr.bf16.mxu0 0
        %1530 = vmatmul.mubr.bf16.gmra.mrb[0].mxu0 %v1400
        %v1531 = vpop.f32.mrb[0].mxu0
        %v1532 = vadd.f32 0.0, %v1531
        %v1533 = vpop.f32.mrb[0].mxu0
        %v1534 = vpop.f32.mrb[0].mxu0
        %v1535 = vadd.f32 0.0, %v1534
        %v1536 = vpop.f32.mrb[0].mxu0
        %1537 = vmatprep.mubr.bf16.mxu0 0
        %1538 = vmatmul.mubr.bf16.gmra.mrb[0].mxu0 %v1403
        %v1539 = vpop.f32.mrb[0].mxu0
        %v1540 = vadd.f32 0.0, %v1539
        %v1541 = vpop.f32.mrb[0].mxu0
        %v1542 = vpop.f32.mrb[0].mxu0
        %v1543 = vadd.f32 0.0, %v1542
        %v1544 = vpop.f32.mrb[0].mxu0
        %1545 = vmatprep.mubr.bf16.mxu0 0
        %1546 = vmatmul.mubr.bf16.gmra.mrb[0].mxu0 %v1406
        %v1547 = vpop.f32.mrb[0].mxu0
        %v1548 = vadd.f32 0.0, %v1547
        %v1549 = vpop.f32.mrb[0].mxu0
        %v1550 = vpop.f32.mrb[0].mxu0
        %v1551 = vadd.f32 0.0, %v1550
        %v1552 = vpop.f32.mrb[0].mxu0
        %1553 = vmatprep.mubr.bf16.mxu0 0
        %1554 = vmatmul.mubr.bf16.gmra.mrb[0].mxu0 %v1409
        %v1555 = vpop.f32.mrb[0].mxu0
        %v1556 = vadd.f32 0.0, %v1555
        %v1557 = vpop.f32.mrb[0].mxu0
        %v1558 = vpop.f32.mrb[0].mxu0
        %v1559 = vadd.f32 0.0, %v1558
        %v1560 = vpop.f32.mrb[0].mxu0
        %1561 = vmatprep.mubr.bf16.mxu0 0
        %1562 = vmatmul.mubr.bf16.gmra.mrb[0].mxu0 %v1412
        %v1563 = vpop.f32.mrb[0].mxu0
        %v1564 = vadd.f32 0.0, %v1563
        %v1565 = vpop.f32.mrb[0].mxu0
        %v1566 = vpop.f32.mrb[0].mxu0
        %v1567 = vadd.f32 0.0, %v1566
        %v1568 = vpop.f32.mrb[0].mxu0
        %1569 = vmatprep.mubr.bf16.mxu0 0
        %1570 = vmatmul.mubr.bf16.gmra.mrb[0].mxu0 %v1415
        %v1571 = vpop.f32.mrb[0].mxu0
        %v1572 = vadd.f32 0.0, %v1571
        %v1573 = vpop.f32.mrb[0].mxu0
        %v1574 = vpop.f32.mrb[0].mxu0
        %v1575 = vadd.f32 0.0, %v1574
        %v1576 = vpop.f32.mrb[0].mxu0
        %1577 = vdwg.mxu0
        %v1578 = vadd.f32 %v1150, %v1452
        %v1579 = vadd.f32 %v1153, %v1455
        %v1580 = vadd.f32 %v1158, %v1460
        %v1581 = vadd.f32 %v1161, %v1463
        %v1582 = vadd.f32 %v1166, %v1468
        %v1583 = vadd.f32 %v1169, %v1471
        %v1584 = vadd.f32 %v1174, %v1476
        %v1585 = vadd.f32 %v1177, %v1479
        %v1586 = vadd.f32 %v1182, %v1484
        %v1587 = vadd.f32 %v1185, %v1487
        %v1588 = vadd.f32 %v1190, %v1492
        %v1589 = vadd.f32 %v1193, %v1495
        %v1590 = vadd.f32 %v1198, %v1500
        %v1591 = vadd.f32 %v1201, %v1503
        %v1592 = vadd.f32 %v1206, %v1508
        %v1593 = vadd.f32 %v1209, %v1511
        %v1594 = vadd.f32 %v1214, %v1516
        %v1595 = vadd.f32 %v1217, %v1519
        %v1596 = vadd.f32 %v1222, %v1524
        %v1597 = vadd.f32 %v1225, %v1527
        %v1598 = vadd.f32 %v1230, %v1532
        %v1599 = vadd.f32 %v1233, %v1535
        %v1600 = vadd.f32 %v1238, %v1540
        %v1601 = vadd.f32 %v1241, %v1543
        %v1602 = vadd.f32 %v1246, %v1548
        %v1603 = vadd.f32 %v1249, %v1551
        %v1604 = vadd.f32 %v1254, %v1556
        %v1605 = vadd.f32 %v1257, %v1559
        %v1606 = vadd.f32 %v1262, %v1564
        %v1607 = vadd.f32 %v1265, %v1567
        %v1608 = vadd.f32 %v1270, %v1572
        %v1609 = vadd.f32 %v1273, %v1575
        %v1614 = vunpack.c.l.b16 %v543
        %v1615 = vunpack.c.l.b16 %v544
        %v1616 = vunpack.c.l.b16 %v545
        %v1617 = vunpack.c.l.b16 %v546
        %v1618 = vpack.c.b16 %v1615, %v1614
        %v1619 = vpack.c.b16 %v1617, %v1616
        %v1623 = vsel %vm342, %v653, 0
        %1625 = vmatprep.subr.bf16.mxu0 0
        %1626 = vmatpush1.bf16.msra.mxu0 %v1618
        %1627 = vmatprep.subr.bf16.mxu0 0
        %1628 = vmatpush1.bf16.msra.mxu0 %v1619
        %1629 = vmatprep.subr.bf16.mxu0 0
        %1630 = vmatpush1.bf16.msra.mxu0 0
        %1631 = vmatprep.subr.bf16.mxu0 0
        %1632 = vmatpush1.bf16.msra.mxu0 0
        %1633 = vmatprep.subr.bf16.mxu0 0
        %1634 = vmatpush1.bf16.msra.mxu0 0
        %1635 = vmatprep.subr.bf16.mxu0 0
        %1636 = vmatpush1.bf16.msra.mxu0 0
        %1637 = vmatprep.subr.bf16.mxu0 0
        %1638 = vmatpush1.bf16.msra.mxu0 0
        %1639 = vmatprep.subr.bf16.mxu0 0
        %1640 = vmatpush1.bf16.msra.mxu0 0
        %1641 = vmatprep.subr.bf16.mxu0 0
        %1642 = vmatpush1.bf16.msra.mxu0 0
        %1643 = vmatprep.subr.bf16.mxu0 0
        %1644 = vmatpush1.bf16.msra.mxu0 0
        %1645 = vmatprep.subr.bf16.mxu0 0
        %1646 = vmatpush1.bf16.msra.mxu0 0
        %1647 = vmatprep.subr.bf16.mxu0 0
        %1648 = vmatpush1.bf16.msra.mxu0 0
        %1649 = vmatprep.subr.bf16.mxu0 0
        %1650 = vmatpush1.bf16.msra.mxu0 0
        %1651 = vmatprep.subr.bf16.mxu0 0
        %1652 = vmatpush1.bf16.msra.mxu0 0
        %1653 = vmatprep.subr.bf16.mxu0 0
        %1654 = vmatpush1.bf16.msra.mxu0 0
        %1655 = vmatprep.subr.bf16.mxu0 0
        %1656 = vmatpush1.bf16.msra.mxu0 0
        %1657 = vmatprep.mubr.bf16.mxu0 0
        %1658 = vmatmul.mubr.bf16.gmra.mrb[0].mxu0 %v1085
        %v1659 = vpop.f32.mrb[0].mxu0
        %v1660 = vadd.f32 0.0, %v1659
        %v1661 = vpop.f32.mrb[0].mxu0
        %v1662 = vpop.f32.mrb[0].mxu0
        %v1663 = vadd.f32 0.0, %v1662
        %v1664 = vpop.f32.mrb[0].mxu0
        %1665 = vmatprep.mubr.bf16.mxu0 0
        %1666 = vmatmul.mubr.bf16.gmra.mrb[0].mxu0 %v1087
        %v1667 = vpop.f32.mrb[0].mxu0
        %v1668 = vadd.f32 0.0, %v1667
        %v1669 = vpop.f32.mrb[0].mxu0
        %v1670 = vpop.f32.mrb[0].mxu0
        %v1671 = vadd.f32 0.0, %v1670
        %v1672 = vpop.f32.mrb[0].mxu0
        %1673 = vmatprep.mubr.bf16.mxu0 0
        %1674 = vmatmul.mubr.bf16.gmra.mrb[0].mxu0 %v1089
        %v1675 = vpop.f32.mrb[0].mxu0
        %v1676 = vadd.f32 0.0, %v1675
        %v1677 = vpop.f32.mrb[0].mxu0
        %v1678 = vpop.f32.mrb[0].mxu0
        %v1679 = vadd.f32 0.0, %v1678
        %v1680 = vpop.f32.mrb[0].mxu0
        %1681 = vmatprep.mubr.bf16.mxu0 0
        %1682 = vmatmul.mubr.bf16.gmra.mrb[0].mxu0 %v1091
        %v1683 = vpop.f32.mrb[0].mxu0
        %v1684 = vadd.f32 0.0, %v1683
        %v1685 = vpop.f32.mrb[0].mxu0
        %v1686 = vpop.f32.mrb[0].mxu0
        %v1687 = vadd.f32 0.0, %v1686
        %v1688 = vpop.f32.mrb[0].mxu0
        %1689 = vmatprep.mubr.bf16.mxu0 0
        %1690 = vmatmul.mubr.bf16.gmra.mrb[0].mxu0 %v1093
        %v1691 = vpop.f32.mrb[0].mxu0
        %v1692 = vadd.f32 0.0, %v1691
        %v1693 = vpop.f32.mrb[0].mxu0
        %v1694 = vpop.f32.mrb[0].mxu0
        %v1695 = vadd.f32 0.0, %v1694
        %v1696 = vpop.f32.mrb[0].mxu0
        %1697 = vmatprep.mubr.bf16.mxu0 0
        %1698 = vmatmul.mubr.bf16.gmra.mrb[0].mxu0 %v1095
        %v1699 = vpop.f32.mrb[0].mxu0
        %v1700 = vadd.f32 0.0, %v1699
        %v1701 = vpop.f32.mrb[0].mxu0
        %v1702 = vpop.f32.mrb[0].mxu0
        %v1703 = vadd.f32 0.0, %v1702
        %v1704 = vpop.f32.mrb[0].mxu0
        %1705 = vmatprep.mubr.bf16.mxu0 0
        %1706 = vmatmul.mubr.bf16.gmra.mrb[0].mxu0 %v1097
        %v1707 = vpop.f32.mrb[0].mxu0
        %v1708 = vadd.f32 0.0, %v1707
        %v1709 = vpop.f32.mrb[0].mxu0
        %v1710 = vpop.f32.mrb[0].mxu0
        %v1711 = vadd.f32 0.0, %v1710
        %v1712 = vpop.f32.mrb[0].mxu0
        %1713 = vmatprep.mubr.bf16.mxu0 0
        %1714 = vmatmul.mubr.bf16.gmra.mrb[0].mxu0 %v1099
        %v1715 = vpop.f32.mrb[0].mxu0
        %v1716 = vadd.f32 0.0, %v1715
        %v1717 = vpop.f32.mrb[0].mxu0
        %v1718 = vpop.f32.mrb[0].mxu0
        %v1719 = vadd.f32 0.0, %v1718
        %v1720 = vpop.f32.mrb[0].mxu0
        %1721 = vmatprep.mubr.bf16.mxu0 0
        %1722 = vmatmul.mubr.bf16.gmra.mrb[0].mxu0 %v1101
        %v1723 = vpop.f32.mrb[0].mxu0
        %v1724 = vadd.f32 0.0, %v1723
        %v1725 = vpop.f32.mrb[0].mxu0
        %v1726 = vpop.f32.mrb[0].mxu0
        %v1727 = vadd.f32 0.0, %v1726
        %v1728 = vpop.f32.mrb[0].mxu0
        %1729 = vmatprep.mubr.bf16.mxu0 0
        %1730 = vmatmul.mubr.bf16.gmra.mrb[0].mxu0 %v1103
        %v1731 = vpop.f32.mrb[0].mxu0
        %v1732 = vadd.f32 0.0, %v1731
        %v1733 = vpop.f32.mrb[0].mxu0
        %v1734 = vpop.f32.mrb[0].mxu0
        %v1735 = vadd.f32 0.0, %v1734
        %v1736 = vpop.f32.mrb[0].mxu0
        %1737 = vmatprep.mubr.bf16.mxu0 0
        %1738 = vmatmul.mubr.bf16.gmra.mrb[0].mxu0 %v1105
        %v1739 = vpop.f32.mrb[0].mxu0
        %v1740 = vadd.f32 0.0, %v1739
        %v1741 = vpop.f32.mrb[0].mxu0
        %v1742 = vpop.f32.mrb[0].mxu0
        %v1743 = vadd.f32 0.0, %v1742
        %v1744 = vpop.f32.mrb[0].mxu0
        %1745 = vmatprep.mubr.bf16.mxu0 0
        %1746 = vmatmul.mubr.bf16.gmra.mrb[0].mxu0 %v1107
        %v1747 = vpop.f32.mrb[0].mxu0
        %v1748 = vadd.f32 0.0, %v1747
        %v1749 = vpop.f32.mrb[0].mxu0
        %v1750 = vpop.f32.mrb[0].mxu0
        %v1751 = vadd.f32 0.0, %v1750
        %v1752 = vpop.f32.mrb[0].mxu0
        %1753 = vmatprep.mubr.bf16.mxu0 0
        %1754 = vmatmul.mubr.bf16.gmra.mrb[0].mxu0 %v1109
        %v1755 = vpop.f32.mrb[0].mxu0
        %v1756 = vadd.f32 0.0, %v1755
        %v1757 = vpop.f32.mrb[0].mxu0
        %v1758 = vpop.f32.mrb[0].mxu0
        %v1759 = vadd.f32 0.0, %v1758
        %v1760 = vpop.f32.mrb[0].mxu0
        %1761 = vmatprep.mubr.bf16.mxu0 0
        %1762 = vmatmul.mubr.bf16.gmra.mrb[0].mxu0 %v1111
        %v1763 = vpop.f32.mrb[0].mxu0
        %v1764 = vadd.f32 0.0, %v1763
        %v1765 = vpop.f32.mrb[0].mxu0
        %v1766 = vpop.f32.mrb[0].mxu0
        %v1767 = vadd.f32 0.0, %v1766
        %v1768 = vpop.f32.mrb[0].mxu0
        %1769 = vmatprep.mubr.bf16.mxu0 0
        %1770 = vmatmul.mubr.bf16.gmra.mrb[0].mxu0 %v1113
        %v1771 = vpop.f32.mrb[0].mxu0
        %v1772 = vadd.f32 0.0, %v1771
        %v1773 = vpop.f32.mrb[0].mxu0
        %v1774 = vpop.f32.mrb[0].mxu0
        %v1775 = vadd.f32 0.0, %v1774
        %v1776 = vpop.f32.mrb[0].mxu0
        %1777 = vmatprep.mubr.bf16.mxu0 0
        %1778 = vmatmul.mubr.bf16.gmra.mrb[0].mxu0 %v1623
        %v1779 = vpop.f32.mrb[0].mxu0
        %v1780 = vadd.f32 0.0, %v1779
        %v1781 = vpop.f32.mrb[0].mxu0
        %v1782 = vpop.f32.mrb[0].mxu0
        %v1783 = vadd.f32 0.0, %v1782
        %v1784 = vpop.f32.mrb[0].mxu0
        %1785 = vdwg.mxu0
        %v1786 = vadd.f32 %v1578, %v1660
        %v1787 = vadd.f32 %v1579, %v1663
        %v1788 = vadd.f32 %v1580, %v1668
        %v1789 = vadd.f32 %v1581, %v1671
        %v1790 = vadd.f32 %v1582, %v1676
        %v1791 = vadd.f32 %v1583, %v1679
        %v1792 = vadd.f32 %v1584, %v1684
        %v1793 = vadd.f32 %v1585, %v1687
        %v1794 = vadd.f32 %v1586, %v1692
        %v1795 = vadd.f32 %v1587, %v1695
        %v1796 = vadd.f32 %v1588, %v1700
        %v1797 = vadd.f32 %v1589, %v1703
        %v1798 = vadd.f32 %v1590, %v1708
        %v1799 = vadd.f32 %v1591, %v1711
        %v1800 = vadd.f32 %v1592, %v1716
        %v1801 = vadd.f32 %v1593, %v1719
        %v1802 = vadd.f32 %v1594, %v1724
        %v1803 = vadd.f32 %v1595, %v1727
        %v1804 = vadd.f32 %v1596, %v1732
        %v1805 = vadd.f32 %v1597, %v1735
        %v1806 = vadd.f32 %v1598, %v1740
        %v1807 = vadd.f32 %v1599, %v1743
        %v1808 = vadd.f32 %v1600, %v1748
        %v1809 = vadd.f32 %v1601, %v1751
        %v1810 = vadd.f32 %v1602, %v1756
        %v1811 = vadd.f32 %v1603, %v1759
        %v1812 = vadd.f32 %v1604, %v1764
        %v1813 = vadd.f32 %v1605, %v1767
        %v1814 = vadd.f32 %v1606, %v1772
        %v1815 = vadd.f32 %v1607, %v1775
        %v1816 = vadd.f32 %v1608, %v1780
        %v1817 = vadd.f32 %v1609, %v1783
        %v1818 = vshrl.u32 %v653, 16
        %v1820 = vshll.u32 %v653, 16
        %v1822 = vrot.slane %v1820, 1
        %v1823 = vor.u32 %v1818, %v1822
        %v1825 = vshll.u32 %v654, 16
        %v1827 = vrot.slane %v1825, 1
        %v1828 = vsel %vm657, %v1823, %v1827
        %v1833 = vunpack.c.l.b16 %v547
        %v1834 = vunpack.c.l.b16 %v548
        %v1835 = vunpack.c.l.b16 %v549
        %v1836 = vunpack.c.l.b16 %v550
        %v1837 = vpack.c.b16 %v1834, %v1833
        %v1838 = vpack.c.b16 %v1836, %v1835
        %v1842 = vsel %vm342, %v1828, 0
        %1844 = vmatprep.subr.bf16.mxu0 0
        %1845 = vmatpush1.bf16.msra.mxu0 %v1837
        %1846 = vmatprep.subr.bf16.mxu0 0
        %1847 = vmatpush1.bf16.msra.mxu0 %v1838
        %1848 = vmatprep.subr.bf16.mxu0 0
        %1849 = vmatpush1.bf16.msra.mxu0 0
        %1850 = vmatprep.subr.bf16.mxu0 0
        %1851 = vmatpush1.bf16.msra.mxu0 0
        %1852 = vmatprep.subr.bf16.mxu0 0
        %1853 = vmatpush1.bf16.msra.mxu0 0
        %1854 = vmatprep.subr.bf16.mxu0 0
        %1855 = vmatpush1.bf16.msra.mxu0 0
        %1856 = vmatprep.subr.bf16.mxu0 0
        %1857 = vmatpush1.bf16.msra.mxu0 0
        %1858 = vmatprep.subr.bf16.mxu0 0
        %1859 = vmatpush1.bf16.msra.mxu0 0
        %1860 = vmatprep.subr.bf16.mxu0 0
        %1861 = vmatpush1.bf16.msra.mxu0 0
        %1862 = vmatprep.subr.bf16.mxu0 0
        %1863 = vmatpush1.bf16.msra.mxu0 0
        %1864 = vmatprep.subr.bf16.mxu0 0
        %1865 = vmatpush1.bf16.msra.mxu0 0
        %1866 = vmatprep.subr.bf16.mxu0 0
        %1867 = vmatpush1.bf16.msra.mxu0 0
        %1868 = vmatprep.subr.bf16.mxu0 0
        %1869 = vmatpush1.bf16.msra.mxu0 0
        %1870 = vmatprep.subr.bf16.mxu0 0
        %1871 = vmatpush1.bf16.msra.mxu0 0
        %1872 = vmatprep.subr.bf16.mxu0 0
        %1873 = vmatpush1.bf16.msra.mxu0 0
        %1874 = vmatprep.subr.bf16.mxu0 0
        %1875 = vmatpush1.bf16.msra.mxu0 0
        %1876 = vmatprep.mubr.bf16.mxu0 0
        %1877 = vmatmul.mubr.bf16.gmra.mrb[0].mxu0 %v866
        %v1878 = vpop.f32.mrb[0].mxu0
        %v1879 = vadd.f32 0.0, %v1878
        %v1880 = vpop.f32.mrb[0].mxu0
        %v1881 = vpop.f32.mrb[0].mxu0
        %v1882 = vadd.f32 0.0, %v1881
        %v1883 = vpop.f32.mrb[0].mxu0
        %1884 = vmatprep.mubr.bf16.mxu0 0
        %1885 = vmatmul.mubr.bf16.gmra.mrb[0].mxu0 %v869
        %v1886 = vpop.f32.mrb[0].mxu0
        %v1887 = vadd.f32 0.0, %v1886
        %v1888 = vpop.f32.mrb[0].mxu0
        %v1889 = vpop.f32.mrb[0].mxu0
        %v1890 = vadd.f32 0.0, %v1889
        %v1891 = vpop.f32.mrb[0].mxu0
        %1892 = vmatprep.mubr.bf16.mxu0 0
        %1893 = vmatmul.mubr.bf16.gmra.mrb[0].mxu0 %v872
        %v1894 = vpop.f32.mrb[0].mxu0
        %v1895 = vadd.f32 0.0, %v1894
        %v1896 = vpop.f32.mrb[0].mxu0
        %v1897 = vpop.f32.mrb[0].mxu0
        %v1898 = vadd.f32 0.0, %v1897
        %v1899 = vpop.f32.mrb[0].mxu0
        %1900 = vmatprep.mubr.bf16.mxu0 0
        %1901 = vmatmul.mubr.bf16.gmra.mrb[0].mxu0 %v875
        %v1902 = vpop.f32.mrb[0].mxu0
        %v1903 = vadd.f32 0.0, %v1902
        %v1904 = vpop.f32.mrb[0].mxu0
        %v1905 = vpop.f32.mrb[0].mxu0
        %v1906 = vadd.f32 0.0, %v1905
        %v1907 = vpop.f32.mrb[0].mxu0
        %1908 = vmatprep.mubr.bf16.mxu0 0
        %1909 = vmatmul.mubr.bf16.gmra.mrb[0].mxu0 %v878
        %v1910 = vpop.f32.mrb[0].mxu0
        %v1911 = vadd.f32 0.0, %v1910
        %v1912 = vpop.f32.mrb[0].mxu0
        %v1913 = vpop.f32.mrb[0].mxu0
        %v1914 = vadd.f32 0.0, %v1913
        %v1915 = vpop.f32.mrb[0].mxu0
        %1916 = vmatprep.mubr.bf16.mxu0 0
        %1917 = vmatmul.mubr.bf16.gmra.mrb[0].mxu0 %v881
        %v1918 = vpop.f32.mrb[0].mxu0
        %v1919 = vadd.f32 0.0, %v1918
        %v1920 = vpop.f32.mrb[0].mxu0
        %v1921 = vpop.f32.mrb[0].mxu0
        %v1922 = vadd.f32 0.0, %v1921
        %v1923 = vpop.f32.mrb[0].mxu0
        %1924 = vmatprep.mubr.bf16.mxu0 0
        %1925 = vmatmul.mubr.bf16.gmra.mrb[0].mxu0 %v884
        %v1926 = vpop.f32.mrb[0].mxu0
        %v1927 = vadd.f32 0.0, %v1926
        %v1928 = vpop.f32.mrb[0].mxu0
        %v1929 = vpop.f32.mrb[0].mxu0
        %v1930 = vadd.f32 0.0, %v1929
        %v1931 = vpop.f32.mrb[0].mxu0
        %1932 = vmatprep.mubr.bf16.mxu0 0
        %1933 = vmatmul.mubr.bf16.gmra.mrb[0].mxu0 %v887
        %v1934 = vpop.f32.mrb[0].mxu0
        %v1935 = vadd.f32 0.0, %v1934
        %v1936 = vpop.f32.mrb[0].mxu0
        %v1937 = vpop.f32.mrb[0].mxu0
        %v1938 = vadd.f32 0.0, %v1937
        %v1939 = vpop.f32.mrb[0].mxu0
        %1940 = vmatprep.mubr.bf16.mxu0 0
        %1941 = vmatmul.mubr.bf16.gmra.mrb[0].mxu0 %v890
        %v1942 = vpop.f32.mrb[0].mxu0
        %v1943 = vadd.f32 0.0, %v1942
        %v1944 = vpop.f32.mrb[0].mxu0
        %v1945 = vpop.f32.mrb[0].mxu0
        %v1946 = vadd.f32 0.0, %v1945
        %v1947 = vpop.f32.mrb[0].mxu0
        %1948 = vmatprep.mubr.bf16.mxu0 0
        %1949 = vmatmul.mubr.bf16.gmra.mrb[0].mxu0 %v893
        %v1950 = vpop.f32.mrb[0].mxu0
        %v1951 = vadd.f32 0.0, %v1950
        %v1952 = vpop.f32.mrb[0].mxu0
        %v1953 = vpop.f32.mrb[0].mxu0
        %v1954 = vadd.f32 0.0, %v1953
        %v1955 = vpop.f32.mrb[0].mxu0
        %1956 = vmatprep.mubr.bf16.mxu0 0
        %1957 = vmatmul.mubr.bf16.gmra.mrb[0].mxu0 %v896
        %v1958 = vpop.f32.mrb[0].mxu0
        %v1959 = vadd.f32 0.0, %v1958
        %v1960 = vpop.f32.mrb[0].mxu0
        %v1961 = vpop.f32.mrb[0].mxu0
        %v1962 = vadd.f32 0.0, %v1961
        %v1963 = vpop.f32.mrb[0].mxu0
        %1964 = vmatprep.mubr.bf16.mxu0 0
        %1965 = vmatmul.mubr.bf16.gmra.mrb[0].mxu0 %v899
        %v1966 = vpop.f32.mrb[0].mxu0
        %v1967 = vadd.f32 0.0, %v1966
        %v1968 = vpop.f32.mrb[0].mxu0
        %v1969 = vpop.f32.mrb[0].mxu0
        %v1970 = vadd.f32 0.0, %v1969
        %v1971 = vpop.f32.mrb[0].mxu0
        %1972 = vmatprep.mubr.bf16.mxu0 0
        %1973 = vmatmul.mubr.bf16.gmra.mrb[0].mxu0 %v902
        %v1974 = vpop.f32.mrb[0].mxu0
        %v1975 = vadd.f32 0.0, %v1974
        %v1976 = vpop.f32.mrb[0].mxu0
        %v1977 = vpop.f32.mrb[0].mxu0
        %v1978 = vadd.f32 0.0, %v1977
        %v1979 = vpop.f32.mrb[0].mxu0
        %1980 = vmatprep.mubr.bf16.mxu0 0
        %1981 = vmatmul.mubr.bf16.gmra.mrb[0].mxu0 %v905
        %v1982 = vpop.f32.mrb[0].mxu0
        %v1983 = vadd.f32 0.0, %v1982
        %v1984 = vpop.f32.mrb[0].mxu0
        %v1985 = vpop.f32.mrb[0].mxu0
        %v1986 = vadd.f32 0.0, %v1985
        %v1987 = vpop.f32.mrb[0].mxu0
        %1988 = vmatprep.mubr.bf16.mxu0 0
        %1989 = vmatmul.mubr.bf16.gmra.mrb[0].mxu0 %v908
        %v1990 = vpop.f32.mrb[0].mxu0
        %v1991 = vadd.f32 0.0, %v1990
        %v1992 = vpop.f32.mrb[0].mxu0
        %v1993 = vpop.f32.mrb[0].mxu0
        %v1994 = vadd.f32 0.0, %v1993
        %v1995 = vpop.f32.mrb[0].mxu0
        %1996 = vmatprep.mubr.bf16.mxu0 0
        %1997 = vmatmul.mubr.bf16.gmra.mrb[0].mxu0 %v1842
        %v1998 = vpop.f32.mrb[0].mxu0
        %v1999 = vadd.f32 0.0, %v1998
        %v2000 = vpop.f32.mrb[0].mxu0
        %v2001 = vpop.f32.mrb[0].mxu0
        %v2002 = vadd.f32 0.0, %v2001
        %v2003 = vpop.f32.mrb[0].mxu0
        %2004 = vdwg.mxu0
        %v2005 = vadd.f32 %v1786, %v1879
        %v2006 = vadd.f32 %v1787, %v1882
        %v2007 = vadd.f32 %v1788, %v1887
        %v2008 = vadd.f32 %v1789, %v1890
        %v2009 = vadd.f32 %v1790, %v1895
        %v2010 = vadd.f32 %v1791, %v1898
        %v2011 = vadd.f32 %v1792, %v1903
        %v2012 = vadd.f32 %v1793, %v1906
        %v2013 = vadd.f32 %v1794, %v1911
        %v2014 = vadd.f32 %v1795, %v1914
        %v2015 = vadd.f32 %v1796, %v1919
        %v2016 = vadd.f32 %v1797, %v1922
        %v2017 = vadd.f32 %v1798, %v1927
        %v2018 = vadd.f32 %v1799, %v1930
        %v2019 = vadd.f32 %v1800, %v1935
        %v2020 = vadd.f32 %v1801, %v1938
        %v2021 = vadd.f32 %v1802, %v1943
        %v2022 = vadd.f32 %v1803, %v1946
        %v2023 = vadd.f32 %v1804, %v1951
        %v2024 = vadd.f32 %v1805, %v1954
        %v2025 = vadd.f32 %v1806, %v1959
        %v2026 = vadd.f32 %v1807, %v1962
        %v2027 = vadd.f32 %v1808, %v1967
        %v2028 = vadd.f32 %v1809, %v1970
        %v2029 = vadd.f32 %v1810, %v1975
        %v2030 = vadd.f32 %v1811, %v1978
        %v2031 = vadd.f32 %v1812, %v1983
        %v2032 = vadd.f32 %v1813, %v1986
        %v2033 = vadd.f32 %v1814, %v1991
        %v2034 = vadd.f32 %v1815, %v1994
        %v2035 = vadd.f32 %v1816, %v1999
        %v2036 = vadd.f32 %v1817, %v2002
        %v2039 = vrot.slane %v653, 1
        %v2040 = vrot.slane %v654, 1
        %v2041 = vsel %vm1308, %v2039, %v2040
        %v2046 = vunpack.c.l.b16 %v551
        %v2047 = vunpack.c.l.b16 %v552
        %v2048 = vunpack.c.l.b16 %v553
        %v2049 = vunpack.c.l.b16 %v554
        %v2050 = vpack.c.b16 %v2047, %v2046
        %v2051 = vpack.c.b16 %v2049, %v2048
        %v2055 = vsel %vm342, %v2041, 0
        %2057 = vmatprep.subr.bf16.mxu0 0
        %2058 = vmatpush1.bf16.msra.mxu0 %v2050
        %2059 = vmatprep.subr.bf16.mxu0 0
        %2060 = vmatpush1.bf16.msra.mxu0 %v2051
        %2061 = vmatprep.subr.bf16.mxu0 0
        %2062 = vmatpush1.bf16.msra.mxu0 0
        %2063 = vmatprep.subr.bf16.mxu0 0
        %2064 = vmatpush1.bf16.msra.mxu0 0
        %2065 = vmatprep.subr.bf16.mxu0 0
        %2066 = vmatpush1.bf16.msra.mxu0 0
        %2067 = vmatprep.subr.bf16.mxu0 0
        %2068 = vmatpush1.bf16.msra.mxu0 0
        %2069 = vmatprep.subr.bf16.mxu0 0
        %2070 = vmatpush1.bf16.msra.mxu0 0
        %2071 = vmatprep.subr.bf16.mxu0 0
        %2072 = vmatpush1.bf16.msra.mxu0 0
        %2073 = vmatprep.subr.bf16.mxu0 0
        %2074 = vmatpush1.bf16.msra.mxu0 0
        %2075 = vmatprep.subr.bf16.mxu0 0
        %2076 = vmatpush1.bf16.msra.mxu0 0
        %2077 = vmatprep.subr.bf16.mxu0 0
        %2078 = vmatpush1.bf16.msra.mxu0 0
        %2079 = vmatprep.subr.bf16.mxu0 0
        %2080 = vmatpush1.bf16.msra.mxu0 0
        %2081 = vmatprep.subr.bf16.mxu0 0
        %2082 = vmatpush1.bf16.msra.mxu0 0
        %2083 = vmatprep.subr.bf16.mxu0 0
        %2084 = vmatpush1.bf16.msra.mxu0 0
        %2085 = vmatprep.subr.bf16.mxu0 0
        %2086 = vmatpush1.bf16.msra.mxu0 0
        %2087 = vmatprep.subr.bf16.mxu0 0
        %2088 = vmatpush1.bf16.msra.mxu0 0
        %2089 = vmatprep.mubr.bf16.mxu0 0
        %2090 = vmatmul.mubr.bf16.gmra.mrb[0].mxu0 %v1373
        %v2091 = vpop.f32.mrb[0].mxu0
        %v2092 = vadd.f32 0.0, %v2091
        %v2093 = vpop.f32.mrb[0].mxu0
        %v2094 = vpop.f32.mrb[0].mxu0
        %v2095 = vadd.f32 0.0, %v2094
        %v2096 = vpop.f32.mrb[0].mxu0
        %2097 = vmatprep.mubr.bf16.mxu0 0
        %2098 = vmatmul.mubr.bf16.gmra.mrb[0].mxu0 %v1376
        %v2099 = vpop.f32.mrb[0].mxu0
        %v2100 = vadd.f32 0.0, %v2099
        %v2101 = vpop.f32.mrb[0].mxu0
        %v2102 = vpop.f32.mrb[0].mxu0
        %v2103 = vadd.f32 0.0, %v2102
        %v2104 = vpop.f32.mrb[0].mxu0
        %2105 = vmatprep.mubr.bf16.mxu0 0
        %2106 = vmatmul.mubr.bf16.gmra.mrb[0].mxu0 %v1379
        %v2107 = vpop.f32.mrb[0].mxu0
        %v2108 = vadd.f32 0.0, %v2107
        %v2109 = vpop.f32.mrb[0].mxu0
        %v2110 = vpop.f32.mrb[0].mxu0
        %v2111 = vadd.f32 0.0, %v2110
        %v2112 = vpop.f32.mrb[0].mxu0
        %2113 = vmatprep.mubr.bf16.mxu0 0
        %2114 = vmatmul.mubr.bf16.gmra.mrb[0].mxu0 %v1382
        %v2115 = vpop.f32.mrb[0].mxu0
        %v2116 = vadd.f32 0.0, %v2115
        %v2117 = vpop.f32.mrb[0].mxu0
        %v2118 = vpop.f32.mrb[0].mxu0
        %v2119 = vadd.f32 0.0, %v2118
        %v2120 = vpop.f32.mrb[0].mxu0
        %2121 = vmatprep.mubr.bf16.mxu0 0
        %2122 = vmatmul.mubr.bf16.gmra.mrb[0].mxu0 %v1385
        %v2123 = vpop.f32.mrb[0].mxu0
        %v2124 = vadd.f32 0.0, %v2123
        %v2125 = vpop.f32.mrb[0].mxu0
        %v2126 = vpop.f32.mrb[0].mxu0
        %v2127 = vadd.f32 0.0, %v2126
        %v2128 = vpop.f32.mrb[0].mxu0
        %2129 = vmatprep.mubr.bf16.mxu0 0
        %2130 = vmatmul.mubr.bf16.gmra.mrb[0].mxu0 %v1388
        %v2131 = vpop.f32.mrb[0].mxu0
        %v2132 = vadd.f32 0.0, %v2131
        %v2133 = vpop.f32.mrb[0].mxu0
        %v2134 = vpop.f32.mrb[0].mxu0
        %v2135 = vadd.f32 0.0, %v2134
        %v2136 = vpop.f32.mrb[0].mxu0
        %2137 = vmatprep.mubr.bf16.mxu0 0
        %2138 = vmatmul.mubr.bf16.gmra.mrb[0].mxu0 %v1391
        %v2139 = vpop.f32.mrb[0].mxu0
        %v2140 = vadd.f32 0.0, %v2139
        %v2141 = vpop.f32.mrb[0].mxu0
        %v2142 = vpop.f32.mrb[0].mxu0
        %v2143 = vadd.f32 0.0, %v2142
        %v2144 = vpop.f32.mrb[0].mxu0
        %2145 = vmatprep.mubr.bf16.mxu0 0
        %2146 = vmatmul.mubr.bf16.gmra.mrb[0].mxu0 %v1394
        %v2147 = vpop.f32.mrb[0].mxu0
        %v2148 = vadd.f32 0.0, %v2147
        %v2149 = vpop.f32.mrb[0].mxu0
        %v2150 = vpop.f32.mrb[0].mxu0
        %v2151 = vadd.f32 0.0, %v2150
        %v2152 = vpop.f32.mrb[0].mxu0
        %2153 = vmatprep.mubr.bf16.mxu0 0
        %2154 = vmatmul.mubr.bf16.gmra.mrb[0].mxu0 %v1397
        %v2155 = vpop.f32.mrb[0].mxu0
        %v2156 = vadd.f32 0.0, %v2155
        %v2157 = vpop.f32.mrb[0].mxu0
        %v2158 = vpop.f32.mrb[0].mxu0
        %v2159 = vadd.f32 0.0, %v2158
        %v2160 = vpop.f32.mrb[0].mxu0
        %2161 = vmatprep.mubr.bf16.mxu0 0
        %2162 = vmatmul.mubr.bf16.gmra.mrb[0].mxu0 %v1400
        %v2163 = vpop.f32.mrb[0].mxu0
        %v2164 = vadd.f32 0.0, %v2163
        %v2165 = vpop.f32.mrb[0].mxu0
        %v2166 = vpop.f32.mrb[0].mxu0
        %v2167 = vadd.f32 0.0, %v2166
        %v2168 = vpop.f32.mrb[0].mxu0
        %2169 = vmatprep.mubr.bf16.mxu0 0
        %2170 = vmatmul.mubr.bf16.gmra.mrb[0].mxu0 %v1403
        %v2171 = vpop.f32.mrb[0].mxu0
        %v2172 = vadd.f32 0.0, %v2171
        %v2173 = vpop.f32.mrb[0].mxu0
        %v2174 = vpop.f32.mrb[0].mxu0
        %v2175 = vadd.f32 0.0, %v2174
        %v2176 = vpop.f32.mrb[0].mxu0
        %2177 = vmatprep.mubr.bf16.mxu0 0
        %2178 = vmatmul.mubr.bf16.gmra.mrb[0].mxu0 %v1406
        %v2179 = vpop.f32.mrb[0].mxu0
        %v2180 = vadd.f32 0.0, %v2179
        %v2181 = vpop.f32.mrb[0].mxu0
        %v2182 = vpop.f32.mrb[0].mxu0
        %v2183 = vadd.f32 0.0, %v2182
        %v2184 = vpop.f32.mrb[0].mxu0
        %2185 = vmatprep.mubr.bf16.mxu0 0
        %2186 = vmatmul.mubr.bf16.gmra.mrb[0].mxu0 %v1409
        %v2187 = vpop.f32.mrb[0].mxu0
        %v2188 = vadd.f32 0.0, %v2187
        %v2189 = vpop.f32.mrb[0].mxu0
        %v2190 = vpop.f32.mrb[0].mxu0
        %v2191 = vadd.f32 0.0, %v2190
        %v2192 = vpop.f32.mrb[0].mxu0
        %2193 = vmatprep.mubr.bf16.mxu0 0
        %2194 = vmatmul.mubr.bf16.gmra.mrb[0].mxu0 %v1412
        %v2195 = vpop.f32.mrb[0].mxu0
        %v2196 = vadd.f32 0.0, %v2195
        %v2197 = vpop.f32.mrb[0].mxu0
        %v2198 = vpop.f32.mrb[0].mxu0
        %v2199 = vadd.f32 0.0, %v2198
        %v2200 = vpop.f32.mrb[0].mxu0
        %2201 = vmatprep.mubr.bf16.mxu0 0
        %2202 = vmatmul.mubr.bf16.gmra.mrb[0].mxu0 %v1415
        %v2203 = vpop.f32.mrb[0].mxu0
        %v2204 = vadd.f32 0.0, %v2203
        %v2205 = vpop.f32.mrb[0].mxu0
        %v2206 = vpop.f32.mrb[0].mxu0
        %v2207 = vadd.f32 0.0, %v2206
        %v2208 = vpop.f32.mrb[0].mxu0
        %2209 = vmatprep.mubr.bf16.mxu0 0
        %2210 = vmatmul.mubr.bf16.gmra.mrb[0].mxu0 %v2055
        %v2211 = vpop.f32.mrb[0].mxu0
        %v2212 = vadd.f32 0.0, %v2211
        %v2213 = vpop.f32.mrb[0].mxu0
        %v2214 = vpop.f32.mrb[0].mxu0
        %v2215 = vadd.f32 0.0, %v2214
        %v2216 = vpop.f32.mrb[0].mxu0
        %2217 = vdwg.mxu0
        %v2218 = vadd.f32 %v2005, %v2092
        %v2219 = vadd.f32 %v2006, %v2095
        %v2220 = vadd.f32 %v2007, %v2100
        %v2221 = vadd.f32 %v2008, %v2103
        %v2222 = vadd.f32 %v2009, %v2108
        %v2223 = vadd.f32 %v2010, %v2111
        %v2224 = vadd.f32 %v2011, %v2116
        %v2225 = vadd.f32 %v2012, %v2119
        %v2226 = vadd.f32 %v2013, %v2124
        %v2227 = vadd.f32 %v2014, %v2127
        %v2228 = vadd.f32 %v2015, %v2132
        %v2229 = vadd.f32 %v2016, %v2135
        %v2230 = vadd.f32 %v2017, %v2140
        %v2231 = vadd.f32 %v2018, %v2143
        %v2232 = vadd.f32 %v2019, %v2148
        %v2233 = vadd.f32 %v2020, %v2151
        %v2234 = vadd.f32 %v2021, %v2156
        %v2235 = vadd.f32 %v2022, %v2159
        %v2236 = vadd.f32 %v2023, %v2164
        %v2237 = vadd.f32 %v2024, %v2167
        %v2238 = vadd.f32 %v2025, %v2172
        %v2239 = vadd.f32 %v2026, %v2175
        %v2240 = vadd.f32 %v2027, %v2180
        %v2241 = vadd.f32 %v2028, %v2183
        %v2242 = vadd.f32 %v2029, %v2188
        %v2243 = vadd.f32 %v2030, %v2191
        %v2244 = vadd.f32 %v2031, %v2196
        %v2245 = vadd.f32 %v2032, %v2199
        %v2246 = vadd.f32 %v2033, %v2204
        %v2247 = vadd.f32 %v2034, %v2207
        %v2248 = vadd.f32 %v2035, %v2212
        %v2249 = vadd.f32 %v2036, %v2215
        %v2254 = vunpack.c.l.b16 %v555
        %v2255 = vunpack.c.l.b16 %v556
        %v2256 = vunpack.c.l.b16 %v557
        %v2257 = vunpack.c.l.b16 %v558
        %v2258 = vpack.c.b16 %v2255, %v2254
        %v2259 = vpack.c.b16 %v2257, %v2256
        %v2263 = vsel %vm342, %v655, 0
        %2265 = vmatprep.subr.bf16.mxu0 0
        %2266 = vmatpush1.bf16.msra.mxu0 %v2258
        %2267 = vmatprep.subr.bf16.mxu0 0
        %2268 = vmatpush1.bf16.msra.mxu0 %v2259
        %2269 = vmatprep.subr.bf16.mxu0 0
        %2270 = vmatpush1.bf16.msra.mxu0 0
        %2271 = vmatprep.subr.bf16.mxu0 0
        %2272 = vmatpush1.bf16.msra.mxu0 0
        %2273 = vmatprep.subr.bf16.mxu0 0
        %2274 = vmatpush1.bf16.msra.mxu0 0
        %2275 = vmatprep.subr.bf16.mxu0 0
        %2276 = vmatpush1.bf16.msra.mxu0 0
        %2277 = vmatprep.subr.bf16.mxu0 0
        %2278 = vmatpush1.bf16.msra.mxu0 0
        %2279 = vmatprep.subr.bf16.mxu0 0
        %2280 = vmatpush1.bf16.msra.mxu0 0
        %2281 = vmatprep.subr.bf16.mxu0 0
        %2282 = vmatpush1.bf16.msra.mxu0 0
        %2283 = vmatprep.subr.bf16.mxu0 0
        %2284 = vmatpush1.bf16.msra.mxu0 0
        %2285 = vmatprep.subr.bf16.mxu0 0
        %2286 = vmatpush1.bf16.msra.mxu0 0
        %2287 = vmatprep.subr.bf16.mxu0 0
        %2288 = vmatpush1.bf16.msra.mxu0 0
        %2289 = vmatprep.subr.bf16.mxu0 0
        %2290 = vmatpush1.bf16.msra.mxu0 0
        %2291 = vmatprep.subr.bf16.mxu0 0
        %2292 = vmatpush1.bf16.msra.mxu0 0
        %2293 = vmatprep.subr.bf16.mxu0 0
        %2294 = vmatpush1.bf16.msra.mxu0 0
        %2295 = vmatprep.subr.bf16.mxu0 0
        %2296 = vmatpush1.bf16.msra.mxu0 0
        %2297 = vmatprep.mubr.bf16.mxu0 0
        %2298 = vmatmul.mubr.bf16.gmra.mrb[0].mxu0 %v1087
        %v2299 = vpop.f32.mrb[0].mxu0
        %v2300 = vadd.f32 0.0, %v2299
        %v2301 = vpop.f32.mrb[0].mxu0
        %v2302 = vpop.f32.mrb[0].mxu0
        %v2303 = vadd.f32 0.0, %v2302
        %v2304 = vpop.f32.mrb[0].mxu0
        %2305 = vmatprep.mubr.bf16.mxu0 0
        %2306 = vmatmul.mubr.bf16.gmra.mrb[0].mxu0 %v1089
        %v2307 = vpop.f32.mrb[0].mxu0
        %v2308 = vadd.f32 0.0, %v2307
        %v2309 = vpop.f32.mrb[0].mxu0
        %v2310 = vpop.f32.mrb[0].mxu0
        %v2311 = vadd.f32 0.0, %v2310
        %v2312 = vpop.f32.mrb[0].mxu0
        %2313 = vmatprep.mubr.bf16.mxu0 0
        %2314 = vmatmul.mubr.bf16.gmra.mrb[0].mxu0 %v1091
        %v2315 = vpop.f32.mrb[0].mxu0
        %v2316 = vadd.f32 0.0, %v2315
        %v2317 = vpop.f32.mrb[0].mxu0
        %v2318 = vpop.f32.mrb[0].mxu0
        %v2319 = vadd.f32 0.0, %v2318
        %v2320 = vpop.f32.mrb[0].mxu0
        %2321 = vmatprep.mubr.bf16.mxu0 0
        %2322 = vmatmul.mubr.bf16.gmra.mrb[0].mxu0 %v1093
        %v2323 = vpop.f32.mrb[0].mxu0
        %v2324 = vadd.f32 0.0, %v2323
        %v2325 = vpop.f32.mrb[0].mxu0
        %v2326 = vpop.f32.mrb[0].mxu0
        %v2327 = vadd.f32 0.0, %v2326
        %v2328 = vpop.f32.mrb[0].mxu0
        %2329 = vmatprep.mubr.bf16.mxu0 0
        %2330 = vmatmul.mubr.bf16.gmra.mrb[0].mxu0 %v1095
        %v2331 = vpop.f32.mrb[0].mxu0
        %v2332 = vadd.f32 0.0, %v2331
        %v2333 = vpop.f32.mrb[0].mxu0
        %v2334 = vpop.f32.mrb[0].mxu0
        %v2335 = vadd.f32 0.0, %v2334
        %v2336 = vpop.f32.mrb[0].mxu0
        %2337 = vmatprep.mubr.bf16.mxu0 0
        %2338 = vmatmul.mubr.bf16.gmra.mrb[0].mxu0 %v1097
        %v2339 = vpop.f32.mrb[0].mxu0
        %v2340 = vadd.f32 0.0, %v2339
        %v2341 = vpop.f32.mrb[0].mxu0
        %v2342 = vpop.f32.mrb[0].mxu0
        %v2343 = vadd.f32 0.0, %v2342
        %v2344 = vpop.f32.mrb[0].mxu0
        %2345 = vmatprep.mubr.bf16.mxu0 0
        %2346 = vmatmul.mubr.bf16.gmra.mrb[0].mxu0 %v1099
        %v2347 = vpop.f32.mrb[0].mxu0
        %v2348 = vadd.f32 0.0, %v2347
        %v2349 = vpop.f32.mrb[0].mxu0
        %v2350 = vpop.f32.mrb[0].mxu0
        %v2351 = vadd.f32 0.0, %v2350
        %v2352 = vpop.f32.mrb[0].mxu0
        %2353 = vmatprep.mubr.bf16.mxu0 0
        %2354 = vmatmul.mubr.bf16.gmra.mrb[0].mxu0 %v1101
        %v2355 = vpop.f32.mrb[0].mxu0
        %v2356 = vadd.f32 0.0, %v2355
        %v2357 = vpop.f32.mrb[0].mxu0
        %v2358 = vpop.f32.mrb[0].mxu0
        %v2359 = vadd.f32 0.0, %v2358
        %v2360 = vpop.f32.mrb[0].mxu0
        %2361 = vmatprep.mubr.bf16.mxu0 0
        %2362 = vmatmul.mubr.bf16.gmra.mrb[0].mxu0 %v1103
        %v2363 = vpop.f32.mrb[0].mxu0
        %v2364 = vadd.f32 0.0, %v2363
        %v2365 = vpop.f32.mrb[0].mxu0
        %v2366 = vpop.f32.mrb[0].mxu0
        %v2367 = vadd.f32 0.0, %v2366
        %v2368 = vpop.f32.mrb[0].mxu0
        %2369 = vmatprep.mubr.bf16.mxu0 0
        %2370 = vmatmul.mubr.bf16.gmra.mrb[0].mxu0 %v1105
        %v2371 = vpop.f32.mrb[0].mxu0
        %v2372 = vadd.f32 0.0, %v2371
        %v2373 = vpop.f32.mrb[0].mxu0
        %v2374 = vpop.f32.mrb[0].mxu0
        %v2375 = vadd.f32 0.0, %v2374
        %v2376 = vpop.f32.mrb[0].mxu0
        %2377 = vmatprep.mubr.bf16.mxu0 0
        %2378 = vmatmul.mubr.bf16.gmra.mrb[0].mxu0 %v1107
        %v2379 = vpop.f32.mrb[0].mxu0
        %v2380 = vadd.f32 0.0, %v2379
        %v2381 = vpop.f32.mrb[0].mxu0
        %v2382 = vpop.f32.mrb[0].mxu0
        %v2383 = vadd.f32 0.0, %v2382
        %v2384 = vpop.f32.mrb[0].mxu0
        %2385 = vmatprep.mubr.bf16.mxu0 0
        %2386 = vmatmul.mubr.bf16.gmra.mrb[0].mxu0 %v1109
        %v2387 = vpop.f32.mrb[0].mxu0
        %v2388 = vadd.f32 0.0, %v2387
        %v2389 = vpop.f32.mrb[0].mxu0
        %v2390 = vpop.f32.mrb[0].mxu0
        %v2391 = vadd.f32 0.0, %v2390
        %v2392 = vpop.f32.mrb[0].mxu0
        %2393 = vmatprep.mubr.bf16.mxu0 0
        %2394 = vmatmul.mubr.bf16.gmra.mrb[0].mxu0 %v1111
        %v2395 = vpop.f32.mrb[0].mxu0
        %v2396 = vadd.f32 0.0, %v2395
        %v2397 = vpop.f32.mrb[0].mxu0
        %v2398 = vpop.f32.mrb[0].mxu0
        %v2399 = vadd.f32 0.0, %v2398
        %v2400 = vpop.f32.mrb[0].mxu0
        %2401 = vmatprep.mubr.bf16.mxu0 0
        %2402 = vmatmul.mubr.bf16.gmra.mrb[0].mxu0 %v1113
        %v2403 = vpop.f32.mrb[0].mxu0
        %v2404 = vadd.f32 0.0, %v2403
        %v2405 = vpop.f32.mrb[0].mxu0
        %v2406 = vpop.f32.mrb[0].mxu0
        %v2407 = vadd.f32 0.0, %v2406
        %v2408 = vpop.f32.mrb[0].mxu0
        %2409 = vmatprep.mubr.bf16.mxu0 0
        %2410 = vmatmul.mubr.bf16.gmra.mrb[0].mxu0 %v1623
        %v2411 = vpop.f32.mrb[0].mxu0
        %v2412 = vadd.f32 0.0, %v2411
        %v2413 = vpop.f32.mrb[0].mxu0
        %v2414 = vpop.f32.mrb[0].mxu0
        %v2415 = vadd.f32 0.0, %v2414
        %v2416 = vpop.f32.mrb[0].mxu0
        %2417 = vmatprep.mubr.bf16.mxu0 0
        %2418 = vmatmul.mubr.bf16.gmra.mrb[0].mxu0 %v2263
        %v2419 = vpop.f32.mrb[0].mxu0
        %v2420 = vadd.f32 0.0, %v2419
        %v2421 = vpop.f32.mrb[0].mxu0
        %v2422 = vpop.f32.mrb[0].mxu0
        %v2423 = vadd.f32 0.0, %v2422
        %v2424 = vpop.f32.mrb[0].mxu0
        %2425 = vdwg.mxu0
        %v2426 = vadd.f32 %v2218, %v2300
        %v2427 = vadd.f32 %v2219, %v2303
        %v2428 = vadd.f32 %v2220, %v2308
        %v2429 = vadd.f32 %v2221, %v2311
        %v2430 = vadd.f32 %v2222, %v2316
        %v2431 = vadd.f32 %v2223, %v2319
        %v2432 = vadd.f32 %v2224, %v2324
        %v2433 = vadd.f32 %v2225, %v2327
        %v2434 = vadd.f32 %v2226, %v2332
        %v2435 = vadd.f32 %v2227, %v2335
        %v2436 = vadd.f32 %v2228, %v2340
        %v2437 = vadd.f32 %v2229, %v2343
        %v2438 = vadd.f32 %v2230, %v2348
        %v2439 = vadd.f32 %v2231, %v2351
        %v2440 = vadd.f32 %v2232, %v2356
        %v2441 = vadd.f32 %v2233, %v2359
        %v2442 = vadd.f32 %v2234, %v2364
        %v2443 = vadd.f32 %v2235, %v2367
        %v2444 = vadd.f32 %v2236, %v2372
        %v2445 = vadd.f32 %v2237, %v2375
        %v2446 = vadd.f32 %v2238, %v2380
        %v2447 = vadd.f32 %v2239, %v2383
        %v2448 = vadd.f32 %v2240, %v2388
        %v2449 = vadd.f32 %v2241, %v2391
        %v2450 = vadd.f32 %v2242, %v2396
        %v2451 = vadd.f32 %v2243, %v2399
        %v2452 = vadd.f32 %v2244, %v2404
        %v2453 = vadd.f32 %v2245, %v2407
        %v2454 = vadd.f32 %v2246, %v2412
        %v2455 = vadd.f32 %v2247, %v2415
        %v2456 = vadd.f32 %v2248, %v2420
        %v2457 = vadd.f32 %v2249, %v2423
        %v2458 = vshrl.u32 %v655, 16
        %v2460 = vshll.u32 %v655, 16
        %v2462 = vrot.slane %v2460, 1
        %v2463 = vor.u32 %v2458, %v2462
        %v2465 = vshll.u32 %v656, 16
        %v2467 = vrot.slane %v2465, 1
        %v2468 = vsel %vm657, %v2463, %v2467
        %v2473 = vunpack.c.l.b16 %v559
        %v2474 = vunpack.c.l.b16 %v560
        %v2475 = vunpack.c.l.b16 %v561
        %v2476 = vunpack.c.l.b16 %v562
        %v2477 = vpack.c.b16 %v2474, %v2473
        %v2478 = vpack.c.b16 %v2476, %v2475
        %v2482 = vsel %vm342, %v2468, 0
        %2484 = vmatprep.subr.bf16.mxu0 0
        %2485 = vmatpush1.bf16.msra.mxu0 %v2477
        %2486 = vmatprep.subr.bf16.mxu0 0
        %2487 = vmatpush1.bf16.msra.mxu0 %v2478
        %2488 = vmatprep.subr.bf16.mxu0 0
        %2489 = vmatpush1.bf16.msra.mxu0 0
        %2490 = vmatprep.subr.bf16.mxu0 0
        %2491 = vmatpush1.bf16.msra.mxu0 0
        %2492 = vmatprep.subr.bf16.mxu0 0
        %2493 = vmatpush1.bf16.msra.mxu0 0
        %2494 = vmatprep.subr.bf16.mxu0 0
        %2495 = vmatpush1.bf16.msra.mxu0 0
        %2496 = vmatprep.subr.bf16.mxu0 0
        %2497 = vmatpush1.bf16.msra.mxu0 0
        %2498 = vmatprep.subr.bf16.mxu0 0
        %2499 = vmatpush1.bf16.msra.mxu0 0
        %2500 = vmatprep.subr.bf16.mxu0 0
        %2501 = vmatpush1.bf16.msra.mxu0 0
        %2502 = vmatprep.subr.bf16.mxu0 0
        %2503 = vmatpush1.bf16.msra.mxu0 0
        %2504 = vmatprep.subr.bf16.mxu0 0
        %2505 = vmatpush1.bf16.msra.mxu0 0
        %2506 = vmatprep.subr.bf16.mxu0 0
        %2507 = vmatpush1.bf16.msra.mxu0 0
        %2508 = vmatprep.subr.bf16.mxu0 0
        %2509 = vmatpush1.bf16.msra.mxu0 0
        %2510 = vmatprep.subr.bf16.mxu0 0
        %2511 = vmatpush1.bf16.msra.mxu0 0
        %2512 = vmatprep.subr.bf16.mxu0 0
        %2513 = vmatpush1.bf16.msra.mxu0 0
        %2514 = vmatprep.subr.bf16.mxu0 0
        %2515 = vmatpush1.bf16.msra.mxu0 0
        %2516 = vmatprep.mubr.bf16.mxu0 0
        %2517 = vmatmul.mubr.bf16.gmra.mrb[0].mxu0 %v869
        %v2518 = vpop.f32.mrb[0].mxu0
        %v2519 = vadd.f32 0.0, %v2518
        %v2520 = vpop.f32.mrb[0].mxu0
        %v2521 = vpop.f32.mrb[0].mxu0
        %v2522 = vadd.f32 0.0, %v2521
        %v2523 = vpop.f32.mrb[0].mxu0
        %2524 = vmatprep.mubr.bf16.mxu0 0
        %2525 = vmatmul.mubr.bf16.gmra.mrb[0].mxu0 %v872
        %v2526 = vpop.f32.mrb[0].mxu0
        %v2527 = vadd.f32 0.0, %v2526
        %v2528 = vpop.f32.mrb[0].mxu0
        %v2529 = vpop.f32.mrb[0].mxu0
        %v2530 = vadd.f32 0.0, %v2529
        %v2531 = vpop.f32.mrb[0].mxu0
        %2532 = vmatprep.mubr.bf16.mxu0 0
        %2533 = vmatmul.mubr.bf16.gmra.mrb[0].mxu0 %v875
        %v2534 = vpop.f32.mrb[0].mxu0
        %v2535 = vadd.f32 0.0, %v2534
        %v2536 = vpop.f32.mrb[0].mxu0
        %v2537 = vpop.f32.mrb[0].mxu0
        %v2538 = vadd.f32 0.0, %v2537
        %v2539 = vpop.f32.mrb[0].mxu0
        %2540 = vmatprep.mubr.bf16.mxu0 0
        %2541 = vmatmul.mubr.bf16.gmra.mrb[0].mxu0 %v878
        %v2542 = vpop.f32.mrb[0].mxu0
        %v2543 = vadd.f32 0.0, %v2542
        %v2544 = vpop.f32.mrb[0].mxu0
        %v2545 = vpop.f32.mrb[0].mxu0
        %v2546 = vadd.f32 0.0, %v2545
        %v2547 = vpop.f32.mrb[0].mxu0
        %2548 = vmatprep.mubr.bf16.mxu0 0
        %2549 = vmatmul.mubr.bf16.gmra.mrb[0].mxu0 %v881
        %v2550 = vpop.f32.mrb[0].mxu0
        %v2551 = vadd.f32 0.0, %v2550
        %v2552 = vpop.f32.mrb[0].mxu0
        %v2553 = vpop.f32.mrb[0].mxu0
        %v2554 = vadd.f32 0.0, %v2553
        %v2555 = vpop.f32.mrb[0].mxu0
        %2556 = vmatprep.mubr.bf16.mxu0 0
        %2557 = vmatmul.mubr.bf16.gmra.mrb[0].mxu0 %v884
        %v2558 = vpop.f32.mrb[0].mxu0
        %v2559 = vadd.f32 0.0, %v2558
        %v2560 = vpop.f32.mrb[0].mxu0
        %v2561 = vpop.f32.mrb[0].mxu0
        %v2562 = vadd.f32 0.0, %v2561
        %v2563 = vpop.f32.mrb[0].mxu0
        %2564 = vmatprep.mubr.bf16.mxu0 0
        %2565 = vmatmul.mubr.bf16.gmra.mrb[0].mxu0 %v887
        %v2566 = vpop.f32.mrb[0].mxu0
        %v2567 = vadd.f32 0.0, %v2566
        %v2568 = vpop.f32.mrb[0].mxu0
        %v2569 = vpop.f32.mrb[0].mxu0
        %v2570 = vadd.f32 0.0, %v2569
        %v2571 = vpop.f32.mrb[0].mxu0
        %2572 = vmatprep.mubr.bf16.mxu0 0
        %2573 = vmatmul.mubr.bf16.gmra.mrb[0].mxu0 %v890
        %v2574 = vpop.f32.mrb[0].mxu0
        %v2575 = vadd.f32 0.0, %v2574
        %v2576 = vpop.f32.mrb[0].mxu0
        %v2577 = vpop.f32.mrb[0].mxu0
        %v2578 = vadd.f32 0.0, %v2577
        %v2579 = vpop.f32.mrb[0].mxu0
        %2580 = vmatprep.mubr.bf16.mxu0 0
        %2581 = vmatmul.mubr.bf16.gmra.mrb[0].mxu0 %v893
        %v2582 = vpop.f32.mrb[0].mxu0
        %v2583 = vadd.f32 0.0, %v2582
        %v2584 = vpop.f32.mrb[0].mxu0
        %v2585 = vpop.f32.mrb[0].mxu0
        %v2586 = vadd.f32 0.0, %v2585
        %v2587 = vpop.f32.mrb[0].mxu0
        %2588 = vmatprep.mubr.bf16.mxu0 0
        %2589 = vmatmul.mubr.bf16.gmra.mrb[0].mxu0 %v896
        %v2590 = vpop.f32.mrb[0].mxu0
        %v2591 = vadd.f32 0.0, %v2590
        %v2592 = vpop.f32.mrb[0].mxu0
        %v2593 = vpop.f32.mrb[0].mxu0
        %v2594 = vadd.f32 0.0, %v2593
        %v2595 = vpop.f32.mrb[0].mxu0
        %2596 = vmatprep.mubr.bf16.mxu0 0
        %2597 = vmatmul.mubr.bf16.gmra.mrb[0].mxu0 %v899
        %v2598 = vpop.f32.mrb[0].mxu0
        %v2599 = vadd.f32 0.0, %v2598
        %v2600 = vpop.f32.mrb[0].mxu0
        %v2601 = vpop.f32.mrb[0].mxu0
        %v2602 = vadd.f32 0.0, %v2601
        %v2603 = vpop.f32.mrb[0].mxu0
        %2604 = vmatprep.mubr.bf16.mxu0 0
        %2605 = vmatmul.mubr.bf16.gmra.mrb[0].mxu0 %v902
        %v2606 = vpop.f32.mrb[0].mxu0
        %v2607 = vadd.f32 0.0, %v2606
        %v2608 = vpop.f32.mrb[0].mxu0
        %v2609 = vpop.f32.mrb[0].mxu0
        %v2610 = vadd.f32 0.0, %v2609
        %v2611 = vpop.f32.mrb[0].mxu0
        %2612 = vmatprep.mubr.bf16.mxu0 0
        %2613 = vmatmul.mubr.bf16.gmra.mrb[0].mxu0 %v905
        %v2614 = vpop.f32.mrb[0].mxu0
        %v2615 = vadd.f32 0.0, %v2614
        %v2616 = vpop.f32.mrb[0].mxu0
        %v2617 = vpop.f32.mrb[0].mxu0
        %v2618 = vadd.f32 0.0, %v2617
        %v2619 = vpop.f32.mrb[0].mxu0
        %2620 = vmatprep.mubr.bf16.mxu0 0
        %2621 = vmatmul.mubr.bf16.gmra.mrb[0].mxu0 %v908
        %v2622 = vpop.f32.mrb[0].mxu0
        %v2623 = vadd.f32 0.0, %v2622
        %v2624 = vpop.f32.mrb[0].mxu0
        %v2625 = vpop.f32.mrb[0].mxu0
        %v2626 = vadd.f32 0.0, %v2625
        %v2627 = vpop.f32.mrb[0].mxu0
        %2628 = vmatprep.mubr.bf16.mxu0 0
        %2629 = vmatmul.mubr.bf16.gmra.mrb[0].mxu0 %v1842
        %v2630 = vpop.f32.mrb[0].mxu0
        %v2631 = vadd.f32 0.0, %v2630
        %v2632 = vpop.f32.mrb[0].mxu0
        %v2633 = vpop.f32.mrb[0].mxu0
        %v2634 = vadd.f32 0.0, %v2633
        %v2635 = vpop.f32.mrb[0].mxu0
        %2636 = vmatprep.mubr.bf16.mxu0 0
        %2637 = vmatmul.mubr.bf16.gmra.mrb[0].mxu0 %v2482
        %v2638 = vpop.f32.mrb[0].mxu0
        %v2639 = vadd.f32 0.0, %v2638
        %v2640 = vpop.f32.mrb[0].mxu0
        %v2641 = vpop.f32.mrb[0].mxu0
        %v2642 = vadd.f32 0.0, %v2641
        %v2643 = vpop.f32.mrb[0].mxu0
        %2644 = vdwg.mxu0
        %v2645 = vadd.f32 %v2426, %v2519
        %v2646 = vadd.f32 %v2427, %v2522
        %v2647 = vadd.f32 %v2428, %v2527
        %v2648 = vadd.f32 %v2429, %v2530
        %v2649 = vadd.f32 %v2430, %v2535
        %v2650 = vadd.f32 %v2431, %v2538
        %v2651 = vadd.f32 %v2432, %v2543
        %v2652 = vadd.f32 %v2433, %v2546
        %v2653 = vadd.f32 %v2434, %v2551
        %v2654 = vadd.f32 %v2435, %v2554
        %v2655 = vadd.f32 %v2436, %v2559
        %v2656 = vadd.f32 %v2437, %v2562
        %v2657 = vadd.f32 %v2438, %v2567
        %v2658 = vadd.f32 %v2439, %v2570
        %v2659 = vadd.f32 %v2440, %v2575
        %v2660 = vadd.f32 %v2441, %v2578
        %v2661 = vadd.f32 %v2442, %v2583
        %v2662 = vadd.f32 %v2443, %v2586
        %v2663 = vadd.f32 %v2444, %v2591
        %v2664 = vadd.f32 %v2445, %v2594
        %v2665 = vadd.f32 %v2446, %v2599
        %v2666 = vadd.f32 %v2447, %v2602
        %v2667 = vadd.f32 %v2448, %v2607
        %v2668 = vadd.f32 %v2449, %v2610
        %v2669 = vadd.f32 %v2450, %v2615
        %v2670 = vadd.f32 %v2451, %v2618
        %v2671 = vadd.f32 %v2452, %v2623
        %v2672 = vadd.f32 %v2453, %v2626
        %v2673 = vadd.f32 %v2454, %v2631
        %v2674 = vadd.f32 %v2455, %v2634
        %v2675 = vadd.f32 %v2456, %v2639
        %v2676 = vadd.f32 %v2457, %v2642
        %v2679 = vrot.slane %v655, 1
        %v2680 = vrot.slane %v656, 1
        %v2681 = vsel %vm1308, %v2679, %v2680
        %v2686 = vunpack.c.l.b16 %v563
        %v2687 = vunpack.c.l.b16 %v564
        %v2688 = vunpack.c.l.b16 %v565
        %v2689 = vunpack.c.l.b16 %v566
        %v2690 = vpack.c.b16 %v2687, %v2686
        %v2691 = vpack.c.b16 %v2689, %v2688
        %v2695 = vsel %vm342, %v2681, 0
        %2697 = vmatprep.subr.bf16.mxu0 0
        %2698 = vmatpush1.bf16.msra.mxu0 %v2690
        %2699 = vmatprep.subr.bf16.mxu0 0
        %2700 = vmatpush1.bf16.msra.mxu0 %v2691
        %2701 = vmatprep.subr.bf16.mxu0 0
        %2702 = vmatpush1.bf16.msra.mxu0 0
        %2703 = vmatprep.subr.bf16.mxu0 0
        %2704 = vmatpush1.bf16.msra.mxu0 0
        %2705 = vmatprep.subr.bf16.mxu0 0
        %2706 = vmatpush1.bf16.msra.mxu0 0
        %2707 = vmatprep.subr.bf16.mxu0 0
        %2708 = vmatpush1.bf16.msra.mxu0 0
        %2709 = vmatprep.subr.bf16.mxu0 0
        %2710 = vmatpush1.bf16.msra.mxu0 0
        %2711 = vmatprep.subr.bf16.mxu0 0
        %2712 = vmatpush1.bf16.msra.mxu0 0
        %2713 = vmatprep.subr.bf16.mxu0 0
        %2714 = vmatpush1.bf16.msra.mxu0 0
        %2715 = vmatprep.subr.bf16.mxu0 0
        %2716 = vmatpush1.bf16.msra.mxu0 0
        %2717 = vmatprep.subr.bf16.mxu0 0
        %2718 = vmatpush1.bf16.msra.mxu0 0
        %2719 = vmatprep.subr.bf16.mxu0 0
        %2720 = vmatpush1.bf16.msra.mxu0 0
        %2721 = vmatprep.subr.bf16.mxu0 0
        %2722 = vmatpush1.bf16.msra.mxu0 0
        %2723 = vmatprep.subr.bf16.mxu0 0
        %2724 = vmatpush1.bf16.msra.mxu0 0
        %2725 = vmatprep.subr.bf16.mxu0 0
        %2726 = vmatpush1.bf16.msra.mxu0 0
        %2727 = vmatprep.subr.bf16.mxu0 0
        %2728 = vmatpush1.bf16.msra.mxu0 0
        %2729 = vmatprep.mubr.bf16.mxu0 0
        %2730 = vmatmul.mubr.bf16.gmra.mrb[0].mxu0 %v1376
        %v2731 = vpop.f32.mrb[0].mxu0
        %v2732 = vadd.f32 0.0, %v2731
        %v2733 = vpop.f32.mrb[0].mxu0
        %v2734 = vpop.f32.mrb[0].mxu0
        %v2735 = vadd.f32 0.0, %v2734
        %v2736 = vpop.f32.mrb[0].mxu0
        %2737 = vmatprep.mubr.bf16.mxu0 0
        %2738 = vmatmul.mubr.bf16.gmra.mrb[0].mxu0 %v1379
        %v2739 = vpop.f32.mrb[0].mxu0
        %v2740 = vadd.f32 0.0, %v2739
        %v2741 = vpop.f32.mrb[0].mxu0
        %v2742 = vpop.f32.mrb[0].mxu0
        %v2743 = vadd.f32 0.0, %v2742
        %v2744 = vpop.f32.mrb[0].mxu0
        %2745 = vmatprep.mubr.bf16.mxu0 0
        %2746 = vmatmul.mubr.bf16.gmra.mrb[0].mxu0 %v1382
        %v2747 = vpop.f32.mrb[0].mxu0
        %v2748 = vadd.f32 0.0, %v2747
        %v2749 = vpop.f32.mrb[0].mxu0
        %v2750 = vpop.f32.mrb[0].mxu0
        %v2751 = vadd.f32 0.0, %v2750
        %v2752 = vpop.f32.mrb[0].mxu0
        %2753 = vmatprep.mubr.bf16.mxu0 0
        %2754 = vmatmul.mubr.bf16.gmra.mrb[0].mxu0 %v1385
        %v2755 = vpop.f32.mrb[0].mxu0
        %v2756 = vadd.f32 0.0, %v2755
        %v2757 = vpop.f32.mrb[0].mxu0
        %v2758 = vpop.f32.mrb[0].mxu0
        %v2759 = vadd.f32 0.0, %v2758
        %v2760 = vpop.f32.mrb[0].mxu0
        %2761 = vmatprep.mubr.bf16.mxu0 0
        %2762 = vmatmul.mubr.bf16.gmra.mrb[0].mxu0 %v1388
        %v2763 = vpop.f32.mrb[0].mxu0
        %v2764 = vadd.f32 0.0, %v2763
        %v2765 = vpop.f32.mrb[0].mxu0
        %v2766 = vpop.f32.mrb[0].mxu0
        %v2767 = vadd.f32 0.0, %v2766
        %v2768 = vpop.f32.mrb[0].mxu0
        %2769 = vmatprep.mubr.bf16.mxu0 0
        %2770 = vmatmul.mubr.bf16.gmra.mrb[0].mxu0 %v1391
        %v2771 = vpop.f32.mrb[0].mxu0
        %v2772 = vadd.f32 0.0, %v2771
        %v2773 = vpop.f32.mrb[0].mxu0
        %v2774 = vpop.f32.mrb[0].mxu0
        %v2775 = vadd.f32 0.0, %v2774
        %v2776 = vpop.f32.mrb[0].mxu0
        %2777 = vmatprep.mubr.bf16.mxu0 0
        %2778 = vmatmul.mubr.bf16.gmra.mrb[0].mxu0 %v1394
        %v2779 = vpop.f32.mrb[0].mxu0
        %v2780 = vadd.f32 0.0, %v2779
        %v2781 = vpop.f32.mrb[0].mxu0
        %v2782 = vpop.f32.mrb[0].mxu0
        %v2783 = vadd.f32 0.0, %v2782
        %v2784 = vpop.f32.mrb[0].mxu0
        %2785 = vmatprep.mubr.bf16.mxu0 0
        %2786 = vmatmul.mubr.bf16.gmra.mrb[0].mxu0 %v1397
        %v2787 = vpop.f32.mrb[0].mxu0
        %v2788 = vadd.f32 0.0, %v2787
        %v2789 = vpop.f32.mrb[0].mxu0
        %v2790 = vpop.f32.mrb[0].mxu0
        %v2791 = vadd.f32 0.0, %v2790
        %v2792 = vpop.f32.mrb[0].mxu0
        %2793 = vmatprep.mubr.bf16.mxu0 0
        %2794 = vmatmul.mubr.bf16.gmra.mrb[0].mxu0 %v1400
        %v2795 = vpop.f32.mrb[0].mxu0
        %v2796 = vadd.f32 0.0, %v2795
        %v2797 = vpop.f32.mrb[0].mxu0
        %v2798 = vpop.f32.mrb[0].mxu0
        %v2799 = vadd.f32 0.0, %v2798
        %v2800 = vpop.f32.mrb[0].mxu0
        %2801 = vmatprep.mubr.bf16.mxu0 0
        %2802 = vmatmul.mubr.bf16.gmra.mrb[0].mxu0 %v1403
        %v2803 = vpop.f32.mrb[0].mxu0
        %v2804 = vadd.f32 0.0, %v2803
        %v2805 = vpop.f32.mrb[0].mxu0
        %v2806 = vpop.f32.mrb[0].mxu0
        %v2807 = vadd.f32 0.0, %v2806
        %v2808 = vpop.f32.mrb[0].mxu0
        %2809 = vmatprep.mubr.bf16.mxu0 0
        %2810 = vmatmul.mubr.bf16.gmra.mrb[0].mxu0 %v1406
        %v2811 = vpop.f32.mrb[0].mxu0
        %v2812 = vadd.f32 0.0, %v2811
        %v2813 = vpop.f32.mrb[0].mxu0
        %v2814 = vpop.f32.mrb[0].mxu0
        %v2815 = vadd.f32 0.0, %v2814
        %v2816 = vpop.f32.mrb[0].mxu0
        %2817 = vmatprep.mubr.bf16.mxu0 0
        %2818 = vmatmul.mubr.bf16.gmra.mrb[0].mxu0 %v1409
        %v2819 = vpop.f32.mrb[0].mxu0
        %v2820 = vadd.f32 0.0, %v2819
        %v2821 = vpop.f32.mrb[0].mxu0
        %v2822 = vpop.f32.mrb[0].mxu0
        %v2823 = vadd.f32 0.0, %v2822
        %v2824 = vpop.f32.mrb[0].mxu0
        %2825 = vmatprep.mubr.bf16.mxu0 0
        %2826 = vmatmul.mubr.bf16.gmra.mrb[0].mxu0 %v1412
        %v2827 = vpop.f32.mrb[0].mxu0
        %v2828 = vadd.f32 0.0, %v2827
        %v2829 = vpop.f32.mrb[0].mxu0
        %v2830 = vpop.f32.mrb[0].mxu0
        %v2831 = vadd.f32 0.0, %v2830
        %v2832 = vpop.f32.mrb[0].mxu0
        %2833 = vmatprep.mubr.bf16.mxu0 0
        %2834 = vmatmul.mubr.bf16.gmra.mrb[0].mxu0 %v1415
        %v2835 = vpop.f32.mrb[0].mxu0
        %v2836 = vadd.f32 0.0, %v2835
        %v2837 = vpop.f32.mrb[0].mxu0
        %v2838 = vpop.f32.mrb[0].mxu0
        %v2839 = vadd.f32 0.0, %v2838
        %v2840 = vpop.f32.mrb[0].mxu0
        %2841 = vmatprep.mubr.bf16.mxu0 0
        %2842 = vmatmul.mubr.bf16.gmra.mrb[0].mxu0 %v2055
        %v2843 = vpop.f32.mrb[0].mxu0
        %v2844 = vadd.f32 0.0, %v2843
        %v2845 = vpop.f32.mrb[0].mxu0
        %v2846 = vpop.f32.mrb[0].mxu0
        %v2847 = vadd.f32 0.0, %v2846
        %v2848 = vpop.f32.mrb[0].mxu0
        %2849 = vmatprep.mubr.bf16.mxu0 0
        %2850 = vmatmul.mubr.bf16.gmra.mrb[0].mxu0 %v2695
        %v2851 = vpop.f32.mrb[0].mxu0
        %v2852 = vadd.f32 0.0, %v2851
        %v2853 = vpop.f32.mrb[0].mxu0
        %v2854 = vpop.f32.mrb[0].mxu0
        %v2855 = vadd.f32 0.0, %v2854
        %v2856 = vpop.f32.mrb[0].mxu0
        %2857 = vdwg.mxu0
        %v2858 = vadd.f32 %v2645, %v2732
        %v2859 = vadd.f32 %v2646, %v2735
        %v2860 = vadd.f32 %v2647, %v2740
        %v2861 = vadd.f32 %v2648, %v2743
        %v2862 = vadd.f32 %v2649, %v2748
        %v2863 = vadd.f32 %v2650, %v2751
        %v2864 = vadd.f32 %v2651, %v2756
        %v2865 = vadd.f32 %v2652, %v2759
        %v2866 = vadd.f32 %v2653, %v2764
        %v2867 = vadd.f32 %v2654, %v2767
        %v2868 = vadd.f32 %v2655, %v2772
        %v2869 = vadd.f32 %v2656, %v2775
        %v2870 = vadd.f32 %v2657, %v2780
        %v2871 = vadd.f32 %v2658, %v2783
        %v2872 = vadd.f32 %v2659, %v2788
        %v2873 = vadd.f32 %v2660, %v2791
        %v2874 = vadd.f32 %v2661, %v2796
        %v2875 = vadd.f32 %v2662, %v2799
        %v2876 = vadd.f32 %v2663, %v2804
        %v2877 = vadd.f32 %v2664, %v2807
        %v2878 = vadd.f32 %v2665, %v2812
        %v2879 = vadd.f32 %v2666, %v2815
        %v2880 = vadd.f32 %v2667, %v2820
        %v2881 = vadd.f32 %v2668, %v2823
        %v2882 = vadd.f32 %v2669, %v2828
        %v2883 = vadd.f32 %v2670, %v2831
        %v2884 = vadd.f32 %v2671, %v2836
        %v2885 = vadd.f32 %v2672, %v2839
        %v2886 = vadd.f32 %v2673, %v2844
        %v2887 = vadd.f32 %v2674, %v2847
        %v2888 = vadd.f32 %v2675, %v2852
        %v2889 = vadd.f32 %v2676, %v2855
        %v2890 = vld [vmem:[%s2] sm:$0x1]
        %v2892 = vlaneseq
        %v2893 = vshrl.u32 %v2892, 7
        %v2894 = vsub.s32 0, %v2893
        %v2895 = vrot.slane %v2890, %v2894
        %v2897 = vadd.f32 %v2858, %v2895
        %v2898 = vadd.f32 %v2859, %v2895
        %v2899 = vadd.f32 %v2860, %v2895
        %v2900 = vadd.f32 %v2861, %v2895
        %v2901 = vadd.f32 %v2862, %v2895
        %v2902 = vadd.f32 %v2863, %v2895
        %v2903 = vadd.f32 %v2864, %v2895
        %v2904 = vadd.f32 %v2865, %v2895
        %v2905 = vadd.f32 %v2866, %v2895
        %v2906 = vadd.f32 %v2867, %v2895
        %v2907 = vadd.f32 %v2868, %v2895
        %v2908 = vadd.f32 %v2869, %v2895
        %v2909 = vadd.f32 %v2870, %v2895
        %v2910 = vadd.f32 %v2871, %v2895
        %v2911 = vadd.f32 %v2872, %v2895
        %v2912 = vadd.f32 %v2873, %v2895
        %v2913 = vadd.f32 %v2874, %v2895
        %v2914 = vadd.f32 %v2875, %v2895
        %v2915 = vadd.f32 %v2876, %v2895
        %v2916 = vadd.f32 %v2877, %v2895
        %v2917 = vadd.f32 %v2878, %v2895
        %v2918 = vadd.f32 %v2879, %v2895
        %v2919 = vadd.f32 %v2880, %v2895
        %v2920 = vadd.f32 %v2881, %v2895
        %v2921 = vadd.f32 %v2882, %v2895
        %v2922 = vadd.f32 %v2883, %v2895
        %v2923 = vadd.f32 %v2884, %v2895
        %v2924 = vadd.f32 %v2885, %v2895
        %v2925 = vadd.f32 %v2886, %v2895
        %v2926 = vadd.f32 %v2887, %v2895
        %v2927 = vadd.f32 %v2888, %v2895
        %v2928 = vadd.f32 %v2889, %v2895
        %v2929 = vmax.f32 %v2897, 0.0
        %v2930 = vmax.f32 %v2898, 0.0
        %v2931 = vmax.f32 %v2899, 0.0
        %v2932 = vmax.f32 %v2900, 0.0
        %v2933 = vmax.f32 %v2901, 0.0
        %v2934 = vmax.f32 %v2902, 0.0
        %v2935 = vmax.f32 %v2903, 0.0
        %v2936 = vmax.f32 %v2904, 0.0
        %v2937 = vmax.f32 %v2905, 0.0
        %v2938 = vmax.f32 %v2906, 0.0
        %v2939 = vmax.f32 %v2907, 0.0
        %v2940 = vmax.f32 %v2908, 0.0
        %v2941 = vmax.f32 %v2909, 0.0
        %v2942 = vmax.f32 %v2910, 0.0
        %v2943 = vmax.f32 %v2911, 0.0
        %v2944 = vmax.f32 %v2912, 0.0
        %v2945 = vmax.f32 %v2913, 0.0
        %v2946 = vmax.f32 %v2914, 0.0
        %v2947 = vmax.f32 %v2915, 0.0
        %v2948 = vmax.f32 %v2916, 0.0
        %v2949 = vmax.f32 %v2917, 0.0
        %v2950 = vmax.f32 %v2918, 0.0
        %v2951 = vmax.f32 %v2919, 0.0
        %v2952 = vmax.f32 %v2920, 0.0
        %v2953 = vmax.f32 %v2921, 0.0
        %v2954 = vmax.f32 %v2922, 0.0
        %v2955 = vmax.f32 %v2923, 0.0
        %v2956 = vmax.f32 %v2924, 0.0
        %v2957 = vmax.f32 %v2925, 0.0
        %v2958 = vmax.f32 %v2926, 0.0
        %v2959 = vmax.f32 %v2927, 0.0
        %v2960 = vmax.f32 %v2928, 0.0
        %s2961 = scalar_lea.vmem [#allocation3], 24
        %2962 = vst.msk [vmem:[%s2961 + $0x1] sm:$0xff] %vm388, %v2929
        %2963 = vst.msk [vmem:[%s2961 + $0x9] sm:$0xff] %vm388, %v2930
        %2964 = vst.msk [vmem:[%s2961 + $0x19] sm:$0xff] %vm388, %v2931
        %2965 = vst.msk [vmem:[%s2961 + $0x21] sm:$0xff] %vm388, %v2932
        %2966 = vst.msk [vmem:[%s2961 + $0x31] sm:$0xff] %vm388, %v2933
        %2967 = vst.msk [vmem:[%s2961 + $0x39] sm:$0xff] %vm388, %v2934
        %2968 = vst.msk [vmem:[%s2961 + $0x49] sm:$0xff] %vm388, %v2935
        %2969 = vst.msk [vmem:[%s2961 + $0x51] sm:$0xff] %vm388, %v2936
        %2970 = vst.msk [vmem:[%s2961 + $0x61] sm:$0xff] %vm388, %v2937
        %2971 = vst.msk [vmem:[%s2961 + $0x69] sm:$0xff] %vm388, %v2938
        %2972 = vst.msk [vmem:[%s2961 + $0x79] sm:$0xff] %vm388, %v2939
        %2973 = vst.msk [vmem:[%s2961 + $0x81] sm:$0xff] %vm388, %v2940
        %2974 = vst.msk [vmem:[%s2961 + $0x91] sm:$0xff] %vm388, %v2941
        %2975 = vst.msk [vmem:[%s2961 + $0x99] sm:$0xff] %vm388, %v2942
        %2976 = vst.msk [vmem:[%s2961 + $0xa9] sm:$0xff] %vm388, %v2943
        %2977 = vst.msk [vmem:[%s2961 + $0xb1] sm:$0xff] %vm388, %v2944
        %2978 = vst.msk [vmem:[%s2961 + $0xc1] sm:$0xff] %vm388, %v2945
        %2979 = vst.msk [vmem:[%s2961 + $0xc9] sm:$0xff] %vm388, %v2946
        %2980 = vst.msk [vmem:[%s2961 + $0xd9] sm:$0xff] %vm388, %v2947
        %2981 = vst.msk [vmem:[%s2961 + $0xe1] sm:$0xff] %vm388, %v2948
        %2982 = vst.msk [vmem:[%s2961 + $0xf1] sm:$0xff] %vm388, %v2949
        %2983 = vst.msk [vmem:[%s2961 + $0xf9] sm:$0xff] %vm388, %v2950
        %2984 = vst.msk [vmem:[%s2961 + $0x109] sm:$0xff] %vm388, %v2951
        %2985 = vst.msk [vmem:[%s2961 + $0x111] sm:$0xff] %vm388, %v2952
        %2986 = vst.msk [vmem:[%s2961 + $0x121] sm:$0xff] %vm388, %v2953
        %2987 = vst.msk [vmem:[%s2961 + $0x129] sm:$0xff] %vm388, %v2954
        %2988 = vst.msk [vmem:[%s2961 + $0x139] sm:$0xff] %vm388, %v2955
        %2989 = vst.msk [vmem:[%s2961 + $0x141] sm:$0xff] %vm388, %v2956
        %2990 = vst.msk [vmem:[%s2961 + $0x151] sm:$0xff] %vm388, %v2957
        %2991 = vst.msk [vmem:[%s2961 + $0x159] sm:$0xff] %vm388, %v2958
        %2992 = vst.msk [vmem:[%s2961 + $0x169] sm:$0xff] %vm388, %v2959
        %2993 = vst.msk [vmem:[%s2961 + $0x171] sm:$0xff] %vm388, %v2960
        %v2994 = vld [vmem:[#allocation9] sm:$0xf]
        %v2995 = vld [vmem:[#allocation9 + $0x4] sm:$0xf]
        %v2996 = vld [vmem:[#allocation9 + $0x8] sm:$0xf]
        %v2997 = vld [vmem:[#allocation9 + $0xc] sm:$0xf]
        %v2998 = vld [vmem:[#allocation9 + $0x10] sm:$0xf]
        %v2999 = vld [vmem:[#allocation9 + $0x14] sm:$0xf]
        %v3000 = vld [vmem:[#allocation9 + $0x18] sm:$0xf]
        %v3001 = vld [vmem:[#allocation9 + $0x1c] sm:$0xf]
        %v3002 = vld [vmem:[#allocation9 + $0x20] sm:$0xf]
        %v3003 = vld [vmem:[#allocation9 + $0x24] sm:$0xf]
        %v3004 = vld [vmem:[#allocation9 + $0x28] sm:$0xf]
        %v3005 = vld [vmem:[#allocation9 + $0x2c] sm:$0xf]
        %v3006 = vld [vmem:[#allocation9 + $0x30] sm:$0xf]
        %v3007 = vld [vmem:[#allocation9 + $0x34] sm:$0xf]
        %v3008 = vld [vmem:[#allocation9 + $0x38] sm:$0xf]
        %v3009 = vld [vmem:[#allocation9 + $0x3c] sm:$0xf]
        %v3010 = vld [vmem:[#allocation9 + $0x40] sm:$0xf]
        %v3011 = vld [vmem:[#allocation9 + $0x44] sm:$0xf]
        %v3012 = vld [vmem:[#allocation9 + $0x48] sm:$0xf]
        %v3013 = vld [vmem:[#allocation9 + $0x4c] sm:$0xf]
        %v3014 = vld [vmem:[#allocation9 + $0x50] sm:$0xf]
        %v3015 = vld [vmem:[#allocation9 + $0x54] sm:$0xf]
        %v3016 = vld [vmem:[#allocation9 + $0x58] sm:$0xf]
        %v3017 = vld [vmem:[#allocation9 + $0x5c] sm:$0xf]
        %v3018 = vld [vmem:[#allocation9 + $0x60] sm:$0xf]
        %v3019 = vld [vmem:[#allocation9 + $0x64] sm:$0xf]
        %v3020 = vld [vmem:[#allocation9 + $0x68] sm:$0xf]
        %v3021 = vld [vmem:[#allocation9 + $0x6c] sm:$0xf]
        %v3022 = vld [vmem:[#allocation9 + $0x70] sm:$0xf]
        %v3023 = vld [vmem:[#allocation9 + $0x74] sm:$0xf]
        %v3024 = vld [vmem:[#allocation9 + $0x78] sm:$0xf]
        %v3025 = vld [vmem:[#allocation9 + $0x7c] sm:$0xf]
        %v3026 = vld [vmem:[#allocation9 + $0x80] sm:$0xf]
        %v3027 = vld [vmem:[#allocation9 + $0x84] sm:$0xf]
        %v3028 = vld [vmem:[#allocation9 + $0x88] sm:$0xf]
        %v3029 = vld [vmem:[#allocation9 + $0x8c] sm:$0xf]
        %v3030 = vld [vmem:[#allocation9 + $0x90] sm:$0xf]
        %v3031 = vld [vmem:[#allocation9 + $0x94] sm:$0xf]
        %v3032 = vld [vmem:[#allocation9 + $0x98] sm:$0xf]
        %v3033 = vld [vmem:[#allocation9 + $0x9c] sm:$0xf]
        %v3034 = vld [vmem:[#allocation9 + $0xa0] sm:$0xf]
        %v3035 = vld [vmem:[#allocation9 + $0xa4] sm:$0xf]
        %v3036 = vld [vmem:[#allocation9 + $0xa8] sm:$0xf]
        %v3037 = vld [vmem:[#allocation9 + $0xac] sm:$0xf]
        %v3038 = vld [vmem:[#allocation9 + $0xb0] sm:$0xf]
        %v3039 = vld [vmem:[#allocation9 + $0xb4] sm:$0xf]
        %v3040 = vld [vmem:[#allocation9 + $0xb8] sm:$0xf]
        %v3041 = vld [vmem:[#allocation9 + $0xbc] sm:$0xf]
        %v3042 = vld [vmem:[#allocation9 + $0xc0] sm:$0xf]
        %v3043 = vld [vmem:[#allocation9 + $0xc4] sm:$0xf]
        %v3044 = vld [vmem:[#allocation9 + $0xc8] sm:$0xf]
        %v3045 = vld [vmem:[#allocation9 + $0xcc] sm:$0xf]
        %v3046 = vld [vmem:[#allocation9 + $0xd0] sm:$0xf]
        %v3047 = vld [vmem:[#allocation9 + $0xd4] sm:$0xf]
        %v3048 = vld [vmem:[#allocation9 + $0xd8] sm:$0xf]
        %v3049 = vld [vmem:[#allocation9 + $0xdc] sm:$0xf]
        %v3050 = vld [vmem:[#allocation9 + $0xe0] sm:$0xf]
        %v3051 = vld [vmem:[#allocation9 + $0xe4] sm:$0xf]
        %v3052 = vld [vmem:[#allocation9 + $0xe8] sm:$0xf]
        %v3053 = vld [vmem:[#allocation9 + $0xec] sm:$0xf]
        %v3054 = vld [vmem:[#allocation9 + $0xf0] sm:$0xf]
        %v3055 = vld [vmem:[#allocation9 + $0xf4] sm:$0xf]
        %v3056 = vld [vmem:[#allocation9 + $0xf8] sm:$0xf]
        %v3057 = vld [vmem:[#allocation9 + $0xfc] sm:$0xf]
        %v3058 = vld [vmem:[#allocation9 + $0x100] sm:$0xf]
        %v3059 = vld [vmem:[#allocation9 + $0x104] sm:$0xf]
        %v3060 = vld [vmem:[#allocation9 + $0x108] sm:$0xf]
        %v3061 = vld [vmem:[#allocation9 + $0x10c] sm:$0xf]
        %v3062 = vld [vmem:[#allocation9 + $0x110] sm:$0xf]
        %v3063 = vld [vmem:[#allocation9 + $0x114] sm:$0xf]
        %v3064 = vld [vmem:[#allocation9 + $0x118] sm:$0xf]
        %v3065 = vld [vmem:[#allocation9 + $0x11c] sm:$0xf]
        %v3066 = vld [vmem:[#allocation3] sm:$0xff]
        %v3067 = vld [vmem:[#allocation3 + $0x8] sm:$0xff]
        %v3068 = vld [vmem:[#allocation3 + $0x10] sm:$0x3]
        %v3069 = vld [vmem:[#allocation3 + $0x18] sm:$0xff]
        %v3070 = vld [vmem:[#allocation3 + $0x20] sm:$0xff]
        %v3071 = vld [vmem:[#allocation3 + $0x28] sm:$0x3]
        %v3072 = vld [vmem:[#allocation3 + $0x30] sm:$0xff]
        %v3073 = vld [vmem:[#allocation3 + $0x38] sm:$0xff]
        %v3074 = vld [vmem:[#allocation3 + $0x40] sm:$0x3]
        %v3075 = vld [vmem:[#allocation3 + $0x48] sm:$0xff]
        %v3076 = vld [vmem:[#allocation3 + $0x50] sm:$0xff]
        %v3077 = vld [vmem:[#allocation3 + $0x58] sm:$0x3]
        %v3078 = vld [vmem:[#allocation3 + $0x60] sm:$0xff]
        %v3079 = vld [vmem:[#allocation3 + $0x68] sm:$0xff]
        %v3080 = vld [vmem:[#allocation3 + $0x70] sm:$0x3]
        %v3081 = vld [vmem:[#allocation3 + $0x78] sm:$0xff]
        %v3082 = vld [vmem:[#allocation3 + $0x80] sm:$0xff]
        %v3083 = vld [vmem:[#allocation3 + $0x88] sm:$0x3]
        %v3084 = vld [vmem:[#allocation3 + $0x90] sm:$0xff]
        %v3085 = vld [vmem:[#allocation3 + $0x98] sm:$0xff]
        %v3086 = vld [vmem:[#allocation3 + $0xa0] sm:$0x3]
        %v3087 = vld [vmem:[#allocation3 + $0xa8] sm:$0xff]
        %v3088 = vld [vmem:[#allocation3 + $0xb0] sm:$0xff]
        %v3089 = vld [vmem:[#allocation3 + $0xb8] sm:$0x3]
        %v3090 = vld [vmem:[#allocation3 + $0xc0] sm:$0xff]
        %v3091 = vld [vmem:[#allocation3 + $0xc8] sm:$0xff]
        %v3092 = vld [vmem:[#allocation3 + $0xd0] sm:$0x3]
        %v3093 = vld [vmem:[#allocation3 + $0xd8] sm:$0xff]
        %v3094 = vld [vmem:[#allocation3 + $0xe0] sm:$0xff]
        %v3095 = vld [vmem:[#allocation3 + $0xe8] sm:$0x3]
        %v3096 = vld [vmem:[#allocation3 + $0xf0] sm:$0xff]
        %v3097 = vld [vmem:[#allocation3 + $0xf8] sm:$0xff]
        %v3098 = vld [vmem:[#allocation3 + $0x100] sm:$0x3]
        %v3099 = vld [vmem:[#allocation3 + $0x108] sm:$0xff]
        %v3100 = vld [vmem:[#allocation3 + $0x110] sm:$0xff]
        %v3101 = vld [vmem:[#allocation3 + $0x118] sm:$0x3]
        %v3102 = vld [vmem:[#allocation3 + $0x120] sm:$0xff]
        %v3103 = vld [vmem:[#allocation3 + $0x128] sm:$0xff]
        %v3104 = vld [vmem:[#allocation3 + $0x130] sm:$0x3]
        %v3105 = vld [vmem:[#allocation3 + $0x138] sm:$0xff]
        %v3106 = vld [vmem:[#allocation3 + $0x140] sm:$0xff]
        %v3107 = vld [vmem:[#allocation3 + $0x148] sm:$0x3]
        %v3108 = vld [vmem:[#allocation3 + $0x150] sm:$0xff]
        %v3109 = vld [vmem:[#allocation3 + $0x158] sm:$0xff]
        %v3110 = vld [vmem:[#allocation3 + $0x160] sm:$0x3]
        %v3111 = vld [vmem:[#allocation3 + $0x168] sm:$0xff]
        %v3112 = vld [vmem:[#allocation3 + $0x170] sm:$0xff]
        %v3113 = vld [vmem:[#allocation3 + $0x178] sm:$0x3]
        %v3114 = vld [vmem:[#allocation3 + $0x180] sm:$0xff]
        %v3115 = vld [vmem:[#allocation3 + $0x188] sm:$0xff]
        %v3116 = vld [vmem:[#allocation3 + $0x190] sm:$0x3]
        %v3117 = vld [vmem:[#allocation3 + $0x198] sm:$0xff]
        %v3118 = vld [vmem:[#allocation3 + $0x1a0] sm:$0xff]
        %v3119 = vld [vmem:[#allocation3 + $0x1a8] sm:$0x3]
        %v3120 = vpack.c.bf16 %v3067, %v3066
        %v3121 = vpack.c.bf16 %v3068, %v3068
        %v3122 = vpack.c.bf16 %v3070, %v3069
        %v3123 = vpack.c.bf16 %v3071, %v3071
        %v3124 = vpack.c.bf16 %v3073, %v3072
        %v3125 = vpack.c.bf16 %v3074, %v3074
        %v3126 = vpack.c.bf16 %v3076, %v3075
        %v3127 = vpack.c.bf16 %v3077, %v3077
        %v3128 = vpack.c.bf16 %v3079, %v3078
        %v3129 = vpack.c.bf16 %v3080, %v3080
        %v3130 = vpack.c.bf16 %v3082, %v3081
        %v3131 = vpack.c.bf16 %v3083, %v3083
        %v3132 = vpack.c.bf16 %v3085, %v3084
        %v3133 = vpack.c.bf16 %v3086, %v3086
        %v3134 = vpack.c.bf16 %v3088, %v3087
        %v3135 = vpack.c.bf16 %v3089, %v3089
        %v3136 = vpack.c.bf16 %v3091, %v3090
        %v3137 = vpack.c.bf16 %v3092, %v3092
        %v3138 = vpack.c.bf16 %v3094, %v3093
        %v3139 = vpack.c.bf16 %v3095, %v3095
        %v3140 = vpack.c.bf16 %v3097, %v3096
        %v3141 = vpack.c.bf16 %v3098, %v3098
        %v3142 = vpack.c.bf16 %v3100, %v3099
        %v3143 = vpack.c.bf16 %v3101, %v3101
        %v3144 = vpack.c.bf16 %v3103, %v3102
        %v3145 = vpack.c.bf16 %v3104, %v3104
        %v3146 = vpack.c.bf16 %v3106, %v3105
        %v3147 = vpack.c.bf16 %v3107, %v3107
        %v3148 = vpack.c.bf16 %v3109, %v3108
        %v3149 = vpack.c.bf16 %v3110, %v3110
        %v3150 = vpack.c.bf16 %v3112, %v3111
        %v3151 = vpack.c.bf16 %v3113, %v3113
        %v3152 = vpack.c.bf16 %v3115, %v3114
        %v3153 = vpack.c.bf16 %v3116, %v3116
        %v3154 = vpack.c.bf16 %v3118, %v3117
        %v3155 = vpack.c.bf16 %v3119, %v3119
        %v3157 = vshrl.u32 %v3120, 16
        %v3159 = vshll.u32 %v3120, 16
        %v3161 = vrot.slane %v3159, 1
        %v3162 = vor.u32 %v3157, %v3161
        %v3164 = vshll.u32 %v3121, 16
        %v3166 = vrot.slane %v3164, 1
        %v3167 = vsel %vm657, %v3162, %v3166
        %v3169 = vshrl.u32 %v3122, 16
        %v3171 = vshll.u32 %v3122, 16
        %v3173 = vrot.slane %v3171, 1
        %v3174 = vor.u32 %v3169, %v3173
        %v3176 = vshll.u32 %v3123, 16
        %v3178 = vrot.slane %v3176, 1
        %v3179 = vsel %vm657, %v3174, %v3178
        %v3181 = vshrl.u32 %v3124, 16
        %v3183 = vshll.u32 %v3124, 16
        %v3185 = vrot.slane %v3183, 1
        %v3186 = vor.u32 %v3181, %v3185
        %v3188 = vshll.u32 %v3125, 16
        %v3190 = vrot.slane %v3188, 1
        %v3191 = vsel %vm657, %v3186, %v3190
        %v3193 = vshrl.u32 %v3126, 16
        %v3195 = vshll.u32 %v3126, 16
        %v3197 = vrot.slane %v3195, 1
        %v3198 = vor.u32 %v3193, %v3197
        %v3200 = vshll.u32 %v3127, 16
        %v3202 = vrot.slane %v3200, 1
        %v3203 = vsel %vm657, %v3198, %v3202
        %v3205 = vshrl.u32 %v3128, 16
        %v3207 = vshll.u32 %v3128, 16
        %v3209 = vrot.slane %v3207, 1
        %v3210 = vor.u32 %v3205, %v3209
        %v3212 = vshll.u32 %v3129, 16
        %v3214 = vrot.slane %v3212, 1
        %v3215 = vsel %vm657, %v3210, %v3214
        %v3217 = vshrl.u32 %v3130, 16
        %v3219 = vshll.u32 %v3130, 16
        %v3221 = vrot.slane %v3219, 1
        %v3222 = vor.u32 %v3217, %v3221
        %v3224 = vshll.u32 %v3131, 16
        %v3226 = vrot.slane %v3224, 1
        %v3227 = vsel %vm657, %v3222, %v3226
        %v3229 = vshrl.u32 %v3132, 16
        %v3231 = vshll.u32 %v3132, 16
        %v3233 = vrot.slane %v3231, 1
        %v3234 = vor.u32 %v3229, %v3233
        %v3236 = vshll.u32 %v3133, 16
        %v3238 = vrot.slane %v3236, 1
        %v3239 = vsel %vm657, %v3234, %v3238
        %v3241 = vshrl.u32 %v3134, 16
        %v3243 = vshll.u32 %v3134, 16
        %v3245 = vrot.slane %v3243, 1
        %v3246 = vor.u32 %v3241, %v3245
        %v3248 = vshll.u32 %v3135, 16
        %v3250 = vrot.slane %v3248, 1
        %v3251 = vsel %vm657, %v3246, %v3250
        %v3253 = vshrl.u32 %v3136, 16
        %v3255 = vshll.u32 %v3136, 16
        %v3257 = vrot.slane %v3255, 1
        %v3258 = vor.u32 %v3253, %v3257
        %v3260 = vshll.u32 %v3137, 16
        %v3262 = vrot.slane %v3260, 1
        %v3263 = vsel %vm657, %v3258, %v3262
        %v3265 = vshrl.u32 %v3138, 16
        %v3267 = vshll.u32 %v3138, 16
        %v3269 = vrot.slane %v3267, 1
        %v3270 = vor.u32 %v3265, %v3269
        %v3272 = vshll.u32 %v3139, 16
        %v3274 = vrot.slane %v3272, 1
        %v3275 = vsel %vm657, %v3270, %v3274
        %v3277 = vshrl.u32 %v3140, 16
        %v3279 = vshll.u32 %v3140, 16
        %v3281 = vrot.slane %v3279, 1
        %v3282 = vor.u32 %v3277, %v3281
        %v3284 = vshll.u32 %v3141, 16
        %v3286 = vrot.slane %v3284, 1
        %v3287 = vsel %vm657, %v3282, %v3286
        %v3289 = vshrl.u32 %v3142, 16
        %v3291 = vshll.u32 %v3142, 16
        %v3293 = vrot.slane %v3291, 1
        %v3294 = vor.u32 %v3289, %v3293
        %v3296 = vshll.u32 %v3143, 16
        %v3298 = vrot.slane %v3296, 1
        %v3299 = vsel %vm657, %v3294, %v3298
        %v3301 = vshrl.u32 %v3144, 16
        %v3303 = vshll.u32 %v3144, 16
        %v3305 = vrot.slane %v3303, 1
        %v3306 = vor.u32 %v3301, %v3305
        %v3308 = vshll.u32 %v3145, 16
        %v3310 = vrot.slane %v3308, 1
        %v3311 = vsel %vm657, %v3306, %v3310
        %v3313 = vshrl.u32 %v3146, 16
        %v3315 = vshll.u32 %v3146, 16
        %v3317 = vrot.slane %v3315, 1
        %v3318 = vor.u32 %v3313, %v3317
        %v3320 = vshll.u32 %v3147, 16
        %v3322 = vrot.slane %v3320, 1
        %v3323 = vsel %vm657, %v3318, %v3322
        %v3325 = vshrl.u32 %v3148, 16
        %v3327 = vshll.u32 %v3148, 16
        %v3329 = vrot.slane %v3327, 1
        %v3330 = vor.u32 %v3325, %v3329
        %v3332 = vshll.u32 %v3149, 16
        %v3334 = vrot.slane %v3332, 1
        %v3335 = vsel %vm657, %v3330, %v3334
        %v3337 = vshrl.u32 %v3150, 16
        %v3339 = vshll.u32 %v3150, 16
        %v3341 = vrot.slane %v3339, 1
        %v3342 = vor.u32 %v3337, %v3341
        %v3344 = vshll.u32 %v3151, 16
        %v3346 = vrot.slane %v3344, 1
        %v3347 = vsel %vm657, %v3342, %v3346
        %v3356 = vunpack.c.l.b16 %v3002
        %v3357 = vunpack.c.l.b16 %v3003
        %v3358 = vunpack.c.l.b16 %v3004
        %v3359 = vunpack.c.l.b16 %v3005
        %v3360 = vunpack.c.l.b16 %v3006
        %v3361 = vunpack.c.l.b16 %v3007
        %v3362 = vunpack.c.l.b16 %v3008
        %v3363 = vunpack.c.l.b16 %v3009
        %v3364 = vpack.c.b16 %v3357, %v3356
        %v3365 = vpack.c.b16 %v3359, %v3358
        %v3366 = vpack.c.b16 %v3361, %v3360
        %v3367 = vpack.c.b16 %v3363, %v3362
        %v3373 = vsel %vm388, %v3167, 0
        %v3376 = vsel %vm388, %v3179, 0
        %v3379 = vsel %vm388, %v3191, 0
        %v3382 = vsel %vm388, %v3203, 0
        %v3385 = vsel %vm388, %v3215, 0
        %v3388 = vsel %vm388, %v3227, 0
        %v3391 = vsel %vm388, %v3239, 0
        %v3394 = vsel %vm388, %v3251, 0
        %v3397 = vsel %vm388, %v3263, 0
        %v3400 = vsel %vm388, %v3275, 0
        %v3403 = vsel %vm388, %v3287, 0
        %v3406 = vsel %vm388, %v3299, 0
        %v3409 = vsel %vm388, %v3311, 0
        %v3412 = vsel %vm388, %v3323, 0
        %v3415 = vsel %vm388, %v3335, 0
        %v3418 = vsel %vm388, %v3347, 0
        %3420 = vmatprep.subr.bf16.mxu0 0
        %3421 = vmatpush1.bf16.msra.mxu0 %v3364
        %3422 = vmatprep.subr.bf16.mxu0 0
        %3423 = vmatpush1.bf16.msra.mxu0 %v3365
        %3424 = vmatprep.subr.bf16.mxu0 0
        %3425 = vmatpush1.bf16.msra.mxu0 %v3366
        %3426 = vmatprep.subr.bf16.mxu0 0
        %3427 = vmatpush1.bf16.msra.mxu0 %v3367
        %3428 = vmatprep.subr.bf16.mxu0 0
        %3429 = vmatpush1.bf16.msra.mxu0 0
        %3430 = vmatprep.subr.bf16.mxu0 0
        %3431 = vmatpush1.bf16.msra.mxu0 0
        %3432 = vmatprep.subr.bf16.mxu0 0
        %3433 = vmatpush1.bf16.msra.mxu0 0
        %3434 = vmatprep.subr.bf16.mxu0 0
        %3435 = vmatpush1.bf16.msra.mxu0 0
        %3436 = vmatprep.subr.bf16.mxu0 0
        %3437 = vmatpush1.bf16.msra.mxu0 0
        %3438 = vmatprep.subr.bf16.mxu0 0
        %3439 = vmatpush1.bf16.msra.mxu0 0
        %3440 = vmatprep.subr.bf16.mxu0 0
        %3441 = vmatpush1.bf16.msra.mxu0 0
        %3442 = vmatprep.subr.bf16.mxu0 0
        %3443 = vmatpush1.bf16.msra.mxu0 0
        %3444 = vmatprep.subr.bf16.mxu0 0
        %3445 = vmatpush1.bf16.msra.mxu0 0
        %3446 = vmatprep.subr.bf16.mxu0 0
        %3447 = vmatpush1.bf16.msra.mxu0 0
        %3448 = vmatprep.subr.bf16.mxu0 0
        %3449 = vmatpush1.bf16.msra.mxu0 0
        %3450 = vmatprep.subr.bf16.mxu0 0
        %3451 = vmatpush1.bf16.msra.mxu0 0
        %3452 = vmatprep.mubr.bf16.mxu0 0
        %3453 = vmatmul.mubr.bf16.gmra.mrb[0].mxu0 %v3373
        %v3454 = vpop.f32.mrb[0].mxu0
        %v3455 = vadd.f32 0.0, %v3454
        %v3456 = vpop.f32.mrb[0].mxu0
        %v3457 = vpop.f32.mrb[0].mxu0
        %v3458 = vadd.f32 0.0, %v3457
        %v3459 = vpop.f32.mrb[0].mxu0
        %3460 = vmatprep.mubr.bf16.mxu0 0
        %3461 = vmatmul.mubr.bf16.gmra.mrb[0].mxu0 %v3376
        %v3462 = vpop.f32.mrb[0].mxu0
        %v3463 = vadd.f32 0.0, %v3462
        %v3464 = vpop.f32.mrb[0].mxu0
        %v3465 = vpop.f32.mrb[0].mxu0
        %v3466 = vadd.f32 0.0, %v3465
        %v3467 = vpop.f32.mrb[0].mxu0
        %3468 = vmatprep.mubr.bf16.mxu0 0
        %3469 = vmatmul.mubr.bf16.gmra.mrb[0].mxu0 %v3379
        %v3470 = vpop.f32.mrb[0].mxu0
        %v3471 = vadd.f32 0.0, %v3470
        %v3472 = vpop.f32.mrb[0].mxu0
        %v3473 = vpop.f32.mrb[0].mxu0
        %v3474 = vadd.f32 0.0, %v3473
        %v3475 = vpop.f32.mrb[0].mxu0
        %3476 = vmatprep.mubr.bf16.mxu0 0
        %3477 = vmatmul.mubr.bf16.gmra.mrb[0].mxu0 %v3382
        %v3478 = vpop.f32.mrb[0].mxu0
        %v3479 = vadd.f32 0.0, %v3478
        %v3480 = vpop.f32.mrb[0].mxu0
        %v3481 = vpop.f32.mrb[0].mxu0
        %v3482 = vadd.f32 0.0, %v3481
        %v3483 = vpop.f32.mrb[0].mxu0
        %3484 = vmatprep.mubr.bf16.mxu0 0
        %3485 = vmatmul.mubr.bf16.gmra.mrb[0].mxu0 %v3385
        %v3486 = vpop.f32.mrb[0].mxu0
        %v3487 = vadd.f32 0.0, %v3486
        %v3488 = vpop.f32.mrb[0].mxu0
        %v3489 = vpop.f32.mrb[0].mxu0
        %v3490 = vadd.f32 0.0, %v3489
        %v3491 = vpop.f32.mrb[0].mxu0
        %3492 = vmatprep.mubr.bf16.mxu0 0
        %3493 = vmatmul.mubr.bf16.gmra.mrb[0].mxu0 %v3388
        %v3494 = vpop.f32.mrb[0].mxu0
        %v3495 = vadd.f32 0.0, %v3494
        %v3496 = vpop.f32.mrb[0].mxu0
        %v3497 = vpop.f32.mrb[0].mxu0
        %v3498 = vadd.f32 0.0, %v3497
        %v3499 = vpop.f32.mrb[0].mxu0
        %3500 = vmatprep.mubr.bf16.mxu0 0
        %3501 = vmatmul.mubr.bf16.gmra.mrb[0].mxu0 %v3391
        %v3502 = vpop.f32.mrb[0].mxu0
        %v3503 = vadd.f32 0.0, %v3502
        %v3504 = vpop.f32.mrb[0].mxu0
        %v3505 = vpop.f32.mrb[0].mxu0
        %v3506 = vadd.f32 0.0, %v3505
        %v3507 = vpop.f32.mrb[0].mxu0
        %3508 = vmatprep.mubr.bf16.mxu0 0
        %3509 = vmatmul.mubr.bf16.gmra.mrb[0].mxu0 %v3394
        %v3510 = vpop.f32.mrb[0].mxu0
        %v3511 = vadd.f32 0.0, %v3510
        %v3512 = vpop.f32.mrb[0].mxu0
        %v3513 = vpop.f32.mrb[0].mxu0
        %v3514 = vadd.f32 0.0, %v3513
        %v3515 = vpop.f32.mrb[0].mxu0
        %3516 = vmatprep.mubr.bf16.mxu0 0
        %3517 = vmatmul.mubr.bf16.gmra.mrb[0].mxu0 %v3397
        %v3518 = vpop.f32.mrb[0].mxu0
        %v3519 = vadd.f32 0.0, %v3518
        %v3520 = vpop.f32.mrb[0].mxu0
        %v3521 = vpop.f32.mrb[0].mxu0
        %v3522 = vadd.f32 0.0, %v3521
        %v3523 = vpop.f32.mrb[0].mxu0
        %3524 = vmatprep.mubr.bf16.mxu0 0
        %3525 = vmatmul.mubr.bf16.gmra.mrb[0].mxu0 %v3400
        %v3526 = vpop.f32.mrb[0].mxu0
        %v3527 = vadd.f32 0.0, %v3526
        %v3528 = vpop.f32.mrb[0].mxu0
        %v3529 = vpop.f32.mrb[0].mxu0
        %v3530 = vadd.f32 0.0, %v3529
        %v3531 = vpop.f32.mrb[0].mxu0
        %3532 = vmatprep.mubr.bf16.mxu0 0
        %3533 = vmatmul.mubr.bf16.gmra.mrb[0].mxu0 %v3403
        %v3534 = vpop.f32.mrb[0].mxu0
        %v3535 = vadd.f32 0.0, %v3534
        %v3536 = vpop.f32.mrb[0].mxu0
        %v3537 = vpop.f32.mrb[0].mxu0
        %v3538 = vadd.f32 0.0, %v3537
        %v3539 = vpop.f32.mrb[0].mxu0
        %3540 = vmatprep.mubr.bf16.mxu0 0
        %3541 = vmatmul.mubr.bf16.gmra.mrb[0].mxu0 %v3406
        %v3542 = vpop.f32.mrb[0].mxu0
        %v3543 = vadd.f32 0.0, %v3542
        %v3544 = vpop.f32.mrb[0].mxu0
        %v3545 = vpop.f32.mrb[0].mxu0
        %v3546 = vadd.f32 0.0, %v3545
        %v3547 = vpop.f32.mrb[0].mxu0
        %3548 = vmatprep.mubr.bf16.mxu0 0
        %3549 = vmatmul.mubr.bf16.gmra.mrb[0].mxu0 %v3409
        %v3550 = vpop.f32.mrb[0].mxu0
        %v3551 = vadd.f32 0.0, %v3550
        %v3552 = vpop.f32.mrb[0].mxu0
        %v3553 = vpop.f32.mrb[0].mxu0
        %v3554 = vadd.f32 0.0, %v3553
        %v3555 = vpop.f32.mrb[0].mxu0
        %3556 = vmatprep.mubr.bf16.mxu0 0
        %3557 = vmatmul.mubr.bf16.gmra.mrb[0].mxu0 %v3412
        %v3558 = vpop.f32.mrb[0].mxu0
        %v3559 = vadd.f32 0.0, %v3558
        %v3560 = vpop.f32.mrb[0].mxu0
        %v3561 = vpop.f32.mrb[0].mxu0
        %v3562 = vadd.f32 0.0, %v3561
        %v3563 = vpop.f32.mrb[0].mxu0
        %3564 = vmatprep.mubr.bf16.mxu0 0
        %3565 = vmatmul.mubr.bf16.gmra.mrb[0].mxu0 %v3415
        %v3566 = vpop.f32.mrb[0].mxu0
        %v3567 = vadd.f32 0.0, %v3566
        %v3568 = vpop.f32.mrb[0].mxu0
        %v3569 = vpop.f32.mrb[0].mxu0
        %v3570 = vadd.f32 0.0, %v3569
        %v3571 = vpop.f32.mrb[0].mxu0
        %3572 = vmatprep.mubr.bf16.mxu0 0
        %3573 = vmatmul.mubr.bf16.gmra.mrb[0].mxu0 %v3418
        %v3574 = vpop.f32.mrb[0].mxu0
        %v3575 = vadd.f32 0.0, %v3574
        %v3576 = vpop.f32.mrb[0].mxu0
        %v3577 = vpop.f32.mrb[0].mxu0
        %v3578 = vadd.f32 0.0, %v3577
        %v3579 = vpop.f32.mrb[0].mxu0
        %3580 = vdwg.mxu0
        %v3589 = vunpack.c.l.b16 %v2994
        %v3590 = vunpack.c.l.b16 %v2995
        %v3591 = vunpack.c.l.b16 %v2996
        %v3592 = vunpack.c.l.b16 %v2997
        %v3593 = vunpack.c.l.b16 %v2998
        %v3594 = vunpack.c.l.b16 %v2999
        %v3595 = vunpack.c.l.b16 %v3000
        %v3596 = vunpack.c.l.b16 %v3001
        %v3597 = vpack.c.b16 %v3590, %v3589
        %v3598 = vpack.c.b16 %v3592, %v3591
        %v3599 = vpack.c.b16 %v3594, %v3593
        %v3600 = vpack.c.b16 %v3596, %v3595
        %v3605 = vsel %vm388, %v3120, 0
        %v3607 = vsel %vm388, %v3122, 0
        %v3609 = vsel %vm388, %v3124, 0
        %v3611 = vsel %vm388, %v3126, 0
        %v3613 = vsel %vm388, %v3128, 0
        %v3615 = vsel %vm388, %v3130, 0
        %v3617 = vsel %vm388, %v3132, 0
        %v3619 = vsel %vm388, %v3134, 0
        %v3621 = vsel %vm388, %v3136, 0
        %v3623 = vsel %vm388, %v3138, 0
        %v3625 = vsel %vm388, %v3140, 0
        %v3627 = vsel %vm388, %v3142, 0
        %v3629 = vsel %vm388, %v3144, 0
        %v3631 = vsel %vm388, %v3146, 0
        %v3633 = vsel %vm388, %v3148, 0
        %v3635 = vsel %vm388, %v3150, 0
        %3637 = vmatprep.subr.bf16.mxu0 0
        %3638 = vmatpush1.bf16.msra.mxu0 %v3597
        %3639 = vmatprep.subr.bf16.mxu0 0
        %3640 = vmatpush1.bf16.msra.mxu0 %v3598
        %3641 = vmatprep.subr.bf16.mxu0 0
        %3642 = vmatpush1.bf16.msra.mxu0 %v3599
        %3643 = vmatprep.subr.bf16.mxu0 0
        %3644 = vmatpush1.bf16.msra.mxu0 %v3600
        %3645 = vmatprep.subr.bf16.mxu0 0
        %3646 = vmatpush1.bf16.msra.mxu0 0
        %3647 = vmatprep.subr.bf16.mxu0 0
        %3648 = vmatpush1.bf16.msra.mxu0 0
        %3649 = vmatprep.subr.bf16.mxu0 0
        %3650 = vmatpush1.bf16.msra.mxu0 0
        %3651 = vmatprep.subr.bf16.mxu0 0
        %3652 = vmatpush1.bf16.msra.mxu0 0
        %3653 = vmatprep.subr.bf16.mxu0 0
        %3654 = vmatpush1.bf16.msra.mxu0 0
        %3655 = vmatprep.subr.bf16.mxu0 0
        %3656 = vmatpush1.bf16.msra.mxu0 0
        %3657 = vmatprep.subr.bf16.mxu0 0
        %3658 = vmatpush1.bf16.msra.mxu0 0
        %3659 = vmatprep.subr.bf16.mxu0 0
        %3660 = vmatpush1.bf16.msra.mxu0 0
        %3661 = vmatprep.subr.bf16.mxu0 0
        %3662 = vmatpush1.bf16.msra.mxu0 0
        %3663 = vmatprep.subr.bf16.mxu0 0
        %3664 = vmatpush1.bf16.msra.mxu0 0
        %3665 = vmatprep.subr.bf16.mxu0 0
        %3666 = vmatpush1.bf16.msra.mxu0 0
        %3667 = vmatprep.subr.bf16.mxu0 0
        %3668 = vmatpush1.bf16.msra.mxu0 0
        %3669 = vmatprep.mubr.bf16.mxu0 0
        %3670 = vmatmul.mubr.bf16.gmra.mrb[0].mxu0 %v3605
        %v3671 = vpop.f32.mrb[0].mxu0
        %v3672 = vadd.f32 %v3455, %v3671
        %v3673 = vpop.f32.mrb[0].mxu0
        %v3674 = vpop.f32.mrb[0].mxu0
        %v3675 = vadd.f32 %v3458, %v3674
        %v3676 = vpop.f32.mrb[0].mxu0
        %3677 = vmatprep.mubr.bf16.mxu0 0
        %3678 = vmatmul.mubr.bf16.gmra.mrb[0].mxu0 %v3607
        %v3679 = vpop.f32.mrb[0].mxu0
        %v3680 = vadd.f32 %v3463, %v3679
        %v3681 = vpop.f32.mrb[0].mxu0
        %v3682 = vpop.f32.mrb[0].mxu0
        %v3683 = vadd.f32 %v3466, %v3682
        %v3684 = vpop.f32.mrb[0].mxu0
        %3685 = vmatprep.mubr.bf16.mxu0 0
        %3686 = vmatmul.mubr.bf16.gmra.mrb[0].mxu0 %v3609
        %v3687 = vpop.f32.mrb[0].mxu0
        %v3688 = vadd.f32 %v3471, %v3687
        %v3689 = vpop.f32.mrb[0].mxu0
        %v3690 = vpop.f32.mrb[0].mxu0
        %v3691 = vadd.f32 %v3474, %v3690
        %v3692 = vpop.f32.mrb[0].mxu0
        %3693 = vmatprep.mubr.bf16.mxu0 0
        %3694 = vmatmul.mubr.bf16.gmra.mrb[0].mxu0 %v3611
        %v3695 = vpop.f32.mrb[0].mxu0
        %v3696 = vadd.f32 %v3479, %v3695
        %v3697 = vpop.f32.mrb[0].mxu0
        %v3698 = vpop.f32.mrb[0].mxu0
        %v3699 = vadd.f32 %v3482, %v3698
        %v3700 = vpop.f32.mrb[0].mxu0
        %3701 = vmatprep.mubr.bf16.mxu0 0
        %3702 = vmatmul.mubr.bf16.gmra.mrb[0].mxu0 %v3613
        %v3703 = vpop.f32.mrb[0].mxu0
        %v3704 = vadd.f32 %v3487, %v3703
        %v3705 = vpop.f32.mrb[0].mxu0
        %v3706 = vpop.f32.mrb[0].mxu0
        %v3707 = vadd.f32 %v3490, %v3706
        %v3708 = vpop.f32.mrb[0].mxu0
        %3709 = vmatprep.mubr.bf16.mxu0 0
        %3710 = vmatmul.mubr.bf16.gmra.mrb[0].mxu0 %v3615
        %v3711 = vpop.f32.mrb[0].mxu0
        %v3712 = vadd.f32 %v3495, %v3711
        %v3713 = vpop.f32.mrb[0].mxu0
        %v3714 = vpop.f32.mrb[0].mxu0
        %v3715 = vadd.f32 %v3498, %v3714
        %v3716 = vpop.f32.mrb[0].mxu0
        %3717 = vmatprep.mubr.bf16.mxu0 0
        %3718 = vmatmul.mubr.bf16.gmra.mrb[0].mxu0 %v3617
        %v3719 = vpop.f32.mrb[0].mxu0
        %v3720 = vadd.f32 %v3503, %v3719
        %v3721 = vpop.f32.mrb[0].mxu0
        %v3722 = vpop.f32.mrb[0].mxu0
        %v3723 = vadd.f32 %v3506, %v3722
        %v3724 = vpop.f32.mrb[0].mxu0
        %3725 = vmatprep.mubr.bf16.mxu0 0
        %3726 = vmatmul.mubr.bf16.gmra.mrb[0].mxu0 %v3619
        %v3727 = vpop.f32.mrb[0].mxu0
        %v3728 = vadd.f32 %v3511, %v3727
        %v3729 = vpop.f32.mrb[0].mxu0
        %v3730 = vpop.f32.mrb[0].mxu0
        %v3731 = vadd.f32 %v3514, %v3730
        %v3732 = vpop.f32.mrb[0].mxu0
        %3733 = vmatprep.mubr.bf16.mxu0 0
        %3734 = vmatmul.mubr.bf16.gmra.mrb[0].mxu0 %v3621
        %v3735 = vpop.f32.mrb[0].mxu0
        %v3736 = vadd.f32 %v3519, %v3735
        %v3737 = vpop.f32.mrb[0].mxu0
        %v3738 = vpop.f32.mrb[0].mxu0
        %v3739 = vadd.f32 %v3522, %v3738
        %v3740 = vpop.f32.mrb[0].mxu0
        %3741 = vmatprep.mubr.bf16.mxu0 0
        %3742 = vmatmul.mubr.bf16.gmra.mrb[0].mxu0 %v3623
        %v3743 = vpop.f32.mrb[0].mxu0
        %v3744 = vadd.f32 %v3527, %v3743
        %v3745 = vpop.f32.mrb[0].mxu0
        %v3746 = vpop.f32.mrb[0].mxu0
        %v3747 = vadd.f32 %v3530, %v3746
        %v3748 = vpop.f32.mrb[0].mxu0
        %3749 = vmatprep.mubr.bf16.mxu0 0
        %3750 = vmatmul.mubr.bf16.gmra.mrb[0].mxu0 %v3625
        %v3751 = vpop.f32.mrb[0].mxu0
        %v3752 = vadd.f32 %v3535, %v3751
        %v3753 = vpop.f32.mrb[0].mxu0
        %v3754 = vpop.f32.mrb[0].mxu0
        %v3755 = vadd.f32 %v3538, %v3754
        %v3756 = vpop.f32.mrb[0].mxu0
        %3757 = vmatprep.mubr.bf16.mxu0 0
        %3758 = vmatmul.mubr.bf16.gmra.mrb[0].mxu0 %v3627
        %v3759 = vpop.f32.mrb[0].mxu0
        %v3760 = vadd.f32 %v3543, %v3759
        %v3761 = vpop.f32.mrb[0].mxu0
        %v3762 = vpop.f32.mrb[0].mxu0
        %v3763 = vadd.f32 %v3546, %v3762
        %v3764 = vpop.f32.mrb[0].mxu0
        %3765 = vmatprep.mubr.bf16.mxu0 0
        %3766 = vmatmul.mubr.bf16.gmra.mrb[0].mxu0 %v3629
        %v3767 = vpop.f32.mrb[0].mxu0
        %v3768 = vadd.f32 %v3551, %v3767
        %v3769 = vpop.f32.mrb[0].mxu0
        %v3770 = vpop.f32.mrb[0].mxu0
        %v3771 = vadd.f32 %v3554, %v3770
        %v3772 = vpop.f32.mrb[0].mxu0
        %3773 = vmatprep.mubr.bf16.mxu0 0
        %3774 = vmatmul.mubr.bf16.gmra.mrb[0].mxu0 %v3631
        %v3775 = vpop.f32.mrb[0].mxu0
        %v3776 = vadd.f32 %v3559, %v3775
        %v3777 = vpop.f32.mrb[0].mxu0
        %v3778 = vpop.f32.mrb[0].mxu0
        %v3779 = vadd.f32 %v3562, %v3778
        %v3780 = vpop.f32.mrb[0].mxu0
        %3781 = vmatprep.mubr.bf16.mxu0 0
        %3782 = vmatmul.mubr.bf16.gmra.mrb[0].mxu0 %v3633
        %v3783 = vpop.f32.mrb[0].mxu0
        %v3784 = vadd.f32 %v3567, %v3783
        %v3785 = vpop.f32.mrb[0].mxu0
        %v3786 = vpop.f32.mrb[0].mxu0
        %v3787 = vadd.f32 %v3570, %v3786
        %v3788 = vpop.f32.mrb[0].mxu0
        %3789 = vmatprep.mubr.bf16.mxu0 0
        %3790 = vmatmul.mubr.bf16.gmra.mrb[0].mxu0 %v3635
        %v3791 = vpop.f32.mrb[0].mxu0
        %v3792 = vadd.f32 %v3575, %v3791
        %v3793 = vpop.f32.mrb[0].mxu0
        %v3794 = vpop.f32.mrb[0].mxu0
        %v3795 = vadd.f32 %v3578, %v3794
        %v3796 = vpop.f32.mrb[0].mxu0
        %3797 = vdwg.mxu0
        %v3830 = vrot.slane %v3120, 1
        %v3831 = vrot.slane %v3121, 1
        %v3832 = vsel %vm1308, %v3830, %v3831
        %v3833 = vrot.slane %v3122, 1
        %v3834 = vrot.slane %v3123, 1
        %v3835 = vsel %vm1308, %v3833, %v3834
        %v3836 = vrot.slane %v3124, 1
        %v3837 = vrot.slane %v3125, 1
        %v3838 = vsel %vm1308, %v3836, %v3837
        %v3839 = vrot.slane %v3126, 1
        %v3840 = vrot.slane %v3127, 1
        %v3841 = vsel %vm1308, %v3839, %v3840
        %v3842 = vrot.slane %v3128, 1
        %v3843 = vrot.slane %v3129, 1
        %v3844 = vsel %vm1308, %v3842, %v3843
        %v3845 = vrot.slane %v3130, 1
        %v3846 = vrot.slane %v3131, 1
        %v3847 = vsel %vm1308, %v3845, %v3846
        %v3848 = vrot.slane %v3132, 1
        %v3849 = vrot.slane %v3133, 1
        %v3850 = vsel %vm1308, %v3848, %v3849
        %v3851 = vrot.slane %v3134, 1
        %v3852 = vrot.slane %v3135, 1
        %v3853 = vsel %vm1308, %v3851, %v3852
        %v3854 = vrot.slane %v3136, 1
        %v3855 = vrot.slane %v3137, 1
        %v3856 = vsel %vm1308, %v3854, %v3855
        %v3857 = vrot.slane %v3138, 1
        %v3858 = vrot.slane %v3139, 1
        %v3859 = vsel %vm1308, %v3857, %v3858
        %v3860 = vrot.slane %v3140, 1
        %v3861 = vrot.slane %v3141, 1
        %v3862 = vsel %vm1308, %v3860, %v3861
        %v3863 = vrot.slane %v3142, 1
        %v3864 = vrot.slane %v3143, 1
        %v3865 = vsel %vm1308, %v3863, %v3864
        %v3866 = vrot.slane %v3144, 1
        %v3867 = vrot.slane %v3145, 1
        %v3868 = vsel %vm1308, %v3866, %v3867
        %v3869 = vrot.slane %v3146, 1
        %v3870 = vrot.slane %v3147, 1
        %v3871 = vsel %vm1308, %v3869, %v3870
        %v3872 = vrot.slane %v3148, 1
        %v3873 = vrot.slane %v3149, 1
        %v3874 = vsel %vm1308, %v3872, %v3873
        %v3875 = vrot.slane %v3150, 1
        %v3876 = vrot.slane %v3151, 1
        %v3877 = vsel %vm1308, %v3875, %v3876
        %v3886 = vunpack.c.l.b16 %v3010
        %v3887 = vunpack.c.l.b16 %v3011
        %v3888 = vunpack.c.l.b16 %v3012
        %v3889 = vunpack.c.l.b16 %v3013
        %v3890 = vunpack.c.l.b16 %v3014
        %v3891 = vunpack.c.l.b16 %v3015
        %v3892 = vunpack.c.l.b16 %v3016
        %v3893 = vunpack.c.l.b16 %v3017
        %v3894 = vpack.c.b16 %v3887, %v3886
        %v3895 = vpack.c.b16 %v3889, %v3888
        %v3896 = vpack.c.b16 %v3891, %v3890
        %v3897 = vpack.c.b16 %v3893, %v3892
        %v3903 = vsel %vm388, %v3832, 0
        %v3906 = vsel %vm388, %v3835, 0
        %v3909 = vsel %vm388, %v3838, 0
        %v3912 = vsel %vm388, %v3841, 0
        %v3915 = vsel %vm388, %v3844, 0
        %v3918 = vsel %vm388, %v3847, 0
        %v3921 = vsel %vm388, %v3850, 0
        %v3924 = vsel %vm388, %v3853, 0
        %v3927 = vsel %vm388, %v3856, 0
        %v3930 = vsel %vm388, %v3859, 0
        %v3933 = vsel %vm388, %v3862, 0
        %v3936 = vsel %vm388, %v3865, 0
        %v3939 = vsel %vm388, %v3868, 0
        %v3942 = vsel %vm388, %v3871, 0
        %v3945 = vsel %vm388, %v3874, 0
        %v3948 = vsel %vm388, %v3877, 0
        %3950 = vmatprep.subr.bf16.mxu0 0
        %3951 = vmatpush1.bf16.msra.mxu0 %v3894
        %3952 = vmatprep.subr.bf16.mxu0 0
        %3953 = vmatpush1.bf16.msra.mxu0 %v3895
        %3954 = vmatprep.subr.bf16.mxu0 0
        %3955 = vmatpush1.bf16.msra.mxu0 %v3896
        %3956 = vmatprep.subr.bf16.mxu0 0
        %3957 = vmatpush1.bf16.msra.mxu0 %v3897
        %3958 = vmatprep.subr.bf16.mxu0 0
        %3959 = vmatpush1.bf16.msra.mxu0 0
        %3960 = vmatprep.subr.bf16.mxu0 0
        %3961 = vmatpush1.bf16.msra.mxu0 0
        %3962 = vmatprep.subr.bf16.mxu0 0
        %3963 = vmatpush1.bf16.msra.mxu0 0
        %3964 = vmatprep.subr.bf16.mxu0 0
        %3965 = vmatpush1.bf16.msra.mxu0 0
        %3966 = vmatprep.subr.bf16.mxu0 0
        %3967 = vmatpush1.bf16.msra.mxu0 0
        %3968 = vmatprep.subr.bf16.mxu0 0
        %3969 = vmatpush1.bf16.msra.mxu0 0
        %3970 = vmatprep.subr.bf16.mxu0 0
        %3971 = vmatpush1.bf16.msra.mxu0 0
        %3972 = vmatprep.subr.bf16.mxu0 0
        %3973 = vmatpush1.bf16.msra.mxu0 0
        %3974 = vmatprep.subr.bf16.mxu0 0
        %3975 = vmatpush1.bf16.msra.mxu0 0
        %3976 = vmatprep.subr.bf16.mxu0 0
        %3977 = vmatpush1.bf16.msra.mxu0 0
        %3978 = vmatprep.subr.bf16.mxu0 0
        %3979 = vmatpush1.bf16.msra.mxu0 0
        %3980 = vmatprep.subr.bf16.mxu0 0
        %3981 = vmatpush1.bf16.msra.mxu0 0
        %3982 = vmatprep.mubr.bf16.mxu0 0
        %3983 = vmatmul.mubr.bf16.gmra.mrb[0].mxu0 %v3903
        %v3984 = vpop.f32.mrb[0].mxu0
        %v3985 = vadd.f32 0.0, %v3984
        %v3986 = vpop.f32.mrb[0].mxu0
        %v3987 = vpop.f32.mrb[0].mxu0
        %v3988 = vadd.f32 0.0, %v3987
        %v3989 = vpop.f32.mrb[0].mxu0
        %3990 = vmatprep.mubr.bf16.mxu0 0
        %3991 = vmatmul.mubr.bf16.gmra.mrb[0].mxu0 %v3906
        %v3992 = vpop.f32.mrb[0].mxu0
        %v3993 = vadd.f32 0.0, %v3992
        %v3994 = vpop.f32.mrb[0].mxu0
        %v3995 = vpop.f32.mrb[0].mxu0
        %v3996 = vadd.f32 0.0, %v3995
        %v3997 = vpop.f32.mrb[0].mxu0
        %3998 = vmatprep.mubr.bf16.mxu0 0
        %3999 = vmatmul.mubr.bf16.gmra.mrb[0].mxu0 %v3909
        %v4000 = vpop.f32.mrb[0].mxu0
        %v4001 = vadd.f32 0.0, %v4000
        %v4002 = vpop.f32.mrb[0].mxu0
        %v4003 = vpop.f32.mrb[0].mxu0
        %v4004 = vadd.f32 0.0, %v4003
        %v4005 = vpop.f32.mrb[0].mxu0
        %4006 = vmatprep.mubr.bf16.mxu0 0
        %4007 = vmatmul.mubr.bf16.gmra.mrb[0].mxu0 %v3912
        %v4008 = vpop.f32.mrb[0].mxu0
        %v4009 = vadd.f32 0.0, %v4008
        %v4010 = vpop.f32.mrb[0].mxu0
        %v4011 = vpop.f32.mrb[0].mxu0
        %v4012 = vadd.f32 0.0, %v4011
        %v4013 = vpop.f32.mrb[0].mxu0
        %4014 = vmatprep.mubr.bf16.mxu0 0
        %4015 = vmatmul.mubr.bf16.gmra.mrb[0].mxu0 %v3915
        %v4016 = vpop.f32.mrb[0].mxu0
        %v4017 = vadd.f32 0.0, %v4016
        %v4018 = vpop.f32.mrb[0].mxu0
        %v4019 = vpop.f32.mrb[0].mxu0
        %v4020 = vadd.f32 0.0, %v4019
        %v4021 = vpop.f32.mrb[0].mxu0
        %4022 = vmatprep.mubr.bf16.mxu0 0
        %4023 = vmatmul.mubr.bf16.gmra.mrb[0].mxu0 %v3918
        %v4024 = vpop.f32.mrb[0].mxu0
        %v4025 = vadd.f32 0.0, %v4024
        %v4026 = vpop.f32.mrb[0].mxu0
        %v4027 = vpop.f32.mrb[0].mxu0
        %v4028 = vadd.f32 0.0, %v4027
        %v4029 = vpop.f32.mrb[0].mxu0
        %4030 = vmatprep.mubr.bf16.mxu0 0
        %4031 = vmatmul.mubr.bf16.gmra.mrb[0].mxu0 %v3921
        %v4032 = vpop.f32.mrb[0].mxu0
        %v4033 = vadd.f32 0.0, %v4032
        %v4034 = vpop.f32.mrb[0].mxu0
        %v4035 = vpop.f32.mrb[0].mxu0
        %v4036 = vadd.f32 0.0, %v4035
        %v4037 = vpop.f32.mrb[0].mxu0
        %4038 = vmatprep.mubr.bf16.mxu0 0
        %4039 = vmatmul.mubr.bf16.gmra.mrb[0].mxu0 %v3924
        %v4040 = vpop.f32.mrb[0].mxu0
        %v4041 = vadd.f32 0.0, %v4040
        %v4042 = vpop.f32.mrb[0].mxu0
        %v4043 = vpop.f32.mrb[0].mxu0
        %v4044 = vadd.f32 0.0, %v4043
        %v4045 = vpop.f32.mrb[0].mxu0
        %4046 = vmatprep.mubr.bf16.mxu0 0
        %4047 = vmatmul.mubr.bf16.gmra.mrb[0].mxu0 %v3927
        %v4048 = vpop.f32.mrb[0].mxu0
        %v4049 = vadd.f32 0.0, %v4048
        %v4050 = vpop.f32.mrb[0].mxu0
        %v4051 = vpop.f32.mrb[0].mxu0
        %v4052 = vadd.f32 0.0, %v4051
        %v4053 = vpop.f32.mrb[0].mxu0
        %4054 = vmatprep.mubr.bf16.mxu0 0
        %4055 = vmatmul.mubr.bf16.gmra.mrb[0].mxu0 %v3930
        %v4056 = vpop.f32.mrb[0].mxu0
        %v4057 = vadd.f32 0.0, %v4056
        %v4058 = vpop.f32.mrb[0].mxu0
        %v4059 = vpop.f32.mrb[0].mxu0
        %v4060 = vadd.f32 0.0, %v4059
        %v4061 = vpop.f32.mrb[0].mxu0
        %4062 = vmatprep.mubr.bf16.mxu0 0
        %4063 = vmatmul.mubr.bf16.gmra.mrb[0].mxu0 %v3933
        %v4064 = vpop.f32.mrb[0].mxu0
        %v4065 = vadd.f32 0.0, %v4064
        %v4066 = vpop.f32.mrb[0].mxu0
        %v4067 = vpop.f32.mrb[0].mxu0
        %v4068 = vadd.f32 0.0, %v4067
        %v4069 = vpop.f32.mrb[0].mxu0
        %4070 = vmatprep.mubr.bf16.mxu0 0
        %4071 = vmatmul.mubr.bf16.gmra.mrb[0].mxu0 %v3936
        %v4072 = vpop.f32.mrb[0].mxu0
        %v4073 = vadd.f32 0.0, %v4072
        %v4074 = vpop.f32.mrb[0].mxu0
        %v4075 = vpop.f32.mrb[0].mxu0
        %v4076 = vadd.f32 0.0, %v4075
        %v4077 = vpop.f32.mrb[0].mxu0
        %4078 = vmatprep.mubr.bf16.mxu0 0
        %4079 = vmatmul.mubr.bf16.gmra.mrb[0].mxu0 %v3939
        %v4080 = vpop.f32.mrb[0].mxu0
        %v4081 = vadd.f32 0.0, %v4080
        %v4082 = vpop.f32.mrb[0].mxu0
        %v4083 = vpop.f32.mrb[0].mxu0
        %v4084 = vadd.f32 0.0, %v4083
        %v4085 = vpop.f32.mrb[0].mxu0
        %4086 = vmatprep.mubr.bf16.mxu0 0
        %4087 = vmatmul.mubr.bf16.gmra.mrb[0].mxu0 %v3942
        %v4088 = vpop.f32.mrb[0].mxu0
        %v4089 = vadd.f32 0.0, %v4088
        %v4090 = vpop.f32.mrb[0].mxu0
        %v4091 = vpop.f32.mrb[0].mxu0
        %v4092 = vadd.f32 0.0, %v4091
        %v4093 = vpop.f32.mrb[0].mxu0
        %4094 = vmatprep.mubr.bf16.mxu0 0
        %4095 = vmatmul.mubr.bf16.gmra.mrb[0].mxu0 %v3945
        %v4096 = vpop.f32.mrb[0].mxu0
        %v4097 = vadd.f32 0.0, %v4096
        %v4098 = vpop.f32.mrb[0].mxu0
        %v4099 = vpop.f32.mrb[0].mxu0
        %v4100 = vadd.f32 0.0, %v4099
        %v4101 = vpop.f32.mrb[0].mxu0
        %4102 = vmatprep.mubr.bf16.mxu0 0
        %4103 = vmatmul.mubr.bf16.gmra.mrb[0].mxu0 %v3948
        %v4104 = vpop.f32.mrb[0].mxu0
        %v4105 = vadd.f32 0.0, %v4104
        %v4106 = vpop.f32.mrb[0].mxu0
        %v4107 = vpop.f32.mrb[0].mxu0
        %v4108 = vadd.f32 0.0, %v4107
        %v4109 = vpop.f32.mrb[0].mxu0
        %4110 = vdwg.mxu0
        %v4111 = vadd.f32 %v3672, %v3985
        %v4112 = vadd.f32 %v3675, %v3988
        %v4113 = vadd.f32 %v3680, %v3993
        %v4114 = vadd.f32 %v3683, %v3996
        %v4115 = vadd.f32 %v3688, %v4001
        %v4116 = vadd.f32 %v3691, %v4004
        %v4117 = vadd.f32 %v3696, %v4009
        %v4118 = vadd.f32 %v3699, %v4012
        %v4119 = vadd.f32 %v3704, %v4017
        %v4120 = vadd.f32 %v3707, %v4020
        %v4121 = vadd.f32 %v3712, %v4025
        %v4122 = vadd.f32 %v3715, %v4028
        %v4123 = vadd.f32 %v3720, %v4033
        %v4124 = vadd.f32 %v3723, %v4036
        %v4125 = vadd.f32 %v3728, %v4041
        %v4126 = vadd.f32 %v3731, %v4044
        %v4127 = vadd.f32 %v3736, %v4049
        %v4128 = vadd.f32 %v3739, %v4052
        %v4129 = vadd.f32 %v3744, %v4057
        %v4130 = vadd.f32 %v3747, %v4060
        %v4131 = vadd.f32 %v3752, %v4065
        %v4132 = vadd.f32 %v3755, %v4068
        %v4133 = vadd.f32 %v3760, %v4073
        %v4134 = vadd.f32 %v3763, %v4076
        %v4135 = vadd.f32 %v3768, %v4081
        %v4136 = vadd.f32 %v3771, %v4084
        %v4137 = vadd.f32 %v3776, %v4089
        %v4138 = vadd.f32 %v3779, %v4092
        %v4139 = vadd.f32 %v3784, %v4097
        %v4140 = vadd.f32 %v3787, %v4100
        %v4141 = vadd.f32 %v3792, %v4105
        %v4142 = vadd.f32 %v3795, %v4108
        %v4151 = vunpack.c.l.b16 %v3018
        %v4152 = vunpack.c.l.b16 %v3019
        %v4153 = vunpack.c.l.b16 %v3020
        %v4154 = vunpack.c.l.b16 %v3021
        %v4155 = vunpack.c.l.b16 %v3022
        %v4156 = vunpack.c.l.b16 %v3023
        %v4157 = vunpack.c.l.b16 %v3024
        %v4158 = vunpack.c.l.b16 %v3025
        %v4159 = vpack.c.b16 %v4152, %v4151
        %v4160 = vpack.c.b16 %v4154, %v4153
        %v4161 = vpack.c.b16 %v4156, %v4155
        %v4162 = vpack.c.b16 %v4158, %v4157
        %v4168 = vsel %vm388, %v3152, 0
        %4170 = vmatprep.subr.bf16.mxu0 0
        %4171 = vmatpush1.bf16.msra.mxu0 %v4159
        %4172 = vmatprep.subr.bf16.mxu0 0
        %4173 = vmatpush1.bf16.msra.mxu0 %v4160
        %4174 = vmatprep.subr.bf16.mxu0 0
        %4175 = vmatpush1.bf16.msra.mxu0 %v4161
        %4176 = vmatprep.subr.bf16.mxu0 0
        %4177 = vmatpush1.bf16.msra.mxu0 %v4162
        %4178 = vmatprep.subr.bf16.mxu0 0
        %4179 = vmatpush1.bf16.msra.mxu0 0
        %4180 = vmatprep.subr.bf16.mxu0 0
        %4181 = vmatpush1.bf16.msra.mxu0 0
        %4182 = vmatprep.subr.bf16.mxu0 0
        %4183 = vmatpush1.bf16.msra.mxu0 0
        %4184 = vmatprep.subr.bf16.mxu0 0
        %4185 = vmatpush1.bf16.msra.mxu0 0
        %4186 = vmatprep.subr.bf16.mxu0 0
        %4187 = vmatpush1.bf16.msra.mxu0 0
        %4188 = vmatprep.subr.bf16.mxu0 0
        %4189 = vmatpush1.bf16.msra.mxu0 0
        %4190 = vmatprep.subr.bf16.mxu0 0
        %4191 = vmatpush1.bf16.msra.mxu0 0
        %4192 = vmatprep.subr.bf16.mxu0 0
        %4193 = vmatpush1.bf16.msra.mxu0 0
        %4194 = vmatprep.subr.bf16.mxu0 0
        %4195 = vmatpush1.bf16.msra.mxu0 0
        %4196 = vmatprep.subr.bf16.mxu0 0
        %4197 = vmatpush1.bf16.msra.mxu0 0
        %4198 = vmatprep.subr.bf16.mxu0 0
        %4199 = vmatpush1.bf16.msra.mxu0 0
        %4200 = vmatprep.subr.bf16.mxu0 0
        %4201 = vmatpush1.bf16.msra.mxu0 0
        %4202 = vmatprep.mubr.bf16.mxu0 0
        %4203 = vmatmul.mubr.bf16.gmra.mrb[0].mxu0 %v3607
        %v4204 = vpop.f32.mrb[0].mxu0
        %v4205 = vadd.f32 0.0, %v4204
        %v4206 = vpop.f32.mrb[0].mxu0
        %v4207 = vpop.f32.mrb[0].mxu0
        %v4208 = vadd.f32 0.0, %v4207
        %v4209 = vpop.f32.mrb[0].mxu0
        %4210 = vmatprep.mubr.bf16.mxu0 0
        %4211 = vmatmul.mubr.bf16.gmra.mrb[0].mxu0 %v3609
        %v4212 = vpop.f32.mrb[0].mxu0
        %v4213 = vadd.f32 0.0, %v4212
        %v4214 = vpop.f32.mrb[0].mxu0
        %v4215 = vpop.f32.mrb[0].mxu0
        %v4216 = vadd.f32 0.0, %v4215
        %v4217 = vpop.f32.mrb[0].mxu0
        %4218 = vmatprep.mubr.bf16.mxu0 0
        %4219 = vmatmul.mubr.bf16.gmra.mrb[0].mxu0 %v3611
        %v4220 = vpop.f32.mrb[0].mxu0
        %v4221 = vadd.f32 0.0, %v4220
        %v4222 = vpop.f32.mrb[0].mxu0
        %v4223 = vpop.f32.mrb[0].mxu0
        %v4224 = vadd.f32 0.0, %v4223
        %v4225 = vpop.f32.mrb[0].mxu0
        %4226 = vmatprep.mubr.bf16.mxu0 0
        %4227 = vmatmul.mubr.bf16.gmra.mrb[0].mxu0 %v3613
        %v4228 = vpop.f32.mrb[0].mxu0
        %v4229 = vadd.f32 0.0, %v4228
        %v4230 = vpop.f32.mrb[0].mxu0
        %v4231 = vpop.f32.mrb[0].mxu0
        %v4232 = vadd.f32 0.0, %v4231
        %v4233 = vpop.f32.mrb[0].mxu0
        %4234 = vmatprep.mubr.bf16.mxu0 0
        %4235 = vmatmul.mubr.bf16.gmra.mrb[0].mxu0 %v3615
        %v4236 = vpop.f32.mrb[0].mxu0
        %v4237 = vadd.f32 0.0, %v4236
        %v4238 = vpop.f32.mrb[0].mxu0
        %v4239 = vpop.f32.mrb[0].mxu0
        %v4240 = vadd.f32 0.0, %v4239
        %v4241 = vpop.f32.mrb[0].mxu0
        %4242 = vmatprep.mubr.bf16.mxu0 0
        %4243 = vmatmul.mubr.bf16.gmra.mrb[0].mxu0 %v3617
        %v4244 = vpop.f32.mrb[0].mxu0
        %v4245 = vadd.f32 0.0, %v4244
        %v4246 = vpop.f32.mrb[0].mxu0
        %v4247 = vpop.f32.mrb[0].mxu0
        %v4248 = vadd.f32 0.0, %v4247
        %v4249 = vpop.f32.mrb[0].mxu0
        %4250 = vmatprep.mubr.bf16.mxu0 0
        %4251 = vmatmul.mubr.bf16.gmra.mrb[0].mxu0 %v3619
        %v4252 = vpop.f32.mrb[0].mxu0
        %v4253 = vadd.f32 0.0, %v4252
        %v4254 = vpop.f32.mrb[0].mxu0
        %v4255 = vpop.f32.mrb[0].mxu0
        %v4256 = vadd.f32 0.0, %v4255
        %v4257 = vpop.f32.mrb[0].mxu0
        %4258 = vmatprep.mubr.bf16.mxu0 0
        %4259 = vmatmul.mubr.bf16.gmra.mrb[0].mxu0 %v3621
        %v4260 = vpop.f32.mrb[0].mxu0
        %v4261 = vadd.f32 0.0, %v4260
        %v4262 = vpop.f32.mrb[0].mxu0
        %v4263 = vpop.f32.mrb[0].mxu0
        %v4264 = vadd.f32 0.0, %v4263
        %v4265 = vpop.f32.mrb[0].mxu0
        %4266 = vmatprep.mubr.bf16.mxu0 0
        %4267 = vmatmul.mubr.bf16.gmra.mrb[0].mxu0 %v3623
        %v4268 = vpop.f32.mrb[0].mxu0
        %v4269 = vadd.f32 0.0, %v4268
        %v4270 = vpop.f32.mrb[0].mxu0
        %v4271 = vpop.f32.mrb[0].mxu0
        %v4272 = vadd.f32 0.0, %v4271
        %v4273 = vpop.f32.mrb[0].mxu0
        %4274 = vmatprep.mubr.bf16.mxu0 0
        %4275 = vmatmul.mubr.bf16.gmra.mrb[0].mxu0 %v3625
        %v4276 = vpop.f32.mrb[0].mxu0
        %v4277 = vadd.f32 0.0, %v4276
        %v4278 = vpop.f32.mrb[0].mxu0
        %v4279 = vpop.f32.mrb[0].mxu0
        %v4280 = vadd.f32 0.0, %v4279
        %v4281 = vpop.f32.mrb[0].mxu0
        %4282 = vmatprep.mubr.bf16.mxu0 0
        %4283 = vmatmul.mubr.bf16.gmra.mrb[0].mxu0 %v3627
        %v4284 = vpop.f32.mrb[0].mxu0
        %v4285 = vadd.f32 0.0, %v4284
        %v4286 = vpop.f32.mrb[0].mxu0
        %v4287 = vpop.f32.mrb[0].mxu0
        %v4288 = vadd.f32 0.0, %v4287
        %v4289 = vpop.f32.mrb[0].mxu0
        %4290 = vmatprep.mubr.bf16.mxu0 0
        %4291 = vmatmul.mubr.bf16.gmra.mrb[0].mxu0 %v3629
        %v4292 = vpop.f32.mrb[0].mxu0
        %v4293 = vadd.f32 0.0, %v4292
        %v4294 = vpop.f32.mrb[0].mxu0
        %v4295 = vpop.f32.mrb[0].mxu0
        %v4296 = vadd.f32 0.0, %v4295
        %v4297 = vpop.f32.mrb[0].mxu0
        %4298 = vmatprep.mubr.bf16.mxu0 0
        %4299 = vmatmul.mubr.bf16.gmra.mrb[0].mxu0 %v3631
        %v4300 = vpop.f32.mrb[0].mxu0
        %v4301 = vadd.f32 0.0, %v4300
        %v4302 = vpop.f32.mrb[0].mxu0
        %v4303 = vpop.f32.mrb[0].mxu0
        %v4304 = vadd.f32 0.0, %v4303
        %v4305 = vpop.f32.mrb[0].mxu0
        %4306 = vmatprep.mubr.bf16.mxu0 0
        %4307 = vmatmul.mubr.bf16.gmra.mrb[0].mxu0 %v3633
        %v4308 = vpop.f32.mrb[0].mxu0
        %v4309 = vadd.f32 0.0, %v4308
        %v4310 = vpop.f32.mrb[0].mxu0
        %v4311 = vpop.f32.mrb[0].mxu0
        %v4312 = vadd.f32 0.0, %v4311
        %v4313 = vpop.f32.mrb[0].mxu0
        %4314 = vmatprep.mubr.bf16.mxu0 0
        %4315 = vmatmul.mubr.bf16.gmra.mrb[0].mxu0 %v3635
        %v4316 = vpop.f32.mrb[0].mxu0
        %v4317 = vadd.f32 0.0, %v4316
        %v4318 = vpop.f32.mrb[0].mxu0
        %v4319 = vpop.f32.mrb[0].mxu0
        %v4320 = vadd.f32 0.0, %v4319
        %v4321 = vpop.f32.mrb[0].mxu0
        %4322 = vmatprep.mubr.bf16.mxu0 0
        %4323 = vmatmul.mubr.bf16.gmra.mrb[0].mxu0 %v4168
        %v4324 = vpop.f32.mrb[0].mxu0
        %v4325 = vadd.f32 0.0, %v4324
        %v4326 = vpop.f32.mrb[0].mxu0
        %v4327 = vpop.f32.mrb[0].mxu0
        %v4328 = vadd.f32 0.0, %v4327
        %v4329 = vpop.f32.mrb[0].mxu0
        %4330 = vdwg.mxu0
        %v4331 = vadd.f32 %v4111, %v4205
        %v4332 = vadd.f32 %v4112, %v4208
        %v4333 = vadd.f32 %v4113, %v4213
        %v4334 = vadd.f32 %v4114, %v4216
        %v4335 = vadd.f32 %v4115, %v4221
        %v4336 = vadd.f32 %v4116, %v4224
        %v4337 = vadd.f32 %v4117, %v4229
        %v4338 = vadd.f32 %v4118, %v4232
        %v4339 = vadd.f32 %v4119, %v4237
        %v4340 = vadd.f32 %v4120, %v4240
        %v4341 = vadd.f32 %v4121, %v4245
        %v4342 = vadd.f32 %v4122, %v4248
        %v4343 = vadd.f32 %v4123, %v4253
        %v4344 = vadd.f32 %v4124, %v4256
        %v4345 = vadd.f32 %v4125, %v4261
        %v4346 = vadd.f32 %v4126, %v4264
        %v4347 = vadd.f32 %v4127, %v4269
        %v4348 = vadd.f32 %v4128, %v4272
        %v4349 = vadd.f32 %v4129, %v4277
        %v4350 = vadd.f32 %v4130, %v4280
        %v4351 = vadd.f32 %v4131, %v4285
        %v4352 = vadd.f32 %v4132, %v4288
        %v4353 = vadd.f32 %v4133, %v4293
        %v4354 = vadd.f32 %v4134, %v4296
        %v4355 = vadd.f32 %v4135, %v4301
        %v4356 = vadd.f32 %v4136, %v4304
        %v4357 = vadd.f32 %v4137, %v4309
        %v4358 = vadd.f32 %v4138, %v4312
        %v4359 = vadd.f32 %v4139, %v4317
        %v4360 = vadd.f32 %v4140, %v4320
        %v4361 = vadd.f32 %v4141, %v4325
        %v4362 = vadd.f32 %v4142, %v4328
        %v4363 = vshrl.u32 %v3152, 16
        %v4365 = vshll.u32 %v3152, 16
        %v4367 = vrot.slane %v4365, 1
        %v4368 = vor.u32 %v4363, %v4367
        %v4370 = vshll.u32 %v3153, 16
        %v4372 = vrot.slane %v4370, 1
        %v4373 = vsel %vm657, %v4368, %v4372
        %v4382 = vunpack.c.l.b16 %v3026
        %v4383 = vunpack.c.l.b16 %v3027
        %v4384 = vunpack.c.l.b16 %v3028
        %v4385 = vunpack.c.l.b16 %v3029
        %v4386 = vunpack.c.l.b16 %v3030
        %v4387 = vunpack.c.l.b16 %v3031
        %v4388 = vunpack.c.l.b16 %v3032
        %v4389 = vunpack.c.l.b16 %v3033
        %v4390 = vpack.c.b16 %v4383, %v4382
        %v4391 = vpack.c.b16 %v4385, %v4384
        %v4392 = vpack.c.b16 %v4387, %v4386
        %v4393 = vpack.c.b16 %v4389, %v4388
        %v4399 = vsel %vm388, %v4373, 0
        %4401 = vmatprep.subr.bf16.mxu0 0
        %4402 = vmatpush1.bf16.msra.mxu0 %v4390
        %4403 = vmatprep.subr.bf16.mxu0 0
        %4404 = vmatpush1.bf16.msra.mxu0 %v4391
        %4405 = vmatprep.subr.bf16.mxu0 0
        %4406 = vmatpush1.bf16.msra.mxu0 %v4392
        %4407 = vmatprep.subr.bf16.mxu0 0
        %4408 = vmatpush1.bf16.msra.mxu0 %v4393
        %4409 = vmatprep.subr.bf16.mxu0 0
        %4410 = vmatpush1.bf16.msra.mxu0 0
        %4411 = vmatprep.subr.bf16.mxu0 0
        %4412 = vmatpush1.bf16.msra.mxu0 0
        %4413 = vmatprep.subr.bf16.mxu0 0
        %4414 = vmatpush1.bf16.msra.mxu0 0
        %4415 = vmatprep.subr.bf16.mxu0 0
        %4416 = vmatpush1.bf16.msra.mxu0 0
        %4417 = vmatprep.subr.bf16.mxu0 0
        %4418 = vmatpush1.bf16.msra.mxu0 0
        %4419 = vmatprep.subr.bf16.mxu0 0
        %4420 = vmatpush1.bf16.msra.mxu0 0
        %4421 = vmatprep.subr.bf16.mxu0 0
        %4422 = vmatpush1.bf16.msra.mxu0 0
        %4423 = vmatprep.subr.bf16.mxu0 0
        %4424 = vmatpush1.bf16.msra.mxu0 0
        %4425 = vmatprep.subr.bf16.mxu0 0
        %4426 = vmatpush1.bf16.msra.mxu0 0
        %4427 = vmatprep.subr.bf16.mxu0 0
        %4428 = vmatpush1.bf16.msra.mxu0 0
        %4429 = vmatprep.subr.bf16.mxu0 0
        %4430 = vmatpush1.bf16.msra.mxu0 0
        %4431 = vmatprep.subr.bf16.mxu0 0
        %4432 = vmatpush1.bf16.msra.mxu0 0
        %4433 = vmatprep.mubr.bf16.mxu0 0
        %4434 = vmatmul.mubr.bf16.gmra.mrb[0].mxu0 %v3376
        %v4435 = vpop.f32.mrb[0].mxu0
        %v4436 = vadd.f32 0.0, %v4435
        %v4437 = vpop.f32.mrb[0].mxu0
        %v4438 = vpop.f32.mrb[0].mxu0
        %v4439 = vadd.f32 0.0, %v4438
        %v4440 = vpop.f32.mrb[0].mxu0
        %4441 = vmatprep.mubr.bf16.mxu0 0
        %4442 = vmatmul.mubr.bf16.gmra.mrb[0].mxu0 %v3379
        %v4443 = vpop.f32.mrb[0].mxu0
        %v4444 = vadd.f32 0.0, %v4443
        %v4445 = vpop.f32.mrb[0].mxu0
        %v4446 = vpop.f32.mrb[0].mxu0
        %v4447 = vadd.f32 0.0, %v4446
        %v4448 = vpop.f32.mrb[0].mxu0
        %4449 = vmatprep.mubr.bf16.mxu0 0
        %4450 = vmatmul.mubr.bf16.gmra.mrb[0].mxu0 %v3382
        %v4451 = vpop.f32.mrb[0].mxu0
        %v4452 = vadd.f32 0.0, %v4451
        %v4453 = vpop.f32.mrb[0].mxu0
        %v4454 = vpop.f32.mrb[0].mxu0
        %v4455 = vadd.f32 0.0, %v4454
        %v4456 = vpop.f32.mrb[0].mxu0
        %4457 = vmatprep.mubr.bf16.mxu0 0
        %4458 = vmatmul.mubr.bf16.gmra.mrb[0].mxu0 %v3385
        %v4459 = vpop.f32.mrb[0].mxu0
        %v4460 = vadd.f32 0.0, %v4459
        %v4461 = vpop.f32.mrb[0].mxu0
        %v4462 = vpop.f32.mrb[0].mxu0
        %v4463 = vadd.f32 0.0, %v4462
        %v4464 = vpop.f32.mrb[0].mxu0
        %4465 = vmatprep.mubr.bf16.mxu0 0
        %4466 = vmatmul.mubr.bf16.gmra.mrb[0].mxu0 %v3388
        %v4467 = vpop.f32.mrb[0].mxu0
        %v4468 = vadd.f32 0.0, %v4467
        %v4469 = vpop.f32.mrb[0].mxu0
        %v4470 = vpop.f32.mrb[0].mxu0
        %v4471 = vadd.f32 0.0, %v4470
        %v4472 = vpop.f32.mrb[0].mxu0
        %4473 = vmatprep.mubr.bf16.mxu0 0
        %4474 = vmatmul.mubr.bf16.gmra.mrb[0].mxu0 %v3391
        %v4475 = vpop.f32.mrb[0].mxu0
        %v4476 = vadd.f32 0.0, %v4475
        %v4477 = vpop.f32.mrb[0].mxu0
        %v4478 = vpop.f32.mrb[0].mxu0
        %v4479 = vadd.f32 0.0, %v4478
        %v4480 = vpop.f32.mrb[0].mxu0
        %4481 = vmatprep.mubr.bf16.mxu0 0
        %4482 = vmatmul.mubr.bf16.gmra.mrb[0].mxu0 %v3394
        %v4483 = vpop.f32.mrb[0].mxu0
        %v4484 = vadd.f32 0.0, %v4483
        %v4485 = vpop.f32.mrb[0].mxu0
        %v4486 = vpop.f32.mrb[0].mxu0
        %v4487 = vadd.f32 0.0, %v4486
        %v4488 = vpop.f32.mrb[0].mxu0
        %4489 = vmatprep.mubr.bf16.mxu0 0
        %4490 = vmatmul.mubr.bf16.gmra.mrb[0].mxu0 %v3397
        %v4491 = vpop.f32.mrb[0].mxu0
        %v4492 = vadd.f32 0.0, %v4491
        %v4493 = vpop.f32.mrb[0].mxu0
        %v4494 = vpop.f32.mrb[0].mxu0
        %v4495 = vadd.f32 0.0, %v4494
        %v4496 = vpop.f32.mrb[0].mxu0
        %4497 = vmatprep.mubr.bf16.mxu0 0
        %4498 = vmatmul.mubr.bf16.gmra.mrb[0].mxu0 %v3400
        %v4499 = vpop.f32.mrb[0].mxu0
        %v4500 = vadd.f32 0.0, %v4499
        %v4501 = vpop.f32.mrb[0].mxu0
        %v4502 = vpop.f32.mrb[0].mxu0
        %v4503 = vadd.f32 0.0, %v4502
        %v4504 = vpop.f32.mrb[0].mxu0
        %4505 = vmatprep.mubr.bf16.mxu0 0
        %4506 = vmatmul.mubr.bf16.gmra.mrb[0].mxu0 %v3403
        %v4507 = vpop.f32.mrb[0].mxu0
        %v4508 = vadd.f32 0.0, %v4507
        %v4509 = vpop.f32.mrb[0].mxu0
        %v4510 = vpop.f32.mrb[0].mxu0
        %v4511 = vadd.f32 0.0, %v4510
        %v4512 = vpop.f32.mrb[0].mxu0
        %4513 = vmatprep.mubr.bf16.mxu0 0
        %4514 = vmatmul.mubr.bf16.gmra.mrb[0].mxu0 %v3406
        %v4515 = vpop.f32.mrb[0].mxu0
        %v4516 = vadd.f32 0.0, %v4515
        %v4517 = vpop.f32.mrb[0].mxu0
        %v4518 = vpop.f32.mrb[0].mxu0
        %v4519 = vadd.f32 0.0, %v4518
        %v4520 = vpop.f32.mrb[0].mxu0
        %4521 = vmatprep.mubr.bf16.mxu0 0
        %4522 = vmatmul.mubr.bf16.gmra.mrb[0].mxu0 %v3409
        %v4523 = vpop.f32.mrb[0].mxu0
        %v4524 = vadd.f32 0.0, %v4523
        %v4525 = vpop.f32.mrb[0].mxu0
        %v4526 = vpop.f32.mrb[0].mxu0
        %v4527 = vadd.f32 0.0, %v4526
        %v4528 = vpop.f32.mrb[0].mxu0
        %4529 = vmatprep.mubr.bf16.mxu0 0
        %4530 = vmatmul.mubr.bf16.gmra.mrb[0].mxu0 %v3412
        %v4531 = vpop.f32.mrb[0].mxu0
        %v4532 = vadd.f32 0.0, %v4531
        %v4533 = vpop.f32.mrb[0].mxu0
        %v4534 = vpop.f32.mrb[0].mxu0
        %v4535 = vadd.f32 0.0, %v4534
        %v4536 = vpop.f32.mrb[0].mxu0
        %4537 = vmatprep.mubr.bf16.mxu0 0
        %4538 = vmatmul.mubr.bf16.gmra.mrb[0].mxu0 %v3415
        %v4539 = vpop.f32.mrb[0].mxu0
        %v4540 = vadd.f32 0.0, %v4539
        %v4541 = vpop.f32.mrb[0].mxu0
        %v4542 = vpop.f32.mrb[0].mxu0
        %v4543 = vadd.f32 0.0, %v4542
        %v4544 = vpop.f32.mrb[0].mxu0
        %4545 = vmatprep.mubr.bf16.mxu0 0
        %4546 = vmatmul.mubr.bf16.gmra.mrb[0].mxu0 %v3418
        %v4547 = vpop.f32.mrb[0].mxu0
        %v4548 = vadd.f32 0.0, %v4547
        %v4549 = vpop.f32.mrb[0].mxu0
        %v4550 = vpop.f32.mrb[0].mxu0
        %v4551 = vadd.f32 0.0, %v4550
        %v4552 = vpop.f32.mrb[0].mxu0
        %4553 = vmatprep.mubr.bf16.mxu0 0
        %4554 = vmatmul.mubr.bf16.gmra.mrb[0].mxu0 %v4399
        %v4555 = vpop.f32.mrb[0].mxu0
        %v4556 = vadd.f32 0.0, %v4555
        %v4557 = vpop.f32.mrb[0].mxu0
        %v4558 = vpop.f32.mrb[0].mxu0
        %v4559 = vadd.f32 0.0, %v4558
        %v4560 = vpop.f32.mrb[0].mxu0
        %4561 = vdwg.mxu0
        %v4562 = vadd.f32 %v4331, %v4436
        %v4563 = vadd.f32 %v4332, %v4439
        %v4564 = vadd.f32 %v4333, %v4444
        %v4565 = vadd.f32 %v4334, %v4447
        %v4566 = vadd.f32 %v4335, %v4452
        %v4567 = vadd.f32 %v4336, %v4455
        %v4568 = vadd.f32 %v4337, %v4460
        %v4569 = vadd.f32 %v4338, %v4463
        %v4570 = vadd.f32 %v4339, %v4468
        %v4571 = vadd.f32 %v4340, %v4471
        %v4572 = vadd.f32 %v4341, %v4476
        %v4573 = vadd.f32 %v4342, %v4479
        %v4574 = vadd.f32 %v4343, %v4484
        %v4575 = vadd.f32 %v4344, %v4487
        %v4576 = vadd.f32 %v4345, %v4492
        %v4577 = vadd.f32 %v4346, %v4495
        %v4578 = vadd.f32 %v4347, %v4500
        %v4579 = vadd.f32 %v4348, %v4503
        %v4580 = vadd.f32 %v4349, %v4508
        %v4581 = vadd.f32 %v4350, %v4511
        %v4582 = vadd.f32 %v4351, %v4516
        %v4583 = vadd.f32 %v4352, %v4519
        %v4584 = vadd.f32 %v4353, %v4524
        %v4585 = vadd.f32 %v4354, %v4527
        %v4586 = vadd.f32 %v4355, %v4532
        %v4587 = vadd.f32 %v4356, %v4535
        %v4588 = vadd.f32 %v4357, %v4540
        %v4589 = vadd.f32 %v4358, %v4543
        %v4590 = vadd.f32 %v4359, %v4548
        %v4591 = vadd.f32 %v4360, %v4551
        %v4592 = vadd.f32 %v4361, %v4556
        %v4593 = vadd.f32 %v4362, %v4559
        %v4596 = vrot.slane %v3152, 1
        %v4597 = vrot.slane %v3153, 1
        %v4598 = vsel %vm1308, %v4596, %v4597
        %v4607 = vunpack.c.l.b16 %v3034
        %v4608 = vunpack.c.l.b16 %v3035
        %v4609 = vunpack.c.l.b16 %v3036
        %v4610 = vunpack.c.l.b16 %v3037
        %v4611 = vunpack.c.l.b16 %v3038
        %v4612 = vunpack.c.l.b16 %v3039
        %v4613 = vunpack.c.l.b16 %v3040
        %v4614 = vunpack.c.l.b16 %v3041
        %v4615 = vpack.c.b16 %v4608, %v4607
        %v4616 = vpack.c.b16 %v4610, %v4609
        %v4617 = vpack.c.b16 %v4612, %v4611
        %v4618 = vpack.c.b16 %v4614, %v4613
        %v4624 = vsel %vm388, %v4598, 0
        %4626 = vmatprep.subr.bf16.mxu0 0
        %4627 = vmatpush1.bf16.msra.mxu0 %v4615
        %4628 = vmatprep.subr.bf16.mxu0 0
        %4629 = vmatpush1.bf16.msra.mxu0 %v4616
        %4630 = vmatprep.subr.bf16.mxu0 0
        %4631 = vmatpush1.bf16.msra.mxu0 %v4617
        %4632 = vmatprep.subr.bf16.mxu0 0
        %4633 = vmatpush1.bf16.msra.mxu0 %v4618
        %4634 = vmatprep.subr.bf16.mxu0 0
        %4635 = vmatpush1.bf16.msra.mxu0 0
        %4636 = vmatprep.subr.bf16.mxu0 0
        %4637 = vmatpush1.bf16.msra.mxu0 0
        %4638 = vmatprep.subr.bf16.mxu0 0
        %4639 = vmatpush1.bf16.msra.mxu0 0
        %4640 = vmatprep.subr.bf16.mxu0 0
        %4641 = vmatpush1.bf16.msra.mxu0 0
        %4642 = vmatprep.subr.bf16.mxu0 0
        %4643 = vmatpush1.bf16.msra.mxu0 0
        %4644 = vmatprep.subr.bf16.mxu0 0
        %4645 = vmatpush1.bf16.msra.mxu0 0
        %4646 = vmatprep.subr.bf16.mxu0 0
        %4647 = vmatpush1.bf16.msra.mxu0 0
        %4648 = vmatprep.subr.bf16.mxu0 0
        %4649 = vmatpush1.bf16.msra.mxu0 0
        %4650 = vmatprep.subr.bf16.mxu0 0
        %4651 = vmatpush1.bf16.msra.mxu0 0
        %4652 = vmatprep.subr.bf16.mxu0 0
        %4653 = vmatpush1.bf16.msra.mxu0 0
        %4654 = vmatprep.subr.bf16.mxu0 0
        %4655 = vmatpush1.bf16.msra.mxu0 0
        %4656 = vmatprep.subr.bf16.mxu0 0
        %4657 = vmatpush1.bf16.msra.mxu0 0
        %4658 = vmatprep.mubr.bf16.mxu0 0
        %4659 = vmatmul.mubr.bf16.gmra.mrb[0].mxu0 %v3906
        %v4660 = vpop.f32.mrb[0].mxu0
        %v4661 = vadd.f32 0.0, %v4660
        %v4662 = vpop.f32.mrb[0].mxu0
        %v4663 = vpop.f32.mrb[0].mxu0
        %v4664 = vadd.f32 0.0, %v4663
        %v4665 = vpop.f32.mrb[0].mxu0
        %4666 = vmatprep.mubr.bf16.mxu0 0
        %4667 = vmatmul.mubr.bf16.gmra.mrb[0].mxu0 %v3909
        %v4668 = vpop.f32.mrb[0].mxu0
        %v4669 = vadd.f32 0.0, %v4668
        %v4670 = vpop.f32.mrb[0].mxu0
        %v4671 = vpop.f32.mrb[0].mxu0
        %v4672 = vadd.f32 0.0, %v4671
        %v4673 = vpop.f32.mrb[0].mxu0
        %4674 = vmatprep.mubr.bf16.mxu0 0
        %4675 = vmatmul.mubr.bf16.gmra.mrb[0].mxu0 %v3912
        %v4676 = vpop.f32.mrb[0].mxu0
        %v4677 = vadd.f32 0.0, %v4676
        %v4678 = vpop.f32.mrb[0].mxu0
        %v4679 = vpop.f32.mrb[0].mxu0
        %v4680 = vadd.f32 0.0, %v4679
        %v4681 = vpop.f32.mrb[0].mxu0
        %4682 = vmatprep.mubr.bf16.mxu0 0
        %4683 = vmatmul.mubr.bf16.gmra.mrb[0].mxu0 %v3915
        %v4684 = vpop.f32.mrb[0].mxu0
        %v4685 = vadd.f32 0.0, %v4684
        %v4686 = vpop.f32.mrb[0].mxu0
        %v4687 = vpop.f32.mrb[0].mxu0
        %v4688 = vadd.f32 0.0, %v4687
        %v4689 = vpop.f32.mrb[0].mxu0
        %4690 = vmatprep.mubr.bf16.mxu0 0
        %4691 = vmatmul.mubr.bf16.gmra.mrb[0].mxu0 %v3918
        %v4692 = vpop.f32.mrb[0].mxu0
        %v4693 = vadd.f32 0.0, %v4692
        %v4694 = vpop.f32.mrb[0].mxu0
        %v4695 = vpop.f32.mrb[0].mxu0
        %v4696 = vadd.f32 0.0, %v4695
        %v4697 = vpop.f32.mrb[0].mxu0
        %4698 = vmatprep.mubr.bf16.mxu0 0
        %4699 = vmatmul.mubr.bf16.gmra.mrb[0].mxu0 %v3921
        %v4700 = vpop.f32.mrb[0].mxu0
        %v4701 = vadd.f32 0.0, %v4700
        %v4702 = vpop.f32.mrb[0].mxu0
        %v4703 = vpop.f32.mrb[0].mxu0
        %v4704 = vadd.f32 0.0, %v4703
        %v4705 = vpop.f32.mrb[0].mxu0
        %4706 = vmatprep.mubr.bf16.mxu0 0
        %4707 = vmatmul.mubr.bf16.gmra.mrb[0].mxu0 %v3924
        %v4708 = vpop.f32.mrb[0].mxu0
        %v4709 = vadd.f32 0.0, %v4708
        %v4710 = vpop.f32.mrb[0].mxu0
        %v4711 = vpop.f32.mrb[0].mxu0
        %v4712 = vadd.f32 0.0, %v4711
        %v4713 = vpop.f32.mrb[0].mxu0
        %4714 = vmatprep.mubr.bf16.mxu0 0
        %4715 = vmatmul.mubr.bf16.gmra.mrb[0].mxu0 %v3927
        %v4716 = vpop.f32.mrb[0].mxu0
        %v4717 = vadd.f32 0.0, %v4716
        %v4718 = vpop.f32.mrb[0].mxu0
        %v4719 = vpop.f32.mrb[0].mxu0
        %v4720 = vadd.f32 0.0, %v4719
        %v4721 = vpop.f32.mrb[0].mxu0
        %4722 = vmatprep.mubr.bf16.mxu0 0
        %4723 = vmatmul.mubr.bf16.gmra.mrb[0].mxu0 %v3930
        %v4724 = vpop.f32.mrb[0].mxu0
        %v4725 = vadd.f32 0.0, %v4724
        %v4726 = vpop.f32.mrb[0].mxu0
        %v4727 = vpop.f32.mrb[0].mxu0
        %v4728 = vadd.f32 0.0, %v4727
        %v4729 = vpop.f32.mrb[0].mxu0
        %4730 = vmatprep.mubr.bf16.mxu0 0
        %4731 = vmatmul.mubr.bf16.gmra.mrb[0].mxu0 %v3933
        %v4732 = vpop.f32.mrb[0].mxu0
        %v4733 = vadd.f32 0.0, %v4732
        %v4734 = vpop.f32.mrb[0].mxu0
        %v4735 = vpop.f32.mrb[0].mxu0
        %v4736 = vadd.f32 0.0, %v4735
        %v4737 = vpop.f32.mrb[0].mxu0
        %4738 = vmatprep.mubr.bf16.mxu0 0
        %4739 = vmatmul.mubr.bf16.gmra.mrb[0].mxu0 %v3936
        %v4740 = vpop.f32.mrb[0].mxu0
        %v4741 = vadd.f32 0.0, %v4740
        %v4742 = vpop.f32.mrb[0].mxu0
        %v4743 = vpop.f32.mrb[0].mxu0
        %v4744 = vadd.f32 0.0, %v4743
        %v4745 = vpop.f32.mrb[0].mxu0
        %4746 = vmatprep.mubr.bf16.mxu0 0
        %4747 = vmatmul.mubr.bf16.gmra.mrb[0].mxu0 %v3939
        %v4748 = vpop.f32.mrb[0].mxu0
        %v4749 = vadd.f32 0.0, %v4748
        %v4750 = vpop.f32.mrb[0].mxu0
        %v4751 = vpop.f32.mrb[0].mxu0
        %v4752 = vadd.f32 0.0, %v4751
        %v4753 = vpop.f32.mrb[0].mxu0
        %4754 = vmatprep.mubr.bf16.mxu0 0
        %4755 = vmatmul.mubr.bf16.gmra.mrb[0].mxu0 %v3942
        %v4756 = vpop.f32.mrb[0].mxu0
        %v4757 = vadd.f32 0.0, %v4756
        %v4758 = vpop.f32.mrb[0].mxu0
        %v4759 = vpop.f32.mrb[0].mxu0
        %v4760 = vadd.f32 0.0, %v4759
        %v4761 = vpop.f32.mrb[0].mxu0
        %4762 = vmatprep.mubr.bf16.mxu0 0
        %4763 = vmatmul.mubr.bf16.gmra.mrb[0].mxu0 %v3945
        %v4764 = vpop.f32.mrb[0].mxu0
        %v4765 = vadd.f32 0.0, %v4764
        %v4766 = vpop.f32.mrb[0].mxu0
        %v4767 = vpop.f32.mrb[0].mxu0
        %v4768 = vadd.f32 0.0, %v4767
        %v4769 = vpop.f32.mrb[0].mxu0
        %4770 = vmatprep.mubr.bf16.mxu0 0
        %4771 = vmatmul.mubr.bf16.gmra.mrb[0].mxu0 %v3948
        %v4772 = vpop.f32.mrb[0].mxu0
        %v4773 = vadd.f32 0.0, %v4772
        %v4774 = vpop.f32.mrb[0].mxu0
        %v4775 = vpop.f32.mrb[0].mxu0
        %v4776 = vadd.f32 0.0, %v4775
        %v4777 = vpop.f32.mrb[0].mxu0
        %4778 = vmatprep.mubr.bf16.mxu0 0
        %4779 = vmatmul.mubr.bf16.gmra.mrb[0].mxu0 %v4624
        %v4780 = vpop.f32.mrb[0].mxu0
        %v4781 = vadd.f32 0.0, %v4780
        %v4782 = vpop.f32.mrb[0].mxu0
        %v4783 = vpop.f32.mrb[0].mxu0
        %v4784 = vadd.f32 0.0, %v4783
        %v4785 = vpop.f32.mrb[0].mxu0
        %4786 = vdwg.mxu0
        %v4787 = vadd.f32 %v4562, %v4661
        %v4788 = vadd.f32 %v4563, %v4664
        %v4789 = vadd.f32 %v4564, %v4669
        %v4790 = vadd.f32 %v4565, %v4672
        %v4791 = vadd.f32 %v4566, %v4677
        %v4792 = vadd.f32 %v4567, %v4680
        %v4793 = vadd.f32 %v4568, %v4685
        %v4794 = vadd.f32 %v4569, %v4688
        %v4795 = vadd.f32 %v4570, %v4693
        %v4796 = vadd.f32 %v4571, %v4696
        %v4797 = vadd.f32 %v4572, %v4701
        %v4798 = vadd.f32 %v4573, %v4704
        %v4799 = vadd.f32 %v4574, %v4709
        %v4800 = vadd.f32 %v4575, %v4712
        %v4801 = vadd.f32 %v4576, %v4717
        %v4802 = vadd.f32 %v4577, %v4720
        %v4803 = vadd.f32 %v4578, %v4725
        %v4804 = vadd.f32 %v4579, %v4728
        %v4805 = vadd.f32 %v4580, %v4733
        %v4806 = vadd.f32 %v4581, %v4736
        %v4807 = vadd.f32 %v4582, %v4741
        %v4808 = vadd.f32 %v4583, %v4744
        %v4809 = vadd.f32 %v4584, %v4749
        %v4810 = vadd.f32 %v4585, %v4752
        %v4811 = vadd.f32 %v4586, %v4757
        %v4812 = vadd.f32 %v4587, %v4760
        %v4813 = vadd.f32 %v4588, %v4765
        %v4814 = vadd.f32 %v4589, %v4768
        %v4815 = vadd.f32 %v4590, %v4773
        %v4816 = vadd.f32 %v4591, %v4776
        %v4817 = vadd.f32 %v4592, %v4781
        %v4818 = vadd.f32 %v4593, %v4784
        %v4827 = vunpack.c.l.b16 %v3042
        %v4828 = vunpack.c.l.b16 %v3043
        %v4829 = vunpack.c.l.b16 %v3044
        %v4830 = vunpack.c.l.b16 %v3045
        %v4831 = vunpack.c.l.b16 %v3046
        %v4832 = vunpack.c.l.b16 %v3047
        %v4833 = vunpack.c.l.b16 %v3048
        %v4834 = vunpack.c.l.b16 %v3049
        %v4835 = vpack.c.b16 %v4828, %v4827
        %v4836 = vpack.c.b16 %v4830, %v4829
        %v4837 = vpack.c.b16 %v4832, %v4831
        %v4838 = vpack.c.b16 %v4834, %v4833
        %v4844 = vsel %vm388, %v3154, 0
        %4846 = vmatprep.subr.bf16.mxu0 0
        %4847 = vmatpush1.bf16.msra.mxu0 %v4835
        %4848 = vmatprep.subr.bf16.mxu0 0
        %4849 = vmatpush1.bf16.msra.mxu0 %v4836
        %4850 = vmatprep.subr.bf16.mxu0 0
        %4851 = vmatpush1.bf16.msra.mxu0 %v4837
        %4852 = vmatprep.subr.bf16.mxu0 0
        %4853 = vmatpush1.bf16.msra.mxu0 %v4838
        %4854 = vmatprep.subr.bf16.mxu0 0
        %4855 = vmatpush1.bf16.msra.mxu0 0
        %4856 = vmatprep.subr.bf16.mxu0 0
        %4857 = vmatpush1.bf16.msra.mxu0 0
        %4858 = vmatprep.subr.bf16.mxu0 0
        %4859 = vmatpush1.bf16.msra.mxu0 0
        %4860 = vmatprep.subr.bf16.mxu0 0
        %4861 = vmatpush1.bf16.msra.mxu0 0
        %4862 = vmatprep.subr.bf16.mxu0 0
        %4863 = vmatpush1.bf16.msra.mxu0 0
        %4864 = vmatprep.subr.bf16.mxu0 0
        %4865 = vmatpush1.bf16.msra.mxu0 0
        %4866 = vmatprep.subr.bf16.mxu0 0
        %4867 = vmatpush1.bf16.msra.mxu0 0
        %4868 = vmatprep.subr.bf16.mxu0 0
        %4869 = vmatpush1.bf16.msra.mxu0 0
        %4870 = vmatprep.subr.bf16.mxu0 0
        %4871 = vmatpush1.bf16.msra.mxu0 0
        %4872 = vmatprep.subr.bf16.mxu0 0
        %4873 = vmatpush1.bf16.msra.mxu0 0
        %4874 = vmatprep.subr.bf16.mxu0 0
        %4875 = vmatpush1.bf16.msra.mxu0 0
        %4876 = vmatprep.subr.bf16.mxu0 0
        %4877 = vmatpush1.bf16.msra.mxu0 0
        %4878 = vmatprep.mubr.bf16.mxu0 0
        %4879 = vmatmul.mubr.bf16.gmra.mrb[0].mxu0 %v3609
        %v4880 = vpop.f32.mrb[0].mxu0
        %v4881 = vadd.f32 0.0, %v4880
        %v4882 = vpop.f32.mrb[0].mxu0
        %v4883 = vpop.f32.mrb[0].mxu0
        %v4884 = vadd.f32 0.0, %v4883
        %v4885 = vpop.f32.mrb[0].mxu0
        %4886 = vmatprep.mubr.bf16.mxu0 0
        %4887 = vmatmul.mubr.bf16.gmra.mrb[0].mxu0 %v3611
        %v4888 = vpop.f32.mrb[0].mxu0
        %v4889 = vadd.f32 0.0, %v4888
        %v4890 = vpop.f32.mrb[0].mxu0
        %v4891 = vpop.f32.mrb[0].mxu0
        %v4892 = vadd.f32 0.0, %v4891
        %v4893 = vpop.f32.mrb[0].mxu0
        %4894 = vmatprep.mubr.bf16.mxu0 0
        %4895 = vmatmul.mubr.bf16.gmra.mrb[0].mxu0 %v3613
        %v4896 = vpop.f32.mrb[0].mxu0
        %v4897 = vadd.f32 0.0, %v4896
        %v4898 = vpop.f32.mrb[0].mxu0
        %v4899 = vpop.f32.mrb[0].mxu0
        %v4900 = vadd.f32 0.0, %v4899
        %v4901 = vpop.f32.mrb[0].mxu0
        %4902 = vmatprep.mubr.bf16.mxu0 0
        %4903 = vmatmul.mubr.bf16.gmra.mrb[0].mxu0 %v3615
        %v4904 = vpop.f32.mrb[0].mxu0
        %v4905 = vadd.f32 0.0, %v4904
        %v4906 = vpop.f32.mrb[0].mxu0
        %v4907 = vpop.f32.mrb[0].mxu0
        %v4908 = vadd.f32 0.0, %v4907
        %v4909 = vpop.f32.mrb[0].mxu0
        %4910 = vmatprep.mubr.bf16.mxu0 0
        %4911 = vmatmul.mubr.bf16.gmra.mrb[0].mxu0 %v3617
        %v4912 = vpop.f32.mrb[0].mxu0
        %v4913 = vadd.f32 0.0, %v4912
        %v4914 = vpop.f32.mrb[0].mxu0
        %v4915 = vpop.f32.mrb[0].mxu0
        %v4916 = vadd.f32 0.0, %v4915
        %v4917 = vpop.f32.mrb[0].mxu0
        %4918 = vmatprep.mubr.bf16.mxu0 0
        %4919 = vmatmul.mubr.bf16.gmra.mrb[0].mxu0 %v3619
        %v4920 = vpop.f32.mrb[0].mxu0
        %v4921 = vadd.f32 0.0, %v4920
        %v4922 = vpop.f32.mrb[0].mxu0
        %v4923 = vpop.f32.mrb[0].mxu0
        %v4924 = vadd.f32 0.0, %v4923
        %v4925 = vpop.f32.mrb[0].mxu0
        %4926 = vmatprep.mubr.bf16.mxu0 0
        %4927 = vmatmul.mubr.bf16.gmra.mrb[0].mxu0 %v3621
        %v4928 = vpop.f32.mrb[0].mxu0
        %v4929 = vadd.f32 0.0, %v4928
        %v4930 = vpop.f32.mrb[0].mxu0
        %v4931 = vpop.f32.mrb[0].mxu0
        %v4932 = vadd.f32 0.0, %v4931
        %v4933 = vpop.f32.mrb[0].mxu0
        %4934 = vmatprep.mubr.bf16.mxu0 0
        %4935 = vmatmul.mubr.bf16.gmra.mrb[0].mxu0 %v3623
        %v4936 = vpop.f32.mrb[0].mxu0
        %v4937 = vadd.f32 0.0, %v4936
        %v4938 = vpop.f32.mrb[0].mxu0
        %v4939 = vpop.f32.mrb[0].mxu0
        %v4940 = vadd.f32 0.0, %v4939
        %v4941 = vpop.f32.mrb[0].mxu0
        %4942 = vmatprep.mubr.bf16.mxu0 0
        %4943 = vmatmul.mubr.bf16.gmra.mrb[0].mxu0 %v3625
        %v4944 = vpop.f32.mrb[0].mxu0
        %v4945 = vadd.f32 0.0, %v4944
        %v4946 = vpop.f32.mrb[0].mxu0
        %v4947 = vpop.f32.mrb[0].mxu0
        %v4948 = vadd.f32 0.0, %v4947
        %v4949 = vpop.f32.mrb[0].mxu0
        %4950 = vmatprep.mubr.bf16.mxu0 0
        %4951 = vmatmul.mubr.bf16.gmra.mrb[0].mxu0 %v3627
        %v4952 = vpop.f32.mrb[0].mxu0
        %v4953 = vadd.f32 0.0, %v4952
        %v4954 = vpop.f32.mrb[0].mxu0
        %v4955 = vpop.f32.mrb[0].mxu0
        %v4956 = vadd.f32 0.0, %v4955
        %v4957 = vpop.f32.mrb[0].mxu0
        %4958 = vmatprep.mubr.bf16.mxu0 0
        %4959 = vmatmul.mubr.bf16.gmra.mrb[0].mxu0 %v3629
        %v4960 = vpop.f32.mrb[0].mxu0
        %v4961 = vadd.f32 0.0, %v4960
        %v4962 = vpop.f32.mrb[0].mxu0
        %v4963 = vpop.f32.mrb[0].mxu0
        %v4964 = vadd.f32 0.0, %v4963
        %v4965 = vpop.f32.mrb[0].mxu0
        %4966 = vmatprep.mubr.bf16.mxu0 0
        %4967 = vmatmul.mubr.bf16.gmra.mrb[0].mxu0 %v3631
        %v4968 = vpop.f32.mrb[0].mxu0
        %v4969 = vadd.f32 0.0, %v4968
        %v4970 = vpop.f32.mrb[0].mxu0
        %v4971 = vpop.f32.mrb[0].mxu0
        %v4972 = vadd.f32 0.0, %v4971
        %v4973 = vpop.f32.mrb[0].mxu0
        %4974 = vmatprep.mubr.bf16.mxu0 0
        %4975 = vmatmul.mubr.bf16.gmra.mrb[0].mxu0 %v3633
        %v4976 = vpop.f32.mrb[0].mxu0
        %v4977 = vadd.f32 0.0, %v4976
        %v4978 = vpop.f32.mrb[0].mxu0
        %v4979 = vpop.f32.mrb[0].mxu0
        %v4980 = vadd.f32 0.0, %v4979
        %v4981 = vpop.f32.mrb[0].mxu0
        %4982 = vmatprep.mubr.bf16.mxu0 0
        %4983 = vmatmul.mubr.bf16.gmra.mrb[0].mxu0 %v3635
        %v4984 = vpop.f32.mrb[0].mxu0
        %v4985 = vadd.f32 0.0, %v4984
        %v4986 = vpop.f32.mrb[0].mxu0
        %v4987 = vpop.f32.mrb[0].mxu0
        %v4988 = vadd.f32 0.0, %v4987
        %v4989 = vpop.f32.mrb[0].mxu0
        %4990 = vmatprep.mubr.bf16.mxu0 0
        %4991 = vmatmul.mubr.bf16.gmra.mrb[0].mxu0 %v4168
        %v4992 = vpop.f32.mrb[0].mxu0
        %v4993 = vadd.f32 0.0, %v4992
        %v4994 = vpop.f32.mrb[0].mxu0
        %v4995 = vpop.f32.mrb[0].mxu0
        %v4996 = vadd.f32 0.0, %v4995
        %v4997 = vpop.f32.mrb[0].mxu0
        %4998 = vmatprep.mubr.bf16.mxu0 0
        %4999 = vmatmul.mubr.bf16.gmra.mrb[0].mxu0 %v4844
        %v5000 = vpop.f32.mrb[0].mxu0
        %v5001 = vadd.f32 0.0, %v5000
        %v5002 = vpop.f32.mrb[0].mxu0
        %v5003 = vpop.f32.mrb[0].mxu0
        %v5004 = vadd.f32 0.0, %v5003
        %v5005 = vpop.f32.mrb[0].mxu0
        %5006 = vdwg.mxu0
        %v5007 = vadd.f32 %v4787, %v4881
        %v5008 = vadd.f32 %v4788, %v4884
        %v5009 = vadd.f32 %v4789, %v4889
        %v5010 = vadd.f32 %v4790, %v4892
        %v5011 = vadd.f32 %v4791, %v4897
        %v5012 = vadd.f32 %v4792, %v4900
        %v5013 = vadd.f32 %v4793, %v4905
        %v5014 = vadd.f32 %v4794, %v4908
        %v5015 = vadd.f32 %v4795, %v4913
        %v5016 = vadd.f32 %v4796, %v4916
        %v5017 = vadd.f32 %v4797, %v4921
        %v5018 = vadd.f32 %v4798, %v4924
        %v5019 = vadd.f32 %v4799, %v4929
        %v5020 = vadd.f32 %v4800, %v4932
        %v5021 = vadd.f32 %v4801, %v4937
        %v5022 = vadd.f32 %v4802, %v4940
        %v5023 = vadd.f32 %v4803, %v4945
        %v5024 = vadd.f32 %v4804, %v4948
        %v5025 = vadd.f32 %v4805, %v4953
        %v5026 = vadd.f32 %v4806, %v4956
        %v5027 = vadd.f32 %v4807, %v4961
        %v5028 = vadd.f32 %v4808, %v4964
        %v5029 = vadd.f32 %v4809, %v4969
        %v5030 = vadd.f32 %v4810, %v4972
        %v5031 = vadd.f32 %v4811, %v4977
        %v5032 = vadd.f32 %v4812, %v4980
        %v5033 = vadd.f32 %v4813, %v4985
        %v5034 = vadd.f32 %v4814, %v4988
        %v5035 = vadd.f32 %v4815, %v4993
        %v5036 = vadd.f32 %v4816, %v4996
        %v5037 = vadd.f32 %v4817, %v5001
        %v5038 = vadd.f32 %v4818, %v5004
        %v5039 = vshrl.u32 %v3154, 16
        %v5041 = vshll.u32 %v3154, 16
        %v5043 = vrot.slane %v5041, 1
        %v5044 = vor.u32 %v5039, %v5043
        %v5046 = vshll.u32 %v3155, 16
        %v5048 = vrot.slane %v5046, 1
        %v5049 = vsel %vm657, %v5044, %v5048
        %v5058 = vunpack.c.l.b16 %v3050
        %v5059 = vunpack.c.l.b16 %v3051
        %v5060 = vunpack.c.l.b16 %v3052
        %v5061 = vunpack.c.l.b16 %v3053
        %v5062 = vunpack.c.l.b16 %v3054
        %v5063 = vunpack.c.l.b16 %v3055
        %v5064 = vunpack.c.l.b16 %v3056
        %v5065 = vunpack.c.l.b16 %v3057
        %v5066 = vpack.c.b16 %v5059, %v5058
        %v5067 = vpack.c.b16 %v5061, %v5060
        %v5068 = vpack.c.b16 %v5063, %v5062
        %v5069 = vpack.c.b16 %v5065, %v5064
        %v5075 = vsel %vm388, %v5049, 0
        %5077 = vmatprep.subr.bf16.mxu0 0
        %5078 = vmatpush1.bf16.msra.mxu0 %v5066
        %5079 = vmatprep.subr.bf16.mxu0 0
        %5080 = vmatpush1.bf16.msra.mxu0 %v5067
        %5081 = vmatprep.subr.bf16.mxu0 0
        %5082 = vmatpush1.bf16.msra.mxu0 %v5068
        %5083 = vmatprep.subr.bf16.mxu0 0
        %5084 = vmatpush1.bf16.msra.mxu0 %v5069
        %5085 = vmatprep.subr.bf16.mxu0 0
        %5086 = vmatpush1.bf16.msra.mxu0 0
        %5087 = vmatprep.subr.bf16.mxu0 0
        %5088 = vmatpush1.bf16.msra.mxu0 0
        %5089 = vmatprep.subr.bf16.mxu0 0
        %5090 = vmatpush1.bf16.msra.mxu0 0
        %5091 = vmatprep.subr.bf16.mxu0 0
        %5092 = vmatpush1.bf16.msra.mxu0 0
        %5093 = vmatprep.subr.bf16.mxu0 0
        %5094 = vmatpush1.bf16.msra.mxu0 0
        %5095 = vmatprep.subr.bf16.mxu0 0
        %5096 = vmatpush1.bf16.msra.mxu0 0
        %5097 = vmatprep.subr.bf16.mxu0 0
        %5098 = vmatpush1.bf16.msra.mxu0 0
        %5099 = vmatprep.subr.bf16.mxu0 0
        %5100 = vmatpush1.bf16.msra.mxu0 0
        %5101 = vmatprep.subr.bf16.mxu0 0
        %5102 = vmatpush1.bf16.msra.mxu0 0
        %5103 = vmatprep.subr.bf16.mxu0 0
        %5104 = vmatpush1.bf16.msra.mxu0 0
        %5105 = vmatprep.subr.bf16.mxu0 0
        %5106 = vmatpush1.bf16.msra.mxu0 0
        %5107 = vmatprep.subr.bf16.mxu0 0
        %5108 = vmatpush1.bf16.msra.mxu0 0
        %5109 = vmatprep.mubr.bf16.mxu0 0
        %5110 = vmatmul.mubr.bf16.gmra.mrb[0].mxu0 %v3379
        %v5111 = vpop.f32.mrb[0].mxu0
        %v5112 = vadd.f32 0.0, %v5111
        %v5113 = vpop.f32.mrb[0].mxu0
        %v5114 = vpop.f32.mrb[0].mxu0
        %v5115 = vadd.f32 0.0, %v5114
        %v5116 = vpop.f32.mrb[0].mxu0
        %5117 = vmatprep.mubr.bf16.mxu0 0
        %5118 = vmatmul.mubr.bf16.gmra.mrb[0].mxu0 %v3382
        %v5119 = vpop.f32.mrb[0].mxu0
        %v5120 = vadd.f32 0.0, %v5119
        %v5121 = vpop.f32.mrb[0].mxu0
        %v5122 = vpop.f32.mrb[0].mxu0
        %v5123 = vadd.f32 0.0, %v5122
        %v5124 = vpop.f32.mrb[0].mxu0
        %5125 = vmatprep.mubr.bf16.mxu0 0
        %5126 = vmatmul.mubr.bf16.gmra.mrb[0].mxu0 %v3385
        %v5127 = vpop.f32.mrb[0].mxu0
        %v5128 = vadd.f32 0.0, %v5127
        %v5129 = vpop.f32.mrb[0].mxu0
        %v5130 = vpop.f32.mrb[0].mxu0
        %v5131 = vadd.f32 0.0, %v5130
        %v5132 = vpop.f32.mrb[0].mxu0
        %5133 = vmatprep.mubr.bf16.mxu0 0
        %5134 = vmatmul.mubr.bf16.gmra.mrb[0].mxu0 %v3388
        %v5135 = vpop.f32.mrb[0].mxu0
        %v5136 = vadd.f32 0.0, %v5135
        %v5137 = vpop.f32.mrb[0].mxu0
        %v5138 = vpop.f32.mrb[0].mxu0
        %v5139 = vadd.f32 0.0, %v5138
        %v5140 = vpop.f32.mrb[0].mxu0
        %5141 = vmatprep.mubr.bf16.mxu0 0
        %5142 = vmatmul.mubr.bf16.gmra.mrb[0].mxu0 %v3391
        %v5143 = vpop.f32.mrb[0].mxu0
        %v5144 = vadd.f32 0.0, %v5143
        %v5145 = vpop.f32.mrb[0].mxu0
        %v5146 = vpop.f32.mrb[0].mxu0
        %v5147 = vadd.f32 0.0, %v5146
        %v5148 = vpop.f32.mrb[0].mxu0
        %5149 = vmatprep.mubr.bf16.mxu0 0
        %5150 = vmatmul.mubr.bf16.gmra.mrb[0].mxu0 %v3394
        %v5151 = vpop.f32.mrb[0].mxu0
        %v5152 = vadd.f32 0.0, %v5151
        %v5153 = vpop.f32.mrb[0].mxu0
        %v5154 = vpop.f32.mrb[0].mxu0
        %v5155 = vadd.f32 0.0, %v5154
        %v5156 = vpop.f32.mrb[0].mxu0
        %5157 = vmatprep.mubr.bf16.mxu0 0
        %5158 = vmatmul.mubr.bf16.gmra.mrb[0].mxu0 %v3397
        %v5159 = vpop.f32.mrb[0].mxu0
        %v5160 = vadd.f32 0.0, %v5159
        %v5161 = vpop.f32.mrb[0].mxu0
        %v5162 = vpop.f32.mrb[0].mxu0
        %v5163 = vadd.f32 0.0, %v5162
        %v5164 = vpop.f32.mrb[0].mxu0
        %5165 = vmatprep.mubr.bf16.mxu0 0
        %5166 = vmatmul.mubr.bf16.gmra.mrb[0].mxu0 %v3400
        %v5167 = vpop.f32.mrb[0].mxu0
        %v5168 = vadd.f32 0.0, %v5167
        %v5169 = vpop.f32.mrb[0].mxu0
        %v5170 = vpop.f32.mrb[0].mxu0
        %v5171 = vadd.f32 0.0, %v5170
        %v5172 = vpop.f32.mrb[0].mxu0
        %5173 = vmatprep.mubr.bf16.mxu0 0
        %5174 = vmatmul.mubr.bf16.gmra.mrb[0].mxu0 %v3403
        %v5175 = vpop.f32.mrb[0].mxu0
        %v5176 = vadd.f32 0.0, %v5175
        %v5177 = vpop.f32.mrb[0].mxu0
        %v5178 = vpop.f32.mrb[0].mxu0
        %v5179 = vadd.f32 0.0, %v5178
        %v5180 = vpop.f32.mrb[0].mxu0
        %5181 = vmatprep.mubr.bf16.mxu0 0
        %5182 = vmatmul.mubr.bf16.gmra.mrb[0].mxu0 %v3406
        %v5183 = vpop.f32.mrb[0].mxu0
        %v5184 = vadd.f32 0.0, %v5183
        %v5185 = vpop.f32.mrb[0].mxu0
        %v5186 = vpop.f32.mrb[0].mxu0
        %v5187 = vadd.f32 0.0, %v5186
        %v5188 = vpop.f32.mrb[0].mxu0
        %5189 = vmatprep.mubr.bf16.mxu0 0
        %5190 = vmatmul.mubr.bf16.gmra.mrb[0].mxu0 %v3409
        %v5191 = vpop.f32.mrb[0].mxu0
        %v5192 = vadd.f32 0.0, %v5191
        %v5193 = vpop.f32.mrb[0].mxu0
        %v5194 = vpop.f32.mrb[0].mxu0
        %v5195 = vadd.f32 0.0, %v5194
        %v5196 = vpop.f32.mrb[0].mxu0
        %5197 = vmatprep.mubr.bf16.mxu0 0
        %5198 = vmatmul.mubr.bf16.gmra.mrb[0].mxu0 %v3412
        %v5199 = vpop.f32.mrb[0].mxu0
        %v5200 = vadd.f32 0.0, %v5199
        %v5201 = vpop.f32.mrb[0].mxu0
        %v5202 = vpop.f32.mrb[0].mxu0
        %v5203 = vadd.f32 0.0, %v5202
        %v5204 = vpop.f32.mrb[0].mxu0
        %5205 = vmatprep.mubr.bf16.mxu0 0
        %5206 = vmatmul.mubr.bf16.gmra.mrb[0].mxu0 %v3415
        %v5207 = vpop.f32.mrb[0].mxu0
        %v5208 = vadd.f32 0.0, %v5207
        %v5209 = vpop.f32.mrb[0].mxu0
        %v5210 = vpop.f32.mrb[0].mxu0
        %v5211 = vadd.f32 0.0, %v5210
        %v5212 = vpop.f32.mrb[0].mxu0
        %5213 = vmatprep.mubr.bf16.mxu0 0
        %5214 = vmatmul.mubr.bf16.gmra.mrb[0].mxu0 %v3418
        %v5215 = vpop.f32.mrb[0].mxu0
        %v5216 = vadd.f32 0.0, %v5215
        %v5217 = vpop.f32.mrb[0].mxu0
        %v5218 = vpop.f32.mrb[0].mxu0
        %v5219 = vadd.f32 0.0, %v5218
        %v5220 = vpop.f32.mrb[0].mxu0
        %5221 = vmatprep.mubr.bf16.mxu0 0
        %5222 = vmatmul.mubr.bf16.gmra.mrb[0].mxu0 %v4399
        %v5223 = vpop.f32.mrb[0].mxu0
        %v5224 = vadd.f32 0.0, %v5223
        %v5225 = vpop.f32.mrb[0].mxu0
        %v5226 = vpop.f32.mrb[0].mxu0
        %v5227 = vadd.f32 0.0, %v5226
        %v5228 = vpop.f32.mrb[0].mxu0
        %5229 = vmatprep.mubr.bf16.mxu0 0
        %5230 = vmatmul.mubr.bf16.gmra.mrb[0].mxu0 %v5075
        %v5231 = vpop.f32.mrb[0].mxu0
        %v5232 = vadd.f32 0.0, %v5231
        %v5233 = vpop.f32.mrb[0].mxu0
        %v5234 = vpop.f32.mrb[0].mxu0
        %v5235 = vadd.f32 0.0, %v5234
        %v5236 = vpop.f32.mrb[0].mxu0
        %5237 = vdwg.mxu0
        %v5238 = vadd.f32 %v5007, %v5112
        %v5239 = vadd.f32 %v5008, %v5115
        %v5240 = vadd.f32 %v5009, %v5120
        %v5241 = vadd.f32 %v5010, %v5123
        %v5242 = vadd.f32 %v5011, %v5128
        %v5243 = vadd.f32 %v5012, %v5131
        %v5244 = vadd.f32 %v5013, %v5136
        %v5245 = vadd.f32 %v5014, %v5139
        %v5246 = vadd.f32 %v5015, %v5144
        %v5247 = vadd.f32 %v5016, %v5147
        %v5248 = vadd.f32 %v5017, %v5152
        %v5249 = vadd.f32 %v5018, %v5155
        %v5250 = vadd.f32 %v5019, %v5160
        %v5251 = vadd.f32 %v5020, %v5163
        %v5252 = vadd.f32 %v5021, %v5168
        %v5253 = vadd.f32 %v5022, %v5171
        %v5254 = vadd.f32 %v5023, %v5176
        %v5255 = vadd.f32 %v5024, %v5179
        %v5256 = vadd.f32 %v5025, %v5184
        %v5257 = vadd.f32 %v5026, %v5187
        %v5258 = vadd.f32 %v5027, %v5192
        %v5259 = vadd.f32 %v5028, %v5195
        %v5260 = vadd.f32 %v5029, %v5200
        %v5261 = vadd.f32 %v5030, %v5203
        %v5262 = vadd.f32 %v5031, %v5208
        %v5263 = vadd.f32 %v5032, %v5211
        %v5264 = vadd.f32 %v5033, %v5216
        %v5265 = vadd.f32 %v5034, %v5219
        %v5266 = vadd.f32 %v5035, %v5224
        %v5267 = vadd.f32 %v5036, %v5227
        %v5268 = vadd.f32 %v5037, %v5232
        %v5269 = vadd.f32 %v5038, %v5235
        %v5272 = vrot.slane %v3154, 1
        %v5273 = vrot.slane %v3155, 1
        %v5274 = vsel %vm1308, %v5272, %v5273
        %v5283 = vunpack.c.l.b16 %v3058
        %v5284 = vunpack.c.l.b16 %v3059
        %v5285 = vunpack.c.l.b16 %v3060
        %v5286 = vunpack.c.l.b16 %v3061
        %v5287 = vunpack.c.l.b16 %v3062
        %v5288 = vunpack.c.l.b16 %v3063
        %v5289 = vunpack.c.l.b16 %v3064
        %v5290 = vunpack.c.l.b16 %v3065
        %v5291 = vpack.c.b16 %v5284, %v5283
        %v5292 = vpack.c.b16 %v5286, %v5285
        %v5293 = vpack.c.b16 %v5288, %v5287
        %v5294 = vpack.c.b16 %v5290, %v5289
        %v5300 = vsel %vm388, %v5274, 0
        %5302 = vmatprep.subr.bf16.mxu0 0
        %5303 = vmatpush1.bf16.msra.mxu0 %v5291
        %5304 = vmatprep.subr.bf16.mxu0 0
        %5305 = vmatpush1.bf16.msra.mxu0 %v5292
        %5306 = vmatprep.subr.bf16.mxu0 0
        %5307 = vmatpush1.bf16.msra.mxu0 %v5293
        %5308 = vmatprep.subr.bf16.mxu0 0
        %5309 = vmatpush1.bf16.msra.mxu0 %v5294
        %5310 = vmatprep.subr.bf16.mxu0 0
        %5311 = vmatpush1.bf16.msra.mxu0 0
        %5312 = vmatprep.subr.bf16.mxu0 0
        %5313 = vmatpush1.bf16.msra.mxu0 0
        %5314 = vmatprep.subr.bf16.mxu0 0
        %5315 = vmatpush1.bf16.msra.mxu0 0
        %5316 = vmatprep.subr.bf16.mxu0 0
        %5317 = vmatpush1.bf16.msra.mxu0 0
        %5318 = vmatprep.subr.bf16.mxu0 0
        %5319 = vmatpush1.bf16.msra.mxu0 0
        %5320 = vmatprep.subr.bf16.mxu0 0
        %5321 = vmatpush1.bf16.msra.mxu0 0
        %5322 = vmatprep.subr.bf16.mxu0 0
        %5323 = vmatpush1.bf16.msra.mxu0 0
        %5324 = vmatprep.subr.bf16.mxu0 0
        %5325 = vmatpush1.bf16.msra.mxu0 0
        %5326 = vmatprep.subr.bf16.mxu0 0
        %5327 = vmatpush1.bf16.msra.mxu0 0
        %5328 = vmatprep.subr.bf16.mxu0 0
        %5329 = vmatpush1.bf16.msra.mxu0 0
        %5330 = vmatprep.subr.bf16.mxu0 0
        %5331 = vmatpush1.bf16.msra.mxu0 0
        %5332 = vmatprep.subr.bf16.mxu0 0
        %5333 = vmatpush1.bf16.msra.mxu0 0
        %5334 = vmatprep.mubr.bf16.mxu0 0
        %5335 = vmatmul.mubr.bf16.gmra.mrb[0].mxu0 %v3909
        %v5336 = vpop.f32.mrb[0].mxu0
        %v5337 = vadd.f32 0.0, %v5336
        %v5338 = vpop.f32.mrb[0].mxu0
        %v5339 = vpop.f32.mrb[0].mxu0
        %v5340 = vadd.f32 0.0, %v5339
        %v5341 = vpop.f32.mrb[0].mxu0
        %5342 = vmatprep.mubr.bf16.mxu0 0
        %5343 = vmatmul.mubr.bf16.gmra.mrb[0].mxu0 %v3912
        %v5344 = vpop.f32.mrb[0].mxu0
        %v5345 = vadd.f32 0.0, %v5344
        %v5346 = vpop.f32.mrb[0].mxu0
        %v5347 = vpop.f32.mrb[0].mxu0
        %v5348 = vadd.f32 0.0, %v5347
        %v5349 = vpop.f32.mrb[0].mxu0
        %5350 = vmatprep.mubr.bf16.mxu0 0
        %5351 = vmatmul.mubr.bf16.gmra.mrb[0].mxu0 %v3915
        %v5352 = vpop.f32.mrb[0].mxu0
        %v5353 = vadd.f32 0.0, %v5352
        %v5354 = vpop.f32.mrb[0].mxu0
        %v5355 = vpop.f32.mrb[0].mxu0
        %v5356 = vadd.f32 0.0, %v5355
        %v5357 = vpop.f32.mrb[0].mxu0
        %5358 = vmatprep.mubr.bf16.mxu0 0
        %5359 = vmatmul.mubr.bf16.gmra.mrb[0].mxu0 %v3918
        %v5360 = vpop.f32.mrb[0].mxu0
        %v5361 = vadd.f32 0.0, %v5360
        %v5362 = vpop.f32.mrb[0].mxu0
        %v5363 = vpop.f32.mrb[0].mxu0
        %v5364 = vadd.f32 0.0, %v5363
        %v5365 = vpop.f32.mrb[0].mxu0
        %5366 = vmatprep.mubr.bf16.mxu0 0
        %5367 = vmatmul.mubr.bf16.gmra.mrb[0].mxu0 %v3921
        %v5368 = vpop.f32.mrb[0].mxu0
        %v5369 = vadd.f32 0.0, %v5368
        %v5370 = vpop.f32.mrb[0].mxu0
        %v5371 = vpop.f32.mrb[0].mxu0
        %v5372 = vadd.f32 0.0, %v5371
        %v5373 = vpop.f32.mrb[0].mxu0
        %5374 = vmatprep.mubr.bf16.mxu0 0
        %5375 = vmatmul.mubr.bf16.gmra.mrb[0].mxu0 %v3924
        %v5376 = vpop.f32.mrb[0].mxu0
        %v5377 = vadd.f32 0.0, %v5376
        %v5378 = vpop.f32.mrb[0].mxu0
        %v5379 = vpop.f32.mrb[0].mxu0
        %v5380 = vadd.f32 0.0, %v5379
        %v5381 = vpop.f32.mrb[0].mxu0
        %5382 = vmatprep.mubr.bf16.mxu0 0
        %5383 = vmatmul.mubr.bf16.gmra.mrb[0].mxu0 %v3927
        %v5384 = vpop.f32.mrb[0].mxu0
        %v5385 = vadd.f32 0.0, %v5384
        %v5386 = vpop.f32.mrb[0].mxu0
        %v5387 = vpop.f32.mrb[0].mxu0
        %v5388 = vadd.f32 0.0, %v5387
        %v5389 = vpop.f32.mrb[0].mxu0
        %5390 = vmatprep.mubr.bf16.mxu0 0
        %5391 = vmatmul.mubr.bf16.gmra.mrb[0].mxu0 %v3930
        %v5392 = vpop.f32.mrb[0].mxu0
        %v5393 = vadd.f32 0.0, %v5392
        %v5394 = vpop.f32.mrb[0].mxu0
        %v5395 = vpop.f32.mrb[0].mxu0
        %v5396 = vadd.f32 0.0, %v5395
        %v5397 = vpop.f32.mrb[0].mxu0
        %5398 = vmatprep.mubr.bf16.mxu0 0
        %5399 = vmatmul.mubr.bf16.gmra.mrb[0].mxu0 %v3933
        %v5400 = vpop.f32.mrb[0].mxu0
        %v5401 = vadd.f32 0.0, %v5400
        %v5402 = vpop.f32.mrb[0].mxu0
        %v5403 = vpop.f32.mrb[0].mxu0
        %v5404 = vadd.f32 0.0, %v5403
        %v5405 = vpop.f32.mrb[0].mxu0
        %5406 = vmatprep.mubr.bf16.mxu0 0
        %5407 = vmatmul.mubr.bf16.gmra.mrb[0].mxu0 %v3936
        %v5408 = vpop.f32.mrb[0].mxu0
        %v5409 = vadd.f32 0.0, %v5408
        %v5410 = vpop.f32.mrb[0].mxu0
        %v5411 = vpop.f32.mrb[0].mxu0
        %v5412 = vadd.f32 0.0, %v5411
        %v5413 = vpop.f32.mrb[0].mxu0
        %5414 = vmatprep.mubr.bf16.mxu0 0
        %5415 = vmatmul.mubr.bf16.gmra.mrb[0].mxu0 %v3939
        %v5416 = vpop.f32.mrb[0].mxu0
        %v5417 = vadd.f32 0.0, %v5416
        %v5418 = vpop.f32.mrb[0].mxu0
        %v5419 = vpop.f32.mrb[0].mxu0
        %v5420 = vadd.f32 0.0, %v5419
        %v5421 = vpop.f32.mrb[0].mxu0
        %5422 = vmatprep.mubr.bf16.mxu0 0
        %5423 = vmatmul.mubr.bf16.gmra.mrb[0].mxu0 %v3942
        %v5424 = vpop.f32.mrb[0].mxu0
        %v5425 = vadd.f32 0.0, %v5424
        %v5426 = vpop.f32.mrb[0].mxu0
        %v5427 = vpop.f32.mrb[0].mxu0
        %v5428 = vadd.f32 0.0, %v5427
        %v5429 = vpop.f32.mrb[0].mxu0
        %5430 = vmatprep.mubr.bf16.mxu0 0
        %5431 = vmatmul.mubr.bf16.gmra.mrb[0].mxu0 %v3945
        %v5432 = vpop.f32.mrb[0].mxu0
        %v5433 = vadd.f32 0.0, %v5432
        %v5434 = vpop.f32.mrb[0].mxu0
        %v5435 = vpop.f32.mrb[0].mxu0
        %v5436 = vadd.f32 0.0, %v5435
        %v5437 = vpop.f32.mrb[0].mxu0
        %5438 = vmatprep.mubr.bf16.mxu0 0
        %5439 = vmatmul.mubr.bf16.gmra.mrb[0].mxu0 %v3948
        %v5440 = vpop.f32.mrb[0].mxu0
        %v5441 = vadd.f32 0.0, %v5440
        %v5442 = vpop.f32.mrb[0].mxu0
        %v5443 = vpop.f32.mrb[0].mxu0
        %v5444 = vadd.f32 0.0, %v5443
        %v5445 = vpop.f32.mrb[0].mxu0
        %5446 = vmatprep.mubr.bf16.mxu0 0
        %5447 = vmatmul.mubr.bf16.gmra.mrb[0].mxu0 %v4624
        %v5448 = vpop.f32.mrb[0].mxu0
        %v5449 = vadd.f32 0.0, %v5448
        %v5450 = vpop.f32.mrb[0].mxu0
        %v5451 = vpop.f32.mrb[0].mxu0
        %v5452 = vadd.f32 0.0, %v5451
        %v5453 = vpop.f32.mrb[0].mxu0
        %5454 = vmatprep.mubr.bf16.mxu0 0
        %5455 = vmatmul.mubr.bf16.gmra.mrb[0].mxu0 %v5300
        %v5456 = vpop.f32.mrb[0].mxu0
        %v5457 = vadd.f32 0.0, %v5456
        %v5458 = vpop.f32.mrb[0].mxu0
        %v5459 = vpop.f32.mrb[0].mxu0
        %v5460 = vadd.f32 0.0, %v5459
        %v5461 = vpop.f32.mrb[0].mxu0
        %5462 = vdwg.mxu0
        %v5463 = vadd.f32 %v5238, %v5337
        %v5464 = vadd.f32 %v5239, %v5340
        %v5465 = vadd.f32 %v5240, %v5345
        %v5466 = vadd.f32 %v5241, %v5348
        %v5467 = vadd.f32 %v5242, %v5353
        %v5468 = vadd.f32 %v5243, %v5356
        %v5469 = vadd.f32 %v5244, %v5361
        %v5470 = vadd.f32 %v5245, %v5364
        %v5471 = vadd.f32 %v5246, %v5369
        %v5472 = vadd.f32 %v5247, %v5372
        %v5473 = vadd.f32 %v5248, %v5377
        %v5474 = vadd.f32 %v5249, %v5380
        %v5475 = vadd.f32 %v5250, %v5385
        %v5476 = vadd.f32 %v5251, %v5388
        %v5477 = vadd.f32 %v5252, %v5393
        %v5478 = vadd.f32 %v5253, %v5396
        %v5479 = vadd.f32 %v5254, %v5401
        %v5480 = vadd.f32 %v5255, %v5404
        %v5481 = vadd.f32 %v5256, %v5409
        %v5482 = vadd.f32 %v5257, %v5412
        %v5483 = vadd.f32 %v5258, %v5417
        %v5484 = vadd.f32 %v5259, %v5420
        %v5485 = vadd.f32 %v5260, %v5425
        %v5486 = vadd.f32 %v5261, %v5428
        %v5487 = vadd.f32 %v5262, %v5433
        %v5488 = vadd.f32 %v5263, %v5436
        %v5489 = vadd.f32 %v5264, %v5441
        %v5490 = vadd.f32 %v5265, %v5444
        %v5491 = vadd.f32 %v5266, %v5449
        %v5492 = vadd.f32 %v5267, %v5452
        %v5493 = vadd.f32 %v5268, %v5457
        %v5494 = vadd.f32 %v5269, %v5460
        %v5495 = vld [vmem:[%s4] sm:$0x1]
        %v5497 = vlaneseq
        %v5498 = vshrl.u32 %v5497, 7
        %v5499 = vsub.s32 0, %v5498
        %v5500 = vrot.slane %v5495, %v5499
        %v5502 = vadd.f32 %v5463, %v5500
        %v5503 = vadd.f32 %v5464, %v5500
        %v5504 = vadd.f32 %v5465, %v5500
        %v5505 = vadd.f32 %v5466, %v5500
        %v5506 = vadd.f32 %v5467, %v5500
        %v5507 = vadd.f32 %v5468, %v5500
        %v5508 = vadd.f32 %v5469, %v5500
        %v5509 = vadd.f32 %v5470, %v5500
        %v5510 = vadd.f32 %v5471, %v5500
        %v5511 = vadd.f32 %v5472, %v5500
        %v5512 = vadd.f32 %v5473, %v5500
        %v5513 = vadd.f32 %v5474, %v5500
        %v5514 = vadd.f32 %v5475, %v5500
        %v5515 = vadd.f32 %v5476, %v5500
        %v5516 = vadd.f32 %v5477, %v5500
        %v5517 = vadd.f32 %v5478, %v5500
        %v5518 = vadd.f32 %v5479, %v5500
        %v5519 = vadd.f32 %v5480, %v5500
        %v5520 = vadd.f32 %v5481, %v5500
        %v5521 = vadd.f32 %v5482, %v5500
        %v5522 = vadd.f32 %v5483, %v5500
        %v5523 = vadd.f32 %v5484, %v5500
        %v5524 = vadd.f32 %v5485, %v5500
        %v5525 = vadd.f32 %v5486, %v5500
        %v5526 = vadd.f32 %v5487, %v5500
        %v5527 = vadd.f32 %v5488, %v5500
        %v5528 = vadd.f32 %v5489, %v5500
        %v5529 = vadd.f32 %v5490, %v5500
        %v5530 = vadd.f32 %v5491, %v5500
        %v5531 = vadd.f32 %v5492, %v5500
        %v5532 = vadd.f32 %v5493, %v5500
        %v5533 = vadd.f32 %v5494, %v5500
        %v5534 = vmax.f32 %v5502, 0.0
        %v5535 = vmax.f32 %v5503, 0.0
        %v5536 = vmax.f32 %v5504, 0.0
        %v5537 = vmax.f32 %v5505, 0.0
        %v5538 = vmax.f32 %v5506, 0.0
        %v5539 = vmax.f32 %v5507, 0.0
        %v5540 = vmax.f32 %v5508, 0.0
        %v5541 = vmax.f32 %v5509, 0.0
        %v5542 = vmax.f32 %v5510, 0.0
        %v5543 = vmax.f32 %v5511, 0.0
        %v5544 = vmax.f32 %v5512, 0.0
        %v5545 = vmax.f32 %v5513, 0.0
        %v5546 = vmax.f32 %v5514, 0.0
        %v5547 = vmax.f32 %v5515, 0.0
        %v5548 = vmax.f32 %v5516, 0.0
        %v5549 = vmax.f32 %v5517, 0.0
        %v5550 = vmax.f32 %v5518, 0.0
        %v5551 = vmax.f32 %v5519, 0.0
        %v5552 = vmax.f32 %v5520, 0.0
        %v5553 = vmax.f32 %v5521, 0.0
        %v5554 = vmax.f32 %v5522, 0.0
        %v5555 = vmax.f32 %v5523, 0.0
        %v5556 = vmax.f32 %v5524, 0.0
        %v5557 = vmax.f32 %v5525, 0.0
        %v5558 = vmax.f32 %v5526, 0.0
        %v5559 = vmax.f32 %v5527, 0.0
        %v5560 = vmax.f32 %v5528, 0.0
        %v5561 = vmax.f32 %v5529, 0.0
        %v5562 = vmax.f32 %v5530, 0.0
        %v5563 = vmax.f32 %v5531, 0.0
        %v5564 = vmax.f32 %v5532, 0.0
        %v5565 = vmax.f32 %v5533, 0.0
        %5566 = vst.msk [vmem:[%s2961 + $0x1] sm:$0xff] %vm388, %v5534
        %5567 = vst.msk [vmem:[%s2961 + $0x9] sm:$0xff] %vm388, %v5535
        %5568 = vst.msk [vmem:[%s2961 + $0x19] sm:$0xff] %vm388, %v5536
        %5569 = vst.msk [vmem:[%s2961 + $0x21] sm:$0xff] %vm388, %v5537
        %5570 = vst.msk [vmem:[%s2961 + $0x31] sm:$0xff] %vm388, %v5538
        %5571 = vst.msk [vmem:[%s2961 + $0x39] sm:$0xff] %vm388, %v5539
        %5572 = vst.msk [vmem:[%s2961 + $0x49] sm:$0xff] %vm388, %v5540
        %5573 = vst.msk [vmem:[%s2961 + $0x51] sm:$0xff] %vm388, %v5541
        %5574 = vst.msk [vmem:[%s2961 + $0x61] sm:$0xff] %vm388, %v5542
        %5575 = vst.msk [vmem:[%s2961 + $0x69] sm:$0xff] %vm388, %v5543
        %5576 = vst.msk [vmem:[%s2961 + $0x79] sm:$0xff] %vm388, %v5544
        %5577 = vst.msk [vmem:[%s2961 + $0x81] sm:$0xff] %vm388, %v5545
        %5578 = vst.msk [vmem:[%s2961 + $0x91] sm:$0xff] %vm388, %v5546
        %5579 = vst.msk [vmem:[%s2961 + $0x99] sm:$0xff] %vm388, %v5547
        %5580 = vst.msk [vmem:[%s2961 + $0xa9] sm:$0xff] %vm388, %v5548
        %5581 = vst.msk [vmem:[%s2961 + $0xb1] sm:$0xff] %vm388, %v5549
        %5582 = vst.msk [vmem:[%s2961 + $0xc1] sm:$0xff] %vm388, %v5550
        %5583 = vst.msk [vmem:[%s2961 + $0xc9] sm:$0xff] %vm388, %v5551
        %5584 = vst.msk [vmem:[%s2961 + $0xd9] sm:$0xff] %vm388, %v5552
        %5585 = vst.msk [vmem:[%s2961 + $0xe1] sm:$0xff] %vm388, %v5553
        %5586 = vst.msk [vmem:[%s2961 + $0xf1] sm:$0xff] %vm388, %v5554
        %5587 = vst.msk [vmem:[%s2961 + $0xf9] sm:$0xff] %vm388, %v5555
        %5588 = vst.msk [vmem:[%s2961 + $0x109] sm:$0xff] %vm388, %v5556
        %5589 = vst.msk [vmem:[%s2961 + $0x111] sm:$0xff] %vm388, %v5557
        %5590 = vst.msk [vmem:[%s2961 + $0x121] sm:$0xff] %vm388, %v5558
        %5591 = vst.msk [vmem:[%s2961 + $0x129] sm:$0xff] %vm388, %v5559
        %5592 = vst.msk [vmem:[%s2961 + $0x139] sm:$0xff] %vm388, %v5560
        %5593 = vst.msk [vmem:[%s2961 + $0x141] sm:$0xff] %vm388, %v5561
        %5594 = vst.msk [vmem:[%s2961 + $0x151] sm:$0xff] %vm388, %v5562
        %5595 = vst.msk [vmem:[%s2961 + $0x159] sm:$0xff] %vm388, %v5563
        %5596 = vst.msk [vmem:[%s2961 + $0x169] sm:$0xff] %vm388, %v5564
        %5597 = vst.msk [vmem:[%s2961 + $0x171] sm:$0xff] %vm388, %v5565
        %v5598 = vld [vmem:[#allocation10] sm:$0xf]
        %v5599 = vld [vmem:[#allocation10 + $0x4] sm:$0xf]
        %v5600 = vld [vmem:[#allocation10 + $0x8] sm:$0xf]
        %v5601 = vld [vmem:[#allocation10 + $0xc] sm:$0xf]
        %v5602 = vld [vmem:[#allocation10 + $0x10] sm:$0xf]
        %v5603 = vld [vmem:[#allocation10 + $0x14] sm:$0xf]
        %v5604 = vld [vmem:[#allocation10 + $0x18] sm:$0xf]
        %v5605 = vld [vmem:[#allocation10 + $0x1c] sm:$0xf]
        %v5606 = vld [vmem:[#allocation10 + $0x20] sm:$0xf]
        %v5607 = vld [vmem:[#allocation10 + $0x24] sm:$0xf]
        %v5608 = vld [vmem:[#allocation10 + $0x28] sm:$0xf]
        %v5609 = vld [vmem:[#allocation10 + $0x2c] sm:$0xf]
        %v5610 = vld [vmem:[#allocation10 + $0x30] sm:$0xf]
        %v5611 = vld [vmem:[#allocation10 + $0x34] sm:$0xf]
        %v5612 = vld [vmem:[#allocation10 + $0x38] sm:$0xf]
        %v5613 = vld [vmem:[#allocation10 + $0x3c] sm:$0xf]
        %v5614 = vld [vmem:[#allocation10 + $0x40] sm:$0xf]
        %v5615 = vld [vmem:[#allocation10 + $0x44] sm:$0xf]
        %v5616 = vld [vmem:[#allocation10 + $0x48] sm:$0xf]
        %v5617 = vld [vmem:[#allocation10 + $0x4c] sm:$0xf]
        %v5618 = vld [vmem:[#allocation10 + $0x50] sm:$0xf]
        %v5619 = vld [vmem:[#allocation10 + $0x54] sm:$0xf]
        %v5620 = vld [vmem:[#allocation10 + $0x58] sm:$0xf]
        %v5621 = vld [vmem:[#allocation10 + $0x5c] sm:$0xf]
        %v5622 = vld [vmem:[#allocation10 + $0x60] sm:$0xf]
        %v5623 = vld [vmem:[#allocation10 + $0x64] sm:$0xf]
        %v5624 = vld [vmem:[#allocation10 + $0x68] sm:$0xf]
        %v5625 = vld [vmem:[#allocation10 + $0x6c] sm:$0xf]
        %v5626 = vld [vmem:[#allocation10 + $0x70] sm:$0xf]
        %v5627 = vld [vmem:[#allocation10 + $0x74] sm:$0xf]
        %v5628 = vld [vmem:[#allocation10 + $0x78] sm:$0xf]
        %v5629 = vld [vmem:[#allocation10 + $0x7c] sm:$0xf]
        %v5630 = vld [vmem:[#allocation10 + $0x80] sm:$0xf]
        %v5631 = vld [vmem:[#allocation10 + $0x84] sm:$0xf]
        %v5632 = vld [vmem:[#allocation10 + $0x88] sm:$0xf]
        %v5633 = vld [vmem:[#allocation10 + $0x8c] sm:$0xf]
        %v5634 = vld [vmem:[#allocation10 + $0x90] sm:$0xf]
        %v5635 = vld [vmem:[#allocation10 + $0x94] sm:$0xf]
        %v5636 = vld [vmem:[#allocation10 + $0x98] sm:$0xf]
        %v5637 = vld [vmem:[#allocation10 + $0x9c] sm:$0xf]
        %v5638 = vld [vmem:[#allocation10 + $0xa0] sm:$0xf]
        %v5639 = vld [vmem:[#allocation10 + $0xa4] sm:$0xf]
        %v5640 = vld [vmem:[#allocation10 + $0xa8] sm:$0xf]
        %v5641 = vld [vmem:[#allocation10 + $0xac] sm:$0xf]
        %v5642 = vld [vmem:[#allocation10 + $0xb0] sm:$0xf]
        %v5643 = vld [vmem:[#allocation10 + $0xb4] sm:$0xf]
        %v5644 = vld [vmem:[#allocation10 + $0xb8] sm:$0xf]
        %v5645 = vld [vmem:[#allocation10 + $0xbc] sm:$0xf]
        %v5646 = vld [vmem:[#allocation10 + $0xc0] sm:$0xf]
        %v5647 = vld [vmem:[#allocation10 + $0xc4] sm:$0xf]
        %v5648 = vld [vmem:[#allocation10 + $0xc8] sm:$0xf]
        %v5649 = vld [vmem:[#allocation10 + $0xcc] sm:$0xf]
        %v5650 = vld [vmem:[#allocation10 + $0xd0] sm:$0xf]
        %v5651 = vld [vmem:[#allocation10 + $0xd4] sm:$0xf]
        %v5652 = vld [vmem:[#allocation10 + $0xd8] sm:$0xf]
        %v5653 = vld [vmem:[#allocation10 + $0xdc] sm:$0xf]
        %v5654 = vld [vmem:[#allocation10 + $0xe0] sm:$0xf]
        %v5655 = vld [vmem:[#allocation10 + $0xe4] sm:$0xf]
        %v5656 = vld [vmem:[#allocation10 + $0xe8] sm:$0xf]
        %v5657 = vld [vmem:[#allocation10 + $0xec] sm:$0xf]
        %v5658 = vld [vmem:[#allocation10 + $0xf0] sm:$0xf]
        %v5659 = vld [vmem:[#allocation10 + $0xf4] sm:$0xf]
        %v5660 = vld [vmem:[#allocation10 + $0xf8] sm:$0xf]
        %v5661 = vld [vmem:[#allocation10 + $0xfc] sm:$0xf]
        %v5662 = vld [vmem:[#allocation10 + $0x100] sm:$0xf]
        %v5663 = vld [vmem:[#allocation10 + $0x104] sm:$0xf]
        %v5664 = vld [vmem:[#allocation10 + $0x108] sm:$0xf]
        %v5665 = vld [vmem:[#allocation10 + $0x10c] sm:$0xf]
        %v5666 = vld [vmem:[#allocation10 + $0x110] sm:$0xf]
        %v5667 = vld [vmem:[#allocation10 + $0x114] sm:$0xf]
        %v5668 = vld [vmem:[#allocation10 + $0x118] sm:$0xf]
        %v5669 = vld [vmem:[#allocation10 + $0x11c] sm:$0xf]
        %v5670 = vld [vmem:[#allocation3] sm:$0xff]
        %v5671 = vld [vmem:[#allocation3 + $0x8] sm:$0xff]
        %v5672 = vld [vmem:[#allocation3 + $0x10] sm:$0x3]
        %v5673 = vld [vmem:[#allocation3 + $0x18] sm:$0xff]
        %v5674 = vld [vmem:[#allocation3 + $0x20] sm:$0xff]
        %v5675 = vld [vmem:[#allocation3 + $0x28] sm:$0x3]
        %v5676 = vld [vmem:[#allocation3 + $0x30] sm:$0xff]
        %v5677 = vld [vmem:[#allocation3 + $0x38] sm:$0xff]
        %v5678 = vld [vmem:[#allocation3 + $0x40] sm:$0x3]
        %v5679 = vld [vmem:[#allocation3 + $0x48] sm:$0xff]
        %v5680 = vld [vmem:[#allocation3 + $0x50] sm:$0xff]
        %v5681 = vld [vmem:[#allocation3 + $0x58] sm:$0x3]
        %v5682 = vld [vmem:[#allocation3 + $0x60] sm:$0xff]
        %v5683 = vld [vmem:[#allocation3 + $0x68] sm:$0xff]
        %v5684 = vld [vmem:[#allocation3 + $0x70] sm:$0x3]
        %v5685 = vld [vmem:[#allocation3 + $0x78] sm:$0xff]
        %v5686 = vld [vmem:[#allocation3 + $0x80] sm:$0xff]
        %v5687 = vld [vmem:[#allocation3 + $0x88] sm:$0x3]
        %v5688 = vld [vmem:[#allocation3 + $0x90] sm:$0xff]
        %v5689 = vld [vmem:[#allocation3 + $0x98] sm:$0xff]
        %v5690 = vld [vmem:[#allocation3 + $0xa0] sm:$0x3]
        %v5691 = vld [vmem:[#allocation3 + $0xa8] sm:$0xff]
        %v5692 = vld [vmem:[#allocation3 + $0xb0] sm:$0xff]
        %v5693 = vld [vmem:[#allocation3 + $0xb8] sm:$0x3]
        %v5694 = vld [vmem:[#allocation3 + $0xc0] sm:$0xff]
        %v5695 = vld [vmem:[#allocation3 + $0xc8] sm:$0xff]
        %v5696 = vld [vmem:[#allocation3 + $0xd0] sm:$0x3]
        %v5697 = vld [vmem:[#allocation3 + $0xd8] sm:$0xff]
        %v5698 = vld [vmem:[#allocation3 + $0xe0] sm:$0xff]
        %v5699 = vld [vmem:[#allocation3 + $0xe8] sm:$0x3]
        %v5700 = vld [vmem:[#allocation3 + $0xf0] sm:$0xff]
        %v5701 = vld [vmem:[#allocation3 + $0xf8] sm:$0xff]
        %v5702 = vld [vmem:[#allocation3 + $0x100] sm:$0x3]
        %v5703 = vld [vmem:[#allocation3 + $0x108] sm:$0xff]
        %v5704 = vld [vmem:[#allocation3 + $0x110] sm:$0xff]
        %v5705 = vld [vmem:[#allocation3 + $0x118] sm:$0x3]
        %v5706 = vld [vmem:[#allocation3 + $0x120] sm:$0xff]
        %v5707 = vld [vmem:[#allocation3 + $0x128] sm:$0xff]
        %v5708 = vld [vmem:[#allocation3 + $0x130] sm:$0x3]
        %v5709 = vld [vmem:[#allocation3 + $0x138] sm:$0xff]
        %v5710 = vld [vmem:[#allocation3 + $0x140] sm:$0xff]
        %v5711 = vld [vmem:[#allocation3 + $0x148] sm:$0x3]
        %v5712 = vld [vmem:[#allocation3 + $0x150] sm:$0xff]
        %v5713 = vld [vmem:[#allocation3 + $0x158] sm:$0xff]
        %v5714 = vld [vmem:[#allocation3 + $0x160] sm:$0x3]
        %v5715 = vld [vmem:[#allocation3 + $0x168] sm:$0xff]
        %v5716 = vld [vmem:[#allocation3 + $0x170] sm:$0xff]
        %v5717 = vld [vmem:[#allocation3 + $0x178] sm:$0x3]
        %v5718 = vld [vmem:[#allocation3 + $0x180] sm:$0xff]
        %v5719 = vld [vmem:[#allocation3 + $0x188] sm:$0xff]
        %v5720 = vld [vmem:[#allocation3 + $0x190] sm:$0x3]
        %v5721 = vld [vmem:[#allocation3 + $0x198] sm:$0xff]
        %v5722 = vld [vmem:[#allocation3 + $0x1a0] sm:$0xff]
        %v5723 = vld [vmem:[#allocation3 + $0x1a8] sm:$0x3]
        %v5724 = vpack.c.bf16 %v5671, %v5670
        %v5725 = vpack.c.bf16 %v5672, %v5672
        %v5726 = vpack.c.bf16 %v5674, %v5673
        %v5727 = vpack.c.bf16 %v5675, %v5675
        %v5728 = vpack.c.bf16 %v5677, %v5676
        %v5729 = vpack.c.bf16 %v5678, %v5678
        %v5730 = vpack.c.bf16 %v5680, %v5679
        %v5731 = vpack.c.bf16 %v5681, %v5681
        %v5732 = vpack.c.bf16 %v5683, %v5682
        %v5733 = vpack.c.bf16 %v5684, %v5684
        %v5734 = vpack.c.bf16 %v5686, %v5685
        %v5735 = vpack.c.bf16 %v5687, %v5687
        %v5736 = vpack.c.bf16 %v5689, %v5688
        %v5737 = vpack.c.bf16 %v5690, %v5690
        %v5738 = vpack.c.bf16 %v5692, %v5691
        %v5739 = vpack.c.bf16 %v5693, %v5693
        %v5740 = vpack.c.bf16 %v5695, %v5694
        %v5741 = vpack.c.bf16 %v5696, %v5696
        %v5742 = vpack.c.bf16 %v5698, %v5697
        %v5743 = vpack.c.bf16 %v5699, %v5699
        %v5744 = vpack.c.bf16 %v5701, %v5700
        %v5745 = vpack.c.bf16 %v5702, %v5702
        %v5746 = vpack.c.bf16 %v5704, %v5703
        %v5747 = vpack.c.bf16 %v5705, %v5705
        %v5748 = vpack.c.bf16 %v5707, %v5706
        %v5749 = vpack.c.bf16 %v5708, %v5708
        %v5750 = vpack.c.bf16 %v5710, %v5709
        %v5751 = vpack.c.bf16 %v5711, %v5711
        %v5752 = vpack.c.bf16 %v5713, %v5712
        %v5753 = vpack.c.bf16 %v5714, %v5714
        %v5754 = vpack.c.bf16 %v5716, %v5715
        %v5755 = vpack.c.bf16 %v5717, %v5717
        %v5756 = vpack.c.bf16 %v5719, %v5718
        %v5757 = vpack.c.bf16 %v5720, %v5720
        %v5758 = vpack.c.bf16 %v5722, %v5721
        %v5759 = vpack.c.bf16 %v5723, %v5723
        %v5761 = vshrl.u32 %v5724, 16
        %v5763 = vshll.u32 %v5724, 16
        %v5765 = vrot.slane %v5763, 1
        %v5766 = vor.u32 %v5761, %v5765
        %v5768 = vshll.u32 %v5725, 16
        %v5770 = vrot.slane %v5768, 1
        %v5771 = vsel %vm657, %v5766, %v5770
        %v5773 = vshrl.u32 %v5726, 16
        %v5775 = vshll.u32 %v5726, 16
        %v5777 = vrot.slane %v5775, 1
        %v5778 = vor.u32 %v5773, %v5777
        %v5780 = vshll.u32 %v5727, 16
        %v5782 = vrot.slane %v5780, 1
        %v5783 = vsel %vm657, %v5778, %v5782
        %v5785 = vshrl.u32 %v5728, 16
        %v5787 = vshll.u32 %v5728, 16
        %v5789 = vrot.slane %v5787, 1
        %v5790 = vor.u32 %v5785, %v5789
        %v5792 = vshll.u32 %v5729, 16
        %v5794 = vrot.slane %v5792, 1
        %v5795 = vsel %vm657, %v5790, %v5794
        %v5797 = vshrl.u32 %v5730, 16
        %v5799 = vshll.u32 %v5730, 16
        %v5801 = vrot.slane %v5799, 1
        %v5802 = vor.u32 %v5797, %v5801
        %v5804 = vshll.u32 %v5731, 16
        %v5806 = vrot.slane %v5804, 1
        %v5807 = vsel %vm657, %v5802, %v5806
        %v5809 = vshrl.u32 %v5732, 16
        %v5811 = vshll.u32 %v5732, 16
        %v5813 = vrot.slane %v5811, 1
        %v5814 = vor.u32 %v5809, %v5813
        %v5816 = vshll.u32 %v5733, 16
        %v5818 = vrot.slane %v5816, 1
        %v5819 = vsel %vm657, %v5814, %v5818
        %v5821 = vshrl.u32 %v5734, 16
        %v5823 = vshll.u32 %v5734, 16
        %v5825 = vrot.slane %v5823, 1
        %v5826 = vor.u32 %v5821, %v5825
        %v5828 = vshll.u32 %v5735, 16
        %v5830 = vrot.slane %v5828, 1
        %v5831 = vsel %vm657, %v5826, %v5830
        %v5833 = vshrl.u32 %v5736, 16
        %v5835 = vshll.u32 %v5736, 16
        %v5837 = vrot.slane %v5835, 1
        %v5838 = vor.u32 %v5833, %v5837
        %v5840 = vshll.u32 %v5737, 16
        %v5842 = vrot.slane %v5840, 1
        %v5843 = vsel %vm657, %v5838, %v5842
        %v5845 = vshrl.u32 %v5738, 16
        %v5847 = vshll.u32 %v5738, 16
        %v5849 = vrot.slane %v5847, 1
        %v5850 = vor.u32 %v5845, %v5849
        %v5852 = vshll.u32 %v5739, 16
        %v5854 = vrot.slane %v5852, 1
        %v5855 = vsel %vm657, %v5850, %v5854
        %v5857 = vshrl.u32 %v5740, 16
        %v5859 = vshll.u32 %v5740, 16
        %v5861 = vrot.slane %v5859, 1
        %v5862 = vor.u32 %v5857, %v5861
        %v5864 = vshll.u32 %v5741, 16
        %v5866 = vrot.slane %v5864, 1
        %v5867 = vsel %vm657, %v5862, %v5866
        %v5869 = vshrl.u32 %v5742, 16
        %v5871 = vshll.u32 %v5742, 16
        %v5873 = vrot.slane %v5871, 1
        %v5874 = vor.u32 %v5869, %v5873
        %v5876 = vshll.u32 %v5743, 16
        %v5878 = vrot.slane %v5876, 1
        %v5879 = vsel %vm657, %v5874, %v5878
        %v5881 = vshrl.u32 %v5744, 16
        %v5883 = vshll.u32 %v5744, 16
        %v5885 = vrot.slane %v5883, 1
        %v5886 = vor.u32 %v5881, %v5885
        %v5888 = vshll.u32 %v5745, 16
        %v5890 = vrot.slane %v5888, 1
        %v5891 = vsel %vm657, %v5886, %v5890
        %v5893 = vshrl.u32 %v5746, 16
        %v5895 = vshll.u32 %v5746, 16
        %v5897 = vrot.slane %v5895, 1
        %v5898 = vor.u32 %v5893, %v5897
        %v5900 = vshll.u32 %v5747, 16
        %v5902 = vrot.slane %v5900, 1
        %v5903 = vsel %vm657, %v5898, %v5902
        %v5905 = vshrl.u32 %v5748, 16
        %v5907 = vshll.u32 %v5748, 16
        %v5909 = vrot.slane %v5907, 1
        %v5910 = vor.u32 %v5905, %v5909
        %v5912 = vshll.u32 %v5749, 16
        %v5914 = vrot.slane %v5912, 1
        %v5915 = vsel %vm657, %v5910, %v5914
        %v5917 = vshrl.u32 %v5750, 16
        %v5919 = vshll.u32 %v5750, 16
        %v5921 = vrot.slane %v5919, 1
        %v5922 = vor.u32 %v5917, %v5921
        %v5924 = vshll.u32 %v5751, 16
        %v5926 = vrot.slane %v5924, 1
        %v5927 = vsel %vm657, %v5922, %v5926
        %v5929 = vshrl.u32 %v5752, 16
        %v5931 = vshll.u32 %v5752, 16
        %v5933 = vrot.slane %v5931, 1
        %v5934 = vor.u32 %v5929, %v5933
        %v5936 = vshll.u32 %v5753, 16
        %v5938 = vrot.slane %v5936, 1
        %v5939 = vsel %vm657, %v5934, %v5938
        %v5941 = vshrl.u32 %v5754, 16
        %v5943 = vshll.u32 %v5754, 16
        %v5945 = vrot.slane %v5943, 1
        %v5946 = vor.u32 %v5941, %v5945
        %v5948 = vshll.u32 %v5755, 16
        %v5950 = vrot.slane %v5948, 1
        %v5951 = vsel %vm657, %v5946, %v5950
        %v5960 = vunpack.c.l.b16 %v5606
        %v5961 = vunpack.c.l.b16 %v5607
        %v5962 = vunpack.c.l.b16 %v5608
        %v5963 = vunpack.c.l.b16 %v5609
        %v5964 = vunpack.c.l.b16 %v5610
        %v5965 = vunpack.c.l.b16 %v5611
        %v5966 = vunpack.c.l.b16 %v5612
        %v5967 = vunpack.c.l.b16 %v5613
        %v5968 = vpack.c.b16 %v5961, %v5960
        %v5969 = vpack.c.b16 %v5963, %v5962
        %v5970 = vpack.c.b16 %v5965, %v5964
        %v5971 = vpack.c.b16 %v5967, %v5966
        %v5977 = vsel %vm388, %v5771, 0
        %v5980 = vsel %vm388, %v5783, 0
        %v5983 = vsel %vm388, %v5795, 0
        %v5986 = vsel %vm388, %v5807, 0
        %v5989 = vsel %vm388, %v5819, 0
        %v5992 = vsel %vm388, %v5831, 0
        %v5995 = vsel %vm388, %v5843, 0
        %v5998 = vsel %vm388, %v5855, 0
        %v6001 = vsel %vm388, %v5867, 0
        %v6004 = vsel %vm388, %v5879, 0
        %v6007 = vsel %vm388, %v5891, 0
        %v6010 = vsel %vm388, %v5903, 0
        %v6013 = vsel %vm388, %v5915, 0
        %v6016 = vsel %vm388, %v5927, 0
        %v6019 = vsel %vm388, %v5939, 0
        %v6022 = vsel %vm388, %v5951, 0
        %6024 = vmatprep.subr.bf16.mxu0 0
        %6025 = vmatpush1.bf16.msra.mxu0 %v5968
        %6026 = vmatprep.subr.bf16.mxu0 0
        %6027 = vmatpush1.bf16.msra.mxu0 %v5969
        %6028 = vmatprep.subr.bf16.mxu0 0
        %6029 = vmatpush1.bf16.msra.mxu0 %v5970
        %6030 = vmatprep.subr.bf16.mxu0 0
        %6031 = vmatpush1.bf16.msra.mxu0 %v5971
        %6032 = vmatprep.subr.bf16.mxu0 0
        %6033 = vmatpush1.bf16.msra.mxu0 0
        %6034 = vmatprep.subr.bf16.mxu0 0
        %6035 = vmatpush1.bf16.msra.mxu0 0
        %6036 = vmatprep.subr.bf16.mxu0 0
        %6037 = vmatpush1.bf16.msra.mxu0 0
        %6038 = vmatprep.subr.bf16.mxu0 0
        %6039 = vmatpush1.bf16.msra.mxu0 0
        %6040 = vmatprep.subr.bf16.mxu0 0
        %6041 = vmatpush1.bf16.msra.mxu0 0
        %6042 = vmatprep.subr.bf16.mxu0 0
        %6043 = vmatpush1.bf16.msra.mxu0 0
        %6044 = vmatprep.subr.bf16.mxu0 0
        %6045 = vmatpush1.bf16.msra.mxu0 0
        %6046 = vmatprep.subr.bf16.mxu0 0
        %6047 = vmatpush1.bf16.msra.mxu0 0
        %6048 = vmatprep.subr.bf16.mxu0 0
        %6049 = vmatpush1.bf16.msra.mxu0 0
        %6050 = vmatprep.subr.bf16.mxu0 0
        %6051 = vmatpush1.bf16.msra.mxu0 0
        %6052 = vmatprep.subr.bf16.mxu0 0
        %6053 = vmatpush1.bf16.msra.mxu0 0
        %6054 = vmatprep.subr.bf16.mxu0 0
        %6055 = vmatpush1.bf16.msra.mxu0 0
        %6056 = vmatprep.mubr.bf16.mxu0 0
        %6057 = vmatmul.mubr.bf16.gmra.mrb[0].mxu0 %v5977
        %v6058 = vpop.f32.mrb[0].mxu0
        %v6059 = vadd.f32 0.0, %v6058
        %v6060 = vpop.f32.mrb[0].mxu0
        %v6061 = vpop.f32.mrb[0].mxu0
        %v6062 = vadd.f32 0.0, %v6061
        %v6063 = vpop.f32.mrb[0].mxu0
        %6064 = vmatprep.mubr.bf16.mxu0 0
        %6065 = vmatmul.mubr.bf16.gmra.mrb[0].mxu0 %v5980
        %v6066 = vpop.f32.mrb[0].mxu0
        %v6067 = vadd.f32 0.0, %v6066
        %v6068 = vpop.f32.mrb[0].mxu0
        %v6069 = vpop.f32.mrb[0].mxu0
        %v6070 = vadd.f32 0.0, %v6069
        %v6071 = vpop.f32.mrb[0].mxu0
        %6072 = vmatprep.mubr.bf16.mxu0 0
        %6073 = vmatmul.mubr.bf16.gmra.mrb[0].mxu0 %v5983
        %v6074 = vpop.f32.mrb[0].mxu0
        %v6075 = vadd.f32 0.0, %v6074
        %v6076 = vpop.f32.mrb[0].mxu0
        %v6077 = vpop.f32.mrb[0].mxu0
        %v6078 = vadd.f32 0.0, %v6077
        %v6079 = vpop.f32.mrb[0].mxu0
        %6080 = vmatprep.mubr.bf16.mxu0 0
        %6081 = vmatmul.mubr.bf16.gmra.mrb[0].mxu0 %v5986
        %v6082 = vpop.f32.mrb[0].mxu0
        %v6083 = vadd.f32 0.0, %v6082
        %v6084 = vpop.f32.mrb[0].mxu0
        %v6085 = vpop.f32.mrb[0].mxu0
        %v6086 = vadd.f32 0.0, %v6085
        %v6087 = vpop.f32.mrb[0].mxu0
        %6088 = vmatprep.mubr.bf16.mxu0 0
        %6089 = vmatmul.mubr.bf16.gmra.mrb[0].mxu0 %v5989
        %v6090 = vpop.f32.mrb[0].mxu0
        %v6091 = vadd.f32 0.0, %v6090
        %v6092 = vpop.f32.mrb[0].mxu0
        %v6093 = vpop.f32.mrb[0].mxu0
        %v6094 = vadd.f32 0.0, %v6093
        %v6095 = vpop.f32.mrb[0].mxu0
        %6096 = vmatprep.mubr.bf16.mxu0 0
        %6097 = vmatmul.mubr.bf16.gmra.mrb[0].mxu0 %v5992
        %v6098 = vpop.f32.mrb[0].mxu0
        %v6099 = vadd.f32 0.0, %v6098
        %v6100 = vpop.f32.mrb[0].mxu0
        %v6101 = vpop.f32.mrb[0].mxu0
        %v6102 = vadd.f32 0.0, %v6101
        %v6103 = vpop.f32.mrb[0].mxu0
        %6104 = vmatprep.mubr.bf16.mxu0 0
        %6105 = vmatmul.mubr.bf16.gmra.mrb[0].mxu0 %v5995
        %v6106 = vpop.f32.mrb[0].mxu0
        %v6107 = vadd.f32 0.0, %v6106
        %v6108 = vpop.f32.mrb[0].mxu0
        %v6109 = vpop.f32.mrb[0].mxu0
        %v6110 = vadd.f32 0.0, %v6109
        %v6111 = vpop.f32.mrb[0].mxu0
        %6112 = vmatprep.mubr.bf16.mxu0 0
        %6113 = vmatmul.mubr.bf16.gmra.mrb[0].mxu0 %v5998
        %v6114 = vpop.f32.mrb[0].mxu0
        %v6115 = vadd.f32 0.0, %v6114
        %v6116 = vpop.f32.mrb[0].mxu0
        %v6117 = vpop.f32.mrb[0].mxu0
        %v6118 = vadd.f32 0.0, %v6117
        %v6119 = vpop.f32.mrb[0].mxu0
        %6120 = vmatprep.mubr.bf16.mxu0 0
        %6121 = vmatmul.mubr.bf16.gmra.mrb[0].mxu0 %v6001
        %v6122 = vpop.f32.mrb[0].mxu0
        %v6123 = vadd.f32 0.0, %v6122
        %v6124 = vpop.f32.mrb[0].mxu0
        %v6125 = vpop.f32.mrb[0].mxu0
        %v6126 = vadd.f32 0.0, %v6125
        %v6127 = vpop.f32.mrb[0].mxu0
        %6128 = vmatprep.mubr.bf16.mxu0 0
        %6129 = vmatmul.mubr.bf16.gmra.mrb[0].mxu0 %v6004
        %v6130 = vpop.f32.mrb[0].mxu0
        %v6131 = vadd.f32 0.0, %v6130
        %v6132 = vpop.f32.mrb[0].mxu0
        %v6133 = vpop.f32.mrb[0].mxu0
        %v6134 = vadd.f32 0.0, %v6133
        %v6135 = vpop.f32.mrb[0].mxu0
        %6136 = vmatprep.mubr.bf16.mxu0 0
        %6137 = vmatmul.mubr.bf16.gmra.mrb[0].mxu0 %v6007
        %v6138 = vpop.f32.mrb[0].mxu0
        %v6139 = vadd.f32 0.0, %v6138
        %v6140 = vpop.f32.mrb[0].mxu0
        %v6141 = vpop.f32.mrb[0].mxu0
        %v6142 = vadd.f32 0.0, %v6141
        %v6143 = vpop.f32.mrb[0].mxu0
        %6144 = vmatprep.mubr.bf16.mxu0 0
        %6145 = vmatmul.mubr.bf16.gmra.mrb[0].mxu0 %v6010
        %v6146 = vpop.f32.mrb[0].mxu0
        %v6147 = vadd.f32 0.0, %v6146
        %v6148 = vpop.f32.mrb[0].mxu0
        %v6149 = vpop.f32.mrb[0].mxu0
        %v6150 = vadd.f32 0.0, %v6149
        %v6151 = vpop.f32.mrb[0].mxu0
        %6152 = vmatprep.mubr.bf16.mxu0 0
        %6153 = vmatmul.mubr.bf16.gmra.mrb[0].mxu0 %v6013
        %v6154 = vpop.f32.mrb[0].mxu0
        %v6155 = vadd.f32 0.0, %v6154
        %v6156 = vpop.f32.mrb[0].mxu0
        %v6157 = vpop.f32.mrb[0].mxu0
        %v6158 = vadd.f32 0.0, %v6157
        %v6159 = vpop.f32.mrb[0].mxu0
        %6160 = vmatprep.mubr.bf16.mxu0 0
        %6161 = vmatmul.mubr.bf16.gmra.mrb[0].mxu0 %v6016
        %v6162 = vpop.f32.mrb[0].mxu0
        %v6163 = vadd.f32 0.0, %v6162
        %v6164 = vpop.f32.mrb[0].mxu0
        %v6165 = vpop.f32.mrb[0].mxu0
        %v6166 = vadd.f32 0.0, %v6165
        %v6167 = vpop.f32.mrb[0].mxu0
        %6168 = vmatprep.mubr.bf16.mxu0 0
        %6169 = vmatmul.mubr.bf16.gmra.mrb[0].mxu0 %v6019
        %v6170 = vpop.f32.mrb[0].mxu0
        %v6171 = vadd.f32 0.0, %v6170
        %v6172 = vpop.f32.mrb[0].mxu0
        %v6173 = vpop.f32.mrb[0].mxu0
        %v6174 = vadd.f32 0.0, %v6173
        %v6175 = vpop.f32.mrb[0].mxu0
        %6176 = vmatprep.mubr.bf16.mxu0 0
        %6177 = vmatmul.mubr.bf16.gmra.mrb[0].mxu0 %v6022
        %v6178 = vpop.f32.mrb[0].mxu0
        %v6179 = vadd.f32 0.0, %v6178
        %v6180 = vpop.f32.mrb[0].mxu0
        %v6181 = vpop.f32.mrb[0].mxu0
        %v6182 = vadd.f32 0.0, %v6181
        %v6183 = vpop.f32.mrb[0].mxu0
        %6184 = vdwg.mxu0
        %v6193 = vunpack.c.l.b16 %v5598
        %v6194 = vunpack.c.l.b16 %v5599
        %v6195 = vunpack.c.l.b16 %v5600
        %v6196 = vunpack.c.l.b16 %v5601
        %v6197 = vunpack.c.l.b16 %v5602
        %v6198 = vunpack.c.l.b16 %v5603
        %v6199 = vunpack.c.l.b16 %v5604
        %v6200 = vunpack.c.l.b16 %v5605
        %v6201 = vpack.c.b16 %v6194, %v6193
        %v6202 = vpack.c.b16 %v6196, %v6195
        %v6203 = vpack.c.b16 %v6198, %v6197
        %v6204 = vpack.c.b16 %v6200, %v6199
        %v6209 = vsel %vm388, %v5724, 0
        %v6211 = vsel %vm388, %v5726, 0
        %v6213 = vsel %vm388, %v5728, 0
        %v6215 = vsel %vm388, %v5730, 0
        %v6217 = vsel %vm388, %v5732, 0
        %v6219 = vsel %vm388, %v5734, 0
        %v6221 = vsel %vm388, %v5736, 0
        %v6223 = vsel %vm388, %v5738, 0
        %v6225 = vsel %vm388, %v5740, 0
        %v6227 = vsel %vm388, %v5742, 0
        %v6229 = vsel %vm388, %v5744, 0
        %v6231 = vsel %vm388, %v5746, 0
        %v6233 = vsel %vm388, %v5748, 0
        %v6235 = vsel %vm388, %v5750, 0
        %v6237 = vsel %vm388, %v5752, 0
        %v6239 = vsel %vm388, %v5754, 0
        %6241 = vmatprep.subr.bf16.mxu0 0
        %6242 = vmatpush1.bf16.msra.mxu0 %v6201
        %6243 = vmatprep.subr.bf16.mxu0 0
        %6244 = vmatpush1.bf16.msra.mxu0 %v6202
        %6245 = vmatprep.subr.bf16.mxu0 0
        %6246 = vmatpush1.bf16.msra.mxu0 %v6203
        %6247 = vmatprep.subr.bf16.mxu0 0
        %6248 = vmatpush1.bf16.msra.mxu0 %v6204
        %6249 = vmatprep.subr.bf16.mxu0 0
        %6250 = vmatpush1.bf16.msra.mxu0 0
        %6251 = vmatprep.subr.bf16.mxu0 0
        %6252 = vmatpush1.bf16.msra.mxu0 0
        %6253 = vmatprep.subr.bf16.mxu0 0
        %6254 = vmatpush1.bf16.msra.mxu0 0
        %6255 = vmatprep.subr.bf16.mxu0 0
        %6256 = vmatpush1.bf16.msra.mxu0 0
        %6257 = vmatprep.subr.bf16.mxu0 0
        %6258 = vmatpush1.bf16.msra.mxu0 0
        %6259 = vmatprep.subr.bf16.mxu0 0
        %6260 = vmatpush1.bf16.msra.mxu0 0
        %6261 = vmatprep.subr.bf16.mxu0 0
        %6262 = vmatpush1.bf16.msra.mxu0 0
        %6263 = vmatprep.subr.bf16.mxu0 0
        %6264 = vmatpush1.bf16.msra.mxu0 0
        %6265 = vmatprep.subr.bf16.mxu0 0
        %6266 = vmatpush1.bf16.msra.mxu0 0
        %6267 = vmatprep.subr.bf16.mxu0 0
        %6268 = vmatpush1.bf16.msra.mxu0 0
        %6269 = vmatprep.subr.bf16.mxu0 0
        %6270 = vmatpush1.bf16.msra.mxu0 0
        %6271 = vmatprep.subr.bf16.mxu0 0
        %6272 = vmatpush1.bf16.msra.mxu0 0
        %6273 = vmatprep.mubr.bf16.mxu0 0
        %6274 = vmatmul.mubr.bf16.gmra.mrb[0].mxu0 %v6209
        %v6275 = vpop.f32.mrb[0].mxu0
        %v6276 = vadd.f32 %v6059, %v6275
        %v6277 = vpop.f32.mrb[0].mxu0
        %v6278 = vpop.f32.mrb[0].mxu0
        %v6279 = vadd.f32 %v6062, %v6278
        %v6280 = vpop.f32.mrb[0].mxu0
        %6281 = vmatprep.mubr.bf16.mxu0 0
        %6282 = vmatmul.mubr.bf16.gmra.mrb[0].mxu0 %v6211
        %v6283 = vpop.f32.mrb[0].mxu0
        %v6284 = vadd.f32 %v6067, %v6283
        %v6285 = vpop.f32.mrb[0].mxu0
        %v6286 = vpop.f32.mrb[0].mxu0
        %v6287 = vadd.f32 %v6070, %v6286
        %v6288 = vpop.f32.mrb[0].mxu0
        %6289 = vmatprep.mubr.bf16.mxu0 0
        %6290 = vmatmul.mubr.bf16.gmra.mrb[0].mxu0 %v6213
        %v6291 = vpop.f32.mrb[0].mxu0
        %v6292 = vadd.f32 %v6075, %v6291
        %v6293 = vpop.f32.mrb[0].mxu0
        %v6294 = vpop.f32.mrb[0].mxu0
        %v6295 = vadd.f32 %v6078, %v6294
        %v6296 = vpop.f32.mrb[0].mxu0
        %6297 = vmatprep.mubr.bf16.mxu0 0
        %6298 = vmatmul.mubr.bf16.gmra.mrb[0].mxu0 %v6215
        %v6299 = vpop.f32.mrb[0].mxu0
        %v6300 = vadd.f32 %v6083, %v6299
        %v6301 = vpop.f32.mrb[0].mxu0
        %v6302 = vpop.f32.mrb[0].mxu0
        %v6303 = vadd.f32 %v6086, %v6302
        %v6304 = vpop.f32.mrb[0].mxu0
        %6305 = vmatprep.mubr.bf16.mxu0 0
        %6306 = vmatmul.mubr.bf16.gmra.mrb[0].mxu0 %v6217
        %v6307 = vpop.f32.mrb[0].mxu0
        %v6308 = vadd.f32 %v6091, %v6307
        %v6309 = vpop.f32.mrb[0].mxu0
        %v6310 = vpop.f32.mrb[0].mxu0
        %v6311 = vadd.f32 %v6094, %v6310
        %v6312 = vpop.f32.mrb[0].mxu0
        %6313 = vmatprep.mubr.bf16.mxu0 0
        %6314 = vmatmul.mubr.bf16.gmra.mrb[0].mxu0 %v6219
        %v6315 = vpop.f32.mrb[0].mxu0
        %v6316 = vadd.f32 %v6099, %v6315
        %v6317 = vpop.f32.mrb[0].mxu0
        %v6318 = vpop.f32.mrb[0].mxu0
        %v6319 = vadd.f32 %v6102, %v6318
        %v6320 = vpop.f32.mrb[0].mxu0
        %6321 = vmatprep.mubr.bf16.mxu0 0
        %6322 = vmatmul.mubr.bf16.gmra.mrb[0].mxu0 %v6221
        %v6323 = vpop.f32.mrb[0].mxu0
        %v6324 = vadd.f32 %v6107, %v6323
        %v6325 = vpop.f32.mrb[0].mxu0
        %v6326 = vpop.f32.mrb[0].mxu0
        %v6327 = vadd.f32 %v6110, %v6326
        %v6328 = vpop.f32.mrb[0].mxu0
        %6329 = vmatprep.mubr.bf16.mxu0 0
        %6330 = vmatmul.mubr.bf16.gmra.mrb[0].mxu0 %v6223
        %v6331 = vpop.f32.mrb[0].mxu0
        %v6332 = vadd.f32 %v6115, %v6331
        %v6333 = vpop.f32.mrb[0].mxu0
        %v6334 = vpop.f32.mrb[0].mxu0
        %v6335 = vadd.f32 %v6118, %v6334
        %v6336 = vpop.f32.mrb[0].mxu0
        %6337 = vmatprep.mubr.bf16.mxu0 0
        %6338 = vmatmul.mubr.bf16.gmra.mrb[0].mxu0 %v6225
        %v6339 = vpop.f32.mrb[0].mxu0
        %v6340 = vadd.f32 %v6123, %v6339
        %v6341 = vpop.f32.mrb[0].mxu0
        %v6342 = vpop.f32.mrb[0].mxu0
        %v6343 = vadd.f32 %v6126, %v6342
        %v6344 = vpop.f32.mrb[0].mxu0
        %6345 = vmatprep.mubr.bf16.mxu0 0
        %6346 = vmatmul.mubr.bf16.gmra.mrb[0].mxu0 %v6227
        %v6347 = vpop.f32.mrb[0].mxu0
        %v6348 = vadd.f32 %v6131, %v6347
        %v6349 = vpop.f32.mrb[0].mxu0
        %v6350 = vpop.f32.mrb[0].mxu0
        %v6351 = vadd.f32 %v6134, %v6350
        %v6352 = vpop.f32.mrb[0].mxu0
        %6353 = vmatprep.mubr.bf16.mxu0 0
        %6354 = vmatmul.mubr.bf16.gmra.mrb[0].mxu0 %v6229
        %v6355 = vpop.f32.mrb[0].mxu0
        %v6356 = vadd.f32 %v6139, %v6355
        %v6357 = vpop.f32.mrb[0].mxu0
        %v6358 = vpop.f32.mrb[0].mxu0
        %v6359 = vadd.f32 %v6142, %v6358
        %v6360 = vpop.f32.mrb[0].mxu0
        %6361 = vmatprep.mubr.bf16.mxu0 0
        %6362 = vmatmul.mubr.bf16.gmra.mrb[0].mxu0 %v6231
        %v6363 = vpop.f32.mrb[0].mxu0
        %v6364 = vadd.f32 %v6147, %v6363
        %v6365 = vpop.f32.mrb[0].mxu0
        %v6366 = vpop.f32.mrb[0].mxu0
        %v6367 = vadd.f32 %v6150, %v6366
        %v6368 = vpop.f32.mrb[0].mxu0
        %6369 = vmatprep.mubr.bf16.mxu0 0
        %6370 = vmatmul.mubr.bf16.gmra.mrb[0].mxu0 %v6233
        %v6371 = vpop.f32.mrb[0].mxu0
        %v6372 = vadd.f32 %v6155, %v6371
        %v6373 = vpop.f32.mrb[0].mxu0
        %v6374 = vpop.f32.mrb[0].mxu0
        %v6375 = vadd.f32 %v6158, %v6374
        %v6376 = vpop.f32.mrb[0].mxu0
        %6377 = vmatprep.mubr.bf16.mxu0 0
        %6378 = vmatmul.mubr.bf16.gmra.mrb[0].mxu0 %v6235
        %v6379 = vpop.f32.mrb[0].mxu0
        %v6380 = vadd.f32 %v6163, %v6379
        %v6381 = vpop.f32.mrb[0].mxu0
        %v6382 = vpop.f32.mrb[0].mxu0
        %v6383 = vadd.f32 %v6166, %v6382
        %v6384 = vpop.f32.mrb[0].mxu0
        %6385 = vmatprep.mubr.bf16.mxu0 0
        %6386 = vmatmul.mubr.bf16.gmra.mrb[0].mxu0 %v6237
        %v6387 = vpop.f32.mrb[0].mxu0
        %v6388 = vadd.f32 %v6171, %v6387
        %v6389 = vpop.f32.mrb[0].mxu0
        %v6390 = vpop.f32.mrb[0].mxu0
        %v6391 = vadd.f32 %v6174, %v6390
        %v6392 = vpop.f32.mrb[0].mxu0
        %6393 = vmatprep.mubr.bf16.mxu0 0
        %6394 = vmatmul.mubr.bf16.gmra.mrb[0].mxu0 %v6239
        %v6395 = vpop.f32.mrb[0].mxu0
        %v6396 = vadd.f32 %v6179, %v6395
        %v6397 = vpop.f32.mrb[0].mxu0
        %v6398 = vpop.f32.mrb[0].mxu0
        %v6399 = vadd.f32 %v6182, %v6398
        %v6400 = vpop.f32.mrb[0].mxu0
        %6401 = vdwg.mxu0
        %v6434 = vrot.slane %v5724, 1
        %v6435 = vrot.slane %v5725, 1
        %v6436 = vsel %vm1308, %v6434, %v6435
        %v6437 = vrot.slane %v5726, 1
        %v6438 = vrot.slane %v5727, 1
        %v6439 = vsel %vm1308, %v6437, %v6438
        %v6440 = vrot.slane %v5728, 1
        %v6441 = vrot.slane %v5729, 1
        %v6442 = vsel %vm1308, %v6440, %v6441
        %v6443 = vrot.slane %v5730, 1
        %v6444 = vrot.slane %v5731, 1
        %v6445 = vsel %vm1308, %v6443, %v6444
        %v6446 = vrot.slane %v5732, 1
        %v6447 = vrot.slane %v5733, 1
        %v6448 = vsel %vm1308, %v6446, %v6447
        %v6449 = vrot.slane %v5734, 1
        %v6450 = vrot.slane %v5735, 1
        %v6451 = vsel %vm1308, %v6449, %v6450
        %v6452 = vrot.slane %v5736, 1
        %v6453 = vrot.slane %v5737, 1
        %v6454 = vsel %vm1308, %v6452, %v6453
        %v6455 = vrot.slane %v5738, 1
        %v6456 = vrot.slane %v5739, 1
        %v6457 = vsel %vm1308, %v6455, %v6456
        %v6458 = vrot.slane %v5740, 1
        %v6459 = vrot.slane %v5741, 1
        %v6460 = vsel %vm1308, %v6458, %v6459
        %v6461 = vrot.slane %v5742, 1
        %v6462 = vrot.slane %v5743, 1
        %v6463 = vsel %vm1308, %v6461, %v6462
        %v6464 = vrot.slane %v5744, 1
        %v6465 = vrot.slane %v5745, 1
        %v6466 = vsel %vm1308, %v6464, %v6465
        %v6467 = vrot.slane %v5746, 1
        %v6468 = vrot.slane %v5747, 1
        %v6469 = vsel %vm1308, %v6467, %v6468
        %v6470 = vrot.slane %v5748, 1
        %v6471 = vrot.slane %v5749, 1
        %v6472 = vsel %vm1308, %v6470, %v6471
        %v6473 = vrot.slane %v5750, 1
        %v6474 = vrot.slane %v5751, 1
        %v6475 = vsel %vm1308, %v6473, %v6474
        %v6476 = vrot.slane %v5752, 1
        %v6477 = vrot.slane %v5753, 1
        %v6478 = vsel %vm1308, %v6476, %v6477
        %v6479 = vrot.slane %v5754, 1
        %v6480 = vrot.slane %v5755, 1
        %v6481 = vsel %vm1308, %v6479, %v6480
        %v6490 = vunpack.c.l.b16 %v5614
        %v6491 = vunpack.c.l.b16 %v5615
        %v6492 = vunpack.c.l.b16 %v5616
        %v6493 = vunpack.c.l.b16 %v5617
        %v6494 = vunpack.c.l.b16 %v5618
        %v6495 = vunpack.c.l.b16 %v5619
        %v6496 = vunpack.c.l.b16 %v5620
        %v6497 = vunpack.c.l.b16 %v5621
        %v6498 = vpack.c.b16 %v6491, %v6490
        %v6499 = vpack.c.b16 %v6493, %v6492
        %v6500 = vpack.c.b16 %v6495, %v6494
        %v6501 = vpack.c.b16 %v6497, %v6496
        %v6507 = vsel %vm388, %v6436, 0
        %v6510 = vsel %vm388, %v6439, 0
        %v6513 = vsel %vm388, %v6442, 0
        %v6516 = vsel %vm388, %v6445, 0
        %v6519 = vsel %vm388, %v6448, 0
        %v6522 = vsel %vm388, %v6451, 0
        %v6525 = vsel %vm388, %v6454, 0
        %v6528 = vsel %vm388, %v6457, 0
        %v6531 = vsel %vm388, %v6460, 0
        %v6534 = vsel %vm388, %v6463, 0
        %v6537 = vsel %vm388, %v6466, 0
        %v6540 = vsel %vm388, %v6469, 0
        %v6543 = vsel %vm388, %v6472, 0
        %v6546 = vsel %vm388, %v6475, 0
        %v6549 = vsel %vm388, %v6478, 0
        %v6552 = vsel %vm388, %v6481, 0
        %6554 = vmatprep.subr.bf16.mxu0 0
        %6555 = vmatpush1.bf16.msra.mxu0 %v6498
        %6556 = vmatprep.subr.bf16.mxu0 0
        %6557 = vmatpush1.bf16.msra.mxu0 %v6499
        %6558 = vmatprep.subr.bf16.mxu0 0
        %6559 = vmatpush1.bf16.msra.mxu0 %v6500
        %6560 = vmatprep.subr.bf16.mxu0 0
        %6561 = vmatpush1.bf16.msra.mxu0 %v6501
        %6562 = vmatprep.subr.bf16.mxu0 0
        %6563 = vmatpush1.bf16.msra.mxu0 0
        %6564 = vmatprep.subr.bf16.mxu0 0
        %6565 = vmatpush1.bf16.msra.mxu0 0
        %6566 = vmatprep.subr.bf16.mxu0 0
        %6567 = vmatpush1.bf16.msra.mxu0 0
        %6568 = vmatprep.subr.bf16.mxu0 0
        %6569 = vmatpush1.bf16.msra.mxu0 0
        %6570 = vmatprep.subr.bf16.mxu0 0
        %6571 = vmatpush1.bf16.msra.mxu0 0
        %6572 = vmatprep.subr.bf16.mxu0 0
        %6573 = vmatpush1.bf16.msra.mxu0 0
        %6574 = vmatprep.subr.bf16.mxu0 0
        %6575 = vmatpush1.bf16.msra.mxu0 0
        %6576 = vmatprep.subr.bf16.mxu0 0
        %6577 = vmatpush1.bf16.msra.mxu0 0
        %6578 = vmatprep.subr.bf16.mxu0 0
        %6579 = vmatpush1.bf16.msra.mxu0 0
        %6580 = vmatprep.subr.bf16.mxu0 0
        %6581 = vmatpush1.bf16.msra.mxu0 0
        %6582 = vmatprep.subr.bf16.mxu0 0
        %6583 = vmatpush1.bf16.msra.mxu0 0
        %6584 = vmatprep.subr.bf16.mxu0 0
        %6585 = vmatpush1.bf16.msra.mxu0 0
        %6586 = vmatprep.mubr.bf16.mxu0 0
        %6587 = vmatmul.mubr.bf16.gmra.mrb[0].mxu0 %v6507
        %v6588 = vpop.f32.mrb[0].mxu0
        %v6589 = vadd.f32 0.0, %v6588
        %v6590 = vpop.f32.mrb[0].mxu0
        %v6591 = vpop.f32.mrb[0].mxu0
        %v6592 = vadd.f32 0.0, %v6591
        %v6593 = vpop.f32.mrb[0].mxu0
        %6594 = vmatprep.mubr.bf16.mxu0 0
        %6595 = vmatmul.mubr.bf16.gmra.mrb[0].mxu0 %v6510
        %v6596 = vpop.f32.mrb[0].mxu0
        %v6597 = vadd.f32 0.0, %v6596
        %v6598 = vpop.f32.mrb[0].mxu0
        %v6599 = vpop.f32.mrb[0].mxu0
        %v6600 = vadd.f32 0.0, %v6599
        %v6601 = vpop.f32.mrb[0].mxu0
        %6602 = vmatprep.mubr.bf16.mxu0 0
        %6603 = vmatmul.mubr.bf16.gmra.mrb[0].mxu0 %v6513
        %v6604 = vpop.f32.mrb[0].mxu0
        %v6605 = vadd.f32 0.0, %v6604
        %v6606 = vpop.f32.mrb[0].mxu0
        %v6607 = vpop.f32.mrb[0].mxu0
        %v6608 = vadd.f32 0.0, %v6607
        %v6609 = vpop.f32.mrb[0].mxu0
        %6610 = vmatprep.mubr.bf16.mxu0 0
        %6611 = vmatmul.mubr.bf16.gmra.mrb[0].mxu0 %v6516
        %v6612 = vpop.f32.mrb[0].mxu0
        %v6613 = vadd.f32 0.0, %v6612
        %v6614 = vpop.f32.mrb[0].mxu0
        %v6615 = vpop.f32.mrb[0].mxu0
        %v6616 = vadd.f32 0.0, %v6615
        %v6617 = vpop.f32.mrb[0].mxu0
        %6618 = vmatprep.mubr.bf16.mxu0 0
        %6619 = vmatmul.mubr.bf16.gmra.mrb[0].mxu0 %v6519
        %v6620 = vpop.f32.mrb[0].mxu0
        %v6621 = vadd.f32 0.0, %v6620
        %v6622 = vpop.f32.mrb[0].mxu0
        %v6623 = vpop.f32.mrb[0].mxu0
        %v6624 = vadd.f32 0.0, %v6623
        %v6625 = vpop.f32.mrb[0].mxu0
        %6626 = vmatprep.mubr.bf16.mxu0 0
        %6627 = vmatmul.mubr.bf16.gmra.mrb[0].mxu0 %v6522
        %v6628 = vpop.f32.mrb[0].mxu0
        %v6629 = vadd.f32 0.0, %v6628
        %v6630 = vpop.f32.mrb[0].mxu0
        %v6631 = vpop.f32.mrb[0].mxu0
        %v6632 = vadd.f32 0.0, %v6631
        %v6633 = vpop.f32.mrb[0].mxu0
        %6634 = vmatprep.mubr.bf16.mxu0 0
        %6635 = vmatmul.mubr.bf16.gmra.mrb[0].mxu0 %v6525
        %v6636 = vpop.f32.mrb[0].mxu0
        %v6637 = vadd.f32 0.0, %v6636
        %v6638 = vpop.f32.mrb[0].mxu0
        %v6639 = vpop.f32.mrb[0].mxu0
        %v6640 = vadd.f32 0.0, %v6639
        %v6641 = vpop.f32.mrb[0].mxu0
        %6642 = vmatprep.mubr.bf16.mxu0 0
        %6643 = vmatmul.mubr.bf16.gmra.mrb[0].mxu0 %v6528
        %v6644 = vpop.f32.mrb[0].mxu0
        %v6645 = vadd.f32 0.0, %v6644
        %v6646 = vpop.f32.mrb[0].mxu0
        %v6647 = vpop.f32.mrb[0].mxu0
        %v6648 = vadd.f32 0.0, %v6647
        %v6649 = vpop.f32.mrb[0].mxu0
        %6650 = vmatprep.mubr.bf16.mxu0 0
        %6651 = vmatmul.mubr.bf16.gmra.mrb[0].mxu0 %v6531
        %v6652 = vpop.f32.mrb[0].mxu0
        %v6653 = vadd.f32 0.0, %v6652
        %v6654 = vpop.f32.mrb[0].mxu0
        %v6655 = vpop.f32.mrb[0].mxu0
        %v6656 = vadd.f32 0.0, %v6655
        %v6657 = vpop.f32.mrb[0].mxu0
        %6658 = vmatprep.mubr.bf16.mxu0 0
        %6659 = vmatmul.mubr.bf16.gmra.mrb[0].mxu0 %v6534
        %v6660 = vpop.f32.mrb[0].mxu0
        %v6661 = vadd.f32 0.0, %v6660
        %v6662 = vpop.f32.mrb[0].mxu0
        %v6663 = vpop.f32.mrb[0].mxu0
        %v6664 = vadd.f32 0.0, %v6663
        %v6665 = vpop.f32.mrb[0].mxu0
        %6666 = vmatprep.mubr.bf16.mxu0 0
        %6667 = vmatmul.mubr.bf16.gmra.mrb[0].mxu0 %v6537
        %v6668 = vpop.f32.mrb[0].mxu0
        %v6669 = vadd.f32 0.0, %v6668
        %v6670 = vpop.f32.mrb[0].mxu0
        %v6671 = vpop.f32.mrb[0].mxu0
        %v6672 = vadd.f32 0.0, %v6671
        %v6673 = vpop.f32.mrb[0].mxu0
        %6674 = vmatprep.mubr.bf16.mxu0 0
        %6675 = vmatmul.mubr.bf16.gmra.mrb[0].mxu0 %v6540
        %v6676 = vpop.f32.mrb[0].mxu0
        %v6677 = vadd.f32 0.0, %v6676
        %v6678 = vpop.f32.mrb[0].mxu0
        %v6679 = vpop.f32.mrb[0].mxu0
        %v6680 = vadd.f32 0.0, %v6679
        %v6681 = vpop.f32.mrb[0].mxu0
        %6682 = vmatprep.mubr.bf16.mxu0 0
        %6683 = vmatmul.mubr.bf16.gmra.mrb[0].mxu0 %v6543
        %v6684 = vpop.f32.mrb[0].mxu0
        %v6685 = vadd.f32 0.0, %v6684
        %v6686 = vpop.f32.mrb[0].mxu0
        %v6687 = vpop.f32.mrb[0].mxu0
        %v6688 = vadd.f32 0.0, %v6687
        %v6689 = vpop.f32.mrb[0].mxu0
        %6690 = vmatprep.mubr.bf16.mxu0 0
        %6691 = vmatmul.mubr.bf16.gmra.mrb[0].mxu0 %v6546
        %v6692 = vpop.f32.mrb[0].mxu0
        %v6693 = vadd.f32 0.0, %v6692
        %v6694 = vpop.f32.mrb[0].mxu0
        %v6695 = vpop.f32.mrb[0].mxu0
        %v6696 = vadd.f32 0.0, %v6695
        %v6697 = vpop.f32.mrb[0].mxu0
        %6698 = vmatprep.mubr.bf16.mxu0 0
        %6699 = vmatmul.mubr.bf16.gmra.mrb[0].mxu0 %v6549
        %v6700 = vpop.f32.mrb[0].mxu0
        %v6701 = vadd.f32 0.0, %v6700
        %v6702 = vpop.f32.mrb[0].mxu0
        %v6703 = vpop.f32.mrb[0].mxu0
        %v6704 = vadd.f32 0.0, %v6703
        %v6705 = vpop.f32.mrb[0].mxu0
        %6706 = vmatprep.mubr.bf16.mxu0 0
        %6707 = vmatmul.mubr.bf16.gmra.mrb[0].mxu0 %v6552
        %v6708 = vpop.f32.mrb[0].mxu0
        %v6709 = vadd.f32 0.0, %v6708
        %v6710 = vpop.f32.mrb[0].mxu0
        %v6711 = vpop.f32.mrb[0].mxu0
        %v6712 = vadd.f32 0.0, %v6711
        %v6713 = vpop.f32.mrb[0].mxu0
        %6714 = vdwg.mxu0
        %v6715 = vadd.f32 %v6276, %v6589
        %v6716 = vadd.f32 %v6279, %v6592
        %v6717 = vadd.f32 %v6284, %v6597
        %v6718 = vadd.f32 %v6287, %v6600
        %v6719 = vadd.f32 %v6292, %v6605
        %v6720 = vadd.f32 %v6295, %v6608
        %v6721 = vadd.f32 %v6300, %v6613
        %v6722 = vadd.f32 %v6303, %v6616
        %v6723 = vadd.f32 %v6308, %v6621
        %v6724 = vadd.f32 %v6311, %v6624
        %v6725 = vadd.f32 %v6316, %v6629
        %v6726 = vadd.f32 %v6319, %v6632
        %v6727 = vadd.f32 %v6324, %v6637
        %v6728 = vadd.f32 %v6327, %v6640
        %v6729 = vadd.f32 %v6332, %v6645
        %v6730 = vadd.f32 %v6335, %v6648
        %v6731 = vadd.f32 %v6340, %v6653
        %v6732 = vadd.f32 %v6343, %v6656
        %v6733 = vadd.f32 %v6348, %v6661
        %v6734 = vadd.f32 %v6351, %v6664
        %v6735 = vadd.f32 %v6356, %v6669
        %v6736 = vadd.f32 %v6359, %v6672
        %v6737 = vadd.f32 %v6364, %v6677
        %v6738 = vadd.f32 %v6367, %v6680
        %v6739 = vadd.f32 %v6372, %v6685
        %v6740 = vadd.f32 %v6375, %v6688
        %v6741 = vadd.f32 %v6380, %v6693
        %v6742 = vadd.f32 %v6383, %v6696
        %v6743 = vadd.f32 %v6388, %v6701
        %v6744 = vadd.f32 %v6391, %v6704
        %v6745 = vadd.f32 %v6396, %v6709
        %v6746 = vadd.f32 %v6399, %v6712
        %v6755 = vunpack.c.l.b16 %v5622
        %v6756 = vunpack.c.l.b16 %v5623
        %v6757 = vunpack.c.l.b16 %v5624
        %v6758 = vunpack.c.l.b16 %v5625
        %v6759 = vunpack.c.l.b16 %v5626
        %v6760 = vunpack.c.l.b16 %v5627
        %v6761 = vunpack.c.l.b16 %v5628
        %v6762 = vunpack.c.l.b16 %v5629
        %v6763 = vpack.c.b16 %v6756, %v6755
        %v6764 = vpack.c.b16 %v6758, %v6757
        %v6765 = vpack.c.b16 %v6760, %v6759
        %v6766 = vpack.c.b16 %v6762, %v6761
        %v6772 = vsel %vm388, %v5756, 0
        %6774 = vmatprep.subr.bf16.mxu0 0
        %6775 = vmatpush1.bf16.msra.mxu0 %v6763
        %6776 = vmatprep.subr.bf16.mxu0 0
        %6777 = vmatpush1.bf16.msra.mxu0 %v6764
        %6778 = vmatprep.subr.bf16.mxu0 0
        %6779 = vmatpush1.bf16.msra.mxu0 %v6765
        %6780 = vmatprep.subr.bf16.mxu0 0
        %6781 = vmatpush1.bf16.msra.mxu0 %v6766
        %6782 = vmatprep.subr.bf16.mxu0 0
        %6783 = vmatpush1.bf16.msra.mxu0 0
        %6784 = vmatprep.subr.bf16.mxu0 0
        %6785 = vmatpush1.bf16.msra.mxu0 0
        %6786 = vmatprep.subr.bf16.mxu0 0
        %6787 = vmatpush1.bf16.msra.mxu0 0
        %6788 = vmatprep.subr.bf16.mxu0 0
        %6789 = vmatpush1.bf16.msra.mxu0 0
        %6790 = vmatprep.subr.bf16.mxu0 0
        %6791 = vmatpush1.bf16.msra.mxu0 0
        %6792 = vmatprep.subr.bf16.mxu0 0
        %6793 = vmatpush1.bf16.msra.mxu0 0
        %6794 = vmatprep.subr.bf16.mxu0 0
        %6795 = vmatpush1.bf16.msra.mxu0 0
        %6796 = vmatprep.subr.bf16.mxu0 0
        %6797 = vmatpush1.bf16.msra.mxu0 0
        %6798 = vmatprep.subr.bf16.mxu0 0
        %6799 = vmatpush1.bf16.msra.mxu0 0
        %6800 = vmatprep.subr.bf16.mxu0 0
        %6801 = vmatpush1.bf16.msra.mxu0 0
        %6802 = vmatprep.subr.bf16.mxu0 0
        %6803 = vmatpush1.bf16.msra.mxu0 0
        %6804 = vmatprep.subr.bf16.mxu0 0
        %6805 = vmatpush1.bf16.msra.mxu0 0
        %6806 = vmatprep.mubr.bf16.mxu0 0
        %6807 = vmatmul.mubr.bf16.gmra.mrb[0].mxu0 %v6211
        %v6808 = vpop.f32.mrb[0].mxu0
        %v6809 = vadd.f32 0.0, %v6808
        %v6810 = vpop.f32.mrb[0].mxu0
        %v6811 = vpop.f32.mrb[0].mxu0
        %v6812 = vadd.f32 0.0, %v6811
        %v6813 = vpop.f32.mrb[0].mxu0
        %6814 = vmatprep.mubr.bf16.mxu0 0
        %6815 = vmatmul.mubr.bf16.gmra.mrb[0].mxu0 %v6213
        %v6816 = vpop.f32.mrb[0].mxu0
        %v6817 = vadd.f32 0.0, %v6816
        %v6818 = vpop.f32.mrb[0].mxu0
        %v6819 = vpop.f32.mrb[0].mxu0
        %v6820 = vadd.f32 0.0, %v6819
        %v6821 = vpop.f32.mrb[0].mxu0
        %6822 = vmatprep.mubr.bf16.mxu0 0
        %6823 = vmatmul.mubr.bf16.gmra.mrb[0].mxu0 %v6215
        %v6824 = vpop.f32.mrb[0].mxu0
        %v6825 = vadd.f32 0.0, %v6824
        %v6826 = vpop.f32.mrb[0].mxu0
        %v6827 = vpop.f32.mrb[0].mxu0
        %v6828 = vadd.f32 0.0, %v6827
        %v6829 = vpop.f32.mrb[0].mxu0
        %6830 = vmatprep.mubr.bf16.mxu0 0
        %6831 = vmatmul.mubr.bf16.gmra.mrb[0].mxu0 %v6217
        %v6832 = vpop.f32.mrb[0].mxu0
        %v6833 = vadd.f32 0.0, %v6832
        %v6834 = vpop.f32.mrb[0].mxu0
        %v6835 = vpop.f32.mrb[0].mxu0
        %v6836 = vadd.f32 0.0, %v6835
        %v6837 = vpop.f32.mrb[0].mxu0
        %6838 = vmatprep.mubr.bf16.mxu0 0
        %6839 = vmatmul.mubr.bf16.gmra.mrb[0].mxu0 %v6219
        %v6840 = vpop.f32.mrb[0].mxu0
        %v6841 = vadd.f32 0.0, %v6840
        %v6842 = vpop.f32.mrb[0].mxu0
        %v6843 = vpop.f32.mrb[0].mxu0
        %v6844 = vadd.f32 0.0, %v6843
        %v6845 = vpop.f32.mrb[0].mxu0
        %6846 = vmatprep.mubr.bf16.mxu0 0
        %6847 = vmatmul.mubr.bf16.gmra.mrb[0].mxu0 %v6221
        %v6848 = vpop.f32.mrb[0].mxu0
        %v6849 = vadd.f32 0.0, %v6848
        %v6850 = vpop.f32.mrb[0].mxu0
        %v6851 = vpop.f32.mrb[0].mxu0
        %v6852 = vadd.f32 0.0, %v6851
        %v6853 = vpop.f32.mrb[0].mxu0
        %6854 = vmatprep.mubr.bf16.mxu0 0
        %6855 = vmatmul.mubr.bf16.gmra.mrb[0].mxu0 %v6223
        %v6856 = vpop.f32.mrb[0].mxu0
        %v6857 = vadd.f32 0.0, %v6856
        %v6858 = vpop.f32.mrb[0].mxu0
        %v6859 = vpop.f32.mrb[0].mxu0
        %v6860 = vadd.f32 0.0, %v6859
        %v6861 = vpop.f32.mrb[0].mxu0
        %6862 = vmatprep.mubr.bf16.mxu0 0
        %6863 = vmatmul.mubr.bf16.gmra.mrb[0].mxu0 %v6225
        %v6864 = vpop.f32.mrb[0].mxu0
        %v6865 = vadd.f32 0.0, %v6864
        %v6866 = vpop.f32.mrb[0].mxu0
        %v6867 = vpop.f32.mrb[0].mxu0
        %v6868 = vadd.f32 0.0, %v6867
        %v6869 = vpop.f32.mrb[0].mxu0
        %6870 = vmatprep.mubr.bf16.mxu0 0
        %6871 = vmatmul.mubr.bf16.gmra.mrb[0].mxu0 %v6227
        %v6872 = vpop.f32.mrb[0].mxu0
        %v6873 = vadd.f32 0.0, %v6872
        %v6874 = vpop.f32.mrb[0].mxu0
        %v6875 = vpop.f32.mrb[0].mxu0
        %v6876 = vadd.f32 0.0, %v6875
        %v6877 = vpop.f32.mrb[0].mxu0
        %6878 = vmatprep.mubr.bf16.mxu0 0
        %6879 = vmatmul.mubr.bf16.gmra.mrb[0].mxu0 %v6229
        %v6880 = vpop.f32.mrb[0].mxu0
        %v6881 = vadd.f32 0.0, %v6880
        %v6882 = vpop.f32.mrb[0].mxu0
        %v6883 = vpop.f32.mrb[0].mxu0
        %v6884 = vadd.f32 0.0, %v6883
        %v6885 = vpop.f32.mrb[0].mxu0
        %6886 = vmatprep.mubr.bf16.mxu0 0
        %6887 = vmatmul.mubr.bf16.gmra.mrb[0].mxu0 %v6231
        %v6888 = vpop.f32.mrb[0].mxu0
        %v6889 = vadd.f32 0.0, %v6888
        %v6890 = vpop.f32.mrb[0].mxu0
        %v6891 = vpop.f32.mrb[0].mxu0
        %v6892 = vadd.f32 0.0, %v6891
        %v6893 = vpop.f32.mrb[0].mxu0
        %6894 = vmatprep.mubr.bf16.mxu0 0
        %6895 = vmatmul.mubr.bf16.gmra.mrb[0].mxu0 %v6233
        %v6896 = vpop.f32.mrb[0].mxu0
        %v6897 = vadd.f32 0.0, %v6896
        %v6898 = vpop.f32.mrb[0].mxu0
        %v6899 = vpop.f32.mrb[0].mxu0
        %v6900 = vadd.f32 0.0, %v6899
        %v6901 = vpop.f32.mrb[0].mxu0
        %6902 = vmatprep.mubr.bf16.mxu0 0
        %6903 = vmatmul.mubr.bf16.gmra.mrb[0].mxu0 %v6235
        %v6904 = vpop.f32.mrb[0].mxu0
        %v6905 = vadd.f32 0.0, %v6904
        %v6906 = vpop.f32.mrb[0].mxu0
        %v6907 = vpop.f32.mrb[0].mxu0
        %v6908 = vadd.f32 0.0, %v6907
        %v6909 = vpop.f32.mrb[0].mxu0
        %6910 = vmatprep.mubr.bf16.mxu0 0
        %6911 = vmatmul.mubr.bf16.gmra.mrb[0].mxu0 %v6237
        %v6912 = vpop.f32.mrb[0].mxu0
        %v6913 = vadd.f32 0.0, %v6912
        %v6914 = vpop.f32.mrb[0].mxu0
        %v6915 = vpop.f32.mrb[0].mxu0
        %v6916 = vadd.f32 0.0, %v6915
        %v6917 = vpop.f32.mrb[0].mxu0
        %6918 = vmatprep.mubr.bf16.mxu0 0
        %6919 = vmatmul.mubr.bf16.gmra.mrb[0].mxu0 %v6239
        %v6920 = vpop.f32.mrb[0].mxu0
        %v6921 = vadd.f32 0.0, %v6920
        %v6922 = vpop.f32.mrb[0].mxu0
        %v6923 = vpop.f32.mrb[0].mxu0
        %v6924 = vadd.f32 0.0, %v6923
        %v6925 = vpop.f32.mrb[0].mxu0
        %6926 = vmatprep.mubr.bf16.mxu0 0
        %6927 = vmatmul.mubr.bf16.gmra.mrb[0].mxu0 %v6772
        %v6928 = vpop.f32.mrb[0].mxu0
        %v6929 = vadd.f32 0.0, %v6928
        %v6930 = vpop.f32.mrb[0].mxu0
        %v6931 = vpop.f32.mrb[0].mxu0
        %v6932 = vadd.f32 0.0, %v6931
        %v6933 = vpop.f32.mrb[0].mxu0
        %6934 = vdwg.mxu0
        %v6935 = vadd.f32 %v6715, %v6809
        %v6936 = vadd.f32 %v6716, %v6812
        %v6937 = vadd.f32 %v6717, %v6817
        %v6938 = vadd.f32 %v6718, %v6820
        %v6939 = vadd.f32 %v6719, %v6825
        %v6940 = vadd.f32 %v6720, %v6828
        %v6941 = vadd.f32 %v6721, %v6833
        %v6942 = vadd.f32 %v6722, %v6836
        %v6943 = vadd.f32 %v6723, %v6841
        %v6944 = vadd.f32 %v6724, %v6844
        %v6945 = vadd.f32 %v6725, %v6849
        %v6946 = vadd.f32 %v6726, %v6852
        %v6947 = vadd.f32 %v6727, %v6857
        %v6948 = vadd.f32 %v6728, %v6860
        %v6949 = vadd.f32 %v6729, %v6865
        %v6950 = vadd.f32 %v6730, %v6868
        %v6951 = vadd.f32 %v6731, %v6873
        %v6952 = vadd.f32 %v6732, %v6876
        %v6953 = vadd.f32 %v6733, %v6881
        %v6954 = vadd.f32 %v6734, %v6884
        %v6955 = vadd.f32 %v6735, %v6889
        %v6956 = vadd.f32 %v6736, %v6892
        %v6957 = vadd.f32 %v6737, %v6897
        %v6958 = vadd.f32 %v6738, %v6900
        %v6959 = vadd.f32 %v6739, %v6905
        %v6960 = vadd.f32 %v6740, %v6908
        %v6961 = vadd.f32 %v6741, %v6913
        %v6962 = vadd.f32 %v6742, %v6916
        %v6963 = vadd.f32 %v6743, %v6921
        %v6964 = vadd.f32 %v6744, %v6924
        %v6965 = vadd.f32 %v6745, %v6929
        %v6966 = vadd.f32 %v6746, %v6932
        %v6967 = vshrl.u32 %v5756, 16
        %v6969 = vshll.u32 %v5756, 16
        %v6971 = vrot.slane %v6969, 1
        %v6972 = vor.u32 %v6967, %v6971
        %v6974 = vshll.u32 %v5757, 16
        %v6976 = vrot.slane %v6974, 1
        %v6977 = vsel %vm657, %v6972, %v6976
        %v6986 = vunpack.c.l.b16 %v5630
        %v6987 = vunpack.c.l.b16 %v5631
        %v6988 = vunpack.c.l.b16 %v5632
        %v6989 = vunpack.c.l.b16 %v5633
        %v6990 = vunpack.c.l.b16 %v5634
        %v6991 = vunpack.c.l.b16 %v5635
        %v6992 = vunpack.c.l.b16 %v5636
        %v6993 = vunpack.c.l.b16 %v5637
        %v6994 = vpack.c.b16 %v6987, %v6986
        %v6995 = vpack.c.b16 %v6989, %v6988
        %v6996 = vpack.c.b16 %v6991, %v6990
        %v6997 = vpack.c.b16 %v6993, %v6992
        %v7003 = vsel %vm388, %v6977, 0
        %7005 = vmatprep.subr.bf16.mxu0 0
        %7006 = vmatpush1.bf16.msra.mxu0 %v6994
        %7007 = vmatprep.subr.bf16.mxu0 0
        %7008 = vmatpush1.bf16.msra.mxu0 %v6995
        %7009 = vmatprep.subr.bf16.mxu0 0
        %7010 = vmatpush1.bf16.msra.mxu0 %v6996
        %7011 = vmatprep.subr.bf16.mxu0 0
        %7012 = vmatpush1.bf16.msra.mxu0 %v6997
        %7013 = vmatprep.subr.bf16.mxu0 0
        %7014 = vmatpush1.bf16.msra.mxu0 0
        %7015 = vmatprep.subr.bf16.mxu0 0
        %7016 = vmatpush1.bf16.msra.mxu0 0
        %7017 = vmatprep.subr.bf16.mxu0 0
        %7018 = vmatpush1.bf16.msra.mxu0 0
        %7019 = vmatprep.subr.bf16.mxu0 0
        %7020 = vmatpush1.bf16.msra.mxu0 0
        %7021 = vmatprep.subr.bf16.mxu0 0
        %7022 = vmatpush1.bf16.msra.mxu0 0
        %7023 = vmatprep.subr.bf16.mxu0 0
        %7024 = vmatpush1.bf16.msra.mxu0 0
        %7025 = vmatprep.subr.bf16.mxu0 0
        %7026 = vmatpush1.bf16.msra.mxu0 0
        %7027 = vmatprep.subr.bf16.mxu0 0
        %7028 = vmatpush1.bf16.msra.mxu0 0
        %7029 = vmatprep.subr.bf16.mxu0 0
        %7030 = vmatpush1.bf16.msra.mxu0 0
        %7031 = vmatprep.subr.bf16.mxu0 0
        %7032 = vmatpush1.bf16.msra.mxu0 0
        %7033 = vmatprep.subr.bf16.mxu0 0
        %7034 = vmatpush1.bf16.msra.mxu0 0
        %7035 = vmatprep.subr.bf16.mxu0 0
        %7036 = vmatpush1.bf16.msra.mxu0 0
        %7037 = vmatprep.mubr.bf16.mxu0 0
        %7038 = vmatmul.mubr.bf16.gmra.mrb[0].mxu0 %v5980
        %v7039 = vpop.f32.mrb[0].mxu0
        %v7040 = vadd.f32 0.0, %v7039
        %v7041 = vpop.f32.mrb[0].mxu0
        %v7042 = vpop.f32.mrb[0].mxu0
        %v7043 = vadd.f32 0.0, %v7042
        %v7044 = vpop.f32.mrb[0].mxu0
        %7045 = vmatprep.mubr.bf16.mxu0 0
        %7046 = vmatmul.mubr.bf16.gmra.mrb[0].mxu0 %v5983
        %v7047 = vpop.f32.mrb[0].mxu0
        %v7048 = vadd.f32 0.0, %v7047
        %v7049 = vpop.f32.mrb[0].mxu0
        %v7050 = vpop.f32.mrb[0].mxu0
        %v7051 = vadd.f32 0.0, %v7050
        %v7052 = vpop.f32.mrb[0].mxu0
        %7053 = vmatprep.mubr.bf16.mxu0 0
        %7054 = vmatmul.mubr.bf16.gmra.mrb[0].mxu0 %v5986
        %v7055 = vpop.f32.mrb[0].mxu0
        %v7056 = vadd.f32 0.0, %v7055
        %v7057 = vpop.f32.mrb[0].mxu0
        %v7058 = vpop.f32.mrb[0].mxu0
        %v7059 = vadd.f32 0.0, %v7058
        %v7060 = vpop.f32.mrb[0].mxu0
        %7061 = vmatprep.mubr.bf16.mxu0 0
        %7062 = vmatmul.mubr.bf16.gmra.mrb[0].mxu0 %v5989
        %v7063 = vpop.f32.mrb[0].mxu0
        %v7064 = vadd.f32 0.0, %v7063
        %v7065 = vpop.f32.mrb[0].mxu0
        %v7066 = vpop.f32.mrb[0].mxu0
        %v7067 = vadd.f32 0.0, %v7066
        %v7068 = vpop.f32.mrb[0].mxu0
        %7069 = vmatprep.mubr.bf16.mxu0 0
        %7070 = vmatmul.mubr.bf16.gmra.mrb[0].mxu0 %v5992
        %v7071 = vpop.f32.mrb[0].mxu0
        %v7072 = vadd.f32 0.0, %v7071
        %v7073 = vpop.f32.mrb[0].mxu0
        %v7074 = vpop.f32.mrb[0].mxu0
        %v7075 = vadd.f32 0.0, %v7074
        %v7076 = vpop.f32.mrb[0].mxu0
        %7077 = vmatprep.mubr.bf16.mxu0 0
        %7078 = vmatmul.mubr.bf16.gmra.mrb[0].mxu0 %v5995
        %v7079 = vpop.f32.mrb[0].mxu0
        %v7080 = vadd.f32 0.0, %v7079
        %v7081 = vpop.f32.mrb[0].mxu0
        %v7082 = vpop.f32.mrb[0].mxu0
        %v7083 = vadd.f32 0.0, %v7082
        %v7084 = vpop.f32.mrb[0].mxu0
        %7085 = vmatprep.mubr.bf16.mxu0 0
        %7086 = vmatmul.mubr.bf16.gmra.mrb[0].mxu0 %v5998
        %v7087 = vpop.f32.mrb[0].mxu0
        %v7088 = vadd.f32 0.0, %v7087
        %v7089 = vpop.f32.mrb[0].mxu0
        %v7090 = vpop.f32.mrb[0].mxu0
        %v7091 = vadd.f32 0.0, %v7090
        %v7092 = vpop.f32.mrb[0].mxu0
        %7093 = vmatprep.mubr.bf16.mxu0 0
        %7094 = vmatmul.mubr.bf16.gmra.mrb[0].mxu0 %v6001
        %v7095 = vpop.f32.mrb[0].mxu0
        %v7096 = vadd.f32 0.0, %v7095
        %v7097 = vpop.f32.mrb[0].mxu0
        %v7098 = vpop.f32.mrb[0].mxu0
        %v7099 = vadd.f32 0.0, %v7098
        %v7100 = vpop.f32.mrb[0].mxu0
        %7101 = vmatprep.mubr.bf16.mxu0 0
        %7102 = vmatmul.mubr.bf16.gmra.mrb[0].mxu0 %v6004
        %v7103 = vpop.f32.mrb[0].mxu0
        %v7104 = vadd.f32 0.0, %v7103
        %v7105 = vpop.f32.mrb[0].mxu0
        %v7106 = vpop.f32.mrb[0].mxu0
        %v7107 = vadd.f32 0.0, %v7106
        %v7108 = vpop.f32.mrb[0].mxu0
        %7109 = vmatprep.mubr.bf16.mxu0 0
        %7110 = vmatmul.mubr.bf16.gmra.mrb[0].mxu0 %v6007
        %v7111 = vpop.f32.mrb[0].mxu0
        %v7112 = vadd.f32 0.0, %v7111
        %v7113 = vpop.f32.mrb[0].mxu0
        %v7114 = vpop.f32.mrb[0].mxu0
        %v7115 = vadd.f32 0.0, %v7114
        %v7116 = vpop.f32.mrb[0].mxu0
        %7117 = vmatprep.mubr.bf16.mxu0 0
        %7118 = vmatmul.mubr.bf16.gmra.mrb[0].mxu0 %v6010
        %v7119 = vpop.f32.mrb[0].mxu0
        %v7120 = vadd.f32 0.0, %v7119
        %v7121 = vpop.f32.mrb[0].mxu0
        %v7122 = vpop.f32.mrb[0].mxu0
        %v7123 = vadd.f32 0.0, %v7122
        %v7124 = vpop.f32.mrb[0].mxu0
        %7125 = vmatprep.mubr.bf16.mxu0 0
        %7126 = vmatmul.mubr.bf16.gmra.mrb[0].mxu0 %v6013
        %v7127 = vpop.f32.mrb[0].mxu0
        %v7128 = vadd.f32 0.0, %v7127
        %v7129 = vpop.f32.mrb[0].mxu0
        %v7130 = vpop.f32.mrb[0].mxu0
        %v7131 = vadd.f32 0.0, %v7130
        %v7132 = vpop.f32.mrb[0].mxu0
        %7133 = vmatprep.mubr.bf16.mxu0 0
        %7134 = vmatmul.mubr.bf16.gmra.mrb[0].mxu0 %v6016
        %v7135 = vpop.f32.mrb[0].mxu0
        %v7136 = vadd.f32 0.0, %v7135
        %v7137 = vpop.f32.mrb[0].mxu0
        %v7138 = vpop.f32.mrb[0].mxu0
        %v7139 = vadd.f32 0.0, %v7138
        %v7140 = vpop.f32.mrb[0].mxu0
        %7141 = vmatprep.mubr.bf16.mxu0 0
        %7142 = vmatmul.mubr.bf16.gmra.mrb[0].mxu0 %v6019
        %v7143 = vpop.f32.mrb[0].mxu0
        %v7144 = vadd.f32 0.0, %v7143
        %v7145 = vpop.f32.mrb[0].mxu0
        %v7146 = vpop.f32.mrb[0].mxu0
        %v7147 = vadd.f32 0.0, %v7146
        %v7148 = vpop.f32.mrb[0].mxu0
        %7149 = vmatprep.mubr.bf16.mxu0 0
        %7150 = vmatmul.mubr.bf16.gmra.mrb[0].mxu0 %v6022
        %v7151 = vpop.f32.mrb[0].mxu0
        %v7152 = vadd.f32 0.0, %v7151
        %v7153 = vpop.f32.mrb[0].mxu0
        %v7154 = vpop.f32.mrb[0].mxu0
        %v7155 = vadd.f32 0.0, %v7154
        %v7156 = vpop.f32.mrb[0].mxu0
        %7157 = vmatprep.mubr.bf16.mxu0 0
        %7158 = vmatmul.mubr.bf16.gmra.mrb[0].mxu0 %v7003
        %v7159 = vpop.f32.mrb[0].mxu0
        %v7160 = vadd.f32 0.0, %v7159
        %v7161 = vpop.f32.mrb[0].mxu0
        %v7162 = vpop.f32.mrb[0].mxu0
        %v7163 = vadd.f32 0.0, %v7162
        %v7164 = vpop.f32.mrb[0].mxu0
        %7165 = vdwg.mxu0
        %v7166 = vadd.f32 %v6935, %v7040
        %v7167 = vadd.f32 %v6936, %v7043
        %v7168 = vadd.f32 %v6937, %v7048
        %v7169 = vadd.f32 %v6938, %v7051
        %v7170 = vadd.f32 %v6939, %v7056
        %v7171 = vadd.f32 %v6940, %v7059
        %v7172 = vadd.f32 %v6941, %v7064
        %v7173 = vadd.f32 %v6942, %v7067
        %v7174 = vadd.f32 %v6943, %v7072
        %v7175 = vadd.f32 %v6944, %v7075
        %v7176 = vadd.f32 %v6945, %v7080
        %v7177 = vadd.f32 %v6946, %v7083
        %v7178 = vadd.f32 %v6947, %v7088
        %v7179 = vadd.f32 %v6948, %v7091
        %v7180 = vadd.f32 %v6949, %v7096
        %v7181 = vadd.f32 %v6950, %v7099
        %v7182 = vadd.f32 %v6951, %v7104
        %v7183 = vadd.f32 %v6952, %v7107
        %v7184 = vadd.f32 %v6953, %v7112
        %v7185 = vadd.f32 %v6954, %v7115
        %v7186 = vadd.f32 %v6955, %v7120
        %v7187 = vadd.f32 %v6956, %v7123
        %v7188 = vadd.f32 %v6957, %v7128
        %v7189 = vadd.f32 %v6958, %v7131
        %v7190 = vadd.f32 %v6959, %v7136
        %v7191 = vadd.f32 %v6960, %v7139
        %v7192 = vadd.f32 %v6961, %v7144
        %v7193 = vadd.f32 %v6962, %v7147
        %v7194 = vadd.f32 %v6963, %v7152
        %v7195 = vadd.f32 %v6964, %v7155
        %v7196 = vadd.f32 %v6965, %v7160
        %v7197 = vadd.f32 %v6966, %v7163
        %v7200 = vrot.slane %v5756, 1
        %v7201 = vrot.slane %v5757, 1
        %v7202 = vsel %vm1308, %v7200, %v7201
        %v7211 = vunpack.c.l.b16 %v5638
        %v7212 = vunpack.c.l.b16 %v5639
        %v7213 = vunpack.c.l.b16 %v5640
        %v7214 = vunpack.c.l.b16 %v5641
        %v7215 = vunpack.c.l.b16 %v5642
        %v7216 = vunpack.c.l.b16 %v5643
        %v7217 = vunpack.c.l.b16 %v5644
        %v7218 = vunpack.c.l.b16 %v5645
        %v7219 = vpack.c.b16 %v7212, %v7211
        %v7220 = vpack.c.b16 %v7214, %v7213
        %v7221 = vpack.c.b16 %v7216, %v7215
        %v7222 = vpack.c.b16 %v7218, %v7217
        %v7228 = vsel %vm388, %v7202, 0
        %7230 = vmatprep.subr.bf16.mxu0 0
        %7231 = vmatpush1.bf16.msra.mxu0 %v7219
        %7232 = vmatprep.subr.bf16.mxu0 0
        %7233 = vmatpush1.bf16.msra.mxu0 %v7220
        %7234 = vmatprep.subr.bf16.mxu0 0
        %7235 = vmatpush1.bf16.msra.mxu0 %v7221
        %7236 = vmatprep.subr.bf16.mxu0 0
        %7237 = vmatpush1.bf16.msra.mxu0 %v7222
        %7238 = vmatprep.subr.bf16.mxu0 0
        %7239 = vmatpush1.bf16.msra.mxu0 0
        %7240 = vmatprep.subr.bf16.mxu0 0
        %7241 = vmatpush1.bf16.msra.mxu0 0
        %7242 = vmatprep.subr.bf16.mxu0 0
        %7243 = vmatpush1.bf16.msra.mxu0 0
        %7244 = vmatprep.subr.bf16.mxu0 0
        %7245 = vmatpush1.bf16.msra.mxu0 0
        %7246 = vmatprep.subr.bf16.mxu0 0
        %7247 = vmatpush1.bf16.msra.mxu0 0
        %7248 = vmatprep.subr.bf16.mxu0 0
        %7249 = vmatpush1.bf16.msra.mxu0 0
        %7250 = vmatprep.subr.bf16.mxu0 0
        %7251 = vmatpush1.bf16.msra.mxu0 0
        %7252 = vmatprep.subr.bf16.mxu0 0
        %7253 = vmatpush1.bf16.msra.mxu0 0
        %7254 = vmatprep.subr.bf16.mxu0 0
        %7255 = vmatpush1.bf16.msra.mxu0 0
        %7256 = vmatprep.subr.bf16.mxu0 0
        %7257 = vmatpush1.bf16.msra.mxu0 0
        %7258 = vmatprep.subr.bf16.mxu0 0
        %7259 = vmatpush1.bf16.msra.mxu0 0
        %7260 = vmatprep.subr.bf16.mxu0 0
        %7261 = vmatpush1.bf16.msra.mxu0 0
        %7262 = vmatprep.mubr.bf16.mxu0 0
        %7263 = vmatmul.mubr.bf16.gmra.mrb[0].mxu0 %v6510
        %v7264 = vpop.f32.mrb[0].mxu0
        %v7265 = vadd.f32 0.0, %v7264
        %v7266 = vpop.f32.mrb[0].mxu0
        %v7267 = vpop.f32.mrb[0].mxu0
        %v7268 = vadd.f32 0.0, %v7267
        %v7269 = vpop.f32.mrb[0].mxu0
        %7270 = vmatprep.mubr.bf16.mxu0 0
        %7271 = vmatmul.mubr.bf16.gmra.mrb[0].mxu0 %v6513
        %v7272 = vpop.f32.mrb[0].mxu0
        %v7273 = vadd.f32 0.0, %v7272
        %v7274 = vpop.f32.mrb[0].mxu0
        %v7275 = vpop.f32.mrb[0].mxu0
        %v7276 = vadd.f32 0.0, %v7275
        %v7277 = vpop.f32.mrb[0].mxu0
        %7278 = vmatprep.mubr.bf16.mxu0 0
        %7279 = vmatmul.mubr.bf16.gmra.mrb[0].mxu0 %v6516
        %v7280 = vpop.f32.mrb[0].mxu0
        %v7281 = vadd.f32 0.0, %v7280
        %v7282 = vpop.f32.mrb[0].mxu0
        %v7283 = vpop.f32.mrb[0].mxu0
        %v7284 = vadd.f32 0.0, %v7283
        %v7285 = vpop.f32.mrb[0].mxu0
        %7286 = vmatprep.mubr.bf16.mxu0 0
        %7287 = vmatmul.mubr.bf16.gmra.mrb[0].mxu0 %v6519
        %v7288 = vpop.f32.mrb[0].mxu0
        %v7289 = vadd.f32 0.0, %v7288
        %v7290 = vpop.f32.mrb[0].mxu0
        %v7291 = vpop.f32.mrb[0].mxu0
        %v7292 = vadd.f32 0.0, %v7291
        %v7293 = vpop.f32.mrb[0].mxu0
        %7294 = vmatprep.mubr.bf16.mxu0 0
        %7295 = vmatmul.mubr.bf16.gmra.mrb[0].mxu0 %v6522
        %v7296 = vpop.f32.mrb[0].mxu0
        %v7297 = vadd.f32 0.0, %v7296
        %v7298 = vpop.f32.mrb[0].mxu0
        %v7299 = vpop.f32.mrb[0].mxu0
        %v7300 = vadd.f32 0.0, %v7299
        %v7301 = vpop.f32.mrb[0].mxu0
        %7302 = vmatprep.mubr.bf16.mxu0 0
        %7303 = vmatmul.mubr.bf16.gmra.mrb[0].mxu0 %v6525
        %v7304 = vpop.f32.mrb[0].mxu0
        %v7305 = vadd.f32 0.0, %v7304
        %v7306 = vpop.f32.mrb[0].mxu0
        %v7307 = vpop.f32.mrb[0].mxu0
        %v7308 = vadd.f32 0.0, %v7307
        %v7309 = vpop.f32.mrb[0].mxu0
        %7310 = vmatprep.mubr.bf16.mxu0 0
        %7311 = vmatmul.mubr.bf16.gmra.mrb[0].mxu0 %v6528
        %v7312 = vpop.f32.mrb[0].mxu0
        %v7313 = vadd.f32 0.0, %v7312
        %v7314 = vpop.f32.mrb[0].mxu0
        %v7315 = vpop.f32.mrb[0].mxu0
        %v7316 = vadd.f32 0.0, %v7315
        %v7317 = vpop.f32.mrb[0].mxu0
        %7318 = vmatprep.mubr.bf16.mxu0 0
        %7319 = vmatmul.mubr.bf16.gmra.mrb[0].mxu0 %v6531
        %v7320 = vpop.f32.mrb[0].mxu0
        %v7321 = vadd.f32 0.0, %v7320
        %v7322 = vpop.f32.mrb[0].mxu0
        %v7323 = vpop.f32.mrb[0].mxu0
        %v7324 = vadd.f32 0.0, %v7323
        %v7325 = vpop.f32.mrb[0].mxu0
        %7326 = vmatprep.mubr.bf16.mxu0 0
        %7327 = vmatmul.mubr.bf16.gmra.mrb[0].mxu0 %v6534
        %v7328 = vpop.f32.mrb[0].mxu0
        %v7329 = vadd.f32 0.0, %v7328
        %v7330 = vpop.f32.mrb[0].mxu0
        %v7331 = vpop.f32.mrb[0].mxu0
        %v7332 = vadd.f32 0.0, %v7331
        %v7333 = vpop.f32.mrb[0].mxu0
        %7334 = vmatprep.mubr.bf16.mxu0 0
        %7335 = vmatmul.mubr.bf16.gmra.mrb[0].mxu0 %v6537
        %v7336 = vpop.f32.mrb[0].mxu0
        %v7337 = vadd.f32 0.0, %v7336
        %v7338 = vpop.f32.mrb[0].mxu0
        %v7339 = vpop.f32.mrb[0].mxu0
        %v7340 = vadd.f32 0.0, %v7339
        %v7341 = vpop.f32.mrb[0].mxu0
        %7342 = vmatprep.mubr.bf16.mxu0 0
        %7343 = vmatmul.mubr.bf16.gmra.mrb[0].mxu0 %v6540
        %v7344 = vpop.f32.mrb[0].mxu0
        %v7345 = vadd.f32 0.0, %v7344
        %v7346 = vpop.f32.mrb[0].mxu0
        %v7347 = vpop.f32.mrb[0].mxu0
        %v7348 = vadd.f32 0.0, %v7347
        %v7349 = vpop.f32.mrb[0].mxu0
        %7350 = vmatprep.mubr.bf16.mxu0 0
        %7351 = vmatmul.mubr.bf16.gmra.mrb[0].mxu0 %v6543
        %v7352 = vpop.f32.mrb[0].mxu0
        %v7353 = vadd.f32 0.0, %v7352
        %v7354 = vpop.f32.mrb[0].mxu0
        %v7355 = vpop.f32.mrb[0].mxu0
        %v7356 = vadd.f32 0.0, %v7355
        %v7357 = vpop.f32.mrb[0].mxu0
        %7358 = vmatprep.mubr.bf16.mxu0 0
        %7359 = vmatmul.mubr.bf16.gmra.mrb[0].mxu0 %v6546
        %v7360 = vpop.f32.mrb[0].mxu0
        %v7361 = vadd.f32 0.0, %v7360
        %v7362 = vpop.f32.mrb[0].mxu0
        %v7363 = vpop.f32.mrb[0].mxu0
        %v7364 = vadd.f32 0.0, %v7363
        %v7365 = vpop.f32.mrb[0].mxu0
        %7366 = vmatprep.mubr.bf16.mxu0 0
        %7367 = vmatmul.mubr.bf16.gmra.mrb[0].mxu0 %v6549
        %v7368 = vpop.f32.mrb[0].mxu0
        %v7369 = vadd.f32 0.0, %v7368
        %v7370 = vpop.f32.mrb[0].mxu0
        %v7371 = vpop.f32.mrb[0].mxu0
        %v7372 = vadd.f32 0.0, %v7371
        %v7373 = vpop.f32.mrb[0].mxu0
        %7374 = vmatprep.mubr.bf16.mxu0 0
        %7375 = vmatmul.mubr.bf16.gmra.mrb[0].mxu0 %v6552
        %v7376 = vpop.f32.mrb[0].mxu0
        %v7377 = vadd.f32 0.0, %v7376
        %v7378 = vpop.f32.mrb[0].mxu0
        %v7379 = vpop.f32.mrb[0].mxu0
        %v7380 = vadd.f32 0.0, %v7379
        %v7381 = vpop.f32.mrb[0].mxu0
        %7382 = vmatprep.mubr.bf16.mxu0 0
        %7383 = vmatmul.mubr.bf16.gmra.mrb[0].mxu0 %v7228
        %v7384 = vpop.f32.mrb[0].mxu0
        %v7385 = vadd.f32 0.0, %v7384
        %v7386 = vpop.f32.mrb[0].mxu0
        %v7387 = vpop.f32.mrb[0].mxu0
        %v7388 = vadd.f32 0.0, %v7387
        %v7389 = vpop.f32.mrb[0].mxu0
        %7390 = vdwg.mxu0
        %v7391 = vadd.f32 %v7166, %v7265
        %v7392 = vadd.f32 %v7167, %v7268
        %v7393 = vadd.f32 %v7168, %v7273
        %v7394 = vadd.f32 %v7169, %v7276
        %v7395 = vadd.f32 %v7170, %v7281
        %v7396 = vadd.f32 %v7171, %v7284
        %v7397 = vadd.f32 %v7172, %v7289
        %v7398 = vadd.f32 %v7173, %v7292
        %v7399 = vadd.f32 %v7174, %v7297
        %v7400 = vadd.f32 %v7175, %v7300
        %v7401 = vadd.f32 %v7176, %v7305
        %v7402 = vadd.f32 %v7177, %v7308
        %v7403 = vadd.f32 %v7178, %v7313
        %v7404 = vadd.f32 %v7179, %v7316
        %v7405 = vadd.f32 %v7180, %v7321
        %v7406 = vadd.f32 %v7181, %v7324
        %v7407 = vadd.f32 %v7182, %v7329
        %v7408 = vadd.f32 %v7183, %v7332
        %v7409 = vadd.f32 %v7184, %v7337
        %v7410 = vadd.f32 %v7185, %v7340
        %v7411 = vadd.f32 %v7186, %v7345
        %v7412 = vadd.f32 %v7187, %v7348
        %v7413 = vadd.f32 %v7188, %v7353
        %v7414 = vadd.f32 %v7189, %v7356
        %v7415 = vadd.f32 %v7190, %v7361
        %v7416 = vadd.f32 %v7191, %v7364
        %v7417 = vadd.f32 %v7192, %v7369
        %v7418 = vadd.f32 %v7193, %v7372
        %v7419 = vadd.f32 %v7194, %v7377
        %v7420 = vadd.f32 %v7195, %v7380
        %v7421 = vadd.f32 %v7196, %v7385
        %v7422 = vadd.f32 %v7197, %v7388
        %v7431 = vunpack.c.l.b16 %v5646
        %v7432 = vunpack.c.l.b16 %v5647
        %v7433 = vunpack.c.l.b16 %v5648
        %v7434 = vunpack.c.l.b16 %v5649
        %v7435 = vunpack.c.l.b16 %v5650
        %v7436 = vunpack.c.l.b16 %v5651
        %v7437 = vunpack.c.l.b16 %v5652
        %v7438 = vunpack.c.l.b16 %v5653
        %v7439 = vpack.c.b16 %v7432, %v7431
        %v7440 = vpack.c.b16 %v7434, %v7433
        %v7441 = vpack.c.b16 %v7436, %v7435
        %v7442 = vpack.c.b16 %v7438, %v7437
        %v7448 = vsel %vm388, %v5758, 0
        %7450 = vmatprep.subr.bf16.mxu0 0
        %7451 = vmatpush1.bf16.msra.mxu0 %v7439
        %7452 = vmatprep.subr.bf16.mxu0 0
        %7453 = vmatpush1.bf16.msra.mxu0 %v7440
        %7454 = vmatprep.subr.bf16.mxu0 0
        %7455 = vmatpush1.bf16.msra.mxu0 %v7441
        %7456 = vmatprep.subr.bf16.mxu0 0
        %7457 = vmatpush1.bf16.msra.mxu0 %v7442
        %7458 = vmatprep.subr.bf16.mxu0 0
        %7459 = vmatpush1.bf16.msra.mxu0 0
        %7460 = vmatprep.subr.bf16.mxu0 0
        %7461 = vmatpush1.bf16.msra.mxu0 0
        %7462 = vmatprep.subr.bf16.mxu0 0
        %7463 = vmatpush1.bf16.msra.mxu0 0
        %7464 = vmatprep.subr.bf16.mxu0 0
        %7465 = vmatpush1.bf16.msra.mxu0 0
        %7466 = vmatprep.subr.bf16.mxu0 0
        %7467 = vmatpush1.bf16.msra.mxu0 0
        %7468 = vmatprep.subr.bf16.mxu0 0
        %7469 = vmatpush1.bf16.msra.mxu0 0
        %7470 = vmatprep.subr.bf16.mxu0 0
        %7471 = vmatpush1.bf16.msra.mxu0 0
        %7472 = vmatprep.subr.bf16.mxu0 0
        %7473 = vmatpush1.bf16.msra.mxu0 0
        %7474 = vmatprep.subr.bf16.mxu0 0
        %7475 = vmatpush1.bf16.msra.mxu0 0
        %7476 = vmatprep.subr.bf16.mxu0 0
        %7477 = vmatpush1.bf16.msra.mxu0 0
        %7478 = vmatprep.subr.bf16.mxu0 0
        %7479 = vmatpush1.bf16.msra.mxu0 0
        %7480 = vmatprep.subr.bf16.mxu0 0
        %7481 = vmatpush1.bf16.msra.mxu0 0
        %7482 = vmatprep.mubr.bf16.mxu0 0
        %7483 = vmatmul.mubr.bf16.gmra.mrb[0].mxu0 %v6213
        %v7484 = vpop.f32.mrb[0].mxu0
        %v7485 = vadd.f32 0.0, %v7484
        %v7486 = vpop.f32.mrb[0].mxu0
        %v7487 = vpop.f32.mrb[0].mxu0
        %v7488 = vadd.f32 0.0, %v7487
        %v7489 = vpop.f32.mrb[0].mxu0
        %7490 = vmatprep.mubr.bf16.mxu0 0
        %7491 = vmatmul.mubr.bf16.gmra.mrb[0].mxu0 %v6215
        %v7492 = vpop.f32.mrb[0].mxu0
        %v7493 = vadd.f32 0.0, %v7492
        %v7494 = vpop.f32.mrb[0].mxu0
        %v7495 = vpop.f32.mrb[0].mxu0
        %v7496 = vadd.f32 0.0, %v7495
        %v7497 = vpop.f32.mrb[0].mxu0
        %7498 = vmatprep.mubr.bf16.mxu0 0
        %7499 = vmatmul.mubr.bf16.gmra.mrb[0].mxu0 %v6217
        %v7500 = vpop.f32.mrb[0].mxu0
        %v7501 = vadd.f32 0.0, %v7500
        %v7502 = vpop.f32.mrb[0].mxu0
        %v7503 = vpop.f32.mrb[0].mxu0
        %v7504 = vadd.f32 0.0, %v7503
        %v7505 = vpop.f32.mrb[0].mxu0
        %7506 = vmatprep.mubr.bf16.mxu0 0
        %7507 = vmatmul.mubr.bf16.gmra.mrb[0].mxu0 %v6219
        %v7508 = vpop.f32.mrb[0].mxu0
        %v7509 = vadd.f32 0.0, %v7508
        %v7510 = vpop.f32.mrb[0].mxu0
        %v7511 = vpop.f32.mrb[0].mxu0
        %v7512 = vadd.f32 0.0, %v7511
        %v7513 = vpop.f32.mrb[0].mxu0
        %7514 = vmatprep.mubr.bf16.mxu0 0
        %7515 = vmatmul.mubr.bf16.gmra.mrb[0].mxu0 %v6221
        %v7516 = vpop.f32.mrb[0].mxu0
        %v7517 = vadd.f32 0.0, %v7516
        %v7518 = vpop.f32.mrb[0].mxu0
        %v7519 = vpop.f32.mrb[0].mxu0
        %v7520 = vadd.f32 0.0, %v7519
        %v7521 = vpop.f32.mrb[0].mxu0
        %7522 = vmatprep.mubr.bf16.mxu0 0
        %7523 = vmatmul.mubr.bf16.gmra.mrb[0].mxu0 %v6223
        %v7524 = vpop.f32.mrb[0].mxu0
        %v7525 = vadd.f32 0.0, %v7524
        %v7526 = vpop.f32.mrb[0].mxu0
        %v7527 = vpop.f32.mrb[0].mxu0
        %v7528 = vadd.f32 0.0, %v7527
        %v7529 = vpop.f32.mrb[0].mxu0
        %7530 = vmatprep.mubr.bf16.mxu0 0
        %7531 = vmatmul.mubr.bf16.gmra.mrb[0].mxu0 %v6225
        %v7532 = vpop.f32.mrb[0].mxu0
        %v7533 = vadd.f32 0.0, %v7532
        %v7534 = vpop.f32.mrb[0].mxu0
        %v7535 = vpop.f32.mrb[0].mxu0
        %v7536 = vadd.f32 0.0, %v7535
        %v7537 = vpop.f32.mrb[0].mxu0
        %7538 = vmatprep.mubr.bf16.mxu0 0
        %7539 = vmatmul.mubr.bf16.gmra.mrb[0].mxu0 %v6227
        %v7540 = vpop.f32.mrb[0].mxu0
        %v7541 = vadd.f32 0.0, %v7540
        %v7542 = vpop.f32.mrb[0].mxu0
        %v7543 = vpop.f32.mrb[0].mxu0
        %v7544 = vadd.f32 0.0, %v7543
        %v7545 = vpop.f32.mrb[0].mxu0
        %7546 = vmatprep.mubr.bf16.mxu0 0
        %7547 = vmatmul.mubr.bf16.gmra.mrb[0].mxu0 %v6229
        %v7548 = vpop.f32.mrb[0].mxu0
        %v7549 = vadd.f32 0.0, %v7548
        %v7550 = vpop.f32.mrb[0].mxu0
        %v7551 = vpop.f32.mrb[0].mxu0
        %v7552 = vadd.f32 0.0, %v7551
        %v7553 = vpop.f32.mrb[0].mxu0
        %7554 = vmatprep.mubr.bf16.mxu0 0
        %7555 = vmatmul.mubr.bf16.gmra.mrb[0].mxu0 %v6231
        %v7556 = vpop.f32.mrb[0].mxu0
        %v7557 = vadd.f32 0.0, %v7556
        %v7558 = vpop.f32.mrb[0].mxu0
        %v7559 = vpop.f32.mrb[0].mxu0
        %v7560 = vadd.f32 0.0, %v7559
        %v7561 = vpop.f32.mrb[0].mxu0
        %7562 = vmatprep.mubr.bf16.mxu0 0
        %7563 = vmatmul.mubr.bf16.gmra.mrb[0].mxu0 %v6233
        %v7564 = vpop.f32.mrb[0].mxu0
        %v7565 = vadd.f32 0.0, %v7564
        %v7566 = vpop.f32.mrb[0].mxu0
        %v7567 = vpop.f32.mrb[0].mxu0
        %v7568 = vadd.f32 0.0, %v7567
        %v7569 = vpop.f32.mrb[0].mxu0
        %7570 = vmatprep.mubr.bf16.mxu0 0
        %7571 = vmatmul.mubr.bf16.gmra.mrb[0].mxu0 %v6235
        %v7572 = vpop.f32.mrb[0].mxu0
        %v7573 = vadd.f32 0.0, %v7572
        %v7574 = vpop.f32.mrb[0].mxu0
        %v7575 = vpop.f32.mrb[0].mxu0
        %v7576 = vadd.f32 0.0, %v7575
        %v7577 = vpop.f32.mrb[0].mxu0
        %7578 = vmatprep.mubr.bf16.mxu0 0
        %7579 = vmatmul.mubr.bf16.gmra.mrb[0].mxu0 %v6237
        %v7580 = vpop.f32.mrb[0].mxu0
        %v7581 = vadd.f32 0.0, %v7580
        %v7582 = vpop.f32.mrb[0].mxu0
        %v7583 = vpop.f32.mrb[0].mxu0
        %v7584 = vadd.f32 0.0, %v7583
        %v7585 = vpop.f32.mrb[0].mxu0
        %7586 = vmatprep.mubr.bf16.mxu0 0
        %7587 = vmatmul.mubr.bf16.gmra.mrb[0].mxu0 %v6239
        %v7588 = vpop.f32.mrb[0].mxu0
        %v7589 = vadd.f32 0.0, %v7588
        %v7590 = vpop.f32.mrb[0].mxu0
        %v7591 = vpop.f32.mrb[0].mxu0
        %v7592 = vadd.f32 0.0, %v7591
        %v7593 = vpop.f32.mrb[0].mxu0
        %7594 = vmatprep.mubr.bf16.mxu0 0
        %7595 = vmatmul.mubr.bf16.gmra.mrb[0].mxu0 %v6772
        %v7596 = vpop.f32.mrb[0].mxu0
        %v7597 = vadd.f32 0.0, %v7596
        %v7598 = vpop.f32.mrb[0].mxu0
        %v7599 = vpop.f32.mrb[0].mxu0
        %v7600 = vadd.f32 0.0, %v7599
        %v7601 = vpop.f32.mrb[0].mxu0
        %7602 = vmatprep.mubr.bf16.mxu0 0
        %7603 = vmatmul.mubr.bf16.gmra.mrb[0].mxu0 %v7448
        %v7604 = vpop.f32.mrb[0].mxu0
        %v7605 = vadd.f32 0.0, %v7604
        %v7606 = vpop.f32.mrb[0].mxu0
        %v7607 = vpop.f32.mrb[0].mxu0
        %v7608 = vadd.f32 0.0, %v7607
        %v7609 = vpop.f32.mrb[0].mxu0
        %7610 = vdwg.mxu0
        %v7611 = vadd.f32 %v7391, %v7485
        %v7612 = vadd.f32 %v7392, %v7488
        %v7613 = vadd.f32 %v7393, %v7493
        %v7614 = vadd.f32 %v7394, %v7496
        %v7615 = vadd.f32 %v7395, %v7501
        %v7616 = vadd.f32 %v7396, %v7504
        %v7617 = vadd.f32 %v7397, %v7509
        %v7618 = vadd.f32 %v7398, %v7512
        %v7619 = vadd.f32 %v7399, %v7517
        %v7620 = vadd.f32 %v7400, %v7520
        %v7621 = vadd.f32 %v7401, %v7525
        %v7622 = vadd.f32 %v7402, %v7528
        %v7623 = vadd.f32 %v7403, %v7533
        %v7624 = vadd.f32 %v7404, %v7536
        %v7625 = vadd.f32 %v7405, %v7541
        %v7626 = vadd.f32 %v7406, %v7544
        %v7627 = vadd.f32 %v7407, %v7549
        %v7628 = vadd.f32 %v7408, %v7552
        %v7629 = vadd.f32 %v7409, %v7557
        %v7630 = vadd.f32 %v7410, %v7560
        %v7631 = vadd.f32 %v7411, %v7565
        %v7632 = vadd.f32 %v7412, %v7568
        %v7633 = vadd.f32 %v7413, %v7573
        %v7634 = vadd.f32 %v7414, %v7576
        %v7635 = vadd.f32 %v7415, %v7581
        %v7636 = vadd.f32 %v7416, %v7584
        %v7637 = vadd.f32 %v7417, %v7589
        %v7638 = vadd.f32 %v7418, %v7592
        %v7639 = vadd.f32 %v7419, %v7597
        %v7640 = vadd.f32 %v7420, %v7600
        %v7641 = vadd.f32 %v7421, %v7605
        %v7642 = vadd.f32 %v7422, %v7608
        %v7643 = vshrl.u32 %v5758, 16
        %v7645 = vshll.u32 %v5758, 16
        %v7647 = vrot.slane %v7645, 1
        %v7648 = vor.u32 %v7643, %v7647
        %v7650 = vshll.u32 %v5759, 16
        %v7652 = vrot.slane %v7650, 1
        %v7653 = vsel %vm657, %v7648, %v7652
        %v7662 = vunpack.c.l.b16 %v5654
        %v7663 = vunpack.c.l.b16 %v5655
        %v7664 = vunpack.c.l.b16 %v5656
        %v7665 = vunpack.c.l.b16 %v5657
        %v7666 = vunpack.c.l.b16 %v5658
        %v7667 = vunpack.c.l.b16 %v5659
        %v7668 = vunpack.c.l.b16 %v5660
        %v7669 = vunpack.c.l.b16 %v5661
        %v7670 = vpack.c.b16 %v7663, %v7662
        %v7671 = vpack.c.b16 %v7665, %v7664
        %v7672 = vpack.c.b16 %v7667, %v7666
        %v7673 = vpack.c.b16 %v7669, %v7668
        %v7679 = vsel %vm388, %v7653, 0
        %7681 = vmatprep.subr.bf16.mxu0 0
        %7682 = vmatpush1.bf16.msra.mxu0 %v7670
        %7683 = vmatprep.subr.bf16.mxu0 0
        %7684 = vmatpush1.bf16.msra.mxu0 %v7671
        %7685 = vmatprep.subr.bf16.mxu0 0
        %7686 = vmatpush1.bf16.msra.mxu0 %v7672
        %7687 = vmatprep.subr.bf16.mxu0 0
        %7688 = vmatpush1.bf16.msra.mxu0 %v7673
        %7689 = vmatprep.subr.bf16.mxu0 0
        %7690 = vmatpush1.bf16.msra.mxu0 0
        %7691 = vmatprep.subr.bf16.mxu0 0
        %7692 = vmatpush1.bf16.msra.mxu0 0
        %7693 = vmatprep.subr.bf16.mxu0 0
        %7694 = vmatpush1.bf16.msra.mxu0 0
        %7695 = vmatprep.subr.bf16.mxu0 0
        %7696 = vmatpush1.bf16.msra.mxu0 0
        %7697 = vmatprep.subr.bf16.mxu0 0
        %7698 = vmatpush1.bf16.msra.mxu0 0
        %7699 = vmatprep.subr.bf16.mxu0 0
        %7700 = vmatpush1.bf16.msra.mxu0 0
        %7701 = vmatprep.subr.bf16.mxu0 0
        %7702 = vmatpush1.bf16.msra.mxu0 0
        %7703 = vmatprep.subr.bf16.mxu0 0
        %7704 = vmatpush1.bf16.msra.mxu0 0
        %7705 = vmatprep.subr.bf16.mxu0 0
        %7706 = vmatpush1.bf16.msra.mxu0 0
        %7707 = vmatprep.subr.bf16.mxu0 0
        %7708 = vmatpush1.bf16.msra.mxu0 0
        %7709 = vmatprep.subr.bf16.mxu0 0
        %7710 = vmatpush1.bf16.msra.mxu0 0
        %7711 = vmatprep.subr.bf16.mxu0 0
        %7712 = vmatpush1.bf16.msra.mxu0 0
        %7713 = vmatprep.mubr.bf16.mxu0 0
        %7714 = vmatmul.mubr.bf16.gmra.mrb[0].mxu0 %v5983
        %v7715 = vpop.f32.mrb[0].mxu0
        %v7716 = vadd.f32 0.0, %v7715
        %v7717 = vpop.f32.mrb[0].mxu0
        %v7718 = vpop.f32.mrb[0].mxu0
        %v7719 = vadd.f32 0.0, %v7718
        %v7720 = vpop.f32.mrb[0].mxu0
        %7721 = vmatprep.mubr.bf16.mxu0 0
        %7722 = vmatmul.mubr.bf16.gmra.mrb[0].mxu0 %v5986
        %v7723 = vpop.f32.mrb[0].mxu0
        %v7724 = vadd.f32 0.0, %v7723
        %v7725 = vpop.f32.mrb[0].mxu0
        %v7726 = vpop.f32.mrb[0].mxu0
        %v7727 = vadd.f32 0.0, %v7726
        %v7728 = vpop.f32.mrb[0].mxu0
        %7729 = vmatprep.mubr.bf16.mxu0 0
        %7730 = vmatmul.mubr.bf16.gmra.mrb[0].mxu0 %v5989
        %v7731 = vpop.f32.mrb[0].mxu0
        %v7732 = vadd.f32 0.0, %v7731
        %v7733 = vpop.f32.mrb[0].mxu0
        %v7734 = vpop.f32.mrb[0].mxu0
        %v7735 = vadd.f32 0.0, %v7734
        %v7736 = vpop.f32.mrb[0].mxu0
        %7737 = vmatprep.mubr.bf16.mxu0 0
        %7738 = vmatmul.mubr.bf16.gmra.mrb[0].mxu0 %v5992
        %v7739 = vpop.f32.mrb[0].mxu0
        %v7740 = vadd.f32 0.0, %v7739
        %v7741 = vpop.f32.mrb[0].mxu0
        %v7742 = vpop.f32.mrb[0].mxu0
        %v7743 = vadd.f32 0.0, %v7742
        %v7744 = vpop.f32.mrb[0].mxu0
        %7745 = vmatprep.mubr.bf16.mxu0 0
        %7746 = vmatmul.mubr.bf16.gmra.mrb[0].mxu0 %v5995
        %v7747 = vpop.f32.mrb[0].mxu0
        %v7748 = vadd.f32 0.0, %v7747
        %v7749 = vpop.f32.mrb[0].mxu0
        %v7750 = vpop.f32.mrb[0].mxu0
        %v7751 = vadd.f32 0.0, %v7750
        %v7752 = vpop.f32.mrb[0].mxu0
        %7753 = vmatprep.mubr.bf16.mxu0 0
        %7754 = vmatmul.mubr.bf16.gmra.mrb[0].mxu0 %v5998
        %v7755 = vpop.f32.mrb[0].mxu0
        %v7756 = vadd.f32 0.0, %v7755
        %v7757 = vpop.f32.mrb[0].mxu0
        %v7758 = vpop.f32.mrb[0].mxu0
        %v7759 = vadd.f32 0.0, %v7758
        %v7760 = vpop.f32.mrb[0].mxu0
        %7761 = vmatprep.mubr.bf16.mxu0 0
        %7762 = vmatmul.mubr.bf16.gmra.mrb[0].mxu0 %v6001
        %v7763 = vpop.f32.mrb[0].mxu0
        %v7764 = vadd.f32 0.0, %v7763
        %v7765 = vpop.f32.mrb[0].mxu0
        %v7766 = vpop.f32.mrb[0].mxu0
        %v7767 = vadd.f32 0.0, %v7766
        %v7768 = vpop.f32.mrb[0].mxu0
        %7769 = vmatprep.mubr.bf16.mxu0 0
        %7770 = vmatmul.mubr.bf16.gmra.mrb[0].mxu0 %v6004
        %v7771 = vpop.f32.mrb[0].mxu0
        %v7772 = vadd.f32 0.0, %v7771
        %v7773 = vpop.f32.mrb[0].mxu0
        %v7774 = vpop.f32.mrb[0].mxu0
        %v7775 = vadd.f32 0.0, %v7774
        %v7776 = vpop.f32.mrb[0].mxu0
        %7777 = vmatprep.mubr.bf16.mxu0 0
        %7778 = vmatmul.mubr.bf16.gmra.mrb[0].mxu0 %v6007
        %v7779 = vpop.f32.mrb[0].mxu0
        %v7780 = vadd.f32 0.0, %v7779
        %v7781 = vpop.f32.mrb[0].mxu0
        %v7782 = vpop.f32.mrb[0].mxu0
        %v7783 = vadd.f32 0.0, %v7782
        %v7784 = vpop.f32.mrb[0].mxu0
        %7785 = vmatprep.mubr.bf16.mxu0 0
        %7786 = vmatmul.mubr.bf16.gmra.mrb[0].mxu0 %v6010
        %v7787 = vpop.f32.mrb[0].mxu0
        %v7788 = vadd.f32 0.0, %v7787
        %v7789 = vpop.f32.mrb[0].mxu0
        %v7790 = vpop.f32.mrb[0].mxu0
        %v7791 = vadd.f32 0.0, %v7790
        %v7792 = vpop.f32.mrb[0].mxu0
        %7793 = vmatprep.mubr.bf16.mxu0 0
        %7794 = vmatmul.mubr.bf16.gmra.mrb[0].mxu0 %v6013
        %v7795 = vpop.f32.mrb[0].mxu0
        %v7796 = vadd.f32 0.0, %v7795
        %v7797 = vpop.f32.mrb[0].mxu0
        %v7798 = vpop.f32.mrb[0].mxu0
        %v7799 = vadd.f32 0.0, %v7798
        %v7800 = vpop.f32.mrb[0].mxu0
        %7801 = vmatprep.mubr.bf16.mxu0 0
        %7802 = vmatmul.mubr.bf16.gmra.mrb[0].mxu0 %v6016
        %v7803 = vpop.f32.mrb[0].mxu0
        %v7804 = vadd.f32 0.0, %v7803
        %v7805 = vpop.f32.mrb[0].mxu0
        %v7806 = vpop.f32.mrb[0].mxu0
        %v7807 = vadd.f32 0.0, %v7806
        %v7808 = vpop.f32.mrb[0].mxu0
        %7809 = vmatprep.mubr.bf16.mxu0 0
        %7810 = vmatmul.mubr.bf16.gmra.mrb[0].mxu0 %v6019
        %v7811 = vpop.f32.mrb[0].mxu0
        %v7812 = vadd.f32 0.0, %v7811
        %v7813 = vpop.f32.mrb[0].mxu0
        %v7814 = vpop.f32.mrb[0].mxu0
        %v7815 = vadd.f32 0.0, %v7814
        %v7816 = vpop.f32.mrb[0].mxu0
        %7817 = vmatprep.mubr.bf16.mxu0 0
        %7818 = vmatmul.mubr.bf16.gmra.mrb[0].mxu0 %v6022
        %v7819 = vpop.f32.mrb[0].mxu0
        %v7820 = vadd.f32 0.0, %v7819
        %v7821 = vpop.f32.mrb[0].mxu0
        %v7822 = vpop.f32.mrb[0].mxu0
        %v7823 = vadd.f32 0.0, %v7822
        %v7824 = vpop.f32.mrb[0].mxu0
        %7825 = vmatprep.mubr.bf16.mxu0 0
        %7826 = vmatmul.mubr.bf16.gmra.mrb[0].mxu0 %v7003
        %v7827 = vpop.f32.mrb[0].mxu0
        %v7828 = vadd.f32 0.0, %v7827
        %v7829 = vpop.f32.mrb[0].mxu0
        %v7830 = vpop.f32.mrb[0].mxu0
        %v7831 = vadd.f32 0.0, %v7830
        %v7832 = vpop.f32.mrb[0].mxu0
        %7833 = vmatprep.mubr.bf16.mxu0 0
        %7834 = vmatmul.mubr.bf16.gmra.mrb[0].mxu0 %v7679
        %v7835 = vpop.f32.mrb[0].mxu0
        %v7836 = vadd.f32 0.0, %v7835
        %v7837 = vpop.f32.mrb[0].mxu0
        %v7838 = vpop.f32.mrb[0].mxu0
        %v7839 = vadd.f32 0.0, %v7838
        %v7840 = vpop.f32.mrb[0].mxu0
        %7841 = vdwg.mxu0
        %v7842 = vadd.f32 %v7611, %v7716
        %v7843 = vadd.f32 %v7612, %v7719
        %v7844 = vadd.f32 %v7613, %v7724
        %v7845 = vadd.f32 %v7614, %v7727
        %v7846 = vadd.f32 %v7615, %v7732
        %v7847 = vadd.f32 %v7616, %v7735
        %v7848 = vadd.f32 %v7617, %v7740
        %v7849 = vadd.f32 %v7618, %v7743
        %v7850 = vadd.f32 %v7619, %v7748
        %v7851 = vadd.f32 %v7620, %v7751
        %v7852 = vadd.f32 %v7621, %v7756
        %v7853 = vadd.f32 %v7622, %v7759
        %v7854 = vadd.f32 %v7623, %v7764
        %v7855 = vadd.f32 %v7624, %v7767
        %v7856 = vadd.f32 %v7625, %v7772
        %v7857 = vadd.f32 %v7626, %v7775
        %v7858 = vadd.f32 %v7627, %v7780
        %v7859 = vadd.f32 %v7628, %v7783
        %v7860 = vadd.f32 %v7629, %v7788
        %v7861 = vadd.f32 %v7630, %v7791
        %v7862 = vadd.f32 %v7631, %v7796
        %v7863 = vadd.f32 %v7632, %v7799
        %v7864 = vadd.f32 %v7633, %v7804
        %v7865 = vadd.f32 %v7634, %v7807
        %v7866 = vadd.f32 %v7635, %v7812
        %v7867 = vadd.f32 %v7636, %v7815
        %v7868 = vadd.f32 %v7637, %v7820
        %v7869 = vadd.f32 %v7638, %v7823
        %v7870 = vadd.f32 %v7639, %v7828
        %v7871 = vadd.f32 %v7640, %v7831
        %v7872 = vadd.f32 %v7641, %v7836
        %v7873 = vadd.f32 %v7642, %v7839
        %v7876 = vrot.slane %v5758, 1
        %v7877 = vrot.slane %v5759, 1
        %v7878 = vsel %vm1308, %v7876, %v7877
        %v7887 = vunpack.c.l.b16 %v5662
        %v7888 = vunpack.c.l.b16 %v5663
        %v7889 = vunpack.c.l.b16 %v5664
        %v7890 = vunpack.c.l.b16 %v5665
        %v7891 = vunpack.c.l.b16 %v5666
        %v7892 = vunpack.c.l.b16 %v5667
        %v7893 = vunpack.c.l.b16 %v5668
        %v7894 = vunpack.c.l.b16 %v5669
        %v7895 = vpack.c.b16 %v7888, %v7887
        %v7896 = vpack.c.b16 %v7890, %v7889
        %v7897 = vpack.c.b16 %v7892, %v7891
        %v7898 = vpack.c.b16 %v7894, %v7893
        %v7904 = vsel %vm388, %v7878, 0
        %7906 = vmatprep.subr.bf16.mxu0 0
        %7907 = vmatpush1.bf16.msra.mxu0 %v7895
        %7908 = vmatprep.subr.bf16.mxu0 0
        %7909 = vmatpush1.bf16.msra.mxu0 %v7896
        %7910 = vmatprep.subr.bf16.mxu0 0
        %7911 = vmatpush1.bf16.msra.mxu0 %v7897
        %7912 = vmatprep.subr.bf16.mxu0 0
        %7913 = vmatpush1.bf16.msra.mxu0 %v7898
        %7914 = vmatprep.subr.bf16.mxu0 0
        %7915 = vmatpush1.bf16.msra.mxu0 0
        %7916 = vmatprep.subr.bf16.mxu0 0
        %7917 = vmatpush1.bf16.msra.mxu0 0
        %7918 = vmatprep.subr.bf16.mxu0 0
        %7919 = vmatpush1.bf16.msra.mxu0 0
        %7920 = vmatprep.subr.bf16.mxu0 0
        %7921 = vmatpush1.bf16.msra.mxu0 0
        %7922 = vmatprep.subr.bf16.mxu0 0
        %7923 = vmatpush1.bf16.msra.mxu0 0
        %7924 = vmatprep.subr.bf16.mxu0 0
        %7925 = vmatpush1.bf16.msra.mxu0 0
        %7926 = vmatprep.subr.bf16.mxu0 0
        %7927 = vmatpush1.bf16.msra.mxu0 0
        %7928 = vmatprep.subr.bf16.mxu0 0
        %7929 = vmatpush1.bf16.msra.mxu0 0
        %7930 = vmatprep.subr.bf16.mxu0 0
        %7931 = vmatpush1.bf16.msra.mxu0 0
        %7932 = vmatprep.subr.bf16.mxu0 0
        %7933 = vmatpush1.bf16.msra.mxu0 0
        %7934 = vmatprep.subr.bf16.mxu0 0
        %7935 = vmatpush1.bf16.msra.mxu0 0
        %7936 = vmatprep.subr.bf16.mxu0 0
        %7937 = vmatpush1.bf16.msra.mxu0 0
        %7938 = vmatprep.mubr.bf16.mxu0 0
        %7939 = vmatmul.mubr.bf16.gmra.mrb[0].mxu0 %v6513
        %v7940 = vpop.f32.mrb[0].mxu0
        %v7941 = vadd.f32 0.0, %v7940
        %v7942 = vpop.f32.mrb[0].mxu0
        %v7943 = vpop.f32.mrb[0].mxu0
        %v7944 = vadd.f32 0.0, %v7943
        %v7945 = vpop.f32.mrb[0].mxu0
        %7946 = vmatprep.mubr.bf16.mxu0 0
        %7947 = vmatmul.mubr.bf16.gmra.mrb[0].mxu0 %v6516
        %v7948 = vpop.f32.mrb[0].mxu0
        %v7949 = vadd.f32 0.0, %v7948
        %v7950 = vpop.f32.mrb[0].mxu0
        %v7951 = vpop.f32.mrb[0].mxu0
        %v7952 = vadd.f32 0.0, %v7951
        %v7953 = vpop.f32.mrb[0].mxu0
        %7954 = vmatprep.mubr.bf16.mxu0 0
        %7955 = vmatmul.mubr.bf16.gmra.mrb[0].mxu0 %v6519
        %v7956 = vpop.f32.mrb[0].mxu0
        %v7957 = vadd.f32 0.0, %v7956
        %v7958 = vpop.f32.mrb[0].mxu0
        %v7959 = vpop.f32.mrb[0].mxu0
        %v7960 = vadd.f32 0.0, %v7959
        %v7961 = vpop.f32.mrb[0].mxu0
        %7962 = vmatprep.mubr.bf16.mxu0 0
        %7963 = vmatmul.mubr.bf16.gmra.mrb[0].mxu0 %v6522
        %v7964 = vpop.f32.mrb[0].mxu0
        %v7965 = vadd.f32 0.0, %v7964
        %v7966 = vpop.f32.mrb[0].mxu0
        %v7967 = vpop.f32.mrb[0].mxu0
        %v7968 = vadd.f32 0.0, %v7967
        %v7969 = vpop.f32.mrb[0].mxu0
        %7970 = vmatprep.mubr.bf16.mxu0 0
        %7971 = vmatmul.mubr.bf16.gmra.mrb[0].mxu0 %v6525
        %v7972 = vpop.f32.mrb[0].mxu0
        %v7973 = vadd.f32 0.0, %v7972
        %v7974 = vpop.f32.mrb[0].mxu0
        %v7975 = vpop.f32.mrb[0].mxu0
        %v7976 = vadd.f32 0.0, %v7975
        %v7977 = vpop.f32.mrb[0].mxu0
        %7978 = vmatprep.mubr.bf16.mxu0 0
        %7979 = vmatmul.mubr.bf16.gmra.mrb[0].mxu0 %v6528
        %v7980 = vpop.f32.mrb[0].mxu0
        %v7981 = vadd.f32 0.0, %v7980
        %v7982 = vpop.f32.mrb[0].mxu0
        %v7983 = vpop.f32.mrb[0].mxu0
        %v7984 = vadd.f32 0.0, %v7983
        %v7985 = vpop.f32.mrb[0].mxu0
        %7986 = vmatprep.mubr.bf16.mxu0 0
        %7987 = vmatmul.mubr.bf16.gmra.mrb[0].mxu0 %v6531
        %v7988 = vpop.f32.mrb[0].mxu0
        %v7989 = vadd.f32 0.0, %v7988
        %v7990 = vpop.f32.mrb[0].mxu0
        %v7991 = vpop.f32.mrb[0].mxu0
        %v7992 = vadd.f32 0.0, %v7991
        %v7993 = vpop.f32.mrb[0].mxu0
        %7994 = vmatprep.mubr.bf16.mxu0 0
        %7995 = vmatmul.mubr.bf16.gmra.mrb[0].mxu0 %v6534
        %v7996 = vpop.f32.mrb[0].mxu0
        %v7997 = vadd.f32 0.0, %v7996
        %v7998 = vpop.f32.mrb[0].mxu0
        %v7999 = vpop.f32.mrb[0].mxu0
        %v8000 = vadd.f32 0.0, %v7999
        %v8001 = vpop.f32.mrb[0].mxu0
        %8002 = vmatprep.mubr.bf16.mxu0 0
        %8003 = vmatmul.mubr.bf16.gmra.mrb[0].mxu0 %v6537
        %v8004 = vpop.f32.mrb[0].mxu0
        %v8005 = vadd.f32 0.0, %v8004
        %v8006 = vpop.f32.mrb[0].mxu0
        %v8007 = vpop.f32.mrb[0].mxu0
        %v8008 = vadd.f32 0.0, %v8007
        %v8009 = vpop.f32.mrb[0].mxu0
        %8010 = vmatprep.mubr.bf16.mxu0 0
        %8011 = vmatmul.mubr.bf16.gmra.mrb[0].mxu0 %v6540
        %v8012 = vpop.f32.mrb[0].mxu0
        %v8013 = vadd.f32 0.0, %v8012
        %v8014 = vpop.f32.mrb[0].mxu0
        %v8015 = vpop.f32.mrb[0].mxu0
        %v8016 = vadd.f32 0.0, %v8015
        %v8017 = vpop.f32.mrb[0].mxu0
        %8018 = vmatprep.mubr.bf16.mxu0 0
        %8019 = vmatmul.mubr.bf16.gmra.mrb[0].mxu0 %v6543
        %v8020 = vpop.f32.mrb[0].mxu0
        %v8021 = vadd.f32 0.0, %v8020
        %v8022 = vpop.f32.mrb[0].mxu0
        %v8023 = vpop.f32.mrb[0].mxu0
        %v8024 = vadd.f32 0.0, %v8023
        %v8025 = vpop.f32.mrb[0].mxu0
        %8026 = vmatprep.mubr.bf16.mxu0 0
        %8027 = vmatmul.mubr.bf16.gmra.mrb[0].mxu0 %v6546
        %v8028 = vpop.f32.mrb[0].mxu0
        %v8029 = vadd.f32 0.0, %v8028
        %v8030 = vpop.f32.mrb[0].mxu0
        %v8031 = vpop.f32.mrb[0].mxu0
        %v8032 = vadd.f32 0.0, %v8031
        %v8033 = vpop.f32.mrb[0].mxu0
        %8034 = vmatprep.mubr.bf16.mxu0 0
        %8035 = vmatmul.mubr.bf16.gmra.mrb[0].mxu0 %v6549
        %v8036 = vpop.f32.mrb[0].mxu0
        %v8037 = vadd.f32 0.0, %v8036
        %v8038 = vpop.f32.mrb[0].mxu0
        %v8039 = vpop.f32.mrb[0].mxu0
        %v8040 = vadd.f32 0.0, %v8039
        %v8041 = vpop.f32.mrb[0].mxu0
        %8042 = vmatprep.mubr.bf16.mxu0 0
        %8043 = vmatmul.mubr.bf16.gmra.mrb[0].mxu0 %v6552
        %v8044 = vpop.f32.mrb[0].mxu0
        %v8045 = vadd.f32 0.0, %v8044
        %v8046 = vpop.f32.mrb[0].mxu0
        %v8047 = vpop.f32.mrb[0].mxu0
        %v8048 = vadd.f32 0.0, %v8047
        %v8049 = vpop.f32.mrb[0].mxu0
        %8050 = vmatprep.mubr.bf16.mxu0 0
        %8051 = vmatmul.mubr.bf16.gmra.mrb[0].mxu0 %v7228
        %v8052 = vpop.f32.mrb[0].mxu0
        %v8053 = vadd.f32 0.0, %v8052
        %v8054 = vpop.f32.mrb[0].mxu0
        %v8055 = vpop.f32.mrb[0].mxu0
        %v8056 = vadd.f32 0.0, %v8055
        %v8057 = vpop.f32.mrb[0].mxu0
        %8058 = vmatprep.mubr.bf16.mxu0 0
        %8059 = vmatmul.mubr.bf16.gmra.mrb[0].mxu0 %v7904
        %v8060 = vpop.f32.mrb[0].mxu0
        %v8061 = vadd.f32 0.0, %v8060
        %v8062 = vpop.f32.mrb[0].mxu0
        %v8063 = vpop.f32.mrb[0].mxu0
        %v8064 = vadd.f32 0.0, %v8063
        %v8065 = vpop.f32.mrb[0].mxu0
        %8066 = vdwg.mxu0
        %v8067 = vadd.f32 %v7842, %v7941
        %v8068 = vadd.f32 %v7843, %v7944
        %v8069 = vadd.f32 %v7844, %v7949
        %v8070 = vadd.f32 %v7845, %v7952
        %v8071 = vadd.f32 %v7846, %v7957
        %v8072 = vadd.f32 %v7847, %v7960
        %v8073 = vadd.f32 %v7848, %v7965
        %v8074 = vadd.f32 %v7849, %v7968
        %v8075 = vadd.f32 %v7850, %v7973
        %v8076 = vadd.f32 %v7851, %v7976
        %v8077 = vadd.f32 %v7852, %v7981
        %v8078 = vadd.f32 %v7853, %v7984
        %v8079 = vadd.f32 %v7854, %v7989
        %v8080 = vadd.f32 %v7855, %v7992
        %v8081 = vadd.f32 %v7856, %v7997
        %v8082 = vadd.f32 %v7857, %v8000
        %v8083 = vadd.f32 %v7858, %v8005
        %v8084 = vadd.f32 %v7859, %v8008
        %v8085 = vadd.f32 %v7860, %v8013
        %v8086 = vadd.f32 %v7861, %v8016
        %v8087 = vadd.f32 %v7862, %v8021
        %v8088 = vadd.f32 %v7863, %v8024
        %v8089 = vadd.f32 %v7864, %v8029
        %v8090 = vadd.f32 %v7865, %v8032
        %v8091 = vadd.f32 %v7866, %v8037
        %v8092 = vadd.f32 %v7867, %v8040
        %v8093 = vadd.f32 %v7868, %v8045
        %v8094 = vadd.f32 %v7869, %v8048
        %v8095 = vadd.f32 %v7870, %v8053
        %v8096 = vadd.f32 %v7871, %v8056
        %v8097 = vadd.f32 %v7872, %v8061
        %v8098 = vadd.f32 %v7873, %v8064
        %v8099 = vld [vmem:[%s6] sm:$0x1]
        %v8101 = vlaneseq
        %v8102 = vshrl.u32 %v8101, 7
        %v8103 = vsub.s32 0, %v8102
        %v8104 = vrot.slane %v8099, %v8103
        %v8106 = vadd.f32 %v8067, %v8104
        %v8107 = vadd.f32 %v8068, %v8104
        %v8108 = vadd.f32 %v8069, %v8104
        %v8109 = vadd.f32 %v8070, %v8104
        %v8110 = vadd.f32 %v8071, %v8104
        %v8111 = vadd.f32 %v8072, %v8104
        %v8112 = vadd.f32 %v8073, %v8104
        %v8113 = vadd.f32 %v8074, %v8104
        %v8114 = vadd.f32 %v8075, %v8104
        %v8115 = vadd.f32 %v8076, %v8104
        %v8116 = vadd.f32 %v8077, %v8104
        %v8117 = vadd.f32 %v8078, %v8104
        %v8118 = vadd.f32 %v8079, %v8104
        %v8119 = vadd.f32 %v8080, %v8104
        %v8120 = vadd.f32 %v8081, %v8104
        %v8121 = vadd.f32 %v8082, %v8104
        %v8122 = vadd.f32 %v8083, %v8104
        %v8123 = vadd.f32 %v8084, %v8104
        %v8124 = vadd.f32 %v8085, %v8104
        %v8125 = vadd.f32 %v8086, %v8104
        %v8126 = vadd.f32 %v8087, %v8104
        %v8127 = vadd.f32 %v8088, %v8104
        %v8128 = vadd.f32 %v8089, %v8104
        %v8129 = vadd.f32 %v8090, %v8104
        %v8130 = vadd.f32 %v8091, %v8104
        %v8131 = vadd.f32 %v8092, %v8104
        %v8132 = vadd.f32 %v8093, %v8104
        %v8133 = vadd.f32 %v8094, %v8104
        %v8134 = vadd.f32 %v8095, %v8104
        %v8135 = vadd.f32 %v8096, %v8104
        %v8136 = vadd.f32 %v8097, %v8104
        %v8137 = vadd.f32 %v8098, %v8104
        %8138 = vst [vmem:[%s340] sm:$0xff] %v8106
        %8139 = vst [vmem:[%s340 + $0x8] sm:$0xff] %v8107
        %8140 = vst [vmem:[%s340 + $0x10] sm:$0xff] %v8108
        %8141 = vst [vmem:[%s340 + $0x18] sm:$0xff] %v8109
        %8142 = vst [vmem:[%s340 + $0x20] sm:$0xff] %v8110
        %8143 = vst [vmem:[%s340 + $0x28] sm:$0xff] %v8111
        %8144 = vst [vmem:[%s340 + $0x30] sm:$0xff] %v8112
        %8145 = vst [vmem:[%s340 + $0x38] sm:$0xff] %v8113
        %8146 = vst [vmem:[%s340 + $0x40] sm:$0xff] %v8114
        %8147 = vst [vmem:[%s340 + $0x48] sm:$0xff] %v8115
        %8148 = vst [vmem:[%s340 + $0x50] sm:$0xff] %v8116
        %8149 = vst [vmem:[%s340 + $0x58] sm:$0xff] %v8117
        %8150 = vst [vmem:[%s340 + $0x60] sm:$0xff] %v8118
        %8151 = vst [vmem:[%s340 + $0x68] sm:$0xff] %v8119
        %8152 = vst [vmem:[%s340 + $0x70] sm:$0xff] %v8120
        %8153 = vst [vmem:[%s340 + $0x78] sm:$0xff] %v8121
        %8154 = vst [vmem:[%s340 + $0x80] sm:$0xff] %v8122
        %8155 = vst [vmem:[%s340 + $0x88] sm:$0xff] %v8123
        %8156 = vst [vmem:[%s340 + $0x90] sm:$0xff] %v8124
        %8157 = vst [vmem:[%s340 + $0x98] sm:$0xff] %v8125
        %8158 = vst [vmem:[%s340 + $0xa0] sm:$0xff] %v8126
        %8159 = vst [vmem:[%s340 + $0xa8] sm:$0xff] %v8127
        %8160 = vst [vmem:[%s340 + $0xb0] sm:$0xff] %v8128
        %8161 = vst [vmem:[%s340 + $0xb8] sm:$0xff] %v8129
        %8162 = vst [vmem:[%s340 + $0xc0] sm:$0xff] %v8130
        %8163 = vst [vmem:[%s340 + $0xc8] sm:$0xff] %v8131
        %8164 = vst [vmem:[%s340 + $0xd0] sm:$0xff] %v8132
        %8165 = vst [vmem:[%s340 + $0xd8] sm:$0xff] %v8133
        %8166 = vst [vmem:[%s340 + $0xe0] sm:$0xff] %v8134
        %8167 = vst [vmem:[%s340 + $0xe8] sm:$0xff] %v8135
        %8168 = vst [vmem:[%s340 + $0xf0] sm:$0xff] %v8136
        %8169 = vst [vmem:[%s340 + $0xf8] sm:$0xff] %v8137
        %s8170 = sand.u32 %s186, 1
        %s8171 = scalar_lea.sflag [#allocation6], %s8170
        %s8172 = sand.u32 %s186, 1
        %s8173 = smul.addr %s8172, 256
        %s8174 = scalar_lea.vmem [#allocation12], %s8173
        // Predicated region
        $region65: #{tpu_custom_call.1} parent=47 // pred_check
          %p8175 = pneg %p196
        $region66: #{tpu_custom_call.1} parent=47 // pred_check_branch
          %8177 = sbr.rel (%p8175) target = $region68
        $region67: #{tpu_custom_call.1} parent=47 // pred_region
          %s8179 = ssub.s32 4096, 4096
          %8180 = vsyncadd %s8171, %s8179
          %s8181 = smul.addr %s26, 32
          %s8182 = smul.addr %s8181, 128
          %s8183 = scalar_lea.hbm %s7, %s8182
          %s8184 = sshll.u32 %s8174, 4
          %s8185 = int_to_ptr.vmem [resolvable:$true] %s8184
          %8190 = dma.vmem_to_hbm [thread:$0]  %s8185, 4096, %s8183, %s8171, 128, 128, 8
        $region68: #{tpu_custom_call.1} parent=47 // pred_fallthru
          _
      $region48: #{tpu_custom_call.1} parent=5 // pred_fallthru
        _
      %p8191 = scmp.le.s32.totalorder 2, %s21
      // Predicated region
      $region69: #{tpu_custom_call.1} parent=5 // pred_check
        %p8192 = pneg %p8191
      $region70: #{tpu_custom_call.1} parent=5 // pred_check_branch
        %8194 = sbr.rel (%p8192) target = $region72
      $region71: #{tpu_custom_call.1} parent=5 // pred_region
        %s8195 = ssub.s32 %s21, 2
        // Predicated region
        $region73: #{tpu_custom_call.1} parent=71 // pred_check
          %p8196 = pneg %p202
        $region74: #{tpu_custom_call.1} parent=71 // pred_check_branch
          %8198 = sbr.rel (%p8196) target = $region76
        $region75: #{tpu_custom_call.1} parent=71 // pred_region
          %s8199 = sand.u32 %s187, 1
          %s8200 = scalar_lea.sflag [#allocation6], %s8199
          %s8201 = sand.u32 %s187, 1
          %s8202 = smul.addr %s8201, 256
          %s8203 = scalar_lea.vmem [#allocation12], %s8202
          %8204 = dma.done %s8200, 4096
        $region76: #{tpu_custom_call.1} parent=71 // pred_fallthru
          _
      $region72: #{tpu_custom_call.1} parent=5 // pred_fallthru
        _
    $region6: #{tpu_custom_call.1} parent=1 // loop_footer
      %s25 = sadd.s32 1, %s21
    $region7: #{tpu_custom_call.1} parent=1 // loop_footer_branch
      %20 = sbr.rel target = $region3
    $region8: #{tpu_custom_call.1} parent=1 // loop_exit
      _
    %8205 = vsyncpa [#allocation5], 1
    %s8206 = scalar_lea.sflag [#allocation5], 1
    %8207 = vsyncpa %s8206, 1
    %8208 = vsyncpa [#allocation8], 1
    %8209 = vsyncpa [#allocation11], 1
    %8210 = vsyncpa [#allocation6], 1
    %s8211 = scalar_lea.sflag [#allocation6], 1
    %8212 = vsyncpa %s8211, 1

</llo_original>
